<compile_context>
chip_gen: v6e
topology: v6e:2x2x1
jax: 0.10.0
libtpu: 0.0.40
codegen_flags: <defaults>
</compile_context>

<pallas_src>
import functools

import jax
import jax.numpy as jnp
from jax import lax
from jax.experimental import pallas as pl
from jax.experimental.pallas import tpu as pltpu


# Fused gate slot order: [i | f | o | g]  (sigmoid gates contiguous, tanh gate last).
_GATE_SLOT = (0, 1, 3, 2)  # torch gate order is i, f, g, o


# ----------------------------------------------------------------------------
# Pallas kernel
# ----------------------------------------------------------------------------
def _bilstm_kernel(hidden, seq_len, batch,
                   x_ref, w0x_ref, b0_ref, w0h_ref,
                   w1x_ref, b1_ref, w1h_ref,
                   few_ref, feb_ref, c1w_ref, c1b_ref, c2w_ref, c2b_ref,
                   out_ref, proj_ref, buf0_ref, buf1_ref):
    H, T, B = hidden, seq_len, batch
    G = 2 * H  # fused (fwd | bwd) width of one gate block: 128 lanes for H=64

    def run_fused_layer(inp_bf16, wx_ref, bx_ref, wh_ref, out_buf):
        """One bidirectional LSTM layer with fwd+bwd fused into a single recurrence.

        inp_bf16: (T*B, K) bf16 where row s*B + b holds [fwd_input(s), bwd_input(T-1-s)]
        for batch element b (the required column permutation is folded into wx_ref).
        Per-step states go to out_buf: cols 0:2H forward-ordered, cols 2H:4H time-reversed.
        """
        # (1) Hoisted: all timesteps x both directions, one MXU matmul, bias folded in once.
        proj_ref[...] = jnp.dot(inp_bf16, wx_ref[...],
                                preferred_element_type=jnp.float32) + bx_ref[...]

        # (2) Serial part: only h @ W_hh (bf16 MXU, f32 acc) inside the time loop.
        def step(s, carry):
            h, c = carry
            base = pl.multiple_of(s * B, B)
            gates = proj_ref[pl.ds(base, B), :] + jnp.dot(
                h.astype(jnp.bfloat16), wh_ref[...],
                preferred_element_type=jnp.float32)                       # (B, 8H) f32
            # Gate layout [i_f i_b | f_f f_b | o_f o_b | g_f g_b]:
            # one sigmoid over 3 gate blocks, one tanh over the last.
            sig = jax.nn.sigmoid(gates[:, 0:3 * G])
            i_g = sig[:, 0 * G:1 * G]
            f_g = sig[:, 1 * G:2 * G]
            o_g = sig[:, 2 * G:3 * G]
            g_g = jnp.tanh(gates[:, 3 * G:4 * G])
            c_new = f_g * c + i_g * g_g
            h_new = o_g * jnp.tanh(c_new)
            # Forward-ordered copy (cols 0:2H) and time-reversed copy (cols 2H:4H).
            out_buf[pl.ds(base, B), 0:G] = h_new
            rbase = pl.multiple_of((T - 1 - s) * B, B)
            out_buf[pl.ds(rbase, B), G:2 * G] = h_new
            return h_new, c_new

        h0 = jnp.zeros((B, G), jnp.float32)
        c0 = jnp.zeros((B, G), jnp.float32)
        lax.fori_loop(0, T, step, (h0, c0), unroll=True)

    # ---- LSTM layer 0 (fwd + bwd fused) ----
    run_fused_layer(x_ref[...], w0x_ref, b0_ref, w0h_ref, buf0_ref)

    # ---- LSTM layer 1 ----
    # buf0 row s = [F0[s], Bk0[T-1-s], F0[T-1-s], Bk0[s]]; the permutation mapping this onto
    # the real layer-1 inputs (out0[s] for fwd gates / out0[T-1-s] for bwd gates) is folded
    # into w1x in the wrapper.  Single full-scratch read, no concatenate.
    run_fused_layer(buf0_ref[...].astype(jnp.bfloat16), w1x_ref, b1_ref, w1h_ref, buf1_ref)
    # TODO(synk): inter-layer LSTM dropout (p=0.2) is identity in eval mode; not applied.

    # ---- head ----
    # lstm_out[:, -1, :] = [F1[T-1], Bk1[T-1]].  The last fused-step row of buf1 holds
    # [F1[T-1] | Bk1[0] | F1[0] | Bk1[T-1]]; few_ref is zero-padded so only the F1[T-1] and
    # Bk1[T-1] row blocks contribute.  All head outputs are padded to 128 lanes -> every
    # store in the epilogue is a full unmasked vst.  Dropouts are identity in eval mode.
    last = buf1_ref[(T - 1) * B:T * B, :].astype(jnp.bfloat16)             # (B, 4H)
    feats = jnp.maximum(
        jnp.dot(last, few_ref[...], preferred_element_type=jnp.float32)
        + feb_ref[...], 0.0)
    h2 = jnp.maximum(
        jnp.dot(feats.astype(jnp.bfloat16), c1w_ref[...],
                preferred_element_type=jnp.float32) + c1b_ref[...], 0.0)
    out_ref[...] = (jnp.dot(h2.astype(jnp.bfloat16), c2w_ref[...],
                            preferred_element_type=jnp.float32)
                    + c2b_ref[...]).astype(out_ref.dtype)


# ----------------------------------------------------------------------------
# Wrapper-side weight fusion (pure JAX, run ONCE per parameter set)
# ----------------------------------------------------------------------------
def _regroup_gate_cols(w, hidden, half):
    """w: (rows, 4H) in torch gate order [i|f|g|o].  Returns (rows, 8H) with each gate's
    columns placed in the fused layout [i_f i_b | f_f f_b | o_f o_b | g_f g_b];
    half=0 -> forward slots, half=1 -> backward slots; zeros elsewhere."""
    rows = w.shape[0]
    out = jnp.zeros((rows, 8 * hidden), w.dtype)
    for g, slot in enumerate(_GATE_SLOT):
        dst = slot * 2 * hidden + half * hidden
        out = out.at[:, dst:dst + hidden].set(w[:, g * hidden:(g + 1) * hidden])
    return out


def build_fused_params(p, *, hidden, num_classes, out_pad=128):
    """Fuses torch-layout LSTM/MLP weights into the kernel layout and casts all MXU
    operands to bfloat16 (biases stay f32).  Call once and reuse across forward calls."""
    H = hidden
    # --- layer 0 ---
    w0x = jnp.concatenate([_regroup_gate_cols(p["w_ih_l0"].T, H, 0),
                           _regroup_gate_cols(p["w_ih_l0_reverse"].T, H, 1)], axis=0)
    w0h = jnp.concatenate([_regroup_gate_cols(p["w_hh_l0"].T, H, 0),
                           _regroup_gate_cols(p["w_hh_l0_reverse"].T, H, 1)], axis=0)
    b0 = (_regroup_gate_cols((p["b_ih_l0"] + p["b_hh_l0"])[None, :], H, 0)
          + _regroup_gate_cols((p["b_ih_l0_reverse"] + p["b_hh_l0_reverse"])[None, :], H, 1))
    # --- layer 1 --- (fused input row s = [F0[s], Bk0[T-1-s], F0[T-1-s], Bk0[s]])
    w_ih1f_t = p["w_ih_l1"].T            # (2H, 4H)
    w_ih1b_t = p["w_ih_l1_reverse"].T    # (2H, 4H)
    w1x = jnp.concatenate([
        _regroup_gate_cols(w_ih1f_t[:H], H, 0),   # F0[s]       -> fwd gates
        _regroup_gate_cols(w_ih1b_t[H:], H, 1),   # Bk0[T-1-s]  -> bwd gates
        _regroup_gate_cols(w_ih1b_t[:H], H, 1),   # F0[T-1-s]   -> bwd gates
        _regroup_gate_cols(w_ih1f_t[H:], H, 0),   # Bk0[s]      -> fwd gates
    ], axis=0)
    w1h = jnp.concatenate([_regroup_gate_cols(p["w_hh_l1"].T, H, 0),
                           _regroup_gate_cols(p["w_hh_l1_reverse"].T, H, 1)], axis=0)
    b1 = (_regroup_gate_cols((p["b_ih_l1"] + p["b_hh_l1"])[None, :], H, 0)
          + _regroup_gate_cols((p["b_ih_l1_reverse"] + p["b_hh_l1_reverse"])[None, :], H, 1))
    # --- MLP head (all output widths padded to out_pad lanes; feature layer consumes the
    #     (B, 4H) last fused step directly, so it is row-masked to [F1[T-1], Bk1[T-1]]) ---
    few_t = p["fe_w"].T                                           # (2H, H)
    few = jnp.zeros((4 * H, out_pad), jnp.float32)
    few = few.at[0:H, :H].set(few_t[0:H])                         # F1[T-1] rows
    few = few.at[3 * H:4 * H, :H].set(few_t[H:2 * H])             # Bk1[T-1] rows
    feb = jnp.zeros((1, out_pad), jnp.float32).at[:, :H].set(p["fe_b"][None, :])
    c1w = jnp.zeros((out_pad, out_pad), jnp.float32).at[:H, :H // 2].set(p["c1_w"].T)
    c1b = jnp.zeros((1, out_pad), jnp.float32).at[:, :H // 2].set(p["c1_b"][None, :])
    c2w = jnp.zeros((out_pad, out_pad), jnp.float32).at[:H // 2, :num_classes].set(p["c2_w"].T)
    c2b = jnp.zeros((1, out_pad), jnp.float32).at[:, :num_classes].set(p["c2_b"][None, :])

    bf = jnp.bfloat16
    return dict(w0x=w0x.astype(bf), b0=b0, w0h=w0h.astype(bf),
                w1x=w1x.astype(bf), b1=b1, w1h=w1h.astype(bf),
                few=few.astype(bf), feb=feb,
                c1w=c1w.astype(bf), c1b=c1b,
                c2w=c2w.astype(bf), c2b=c2b)


@functools.partial(jax.jit, static_argnames=("hidden", "num_classes", "out_pad"))
def bilstm_stress_forward(x, fused, *, hidden, num_classes, out_pad=128):
    B, T, D = x.shape
    Bp = ((B + 7) // 8) * 8                                # pad batch to a full sublane tile
    xp = jnp.zeros((Bp, T, D), jnp.float32).at[:B].set(x)
    # Paired per-step input: row s*Bp + b = [x[b, s, :], x[b, T-1-s, :]]  -> (T*Bp, 2D) bf16.
    x_pair = jnp.concatenate([xp, xp[:, ::-1, :]], axis=-1)
    x_pair = jnp.transpose(x_pair, (1, 0, 2)).reshape(T * Bp, 2 * D).astype(jnp.bfloat16)

    args = [x_pair, fused["w0x"], fused["b0"], fused["w0h"],
            fused["w1x"], fused["b1"], fused["w1h"],
            fused["few"], fused["feb"], fused["c1w"], fused["c1b"],
            fused["c2w"], fused["c2b"]]
    kernel = functools.partial(_bilstm_kernel, hidden, T, Bp)
    out = pl.pallas_call(
        kernel,
        out_shape=jax.ShapeDtypeStruct((Bp, out_pad), jnp.float32),
        in_specs=[pl.BlockSpec(memory_space=pltpu.MemorySpace.VMEM)] * len(args),
        out_specs=pl.BlockSpec(memory_space=pltpu.MemorySpace.VMEM),
        scratch_shapes=[pltpu.VMEM((T * Bp, 8 * hidden), jnp.float32),   # hoisted projections
                        pltpu.VMEM((T * Bp, 4 * hidden), jnp.float32),   # layer-0 states
                        pltpu.VMEM((T * Bp, 4 * hidden), jnp.float32)],  # layer-1 states
    )(*args)
    return out[:B, :num_classes]


# ----------------------------------------------------------------------------
# Deterministic torch-layout parameters + pure-JAX reference (for the sanity check)
# ----------------------------------------------------------------------------
def init_params(key, input_dim, hidden, num_classes):
    scale = 1.0 / jnp.sqrt(jnp.float32(hidden))

    def u(k, shape):
        return jax.random.uniform(k, shape, jnp.float32, -scale, scale)

    keys = iter(jax.random.split(key, 32))
    p = {}
    for layer, lin in enumerate((input_dim, 2 * hidden)):
        for suffix in ("", "_reverse"):
            p[f"w_ih_l{layer}{suffix}"] = u(next(keys), (4 * hidden, lin))
            p[f"w_hh_l{layer}{suffix}"] = u(next(keys), (4 * hidden, hidden))
            p[f"b_ih_l{layer}{suffix}"] = u(next(keys), (4 * hidden,))
            p[f"b_hh_l{layer}{suffix}"] = u(next(keys), (4 * hidden,))
    p["fe_w"] = u(next(keys), (hidden, 2 * hidden))
    p["fe_b"] = u(next(keys), (hidden,))
    p["c1_w"] = u(next(keys), (hidden // 2, hidden))
    p["c1_b"] = u(next(keys), (hidden // 2,))
    p["c2_w"] = u(next(keys), (num_classes, hidden // 2))
    p["c2_b"] = u(next(keys), (num_classes,))
    return p


def reference_forward(x, p, hidden):
    """Straightforward (unfused, pure f32) JAX forward, mirroring nn.LSTM batch_first=True."""
    H = hidden
    B, T, _ = x.shape
    xs = [x[:, t, :] for t in range(T)]

    def run_dir(xs_in, w_ih, w_hh, b_ih, b_hh, reverse):
        h = jnp.zeros((B, H), jnp.float32)
        c = jnp.zeros((B, H), jnp.float32)
        outs = [None] * T
        order = range(T - 1, -1, -1) if reverse else range(T)
        for t in order:
            gates = xs_in[t] @ w_ih.T + h @ w_hh.T + b_ih + b_hh
            i_g = jax.nn.sigmoid(gates[:, 0 * H:1 * H])
            f_g = jax.nn.sigmoid(gates[:, 1 * H:2 * H])
            g_g = jnp.tanh(gates[:, 2 * H:3 * H])
            o_g = jax.nn.sigmoid(gates[:, 3 * H:4 * H])
            c = f_g * c + i_g * g_g
            h = o_g * jnp.tanh(c)
            outs[t] = h
        return outs

    f0 = run_dir(xs, p["w_ih_l0"], p["w_hh_l0"], p["b_ih_l0"], p["b_hh_l0"], False)
    b0 = run_dir(xs, p["w_ih_l0_reverse"], p["w_hh_l0_reverse"],
                 p["b_ih_l0_reverse"], p["b_hh_l0_reverse"], True)
    xs1 = [jnp.concatenate([f0[t], b0[t]], axis=-1) for t in range(T)]
    f1 = run_dir(xs1, p["w_ih_l1"], p["w_hh_l1"], p["b_ih_l1"], p["b_hh_l1"], False)
    b1 = run_dir(xs1, p["w_ih_l1_reverse"], p["w_hh_l1_reverse"],
                 p["b_ih_l1_reverse"], p["b_hh_l1_reverse"], True)
    last_hidden = jnp.concatenate([f1[T - 1], b1[T - 1]], axis=-1)
    feats = jnp.maximum(last_hidden @ p["fe_w"].T + p["fe_b"], 0.0)
    h2 = jnp.maximum(feats @ p["c1_w"].T + p["c1_b"], 0.0)
    return h2 @ p["c2_w"].T + p["c2_b"]


# ----------------------------------------------------------------------------
# Main
# ----------------------------------------------------------------------------
if __name__ == "__main__":
    INPUT_DIM = 4
    HIDDEN = 64
    NUM_CLASSES = 3
    BATCH = 2
    SEQ = 8

    key = jax.random.PRNGKey(0)
    k_x, k_p = jax.random.split(key)
    x = jax.random.normal(k_x, (BATCH, SEQ, INPUT_DIM), jnp.float32)
    params = init_params(k_p, INPUT_DIM, HIDDEN, NUM_CLASSES)

    # Weight fusion + bf16 cast happens once per parameter set (not in the per-call path).
    fused = build_fused_params(params, hidden=HIDDEN, num_classes=NUM_CLASSES)

    out = bilstm_stress_forward(x, fused, hidden=HIDDEN, num_classes=NUM_CLASSES)
    out = jax.block_until_ready(out)

    ref = jax.block_until_ready(reference_forward(x, params, HIDDEN))
    assert out.shape == (BATCH, NUM_CLASSES)
    # bf16 MXU operands vs. pure-f32 reference -> relaxed tolerance.
    assert jnp.allclose(out, ref, rtol=2e-2, atol=2e-2), (out, ref)

    print("KERNEL_OK")
</pallas_src>

<mosaic_0001>
module attributes {stable_mosaic.version = 11 : i64} {
  func.func @_bilstm_kernel(%arg0: memref<64x8xbf16, #tpu.memory_space<vmem>>, %arg1: memref<8x512xbf16, #tpu.memory_space<vmem>>, %arg2: memref<1x512xf32, #tpu.memory_space<vmem>>, %arg3: memref<128x512xbf16, #tpu.memory_space<vmem>>, %arg4: memref<256x512xbf16, #tpu.memory_space<vmem>>, %arg5: memref<1x512xf32, #tpu.memory_space<vmem>>, %arg6: memref<128x512xbf16, #tpu.memory_space<vmem>>, %arg7: memref<256x128xbf16, #tpu.memory_space<vmem>>, %arg8: memref<1x128xf32, #tpu.memory_space<vmem>>, %arg9: memref<128x128xbf16, #tpu.memory_space<vmem>>, %arg10: memref<1x128xf32, #tpu.memory_space<vmem>>, %arg11: memref<128x128xbf16, #tpu.memory_space<vmem>>, %arg12: memref<1x128xf32, #tpu.memory_space<vmem>>, %arg13: memref<8x128xf32, #tpu.memory_space<vmem>>, %arg14: memref<64x512xf32, #tpu.memory_space<vmem>>, %arg15: memref<64x256xf32, #tpu.memory_space<vmem>>, %arg16: memref<64x256xf32, #tpu.memory_space<vmem>>) attributes {dimension_semantics = [], scalar_prefetch = 0 : i64, scratch_operands = 3 : i64, tpu.core_type = #tpu.core_type<tc>} {
    %c0 = arith.constant 0 : index
    %c0_0 = arith.constant 0 : index
    %0 = vector.load %arg0[%c0, %c0_0] : memref<64x8xbf16, #tpu.memory_space<vmem>>, vector<64x8xbf16>
    %c0_1 = arith.constant 0 : index
    %c0_2 = arith.constant 0 : index
    %1 = vector.load %arg1[%c0_1, %c0_2] : memref<8x512xbf16, #tpu.memory_space<vmem>>, vector<8x512xbf16>
    %cst = arith.constant dense<0.000000e+00> : vector<64x512xf32>
    %2 = tpu.matmul %0, %1, %cst {dimension_numbers = #tpu.dot_dimension_numbers<[1], [0], [0], [1], [0, 0, 1, 1], [], []>} : vector<64x8xbf16>, vector<8x512xbf16>, vector<64x512xf32> -> vector<64x512xf32>
    %c0_3 = arith.constant 0 : index
    %c0_4 = arith.constant 0 : index
    %3 = vector.load %arg2[%c0_3, %c0_4] : memref<1x512xf32, #tpu.memory_space<vmem>>, vector<1x512xf32>
    %4 = vector.broadcast %3 : vector<1x512xf32> to vector<64x512xf32>
    %5 = arith.addf %2, %4 : vector<64x512xf32>
    %c0_5 = arith.constant 0 : index
    %c0_6 = arith.constant 0 : index
    %6 = vector.load %arg14[%c0_5, %c0_6] : memref<64x512xf32, #tpu.memory_space<vmem>>, vector<64x512xf32>
    tpu.vector_store %arg14[%c0_5, %c0_6], %5 {strides = array<i32>} : memref<64x512xf32, #tpu.memory_space<vmem>>, vector<64x512xf32>,
    %cst_7 = arith.constant 0.000000e+00 : f32
    %7 = vector.broadcast %cst_7 : f32 to vector<8x128xf32>
    %cst_8 = arith.constant 0.000000e+00 : f32
    %8 = vector.broadcast %cst_8 : f32 to vector<8x128xf32>
    %c0_i32 = arith.constant 0 : i32
    %c8_i32 = arith.constant 8 : i32
    %9 = arith.muli %c0_i32, %c8_i32 : i32
    %10 = tpu.assume_multiple %9, 8 : i32
    %11 = arith.index_cast %10 : i32 to index
    %c0_9 = arith.constant 0 : index
    %12 = vector.load %arg14[%11, %c0_9] : memref<64x512xf32, #tpu.memory_space<vmem>>, vector<8x512xf32>
    %13 = arith.truncf %7 : vector<8x128xf32> to vector<8x128xbf16>
    %c0_10 = arith.constant 0 : index
    %c0_11 = arith.constant 0 : index
    %14 = vector.load %arg3[%c0_10, %c0_11] : memref<128x512xbf16, #tpu.memory_space<vmem>>, vector<128x512xbf16>
    %cst_12 = arith.constant dense<0.000000e+00> : vector<8x512xf32>
    %15 = tpu.matmul %13, %14, %cst_12 {dimension_numbers = #tpu.dot_dimension_numbers<[1], [0], [0], [1], [0, 0, 1, 1], [], []>} : vector<8x128xbf16>, vector<128x512xbf16>, vector<8x512xf32> -> vector<8x512xf32>
    %16 = arith.addf %12, %15 : vector<8x512xf32>
    %17 = vector.extract_strided_slice %16 {offsets = [0, 0], sizes = [8, 384], strides = [1, 1]} : vector<8x512xf32> to vector<8x384xf32>
    %18 = arith.negf %17 : vector<8x384xf32>
    %19 = math.exp %18 : vector<8x384xf32>
    %cst_13 = arith.constant 1.000000e+00 : f32
    %20 = vector.broadcast %cst_13 : f32 to vector<8x384xf32>
    %21 = arith.addf %20, %19 : vector<8x384xf32>
    %22 = arith.divf %20, %21 : vector<8x384xf32>
    %23 = vector.extract_strided_slice %22 {offsets = [0, 0], sizes = [8, 128], strides = [1, 1]} : vector<8x384xf32> to vector<8x128xf32>
    %24 = vector.extract_strided_slice %22 {offsets = [0, 128], sizes = [8, 128], strides = [1, 1]} : vector<8x384xf32> to vector<8x128xf32>
    %25 = vector.extract_strided_slice %22 {offsets = [0, 256], sizes = [8, 128], strides = [1, 1]} : vector<8x384xf32> to vector<8x128xf32>
    %26 = vector.extract_strided_slice %16 {offsets = [0, 384], sizes = [8, 128], strides = [1, 1]} : vector<8x512xf32> to vector<8x128xf32>
    %27 = math.tanh %26 : vector<8x128xf32>
    %28 = arith.mulf %24, %8 : vector<8x128xf32>
    %29 = arith.mulf %23, %27 : vector<8x128xf32>
    %30 = arith.addf %28, %29 : vector<8x128xf32>
    %31 = math.tanh %30 : vector<8x128xf32>
    %32 = arith.mulf %25, %31 : vector<8x128xf32>
    %33 = arith.index_cast %10 : i32 to index
    %c0_14 = arith.constant 0 : index
    %34 = vector.load %arg15[%33, %c0_14] : memref<64x256xf32, #tpu.memory_space<vmem>>, vector<8x128xf32>
    tpu.vector_store %arg15[%33, %c0_14], %32 {strides = array<i32>} : memref<64x256xf32, #tpu.memory_space<vmem>>, vector<8x128xf32>,
    %c7_i32 = arith.constant 7 : i32
    %35 = arith.subi %c7_i32, %c0_i32 : i32
    %c8_i32_15 = arith.constant 8 : i32
    %36 = arith.muli %35, %c8_i32_15 : i32
    %37 = tpu.assume_multiple %36, 8 : i32
    %38 = arith.index_cast %37 : i32 to index
    %c128 = arith.constant 128 : index
    %39 = vector.load %arg15[%38, %c128] : memref<64x256xf32, #tpu.memory_space<vmem>>, vector<8x128xf32>
    tpu.vector_store %arg15[%38, %c128], %32 {strides = array<i32>} : memref<64x256xf32, #tpu.memory_space<vmem>>, vector<8x128xf32>,
    %c1_i32 = arith.constant 1 : i32
    %c8_i32_16 = arith.constant 8 : i32
    %40 = arith.muli %c1_i32, %c8_i32_16 : i32
    %41 = tpu.assume_multiple %40, 8 : i32
    %42 = arith.index_cast %41 : i32 to index
    %c0_17 = arith.constant 0 : index
    %43 = vector.load %arg14[%42, %c0_17] : memref<64x512xf32, #tpu.memory_space<vmem>>, vector<8x512xf32>
    %44 = arith.truncf %32 : vector<8x128xf32> to vector<8x128xbf16>
    %c0_18 = arith.constant 0 : index
    %c0_19 = arith.constant 0 : index
    %45 = vector.load %arg3[%c0_18, %c0_19] : memref<128x512xbf16, #tpu.memory_space<vmem>>, vector<128x512xbf16>
    %cst_20 = arith.constant dense<0.000000e+00> : vector<8x512xf32>
    %46 = tpu.matmul %44, %45, %cst_20 {dimension_numbers = #tpu.dot_dimension_numbers<[1], [0], [0], [1], [0, 0, 1, 1], [], []>} : vector<8x128xbf16>, vector<128x512xbf16>, vector<8x512xf32> -> vector<8x512xf32>
    %47 = arith.addf %43, %46 : vector<8x512xf32>
    %48 = vector.extract_strided_slice %47 {offsets = [0, 0], sizes = [8, 384], strides = [1, 1]} : vector<8x512xf32> to vector<8x384xf32>
    %49 = arith.negf %48 : vector<8x384xf32>
    %50 = math.exp %49 : vector<8x384xf32>
    %cst_21 = arith.constant 1.000000e+00 : f32
    %51 = vector.broadcast %cst_21 : f32 to vector<8x384xf32>
    %52 = arith.addf %51, %50 : vector<8x384xf32>
    %53 = arith.divf %51, %52 : vector<8x384xf32>
    %54 = vector.extract_strided_slice %53 {offsets = [0, 0], sizes = [8, 128], strides = [1, 1]} : vector<8x384xf32> to vector<8x128xf32>
    %55 = vector.extract_strided_slice %53 {offsets = [0, 128], sizes = [8, 128], strides = [1, 1]} : vector<8x384xf32> to vector<8x128xf32>
    %56 = vector.extract_strided_slice %53 {offsets = [0, 256], sizes = [8, 128], strides = [1, 1]} : vector<8x384xf32> to vector<8x128xf32>
    %57 = vector.extract_strided_slice %47 {offsets = [0, 384], sizes = [8, 128], strides = [1, 1]} : vector<8x512xf32> to vector<8x128xf32>
    %58 = math.tanh %57 : vector<8x128xf32>
    %59 = arith.mulf %55, %30 : vector<8x128xf32>
    %60 = arith.mulf %54, %58 : vector<8x128xf32>
    %61 = arith.addf %59, %60 : vector<8x128xf32>
    %62 = math.tanh %61 : vector<8x128xf32>
    %63 = arith.mulf %56, %62 : vector<8x128xf32>
    %64 = arith.index_cast %41 : i32 to index
    %c0_22 = arith.constant 0 : index
    %65 = vector.load %arg15[%64, %c0_22] : memref<64x256xf32, #tpu.memory_space<vmem>>, vector<8x128xf32>
    tpu.vector_store %arg15[%64, %c0_22], %63 {strides = array<i32>} : memref<64x256xf32, #tpu.memory_space<vmem>>, vector<8x128xf32>,
    %c7_i32_23 = arith.constant 7 : i32
    %66 = arith.subi %c7_i32_23, %c1_i32 : i32
    %c8_i32_24 = arith.constant 8 : i32
    %67 = arith.muli %66, %c8_i32_24 : i32
    %68 = tpu.assume_multiple %67, 8 : i32
    %69 = arith.index_cast %68 : i32 to index
    %c128_25 = arith.constant 128 : index
    %70 = vector.load %arg15[%69, %c128_25] : memref<64x256xf32, #tpu.memory_space<vmem>>, vector<8x128xf32>
    tpu.vector_store %arg15[%69, %c128_25], %63 {strides = array<i32>} : memref<64x256xf32, #tpu.memory_space<vmem>>, vector<8x128xf32>,
    %c2_i32 = arith.constant 2 : i32
    %c8_i32_26 = arith.constant 8 : i32
    %71 = arith.muli %c2_i32, %c8_i32_26 : i32
    %72 = tpu.assume_multiple %71, 8 : i32
    %73 = arith.index_cast %72 : i32 to index
    %c0_27 = arith.constant 0 : index
    %74 = vector.load %arg14[%73, %c0_27] : memref<64x512xf32, #tpu.memory_space<vmem>>, vector<8x512xf32>
    %75 = arith.truncf %63 : vector<8x128xf32> to vector<8x128xbf16>
    %c0_28 = arith.constant 0 : index
    %c0_29 = arith.constant 0 : index
    %76 = vector.load %arg3[%c0_28, %c0_29] : memref<128x512xbf16, #tpu.memory_space<vmem>>, vector<128x512xbf16>
    %cst_30 = arith.constant dense<0.000000e+00> : vector<8x512xf32>
    %77 = tpu.matmul %75, %76, %cst_30 {dimension_numbers = #tpu.dot_dimension_numbers<[1], [0], [0], [1], [0, 0, 1, 1], [], []>} : vector<8x128xbf16>, vector<128x512xbf16>, vector<8x512xf32> -> vector<8x512xf32>
    %78 = arith.addf %74, %77 : vector<8x512xf32>
    %79 = vector.extract_strided_slice %78 {offsets = [0, 0], sizes = [8, 384], strides = [1, 1]} : vector<8x512xf32> to vector<8x384xf32>
    %80 = arith.negf %79 : vector<8x384xf32>
    %81 = math.exp %80 : vector<8x384xf32>
    %cst_31 = arith.constant 1.000000e+00 : f32
    %82 = vector.broadcast %cst_31 : f32 to vector<8x384xf32>
    %83 = arith.addf %82, %81 : vector<8x384xf32>
    %84 = arith.divf %82, %83 : vector<8x384xf32>
    %85 = vector.extract_strided_slice %84 {offsets = [0, 0], sizes = [8, 128], strides = [1, 1]} : vector<8x384xf32> to vector<8x128xf32>
    %86 = vector.extract_strided_slice %84 {offsets = [0, 128], sizes = [8, 128], strides = [1, 1]} : vector<8x384xf32> to vector<8x128xf32>
    %87 = vector.extract_strided_slice %84 {offsets = [0, 256], sizes = [8, 128], strides = [1, 1]} : vector<8x384xf32> to vector<8x128xf32>
    %88 = vector.extract_strided_slice %78 {offsets = [0, 384], sizes = [8, 128], strides = [1, 1]} : vector<8x512xf32> to vector<8x128xf32>
    %89 = math.tanh %88 : vector<8x128xf32>
    %90 = arith.mulf %86, %61 : vector<8x128xf32>
    %91 = arith.mulf %85, %89 : vector<8x128xf32>
    %92 = arith.addf %90, %91 : vector<8x128xf32>
    %93 = math.tanh %92 : vector<8x128xf32>
    %94 = arith.mulf %87, %93 : vector<8x128xf32>
    %95 = arith.index_cast %72 : i32 to index
    %c0_32 = arith.constant 0 : index
    %96 = vector.load %arg15[%95, %c0_32] : memref<64x256xf32, #tpu.memory_space<vmem>>, vector<8x128xf32>
    tpu.vector_store %arg15[%95, %c0_32], %94 {strides = array<i32>} : memref<64x256xf32, #tpu.memory_space<vmem>>, vector<8x128xf32>,
    %c7_i32_33 = arith.constant 7 : i32
    %97 = arith.subi %c7_i32_33, %c2_i32 : i32
    %c8_i32_34 = arith.constant 8 : i32
    %98 = arith.muli %97, %c8_i32_34 : i32
    %99 = tpu.assume_multiple %98, 8 : i32
    %100 = arith.index_cast %99 : i32 to index
    %c128_35 = arith.constant 128 : index
    %101 = vector.load %arg15[%100, %c128_35] : memref<64x256xf32, #tpu.memory_space<vmem>>, vector<8x128xf32>
    tpu.vector_store %arg15[%100, %c128_35], %94 {strides = array<i32>} : memref<64x256xf32, #tpu.memory_space<vmem>>, vector<8x128xf32>,
    %c3_i32 = arith.constant 3 : i32
    %c8_i32_36 = arith.constant 8 : i32
    %102 = arith.muli %c3_i32, %c8_i32_36 : i32
    %103 = tpu.assume_multiple %102, 8 : i32
    %104 = arith.index_cast %103 : i32 to index
    %c0_37 = arith.constant 0 : index
    %105 = vector.load %arg14[%104, %c0_37] : memref<64x512xf32, #tpu.memory_space<vmem>>, vector<8x512xf32>
    %106 = arith.truncf %94 : vector<8x128xf32> to vector<8x128xbf16>
    %c0_38 = arith.constant 0 : index
    %c0_39 = arith.constant 0 : index
    %107 = vector.load %arg3[%c0_38, %c0_39] : memref<128x512xbf16, #tpu.memory_space<vmem>>, vector<128x512xbf16>
    %cst_40 = arith.constant dense<0.000000e+00> : vector<8x512xf32>
    %108 = tpu.matmul %106, %107, %cst_40 {dimension_numbers = #tpu.dot_dimension_numbers<[1], [0], [0], [1], [0, 0, 1, 1], [], []>} : vector<8x128xbf16>, vector<128x512xbf16>, vector<8x512xf32> -> vector<8x512xf32>
    %109 = arith.addf %105, %108 : vector<8x512xf32>
    %110 = vector.extract_strided_slice %109 {offsets = [0, 0], sizes = [8, 384], strides = [1, 1]} : vector<8x512xf32> to vector<8x384xf32>
    %111 = arith.negf %110 : vector<8x384xf32>
    %112 = math.exp %111 : vector<8x384xf32>
    %cst_41 = arith.constant 1.000000e+00 : f32
    %113 = vector.broadcast %cst_41 : f32 to vector<8x384xf32>
    %114 = arith.addf %113, %112 : vector<8x384xf32>
    %115 = arith.divf %113, %114 : vector<8x384xf32>
    %116 = vector.extract_strided_slice %115 {offsets = [0, 0], sizes = [8, 128], strides = [1, 1]} : vector<8x384xf32> to vector<8x128xf32>
    %117 = vector.extract_strided_slice %115 {offsets = [0, 128], sizes = [8, 128], strides = [1, 1]} : vector<8x384xf32> to vector<8x128xf32>
    %118 = vector.extract_strided_slice %115 {offsets = [0, 256], sizes = [8, 128], strides = [1, 1]} : vector<8x384xf32> to vector<8x128xf32>
    %119 = vector.extract_strided_slice %109 {offsets = [0, 384], sizes = [8, 128], strides = [1, 1]} : vector<8x512xf32> to vector<8x128xf32>
    %120 = math.tanh %119 : vector<8x128xf32>
    %121 = arith.mulf %117, %92 : vector<8x128xf32>
    %122 = arith.mulf %116, %120 : vector<8x128xf32>
    %123 = arith.addf %121, %122 : vector<8x128xf32>
    %124 = math.tanh %123 : vector<8x128xf32>
    %125 = arith.mulf %118, %124 : vector<8x128xf32>
    %126 = arith.index_cast %103 : i32 to index
    %c0_42 = arith.constant 0 : index
    %127 = vector.load %arg15[%126, %c0_42] : memref<64x256xf32, #tpu.memory_space<vmem>>, vector<8x128xf32>
    tpu.vector_store %arg15[%126, %c0_42], %125 {strides = array<i32>} : memref<64x256xf32, #tpu.memory_space<vmem>>, vector<8x128xf32>,
    %c7_i32_43 = arith.constant 7 : i32
    %128 = arith.subi %c7_i32_43, %c3_i32 : i32
    %c8_i32_44 = arith.constant 8 : i32
    %129 = arith.muli %128, %c8_i32_44 : i32
    %130 = tpu.assume_multiple %129, 8 : i32
    %131 = arith.index_cast %130 : i32 to index
    %c128_45 = arith.constant 128 : index
    %132 = vector.load %arg15[%131, %c128_45] : memref<64x256xf32, #tpu.memory_space<vmem>>, vector<8x128xf32>
    tpu.vector_store %arg15[%131, %c128_45], %125 {strides = array<i32>} : memref<64x256xf32, #tpu.memory_space<vmem>>, vector<8x128xf32>,
    %c4_i32 = arith.constant 4 : i32
    %c8_i32_46 = arith.constant 8 : i32
    %133 = arith.muli %c4_i32, %c8_i32_46 : i32
    %134 = tpu.assume_multiple %133, 8 : i32
    %135 = arith.index_cast %134 : i32 to index
    %c0_47 = arith.constant 0 : index
    %136 = vector.load %arg14[%135, %c0_47] : memref<64x512xf32, #tpu.memory_space<vmem>>, vector<8x512xf32>
    %137 = arith.truncf %125 : vector<8x128xf32> to vector<8x128xbf16>
    %c0_48 = arith.constant 0 : index
    %c0_49 = arith.constant 0 : index
    %138 = vector.load %arg3[%c0_48, %c0_49] : memref<128x512xbf16, #tpu.memory_space<vmem>>, vector<128x512xbf16>
    %cst_50 = arith.constant dense<0.000000e+00> : vector<8x512xf32>
    %139 = tpu.matmul %137, %138, %cst_50 {dimension_numbers = #tpu.dot_dimension_numbers<[1], [0], [0], [1], [0, 0, 1, 1], [], []>} : vector<8x128xbf16>, vector<128x512xbf16>, vector<8x512xf32> -> vector<8x512xf32>
    %140 = arith.addf %136, %139 : vector<8x512xf32>
    %141 = vector.extract_strided_slice %140 {offsets = [0, 0], sizes = [8, 384], strides = [1, 1]} : vector<8x512xf32> to vector<8x384xf32>
    %142 = arith.negf %141 : vector<8x384xf32>
    %143 = math.exp %142 : vector<8x384xf32>
    %cst_51 = arith.constant 1.000000e+00 : f32
    %144 = vector.broadcast %cst_51 : f32 to vector<8x384xf32>
    %145 = arith.addf %144, %143 : vector<8x384xf32>
    %146 = arith.divf %144, %145 : vector<8x384xf32>
    %147 = vector.extract_strided_slice %146 {offsets = [0, 0], sizes = [8, 128], strides = [1, 1]} : vector<8x384xf32> to vector<8x128xf32>
    %148 = vector.extract_strided_slice %146 {offsets = [0, 128], sizes = [8, 128], strides = [1, 1]} : vector<8x384xf32> to vector<8x128xf32>
    %149 = vector.extract_strided_slice %146 {offsets = [0, 256], sizes = [8, 128], strides = [1, 1]} : vector<8x384xf32> to vector<8x128xf32>
    %150 = vector.extract_strided_slice %140 {offsets = [0, 384], sizes = [8, 128], strides = [1, 1]} : vector<8x512xf32> to vector<8x128xf32>
    %151 = math.tanh %150 : vector<8x128xf32>
    %152 = arith.mulf %148, %123 : vector<8x128xf32>
    %153 = arith.mulf %147, %151 : vector<8x128xf32>
    %154 = arith.addf %152, %153 : vector<8x128xf32>
    %155 = math.tanh %154 : vector<8x128xf32>
    %156 = arith.mulf %149, %155 : vector<8x128xf32>
    %157 = arith.index_cast %134 : i32 to index
    %c0_52 = arith.constant 0 : index
    %158 = vector.load %arg15[%157, %c0_52] : memref<64x256xf32, #tpu.memory_space<vmem>>, vector<8x128xf32>
    tpu.vector_store %arg15[%157, %c0_52], %156 {strides = array<i32>} : memref<64x256xf32, #tpu.memory_space<vmem>>, vector<8x128xf32>,
    %c7_i32_53 = arith.constant 7 : i32
    %159 = arith.subi %c7_i32_53, %c4_i32 : i32
    %c8_i32_54 = arith.constant 8 : i32
    %160 = arith.muli %159, %c8_i32_54 : i32
    %161 = tpu.assume_multiple %160, 8 : i32
    %162 = arith.index_cast %161 : i32 to index
    %c128_55 = arith.constant 128 : index
    %163 = vector.load %arg15[%162, %c128_55] : memref<64x256xf32, #tpu.memory_space<vmem>>, vector<8x128xf32>
    tpu.vector_store %arg15[%162, %c128_55], %156 {strides = array<i32>} : memref<64x256xf32, #tpu.memory_space<vmem>>, vector<8x128xf32>,
    %c5_i32 = arith.constant 5 : i32
    %c8_i32_56 = arith.constant 8 : i32
    %164 = arith.muli %c5_i32, %c8_i32_56 : i32
    %165 = tpu.assume_multiple %164, 8 : i32
    %166 = arith.index_cast %165 : i32 to index
    %c0_57 = arith.constant 0 : index
    %167 = vector.load %arg14[%166, %c0_57] : memref<64x512xf32, #tpu.memory_space<vmem>>, vector<8x512xf32>
    %168 = arith.truncf %156 : vector<8x128xf32> to vector<8x128xbf16>
    %c0_58 = arith.constant 0 : index
    %c0_59 = arith.constant 0 : index
    %169 = vector.load %arg3[%c0_58, %c0_59] : memref<128x512xbf16, #tpu.memory_space<vmem>>, vector<128x512xbf16>
    %cst_60 = arith.constant dense<0.000000e+00> : vector<8x512xf32>
    %170 = tpu.matmul %168, %169, %cst_60 {dimension_numbers = #tpu.dot_dimension_numbers<[1], [0], [0], [1], [0, 0, 1, 1], [], []>} : vector<8x128xbf16>, vector<128x512xbf16>, vector<8x512xf32> -> vector<8x512xf32>
    %171 = arith.addf %167, %170 : vector<8x512xf32>
    %172 = vector.extract_strided_slice %171 {offsets = [0, 0], sizes = [8, 384], strides = [1, 1]} : vector<8x512xf32> to vector<8x384xf32>
    %173 = arith.negf %172 : vector<8x384xf32>
    %174 = math.exp %173 : vector<8x384xf32>
    %cst_61 = arith.constant 1.000000e+00 : f32
    %175 = vector.broadcast %cst_61 : f32 to vector<8x384xf32>
    %176 = arith.addf %175, %174 : vector<8x384xf32>
    %177 = arith.divf %175, %176 : vector<8x384xf32>
    %178 = vector.extract_strided_slice %177 {offsets = [0, 0], sizes = [8, 128], strides = [1, 1]} : vector<8x384xf32> to vector<8x128xf32>
    %179 = vector.extract_strided_slice %177 {offsets = [0, 128], sizes = [8, 128], strides = [1, 1]} : vector<8x384xf32> to vector<8x128xf32>
    %180 = vector.extract_strided_slice %177 {offsets = [0, 256], sizes = [8, 128], strides = [1, 1]} : vector<8x384xf32> to vector<8x128xf32>
    %181 = vector.extract_strided_slice %171 {offsets = [0, 384], sizes = [8, 128], strides = [1, 1]} : vector<8x512xf32> to vector<8x128xf32>
    %182 = math.tanh %181 : vector<8x128xf32>
    %183 = arith.mulf %179, %154 : vector<8x128xf32>
    %184 = arith.mulf %178, %182 : vector<8x128xf32>
    %185 = arith.addf %183, %184 : vector<8x128xf32>
    %186 = math.tanh %185 : vector<8x128xf32>
    %187 = arith.mulf %180, %186 : vector<8x128xf32>
    %188 = arith.index_cast %165 : i32 to index
    %c0_62 = arith.constant 0 : index
    %189 = vector.load %arg15[%188, %c0_62] : memref<64x256xf32, #tpu.memory_space<vmem>>, vector<8x128xf32>
    tpu.vector_store %arg15[%188, %c0_62], %187 {strides = array<i32>} : memref<64x256xf32, #tpu.memory_space<vmem>>, vector<8x128xf32>,
    %c7_i32_63 = arith.constant 7 : i32
    %190 = arith.subi %c7_i32_63, %c5_i32 : i32
    %c8_i32_64 = arith.constant 8 : i32
    %191 = arith.muli %190, %c8_i32_64 : i32
    %192 = tpu.assume_multiple %191, 8 : i32
    %193 = arith.index_cast %192 : i32 to index
    %c128_65 = arith.constant 128 : index
    %194 = vector.load %arg15[%193, %c128_65] : memref<64x256xf32, #tpu.memory_space<vmem>>, vector<8x128xf32>
    tpu.vector_store %arg15[%193, %c128_65], %187 {strides = array<i32>} : memref<64x256xf32, #tpu.memory_space<vmem>>, vector<8x128xf32>,
    %c6_i32 = arith.constant 6 : i32
    %c8_i32_66 = arith.constant 8 : i32
    %195 = arith.muli %c6_i32, %c8_i32_66 : i32
    %196 = tpu.assume_multiple %195, 8 : i32
    %197 = arith.index_cast %196 : i32 to index
    %c0_67 = arith.constant 0 : index
    %198 = vector.load %arg14[%197, %c0_67] : memref<64x512xf32, #tpu.memory_space<vmem>>, vector<8x512xf32>
    %199 = arith.truncf %187 : vector<8x128xf32> to vector<8x128xbf16>
    %c0_68 = arith.constant 0 : index
    %c0_69 = arith.constant 0 : index
    %200 = vector.load %arg3[%c0_68, %c0_69] : memref<128x512xbf16, #tpu.memory_space<vmem>>, vector<128x512xbf16>
    %cst_70 = arith.constant dense<0.000000e+00> : vector<8x512xf32>
    %201 = tpu.matmul %199, %200, %cst_70 {dimension_numbers = #tpu.dot_dimension_numbers<[1], [0], [0], [1], [0, 0, 1, 1], [], []>} : vector<8x128xbf16>, vector<128x512xbf16>, vector<8x512xf32> -> vector<8x512xf32>
    %202 = arith.addf %198, %201 : vector<8x512xf32>
    %203 = vector.extract_strided_slice %202 {offsets = [0, 0], sizes = [8, 384], strides = [1, 1]} : vector<8x512xf32> to vector<8x384xf32>
    %204 = arith.negf %203 : vector<8x384xf32>
    %205 = math.exp %204 : vector<8x384xf32>
    %cst_71 = arith.constant 1.000000e+00 : f32
    %206 = vector.broadcast %cst_71 : f32 to vector<8x384xf32>
    %207 = arith.addf %206, %205 : vector<8x384xf32>
    %208 = arith.divf %206, %207 : vector<8x384xf32>
    %209 = vector.extract_strided_slice %208 {offsets = [0, 0], sizes = [8, 128], strides = [1, 1]} : vector<8x384xf32> to vector<8x128xf32>
    %210 = vector.extract_strided_slice %208 {offsets = [0, 128], sizes = [8, 128], strides = [1, 1]} : vector<8x384xf32> to vector<8x128xf32>
    %211 = vector.extract_strided_slice %208 {offsets = [0, 256], sizes = [8, 128], strides = [1, 1]} : vector<8x384xf32> to vector<8x128xf32>
    %212 = vector.extract_strided_slice %202 {offsets = [0, 384], sizes = [8, 128], strides = [1, 1]} : vector<8x512xf32> to vector<8x128xf32>
    %213 = math.tanh %212 : vector<8x128xf32>
    %214 = arith.mulf %210, %185 : vector<8x128xf32>
    %215 = arith.mulf %209, %213 : vector<8x128xf32>
    %216 = arith.addf %214, %215 : vector<8x128xf32>
    %217 = math.tanh %216 : vector<8x128xf32>
    %218 = arith.mulf %211, %217 : vector<8x128xf32>
    %219 = arith.index_cast %196 : i32 to index
    %c0_72 = arith.constant 0 : index
    %220 = vector.load %arg15[%219, %c0_72] : memref<64x256xf32, #tpu.memory_space<vmem>>, vector<8x128xf32>
    tpu.vector_store %arg15[%219, %c0_72], %218 {strides = array<i32>} : memref<64x256xf32, #tpu.memory_space<vmem>>, vector<8x128xf32>,
    %c7_i32_73 = arith.constant 7 : i32
    %221 = arith.subi %c7_i32_73, %c6_i32 : i32
    %c8_i32_74 = arith.constant 8 : i32
    %222 = arith.muli %221, %c8_i32_74 : i32
    %223 = tpu.assume_multiple %222, 8 : i32
    %224 = arith.index_cast %223 : i32 to index
    %c128_75 = arith.constant 128 : index
    %225 = vector.load %arg15[%224, %c128_75] : memref<64x256xf32, #tpu.memory_space<vmem>>, vector<8x128xf32>
    tpu.vector_store %arg15[%224, %c128_75], %218 {strides = array<i32>} : memref<64x256xf32, #tpu.memory_space<vmem>>, vector<8x128xf32>,
    %c7_i32_76 = arith.constant 7 : i32
    %c8_i32_77 = arith.constant 8 : i32
    %226 = arith.muli %c7_i32_76, %c8_i32_77 : i32
    %227 = tpu.assume_multiple %226, 8 : i32
    %228 = arith.index_cast %227 : i32 to index
    %c0_78 = arith.constant 0 : index
    %229 = vector.load %arg14[%228, %c0_78] : memref<64x512xf32, #tpu.memory_space<vmem>>, vector<8x512xf32>
    %230 = arith.truncf %218 : vector<8x128xf32> to vector<8x128xbf16>
    %c0_79 = arith.constant 0 : index
    %c0_80 = arith.constant 0 : index
    %231 = vector.load %arg3[%c0_79, %c0_80] : memref<128x512xbf16, #tpu.memory_space<vmem>>, vector<128x512xbf16>
    %cst_81 = arith.constant dense<0.000000e+00> : vector<8x512xf32>
    %232 = tpu.matmul %230, %231, %cst_81 {dimension_numbers = #tpu.dot_dimension_numbers<[1], [0], [0], [1], [0, 0, 1, 1], [], []>} : vector<8x128xbf16>, vector<128x512xbf16>, vector<8x512xf32> -> vector<8x512xf32>
    %233 = arith.addf %229, %232 : vector<8x512xf32>
    %234 = vector.extract_strided_slice %233 {offsets = [0, 0], sizes = [8, 384], strides = [1, 1]} : vector<8x512xf32> to vector<8x384xf32>
    %235 = arith.negf %234 : vector<8x384xf32>
    %236 = math.exp %235 : vector<8x384xf32>
    %cst_82 = arith.constant 1.000000e+00 : f32
    %237 = vector.broadcast %cst_82 : f32 to vector<8x384xf32>
    %238 = arith.addf %237, %236 : vector<8x384xf32>
    %239 = arith.divf %237, %238 : vector<8x384xf32>
    %240 = vector.extract_strided_slice %239 {offsets = [0, 0], sizes = [8, 128], strides = [1, 1]} : vector<8x384xf32> to vector<8x128xf32>
    %241 = vector.extract_strided_slice %239 {offsets = [0, 128], sizes = [8, 128], strides = [1, 1]} : vector<8x384xf32> to vector<8x128xf32>
    %242 = vector.extract_strided_slice %239 {offsets = [0, 256], sizes = [8, 128], strides = [1, 1]} : vector<8x384xf32> to vector<8x128xf32>
    %243 = vector.extract_strided_slice %233 {offsets = [0, 384], sizes = [8, 128], strides = [1, 1]} : vector<8x512xf32> to vector<8x128xf32>
    %244 = math.tanh %243 : vector<8x128xf32>
    %245 = arith.mulf %241, %216 : vector<8x128xf32>
    %246 = arith.mulf %240, %244 : vector<8x128xf32>
    %247 = arith.addf %245, %246 : vector<8x128xf32>
    %248 = math.tanh %247 : vector<8x128xf32>
    %249 = arith.mulf %242, %248 : vector<8x128xf32>
    %250 = arith.index_cast %227 : i32 to index
    %c0_83 = arith.constant 0 : index
    %251 = vector.load %arg15[%250, %c0_83] : memref<64x256xf32, #tpu.memory_space<vmem>>, vector<8x128xf32>
    tpu.vector_store %arg15[%250, %c0_83], %249 {strides = array<i32>} : memref<64x256xf32, #tpu.memory_space<vmem>>, vector<8x128xf32>,
    %c7_i32_84 = arith.constant 7 : i32
    %252 = arith.subi %c7_i32_84, %c7_i32_76 : i32
    %c8_i32_85 = arith.constant 8 : i32
    %253 = arith.muli %252, %c8_i32_85 : i32
    %254 = tpu.assume_multiple %253, 8 : i32
    %255 = arith.index_cast %254 : i32 to index
    %c128_86 = arith.constant 128 : index
    %256 = vector.load %arg15[%255, %c128_86] : memref<64x256xf32, #tpu.memory_space<vmem>>, vector<8x128xf32>
    tpu.vector_store %arg15[%255, %c128_86], %249 {strides = array<i32>} : memref<64x256xf32, #tpu.memory_space<vmem>>, vector<8x128xf32>,
    %c8_i32_87 = arith.constant 8 : i32
    %c0_88 = arith.constant 0 : index
    %c0_89 = arith.constant 0 : index
    %257 = vector.load %arg15[%c0_88, %c0_89] : memref<64x256xf32, #tpu.memory_space<vmem>>, vector<64x256xf32>
    %258 = arith.truncf %257 : vector<64x256xf32> to vector<64x256xbf16>
    %c0_90 = arith.constant 0 : index
    %c0_91 = arith.constant 0 : index
    %259 = vector.load %arg4[%c0_90, %c0_91] : memref<256x512xbf16, #tpu.memory_space<vmem>>, vector<256x512xbf16>
    %cst_92 = arith.constant dense<0.000000e+00> : vector<64x512xf32>
    %260 = tpu.matmul %258, %259, %cst_92 {dimension_numbers = #tpu.dot_dimension_numbers<[1], [0], [0], [1], [0, 0, 1, 1], [], []>} : vector<64x256xbf16>, vector<256x512xbf16>, vector<64x512xf32> -> vector<64x512xf32>
    %c0_93 = arith.constant 0 : index
    %c0_94 = arith.constant 0 : index
    %261 = vector.load %arg5[%c0_93, %c0_94] : memref<1x512xf32, #tpu.memory_space<vmem>>, vector<1x512xf32>
    %262 = vector.broadcast %261 : vector<1x512xf32> to vector<64x512xf32>
    %263 = arith.addf %260, %262 : vector<64x512xf32>
    %c0_95 = arith.constant 0 : index
    %c0_96 = arith.constant 0 : index
    %264 = vector.load %arg14[%c0_95, %c0_96] : memref<64x512xf32, #tpu.memory_space<vmem>>, vector<64x512xf32>
    tpu.vector_store %arg14[%c0_95, %c0_96], %263 {strides = array<i32>} : memref<64x512xf32, #tpu.memory_space<vmem>>, vector<64x512xf32>,
    %cst_97 = arith.constant 0.000000e+00 : f32
    %265 = vector.broadcast %cst_97 : f32 to vector<8x128xf32>
    %cst_98 = arith.constant 0.000000e+00 : f32
    %266 = vector.broadcast %cst_98 : f32 to vector<8x128xf32>
    %c0_i32_99 = arith.constant 0 : i32
    %c8_i32_100 = arith.constant 8 : i32
    %267 = arith.muli %c0_i32_99, %c8_i32_100 : i32
    %268 = tpu.assume_multiple %267, 8 : i32
    %269 = arith.index_cast %268 : i32 to index
    %c0_101 = arith.constant 0 : index
    %270 = vector.load %arg14[%269, %c0_101] : memref<64x512xf32, #tpu.memory_space<vmem>>, vector<8x512xf32>
    %271 = arith.truncf %265 : vector<8x128xf32> to vector<8x128xbf16>
    %c0_102 = arith.constant 0 : index
    %c0_103 = arith.constant 0 : index
    %272 = vector.load %arg6[%c0_102, %c0_103] : memref<128x512xbf16, #tpu.memory_space<vmem>>, vector<128x512xbf16>
    %cst_104 = arith.constant dense<0.000000e+00> : vector<8x512xf32>
    %273 = tpu.matmul %271, %272, %cst_104 {dimension_numbers = #tpu.dot_dimension_numbers<[1], [0], [0], [1], [0, 0, 1, 1], [], []>} : vector<8x128xbf16>, vector<128x512xbf16>, vector<8x512xf32> -> vector<8x512xf32>
    %274 = arith.addf %270, %273 : vector<8x512xf32>
    %275 = vector.extract_strided_slice %274 {offsets = [0, 0], sizes = [8, 384], strides = [1, 1]} : vector<8x512xf32> to vector<8x384xf32>
    %276 = arith.negf %275 : vector<8x384xf32>
    %277 = math.exp %276 : vector<8x384xf32>
    %cst_105 = arith.constant 1.000000e+00 : f32
    %278 = vector.broadcast %cst_105 : f32 to vector<8x384xf32>
    %279 = arith.addf %278, %277 : vector<8x384xf32>
    %280 = arith.divf %278, %279 : vector<8x384xf32>
    %281 = vector.extract_strided_slice %280 {offsets = [0, 0], sizes = [8, 128], strides = [1, 1]} : vector<8x384xf32> to vector<8x128xf32>
    %282 = vector.extract_strided_slice %280 {offsets = [0, 128], sizes = [8, 128], strides = [1, 1]} : vector<8x384xf32> to vector<8x128xf32>
    %283 = vector.extract_strided_slice %280 {offsets = [0, 256], sizes = [8, 128], strides = [1, 1]} : vector<8x384xf32> to vector<8x128xf32>
    %284 = vector.extract_strided_slice %274 {offsets = [0, 384], sizes = [8, 128], strides = [1, 1]} : vector<8x512xf32> to vector<8x128xf32>
    %285 = math.tanh %284 : vector<8x128xf32>
    %286 = arith.mulf %282, %266 : vector<8x128xf32>
    %287 = arith.mulf %281, %285 : vector<8x128xf32>
    %288 = arith.addf %286, %287 : vector<8x128xf32>
    %289 = math.tanh %288 : vector<8x128xf32>
    %290 = arith.mulf %283, %289 : vector<8x128xf32>
    %291 = arith.index_cast %268 : i32 to index
    %c0_106 = arith.constant 0 : index
    %292 = vector.load %arg16[%291, %c0_106] : memref<64x256xf32, #tpu.memory_space<vmem>>, vector<8x128xf32>
    tpu.vector_store %arg16[%291, %c0_106], %290 {strides = array<i32>} : memref<64x256xf32, #tpu.memory_space<vmem>>, vector<8x128xf32>,
    %c7_i32_107 = arith.constant 7 : i32
    %293 = arith.subi %c7_i32_107, %c0_i32_99 : i32
    %c8_i32_108 = arith.constant 8 : i32
    %294 = arith.muli %293, %c8_i32_108 : i32
    %295 = tpu.assume_multiple %294, 8 : i32
    %296 = arith.index_cast %295 : i32 to index
    %c128_109 = arith.constant 128 : index
    %297 = vector.load %arg16[%296, %c128_109] : memref<64x256xf32, #tpu.memory_space<vmem>>, vector<8x128xf32>
    tpu.vector_store %arg16[%296, %c128_109], %290 {strides = array<i32>} : memref<64x256xf32, #tpu.memory_space<vmem>>, vector<8x128xf32>,
    %c1_i32_110 = arith.constant 1 : i32
    %c8_i32_111 = arith.constant 8 : i32
    %298 = arith.muli %c1_i32_110, %c8_i32_111 : i32
    %299 = tpu.assume_multiple %298, 8 : i32
    %300 = arith.index_cast %299 : i32 to index
    %c0_112 = arith.constant 0 : index
    %301 = vector.load %arg14[%300, %c0_112] : memref<64x512xf32, #tpu.memory_space<vmem>>, vector<8x512xf32>
    %302 = arith.truncf %290 : vector<8x128xf32> to vector<8x128xbf16>
    %c0_113 = arith.constant 0 : index
    %c0_114 = arith.constant 0 : index
    %303 = vector.load %arg6[%c0_113, %c0_114] : memref<128x512xbf16, #tpu.memory_space<vmem>>, vector<128x512xbf16>
    %cst_115 = arith.constant dense<0.000000e+00> : vector<8x512xf32>
    %304 = tpu.matmul %302, %303, %cst_115 {dimension_numbers = #tpu.dot_dimension_numbers<[1], [0], [0], [1], [0, 0, 1, 1], [], []>} : vector<8x128xbf16>, vector<128x512xbf16>, vector<8x512xf32> -> vector<8x512xf32>
    %305 = arith.addf %301, %304 : vector<8x512xf32>
    %306 = vector.extract_strided_slice %305 {offsets = [0, 0], sizes = [8, 384], strides = [1, 1]} : vector<8x512xf32> to vector<8x384xf32>
    %307 = arith.negf %306 : vector<8x384xf32>
    %308 = math.exp %307 : vector<8x384xf32>
    %cst_116 = arith.constant 1.000000e+00 : f32
    %309 = vector.broadcast %cst_116 : f32 to vector<8x384xf32>
    %310 = arith.addf %309, %308 : vector<8x384xf32>
    %311 = arith.divf %309, %310 : vector<8x384xf32>
    %312 = vector.extract_strided_slice %311 {offsets = [0, 0], sizes = [8, 128], strides = [1, 1]} : vector<8x384xf32> to vector<8x128xf32>
    %313 = vector.extract_strided_slice %311 {offsets = [0, 128], sizes = [8, 128], strides = [1, 1]} : vector<8x384xf32> to vector<8x128xf32>
    %314 = vector.extract_strided_slice %311 {offsets = [0, 256], sizes = [8, 128], strides = [1, 1]} : vector<8x384xf32> to vector<8x128xf32>
    %315 = vector.extract_strided_slice %305 {offsets = [0, 384], sizes = [8, 128], strides = [1, 1]} : vector<8x512xf32> to vector<8x128xf32>
    %316 = math.tanh %315 : vector<8x128xf32>
    %317 = arith.mulf %313, %288 : vector<8x128xf32>
    %318 = arith.mulf %312, %316 : vector<8x128xf32>
    %319 = arith.addf %317, %318 : vector<8x128xf32>
    %320 = math.tanh %319 : vector<8x128xf32>
    %321 = arith.mulf %314, %320 : vector<8x128xf32>
    %322 = arith.index_cast %299 : i32 to index
    %c0_117 = arith.constant 0 : index
    %323 = vector.load %arg16[%322, %c0_117] : memref<64x256xf32, #tpu.memory_space<vmem>>, vector<8x128xf32>
    tpu.vector_store %arg16[%322, %c0_117], %321 {strides = array<i32>} : memref<64x256xf32, #tpu.memory_space<vmem>>, vector<8x128xf32>,
    %c7_i32_118 = arith.constant 7 : i32
    %324 = arith.subi %c7_i32_118, %c1_i32_110 : i32
    %c8_i32_119 = arith.constant 8 : i32
    %325 = arith.muli %324, %c8_i32_119 : i32
    %326 = tpu.assume_multiple %325, 8 : i32
    %327 = arith.index_cast %326 : i32 to index
    %c128_120 = arith.constant 128 : index
    %328 = vector.load %arg16[%327, %c128_120] : memref<64x256xf32, #tpu.memory_space<vmem>>, vector<8x128xf32>
    tpu.vector_store %arg16[%327, %c128_120], %321 {strides = array<i32>} : memref<64x256xf32, #tpu.memory_space<vmem>>, vector<8x128xf32>,
    %c2_i32_121 = arith.constant 2 : i32
    %c8_i32_122 = arith.constant 8 : i32
    %329 = arith.muli %c2_i32_121, %c8_i32_122 : i32
    %330 = tpu.assume_multiple %329, 8 : i32
    %331 = arith.index_cast %330 : i32 to index
    %c0_123 = arith.constant 0 : index
    %332 = vector.load %arg14[%331, %c0_123] : memref<64x512xf32, #tpu.memory_space<vmem>>, vector<8x512xf32>
    %333 = arith.truncf %321 : vector<8x128xf32> to vector<8x128xbf16>
    %c0_124 = arith.constant 0 : index
    %c0_125 = arith.constant 0 : index
    %334 = vector.load %arg6[%c0_124, %c0_125] : memref<128x512xbf16, #tpu.memory_space<vmem>>, vector<128x512xbf16>
    %cst_126 = arith.constant dense<0.000000e+00> : vector<8x512xf32>
    %335 = tpu.matmul %333, %334, %cst_126 {dimension_numbers = #tpu.dot_dimension_numbers<[1], [0], [0], [1], [0, 0, 1, 1], [], []>} : vector<8x128xbf16>, vector<128x512xbf16>, vector<8x512xf32> -> vector<8x512xf32>
    %336 = arith.addf %332, %335 : vector<8x512xf32>
    %337 = vector.extract_strided_slice %336 {offsets = [0, 0], sizes = [8, 384], strides = [1, 1]} : vector<8x512xf32> to vector<8x384xf32>
    %338 = arith.negf %337 : vector<8x384xf32>
    %339 = math.exp %338 : vector<8x384xf32>
    %cst_127 = arith.constant 1.000000e+00 : f32
    %340 = vector.broadcast %cst_127 : f32 to vector<8x384xf32>
    %341 = arith.addf %340, %339 : vector<8x384xf32>
    %342 = arith.divf %340, %341 : vector<8x384xf32>
    %343 = vector.extract_strided_slice %342 {offsets = [0, 0], sizes = [8, 128], strides = [1, 1]} : vector<8x384xf32> to vector<8x128xf32>
    %344 = vector.extract_strided_slice %342 {offsets = [0, 128], sizes = [8, 128], strides = [1, 1]} : vector<8x384xf32> to vector<8x128xf32>
    %345 = vector.extract_strided_slice %342 {offsets = [0, 256], sizes = [8, 128], strides = [1, 1]} : vector<8x384xf32> to vector<8x128xf32>
    %346 = vector.extract_strided_slice %336 {offsets = [0, 384], sizes = [8, 128], strides = [1, 1]} : vector<8x512xf32> to vector<8x128xf32>
    %347 = math.tanh %346 : vector<8x128xf32>
    %348 = arith.mulf %344, %319 : vector<8x128xf32>
    %349 = arith.mulf %343, %347 : vector<8x128xf32>
    %350 = arith.addf %348, %349 : vector<8x128xf32>
    %351 = math.tanh %350 : vector<8x128xf32>
    %352 = arith.mulf %345, %351 : vector<8x128xf32>
    %353 = arith.index_cast %330 : i32 to index
    %c0_128 = arith.constant 0 : index
    %354 = vector.load %arg16[%353, %c0_128] : memref<64x256xf32, #tpu.memory_space<vmem>>, vector<8x128xf32>
    tpu.vector_store %arg16[%353, %c0_128], %352 {strides = array<i32>} : memref<64x256xf32, #tpu.memory_space<vmem>>, vector<8x128xf32>,
    %c7_i32_129 = arith.constant 7 : i32
    %355 = arith.subi %c7_i32_129, %c2_i32_121 : i32
    %c8_i32_130 = arith.constant 8 : i32
    %356 = arith.muli %355, %c8_i32_130 : i32
    %357 = tpu.assume_multiple %356, 8 : i32
    %358 = arith.index_cast %357 : i32 to index
    %c128_131 = arith.constant 128 : index
    %359 = vector.load %arg16[%358, %c128_131] : memref<64x256xf32, #tpu.memory_space<vmem>>, vector<8x128xf32>
    tpu.vector_store %arg16[%358, %c128_131], %352 {strides = array<i32>} : memref<64x256xf32, #tpu.memory_space<vmem>>, vector<8x128xf32>,
    %c3_i32_132 = arith.constant 3 : i32
    %c8_i32_133 = arith.constant 8 : i32
    %360 = arith.muli %c3_i32_132, %c8_i32_133 : i32
    %361 = tpu.assume_multiple %360, 8 : i32
    %362 = arith.index_cast %361 : i32 to index
    %c0_134 = arith.constant 0 : index
    %363 = vector.load %arg14[%362, %c0_134] : memref<64x512xf32, #tpu.memory_space<vmem>>, vector<8x512xf32>
    %364 = arith.truncf %352 : vector<8x128xf32> to vector<8x128xbf16>
    %c0_135 = arith.constant 0 : index
    %c0_136 = arith.constant 0 : index
    %365 = vector.load %arg6[%c0_135, %c0_136] : memref<128x512xbf16, #tpu.memory_space<vmem>>, vector<128x512xbf16>
    %cst_137 = arith.constant dense<0.000000e+00> : vector<8x512xf32>
    %366 = tpu.matmul %364, %365, %cst_137 {dimension_numbers = #tpu.dot_dimension_numbers<[1], [0], [0], [1], [0, 0, 1, 1], [], []>} : vector<8x128xbf16>, vector<128x512xbf16>, vector<8x512xf32> -> vector<8x512xf32>
    %367 = arith.addf %363, %366 : vector<8x512xf32>
    %368 = vector.extract_strided_slice %367 {offsets = [0, 0], sizes = [8, 384], strides = [1, 1]} : vector<8x512xf32> to vector<8x384xf32>
    %369 = arith.negf %368 : vector<8x384xf32>
    %370 = math.exp %369 : vector<8x384xf32>
    %cst_138 = arith.constant 1.000000e+00 : f32
    %371 = vector.broadcast %cst_138 : f32 to vector<8x384xf32>
    %372 = arith.addf %371, %370 : vector<8x384xf32>
    %373 = arith.divf %371, %372 : vector<8x384xf32>
    %374 = vector.extract_strided_slice %373 {offsets = [0, 0], sizes = [8, 128], strides = [1, 1]} : vector<8x384xf32> to vector<8x128xf32>
    %375 = vector.extract_strided_slice %373 {offsets = [0, 128], sizes = [8, 128], strides = [1, 1]} : vector<8x384xf32> to vector<8x128xf32>
    %376 = vector.extract_strided_slice %373 {offsets = [0, 256], sizes = [8, 128], strides = [1, 1]} : vector<8x384xf32> to vector<8x128xf32>
    %377 = vector.extract_strided_slice %367 {offsets = [0, 384], sizes = [8, 128], strides = [1, 1]} : vector<8x512xf32> to vector<8x128xf32>
    %378 = math.tanh %377 : vector<8x128xf32>
    %379 = arith.mulf %375, %350 : vector<8x128xf32>
    %380 = arith.mulf %374, %378 : vector<8x128xf32>
    %381 = arith.addf %379, %380 : vector<8x128xf32>
    %382 = math.tanh %381 : vector<8x128xf32>
    %383 = arith.mulf %376, %382 : vector<8x128xf32>
    %384 = arith.index_cast %361 : i32 to index
    %c0_139 = arith.constant 0 : index
    %385 = vector.load %arg16[%384, %c0_139] : memref<64x256xf32, #tpu.memory_space<vmem>>, vector<8x128xf32>
    tpu.vector_store %arg16[%384, %c0_139], %383 {strides = array<i32>} : memref<64x256xf32, #tpu.memory_space<vmem>>, vector<8x128xf32>,
    %c7_i32_140 = arith.constant 7 : i32
    %386 = arith.subi %c7_i32_140, %c3_i32_132 : i32
    %c8_i32_141 = arith.constant 8 : i32
    %387 = arith.muli %386, %c8_i32_141 : i32
    %388 = tpu.assume_multiple %387, 8 : i32
    %389 = arith.index_cast %388 : i32 to index
    %c128_142 = arith.constant 128 : index
    %390 = vector.load %arg16[%389, %c128_142] : memref<64x256xf32, #tpu.memory_space<vmem>>, vector<8x128xf32>
    tpu.vector_store %arg16[%389, %c128_142], %383 {strides = array<i32>} : memref<64x256xf32, #tpu.memory_space<vmem>>, vector<8x128xf32>,
    %c4_i32_143 = arith.constant 4 : i32
    %c8_i32_144 = arith.constant 8 : i32
    %391 = arith.muli %c4_i32_143, %c8_i32_144 : i32
    %392 = tpu.assume_multiple %391, 8 : i32
    %393 = arith.index_cast %392 : i32 to index
    %c0_145 = arith.constant 0 : index
    %394 = vector.load %arg14[%393, %c0_145] : memref<64x512xf32, #tpu.memory_space<vmem>>, vector<8x512xf32>
    %395 = arith.truncf %383 : vector<8x128xf32> to vector<8x128xbf16>
    %c0_146 = arith.constant 0 : index
    %c0_147 = arith.constant 0 : index
    %396 = vector.load %arg6[%c0_146, %c0_147] : memref<128x512xbf16, #tpu.memory_space<vmem>>, vector<128x512xbf16>
    %cst_148 = arith.constant dense<0.000000e+00> : vector<8x512xf32>
    %397 = tpu.matmul %395, %396, %cst_148 {dimension_numbers = #tpu.dot_dimension_numbers<[1], [0], [0], [1], [0, 0, 1, 1], [], []>} : vector<8x128xbf16>, vector<128x512xbf16>, vector<8x512xf32> -> vector<8x512xf32>
    %398 = arith.addf %394, %397 : vector<8x512xf32>
    %399 = vector.extract_strided_slice %398 {offsets = [0, 0], sizes = [8, 384], strides = [1, 1]} : vector<8x512xf32> to vector<8x384xf32>
    %400 = arith.negf %399 : vector<8x384xf32>
    %401 = math.exp %400 : vector<8x384xf32>
    %cst_149 = arith.constant 1.000000e+00 : f32
    %402 = vector.broadcast %cst_149 : f32 to vector<8x384xf32>
    %403 = arith.addf %402, %401 : vector<8x384xf32>
    %404 = arith.divf %402, %403 : vector<8x384xf32>
    %405 = vector.extract_strided_slice %404 {offsets = [0, 0], sizes = [8, 128], strides = [1, 1]} : vector<8x384xf32> to vector<8x128xf32>
    %406 = vector.extract_strided_slice %404 {offsets = [0, 128], sizes = [8, 128], strides = [1, 1]} : vector<8x384xf32> to vector<8x128xf32>
    %407 = vector.extract_strided_slice %404 {offsets = [0, 256], sizes = [8, 128], strides = [1, 1]} : vector<8x384xf32> to vector<8x128xf32>
    %408 = vector.extract_strided_slice %398 {offsets = [0, 384], sizes = [8, 128], strides = [1, 1]} : vector<8x512xf32> to vector<8x128xf32>
    %409 = math.tanh %408 : vector<8x128xf32>
    %410 = arith.mulf %406, %381 : vector<8x128xf32>
    %411 = arith.mulf %405, %409 : vector<8x128xf32>
    %412 = arith.addf %410, %411 : vector<8x128xf32>
    %413 = math.tanh %412 : vector<8x128xf32>
    %414 = arith.mulf %407, %413 : vector<8x128xf32>
    %415 = arith.index_cast %392 : i32 to index
    %c0_150 = arith.constant 0 : index
    %416 = vector.load %arg16[%415, %c0_150] : memref<64x256xf32, #tpu.memory_space<vmem>>, vector<8x128xf32>
    tpu.vector_store %arg16[%415, %c0_150], %414 {strides = array<i32>} : memref<64x256xf32, #tpu.memory_space<vmem>>, vector<8x128xf32>,
    %c7_i32_151 = arith.constant 7 : i32
    %417 = arith.subi %c7_i32_151, %c4_i32_143 : i32
    %c8_i32_152 = arith.constant 8 : i32
    %418 = arith.muli %417, %c8_i32_152 : i32
    %419 = tpu.assume_multiple %418, 8 : i32
    %420 = arith.index_cast %419 : i32 to index
    %c128_153 = arith.constant 128 : index
    %421 = vector.load %arg16[%420, %c128_153] : memref<64x256xf32, #tpu.memory_space<vmem>>, vector<8x128xf32>
    tpu.vector_store %arg16[%420, %c128_153], %414 {strides = array<i32>} : memref<64x256xf32, #tpu.memory_space<vmem>>, vector<8x128xf32>,
    %c5_i32_154 = arith.constant 5 : i32
    %c8_i32_155 = arith.constant 8 : i32
    %422 = arith.muli %c5_i32_154, %c8_i32_155 : i32
    %423 = tpu.assume_multiple %422, 8 : i32
    %424 = arith.index_cast %423 : i32 to index
    %c0_156 = arith.constant 0 : index
    %425 = vector.load %arg14[%424, %c0_156] : memref<64x512xf32, #tpu.memory_space<vmem>>, vector<8x512xf32>
    %426 = arith.truncf %414 : vector<8x128xf32> to vector<8x128xbf16>
    %c0_157 = arith.constant 0 : index
    %c0_158 = arith.constant 0 : index
    %427 = vector.load %arg6[%c0_157, %c0_158] : memref<128x512xbf16, #tpu.memory_space<vmem>>, vector<128x512xbf16>
    %cst_159 = arith.constant dense<0.000000e+00> : vector<8x512xf32>
    %428 = tpu.matmul %426, %427, %cst_159 {dimension_numbers = #tpu.dot_dimension_numbers<[1], [0], [0], [1], [0, 0, 1, 1], [], []>} : vector<8x128xbf16>, vector<128x512xbf16>, vector<8x512xf32> -> vector<8x512xf32>
    %429 = arith.addf %425, %428 : vector<8x512xf32>
    %430 = vector.extract_strided_slice %429 {offsets = [0, 0], sizes = [8, 384], strides = [1, 1]} : vector<8x512xf32> to vector<8x384xf32>
    %431 = arith.negf %430 : vector<8x384xf32>
    %432 = math.exp %431 : vector<8x384xf32>
    %cst_160 = arith.constant 1.000000e+00 : f32
    %433 = vector.broadcast %cst_160 : f32 to vector<8x384xf32>
    %434 = arith.addf %433, %432 : vector<8x384xf32>
    %435 = arith.divf %433, %434 : vector<8x384xf32>
    %436 = vector.extract_strided_slice %435 {offsets = [0, 0], sizes = [8, 128], strides = [1, 1]} : vector<8x384xf32> to vector<8x128xf32>
    %437 = vector.extract_strided_slice %435 {offsets = [0, 128], sizes = [8, 128], strides = [1, 1]} : vector<8x384xf32> to vector<8x128xf32>
    %438 = vector.extract_strided_slice %435 {offsets = [0, 256], sizes = [8, 128], strides = [1, 1]} : vector<8x384xf32> to vector<8x128xf32>
    %439 = vector.extract_strided_slice %429 {offsets = [0, 384], sizes = [8, 128], strides = [1, 1]} : vector<8x512xf32> to vector<8x128xf32>
    %440 = math.tanh %439 : vector<8x128xf32>
    %441 = arith.mulf %437, %412 : vector<8x128xf32>
    %442 = arith.mulf %436, %440 : vector<8x128xf32>
    %443 = arith.addf %441, %442 : vector<8x128xf32>
    %444 = math.tanh %443 : vector<8x128xf32>
    %445 = arith.mulf %438, %444 : vector<8x128xf32>
    %446 = arith.index_cast %423 : i32 to index
    %c0_161 = arith.constant 0 : index
    %447 = vector.load %arg16[%446, %c0_161] : memref<64x256xf32, #tpu.memory_space<vmem>>, vector<8x128xf32>
    tpu.vector_store %arg16[%446, %c0_161], %445 {strides = array<i32>} : memref<64x256xf32, #tpu.memory_space<vmem>>, vector<8x128xf32>,
    %c7_i32_162 = arith.constant 7 : i32
    %448 = arith.subi %c7_i32_162, %c5_i32_154 : i32
    %c8_i32_163 = arith.constant 8 : i32
    %449 = arith.muli %448, %c8_i32_163 : i32
    %450 = tpu.assume_multiple %449, 8 : i32
    %451 = arith.index_cast %450 : i32 to index
    %c128_164 = arith.constant 128 : index
    %452 = vector.load %arg16[%451, %c128_164] : memref<64x256xf32, #tpu.memory_space<vmem>>, vector<8x128xf32>
    tpu.vector_store %arg16[%451, %c128_164], %445 {strides = array<i32>} : memref<64x256xf32, #tpu.memory_space<vmem>>, vector<8x128xf32>,
    %c6_i32_165 = arith.constant 6 : i32
    %c8_i32_166 = arith.constant 8 : i32
    %453 = arith.muli %c6_i32_165, %c8_i32_166 : i32
    %454 = tpu.assume_multiple %453, 8 : i32
    %455 = arith.index_cast %454 : i32 to index
    %c0_167 = arith.constant 0 : index
    %456 = vector.load %arg14[%455, %c0_167] : memref<64x512xf32, #tpu.memory_space<vmem>>, vector<8x512xf32>
    %457 = arith.truncf %445 : vector<8x128xf32> to vector<8x128xbf16>
    %c0_168 = arith.constant 0 : index
    %c0_169 = arith.constant 0 : index
    %458 = vector.load %arg6[%c0_168, %c0_169] : memref<128x512xbf16, #tpu.memory_space<vmem>>, vector<128x512xbf16>
    %cst_170 = arith.constant dense<0.000000e+00> : vector<8x512xf32>
    %459 = tpu.matmul %457, %458, %cst_170 {dimension_numbers = #tpu.dot_dimension_numbers<[1], [0], [0], [1], [0, 0, 1, 1], [], []>} : vector<8x128xbf16>, vector<128x512xbf16>, vector<8x512xf32> -> vector<8x512xf32>
    %460 = arith.addf %456, %459 : vector<8x512xf32>
    %461 = vector.extract_strided_slice %460 {offsets = [0, 0], sizes = [8, 384], strides = [1, 1]} : vector<8x512xf32> to vector<8x384xf32>
    %462 = arith.negf %461 : vector<8x384xf32>
    %463 = math.exp %462 : vector<8x384xf32>
    %cst_171 = arith.constant 1.000000e+00 : f32
    %464 = vector.broadcast %cst_171 : f32 to vector<8x384xf32>
    %465 = arith.addf %464, %463 : vector<8x384xf32>
    %466 = arith.divf %464, %465 : vector<8x384xf32>
    %467 = vector.extract_strided_slice %466 {offsets = [0, 0], sizes = [8, 128], strides = [1, 1]} : vector<8x384xf32> to vector<8x128xf32>
    %468 = vector.extract_strided_slice %466 {offsets = [0, 128], sizes = [8, 128], strides = [1, 1]} : vector<8x384xf32> to vector<8x128xf32>
    %469 = vector.extract_strided_slice %466 {offsets = [0, 256], sizes = [8, 128], strides = [1, 1]} : vector<8x384xf32> to vector<8x128xf32>
    %470 = vector.extract_strided_slice %460 {offsets = [0, 384], sizes = [8, 128], strides = [1, 1]} : vector<8x512xf32> to vector<8x128xf32>
    %471 = math.tanh %470 : vector<8x128xf32>
    %472 = arith.mulf %468, %443 : vector<8x128xf32>
    %473 = arith.mulf %467, %471 : vector<8x128xf32>
    %474 = arith.addf %472, %473 : vector<8x128xf32>
    %475 = math.tanh %474 : vector<8x128xf32>
    %476 = arith.mulf %469, %475 : vector<8x128xf32>
    %477 = arith.index_cast %454 : i32 to index
    %c0_172 = arith.constant 0 : index
    %478 = vector.load %arg16[%477, %c0_172] : memref<64x256xf32, #tpu.memory_space<vmem>>, vector<8x128xf32>
    tpu.vector_store %arg16[%477, %c0_172], %476 {strides = array<i32>} : memref<64x256xf32, #tpu.memory_space<vmem>>, vector<8x128xf32>,
    %c7_i32_173 = arith.constant 7 : i32
    %479 = arith.subi %c7_i32_173, %c6_i32_165 : i32
    %c8_i32_174 = arith.constant 8 : i32
    %480 = arith.muli %479, %c8_i32_174 : i32
    %481 = tpu.assume_multiple %480, 8 : i32
    %482 = arith.index_cast %481 : i32 to index
    %c128_175 = arith.constant 128 : index
    %483 = vector.load %arg16[%482, %c128_175] : memref<64x256xf32, #tpu.memory_space<vmem>>, vector<8x128xf32>
    tpu.vector_store %arg16[%482, %c128_175], %476 {strides = array<i32>} : memref<64x256xf32, #tpu.memory_space<vmem>>, vector<8x128xf32>,
    %c7_i32_176 = arith.constant 7 : i32
    %c8_i32_177 = arith.constant 8 : i32
    %484 = arith.muli %c7_i32_176, %c8_i32_177 : i32
    %485 = tpu.assume_multiple %484, 8 : i32
    %486 = arith.index_cast %485 : i32 to index
    %c0_178 = arith.constant 0 : index
    %487 = vector.load %arg14[%486, %c0_178] : memref<64x512xf32, #tpu.memory_space<vmem>>, vector<8x512xf32>
    %488 = arith.truncf %476 : vector<8x128xf32> to vector<8x128xbf16>
    %c0_179 = arith.constant 0 : index
    %c0_180 = arith.constant 0 : index
    %489 = vector.load %arg6[%c0_179, %c0_180] : memref<128x512xbf16, #tpu.memory_space<vmem>>, vector<128x512xbf16>
    %cst_181 = arith.constant dense<0.000000e+00> : vector<8x512xf32>
    %490 = tpu.matmul %488, %489, %cst_181 {dimension_numbers = #tpu.dot_dimension_numbers<[1], [0], [0], [1], [0, 0, 1, 1], [], []>} : vector<8x128xbf16>, vector<128x512xbf16>, vector<8x512xf32> -> vector<8x512xf32>
    %491 = arith.addf %487, %490 : vector<8x512xf32>
    %492 = vector.extract_strided_slice %491 {offsets = [0, 0], sizes = [8, 384], strides = [1, 1]} : vector<8x512xf32> to vector<8x384xf32>
    %493 = arith.negf %492 : vector<8x384xf32>
    %494 = math.exp %493 : vector<8x384xf32>
    %cst_182 = arith.constant 1.000000e+00 : f32
    %495 = vector.broadcast %cst_182 : f32 to vector<8x384xf32>
    %496 = arith.addf %495, %494 : vector<8x384xf32>
    %497 = arith.divf %495, %496 : vector<8x384xf32>
    %498 = vector.extract_strided_slice %497 {offsets = [0, 0], sizes = [8, 128], strides = [1, 1]} : vector<8x384xf32> to vector<8x128xf32>
    %499 = vector.extract_strided_slice %497 {offsets = [0, 128], sizes = [8, 128], strides = [1, 1]} : vector<8x384xf32> to vector<8x128xf32>
    %500 = vector.extract_strided_slice %497 {offsets = [0, 256], sizes = [8, 128], strides = [1, 1]} : vector<8x384xf32> to vector<8x128xf32>
    %501 = vector.extract_strided_slice %491 {offsets = [0, 384], sizes = [8, 128], strides = [1, 1]} : vector<8x512xf32> to vector<8x128xf32>
    %502 = math.tanh %501 : vector<8x128xf32>
    %503 = arith.mulf %499, %474 : vector<8x128xf32>
    %504 = arith.mulf %498, %502 : vector<8x128xf32>
    %505 = arith.addf %503, %504 : vector<8x128xf32>
    %506 = math.tanh %505 : vector<8x128xf32>
    %507 = arith.mulf %500, %506 : vector<8x128xf32>
    %508 = arith.index_cast %485 : i32 to index
    %c0_183 = arith.constant 0 : index
    %509 = vector.load %arg16[%508, %c0_183] : memref<64x256xf32, #tpu.memory_space<vmem>>, vector<8x128xf32>
    tpu.vector_store %arg16[%508, %c0_183], %507 {strides = array<i32>} : memref<64x256xf32, #tpu.memory_space<vmem>>, vector<8x128xf32>,
    %c7_i32_184 = arith.constant 7 : i32
    %510 = arith.subi %c7_i32_184, %c7_i32_176 : i32
    %c8_i32_185 = arith.constant 8 : i32
    %511 = arith.muli %510, %c8_i32_185 : i32
    %512 = tpu.assume_multiple %511, 8 : i32
    %513 = arith.index_cast %512 : i32 to index
    %c128_186 = arith.constant 128 : index
    %514 = vector.load %arg16[%513, %c128_186] : memref<64x256xf32, #tpu.memory_space<vmem>>, vector<8x128xf32>
    tpu.vector_store %arg16[%513, %c128_186], %507 {strides = array<i32>} : memref<64x256xf32, #tpu.memory_space<vmem>>, vector<8x128xf32>,
    %c8_i32_187 = arith.constant 8 : i32
    %c56 = arith.constant 56 : index
    %c0_188 = arith.constant 0 : index
    %515 = vector.load %arg16[%c56, %c0_188] : memref<64x256xf32, #tpu.memory_space<vmem>>, vector<8x256xf32>
    %516 = arith.truncf %515 : vector<8x256xf32> to vector<8x256xbf16>
    %c0_189 = arith.constant 0 : index
    %c0_190 = arith.constant 0 : index
    %517 = vector.load %arg7[%c0_189, %c0_190] : memref<256x128xbf16, #tpu.memory_space<vmem>>, vector<256x128xbf16>
    %cst_191 = arith.constant dense<0.000000e+00> : vector<8x128xf32>
    %518 = tpu.matmul %516, %517, %cst_191 {dimension_numbers = #tpu.dot_dimension_numbers<[1], [0], [0], [1], [0, 0, 1, 1], [], []>} : vector<8x256xbf16>, vector<256x128xbf16>, vector<8x128xf32> -> vector<8x128xf32>
    %c0_192 = arith.constant 0 : index
    %c0_193 = arith.constant 0 : index
    %519 = vector.load %arg8[%c0_192, %c0_193] : memref<1x128xf32, #tpu.memory_space<vmem>>, vector<1x128xf32>
    %520 = vector.broadcast %519 : vector<1x128xf32> to vector<8x128xf32>
    %521 = arith.addf %518, %520 : vector<8x128xf32>
    %cst_194 = arith.constant 0.000000e+00 : f32
    %522 = vector.broadcast %cst_194 : f32 to vector<8x128xf32>
    %523 = arith.maximumf %521, %522 : vector<8x128xf32>
    %524 = arith.truncf %523 : vector<8x128xf32> to vector<8x128xbf16>
    %c0_195 = arith.constant 0 : index
    %c0_196 = arith.constant 0 : index
    %525 = vector.load %arg9[%c0_195, %c0_196] : memref<128x128xbf16, #tpu.memory_space<vmem>>, vector<128x128xbf16>
    %cst_197 = arith.constant dense<0.000000e+00> : vector<8x128xf32>
    %526 = tpu.matmul %524, %525, %cst_197 {dimension_numbers = #tpu.dot_dimension_numbers<[1], [0], [0], [1], [0, 0, 1, 1], [], []>} : vector<8x128xbf16>, vector<128x128xbf16>, vector<8x128xf32> -> vector<8x128xf32>
    %c0_198 = arith.constant 0 : index
    %c0_199 = arith.constant 0 : index
    %527 = vector.load %arg10[%c0_198, %c0_199] : memref<1x128xf32, #tpu.memory_space<vmem>>, vector<1x128xf32>
    %528 = vector.broadcast %527 : vector<1x128xf32> to vector<8x128xf32>
    %529 = arith.addf %526, %528 : vector<8x128xf32>
    %cst_200 = arith.constant 0.000000e+00 : f32
    %530 = vector.broadcast %cst_200 : f32 to vector<8x128xf32>
    %531 = arith.maximumf %529, %530 : vector<8x128xf32>
    %532 = arith.truncf %531 : vector<8x128xf32> to vector<8x128xbf16>
    %c0_201 = arith.constant 0 : index
    %c0_202 = arith.constant 0 : index
    %533 = vector.load %arg11[%c0_201, %c0_202] : memref<128x128xbf16, #tpu.memory_space<vmem>>, vector<128x128xbf16>
    %cst_203 = arith.constant dense<0.000000e+00> : vector<8x128xf32>
    %534 = tpu.matmul %532, %533, %cst_203 {dimension_numbers = #tpu.dot_dimension_numbers<[1], [0], [0], [1], [0, 0, 1, 1], [], []>} : vector<8x128xbf16>, vector<128x128xbf16>, vector<8x128xf32> -> vector<8x128xf32>
    %c0_204 = arith.constant 0 : index
    %c0_205 = arith.constant 0 : index
    %535 = vector.load %arg12[%c0_204, %c0_205] : memref<1x128xf32, #tpu.memory_space<vmem>>, vector<1x128xf32>
    %536 = vector.broadcast %535 : vector<1x128xf32> to vector<8x128xf32>
    %537 = arith.addf %534, %536 : vector<8x128xf32>
    %c0_206 = arith.constant 0 : index
    %c0_207 = arith.constant 0 : index
    %538 = vector.load %arg13[%c0_206, %c0_207] : memref<8x128xf32, #tpu.memory_space<vmem>>, vector<8x128xf32>
    tpu.vector_store %arg13[%c0_206, %c0_207], %537 {strides = array<i32>} : memref<8x128xf32, #tpu.memory_space<vmem>>, vector<8x128xf32>,
    return
  }
}

</mosaic_0001>

<llo_original>
// kernel: bilstm_stress_forward.1
$region0: #{bilstm_stress_forward.1}
  #allocation0 [shape = 'u32[]', space=smem, size = 0x4, offset = 0x4, fixed_abs, tag = 'smem constant byte address 0x4 - core index']
  #allocation1 [shape = 'u32[144,128]{1,0:T(1,128)}', space=vmem, size = 0x12000, scoped, tag = 'internal scratch']
  #allocation2 [shape = 'f32[64,512]{1,0:T(8,128)}', space=vmem, size = 0x20000, scoped, tag = 'scratch operand']
  #allocation3 [shape = 'f32[64,256]{1,0:T(8,128)}', space=vmem, size = 0x10000, scoped, tag = 'scratch operand']
  #allocation4 [shape = 'f32[64,256]{1,0:T(8,128)}', space=vmem, size = 0x10000, scoped, tag = 'scratch operand']
  %s0 = inlined_call_operand.vmem [shape: bf16[64,8], index: 0, kind: input, shape index: {}]
  %s1 = inlined_call_operand.vmem [shape: bf16[8,512], index: 1, kind: input, shape index: {}]
  %s2 = inlined_call_operand.vmem [shape: f32[1,512], index: 2, kind: input, shape index: {}]
  %s3 = inlined_call_operand.hbm [shape: bf16[128,512], index: 3, kind: input, shape index: {}]
  %s4 = inlined_call_operand.hbm [shape: bf16[256,512], index: 4, kind: input, shape index: {}]
  %s5 = inlined_call_operand.vmem [shape: f32[1,512], index: 5, kind: input, shape index: {}]
  %s6 = inlined_call_operand.hbm [shape: bf16[128,512], index: 6, kind: input, shape index: {}]
  %s7 = inlined_call_operand.vmem [shape: bf16[256,128], index: 7, kind: input, shape index: {}]
  %s8 = inlined_call_operand.vmem [shape: f32[1,128], index: 8, kind: input, shape index: {}]
  %s9 = inlined_call_operand.vmem [shape: bf16[128,128], index: 9, kind: input, shape index: {}]
  %s10 = inlined_call_operand.vmem [shape: f32[1,128], index: 10, kind: input, shape index: {}]
  %s11 = inlined_call_operand.hbm [shape: bf16[128,128], index: 11, kind: input, shape index: {}]
  %s12 = inlined_call_operand.vmem [shape: f32[1,128], index: 12, kind: input, shape index: {}]
  %s13 = inlined_call_operand.vmem [shape: f32[8,128], index: 13, kind: output, shape index: {}]
  %s14 = sld [smem:[#allocation0]]
  $region78: #{bilstm_stress_forward.1} parent=0
    _
  %s16 = ssub.s32 1, %s14
  %s17 = scalar_select 0, %s16, %s14
  $region1: #{bilstm_stress_forward.1} parent=0
    #allocation5 [shape = 'u8[131072]{0}', space=vmem, size = 0x20000, scoped, tag = 'input window, operand 3, single buffered']
    #allocation6 [shape = 's32[1]{0}', space=sflag, size = 0x4, scoped, tag = 'scoped memory for bilstm_stress_forward.1']
    #allocation7 [shape = 'u8[262144]{0}', space=vmem, size = 0x40000, scoped, tag = 'input window, operand 4, single buffered']
    #allocation8 [shape = 's32[1]{0}', space=sflag, size = 0x4, scoped, tag = 'scoped memory for bilstm_stress_forward.1']
    #allocation9 [shape = 'u8[131072]{0}', space=vmem, size = 0x20000, scoped, tag = 'input window, operand 6, single buffered']
    #allocation10 [shape = 'u8[32768]{0}', space=vmem, size = 0x8000, scoped, tag = 'input window, operand 11, single buffered']
    #allocation11 [shape = 's32[1]{0}', space=sflag, size = 0x4, scoped, tag = 'scoped memory for bilstm_stress_forward.1']
    %18 = vsyncpa [#allocation6], 0
    %19 = vsyncpa [#allocation8], 0
    %20 = vsyncpa [#allocation11], 0
    // Predicated region
    $region2: #{bilstm_stress_forward.1} parent=1 // pred_check
      _
    $region3: #{bilstm_stress_forward.1} parent=1 // pred_check_branch
      %22 = sbr.rel (0) target = $region5
    $region4: #{bilstm_stress_forward.1} parent=1 // pred_region
      _
    $region5: #{bilstm_stress_forward.1} parent=1 // pred_fallthru
      _
    // Predicated region
    $region6: #{bilstm_stress_forward.1} parent=1 // pred_check
      _
    $region7: #{bilstm_stress_forward.1} parent=1 // pred_check_branch
      %24 = sbr.rel (0) target = $region9
    $region8: #{bilstm_stress_forward.1} parent=1 // pred_region
      _
    $region9: #{bilstm_stress_forward.1} parent=1 // pred_fallthru
      _
    // Predicated region
    $region10: #{bilstm_stress_forward.1} parent=1 // pred_check
      _
    $region11: #{bilstm_stress_forward.1} parent=1 // pred_check_branch
      %26 = sbr.rel (0) target = $region13
    $region12: #{bilstm_stress_forward.1} parent=1 // pred_region
      _
    $region13: #{bilstm_stress_forward.1} parent=1 // pred_fallthru
      _
    // Predicated region
    $region14: #{bilstm_stress_forward.1} parent=1 // pred_check
      _
    $region15: #{bilstm_stress_forward.1} parent=1 // pred_check_branch
      %28 = sbr.rel (0) target = $region17
    $region16: #{bilstm_stress_forward.1} parent=1 // pred_region
      %s30 = ssub.s32 4096, 4096
      %31 = vsyncadd [#allocation6], %s30
      %s32 = sshll.u32 [#allocation5], 4
      %s33 = int_to_ptr.vmem [resolvable:$true] %s32
      %38 = dma.hbm_to_vmem [thread:$0]  %s3, 4096, %s33, [#allocation6], 256, 256, 16
    $region17: #{bilstm_stress_forward.1} parent=1 // pred_fallthru
      _
    // Predicated region
    $region18: #{bilstm_stress_forward.1} parent=1 // pred_check
      _
    $region19: #{bilstm_stress_forward.1} parent=1 // pred_check_branch
      %40 = sbr.rel (0) target = $region21
    $region20: #{bilstm_stress_forward.1} parent=1 // pred_region
      %s42 = ssub.s32 8192, 8192
      %43 = vsyncadd [#allocation8], %s42
      %s44 = sshll.u32 [#allocation7], 4
      %s45 = int_to_ptr.vmem [resolvable:$true] %s44
      %50 = dma.hbm_to_vmem [thread:$0]  %s4, 8192, %s45, [#allocation8], 256, 256, 16
    $region21: #{bilstm_stress_forward.1} parent=1 // pred_fallthru
      _
    // Predicated region
    $region22: #{bilstm_stress_forward.1} parent=1 // pred_check
      _
    $region23: #{bilstm_stress_forward.1} parent=1 // pred_check_branch
      %52 = sbr.rel (0) target = $region25
    $region24: #{bilstm_stress_forward.1} parent=1 // pred_region
      _
    $region25: #{bilstm_stress_forward.1} parent=1 // pred_fallthru
      _
    // Predicated region
    $region26: #{bilstm_stress_forward.1} parent=1 // pred_check
      _
    $region27: #{bilstm_stress_forward.1} parent=1 // pred_check_branch
      %54 = sbr.rel (0) target = $region29
    $region28: #{bilstm_stress_forward.1} parent=1 // pred_region
      %s56 = ssub.s32 4096, 4096
      %57 = vsyncadd [#allocation8], %s56
      %s58 = sshll.u32 [#allocation9], 4
      %s59 = int_to_ptr.vmem [resolvable:$true] %s58
      %64 = dma.hbm_to_vmem [thread:$0]  %s6, 4096, %s59, [#allocation8], 256, 256, 16
    $region29: #{bilstm_stress_forward.1} parent=1 // pred_fallthru
      _
    // Predicated region
    $region30: #{bilstm_stress_forward.1} parent=1 // pred_check
      _
    $region31: #{bilstm_stress_forward.1} parent=1 // pred_check_branch
      %66 = sbr.rel (0) target = $region33
    $region32: #{bilstm_stress_forward.1} parent=1 // pred_region
      _
    $region33: #{bilstm_stress_forward.1} parent=1 // pred_fallthru
      _
    // Predicated region
    $region34: #{bilstm_stress_forward.1} parent=1 // pred_check
      _
    $region35: #{bilstm_stress_forward.1} parent=1 // pred_check_branch
      %68 = sbr.rel (0) target = $region37
    $region36: #{bilstm_stress_forward.1} parent=1 // pred_region
      _
    $region37: #{bilstm_stress_forward.1} parent=1 // pred_fallthru
      _
    // Predicated region
    $region38: #{bilstm_stress_forward.1} parent=1 // pred_check
      _
    $region39: #{bilstm_stress_forward.1} parent=1 // pred_check_branch
      %70 = sbr.rel (0) target = $region41
    $region40: #{bilstm_stress_forward.1} parent=1 // pred_region
      _
    $region41: #{bilstm_stress_forward.1} parent=1 // pred_fallthru
      _
    // Predicated region
    $region42: #{bilstm_stress_forward.1} parent=1 // pred_check
      _
    $region43: #{bilstm_stress_forward.1} parent=1 // pred_check_branch
      %72 = sbr.rel (0) target = $region45
    $region44: #{bilstm_stress_forward.1} parent=1 // pred_region
      _
    $region45: #{bilstm_stress_forward.1} parent=1 // pred_fallthru
      _
    // Predicated region
    $region46: #{bilstm_stress_forward.1} parent=1 // pred_check
      _
    $region47: #{bilstm_stress_forward.1} parent=1 // pred_check_branch
      %74 = sbr.rel (0) target = $region49
    $region48: #{bilstm_stress_forward.1} parent=1 // pred_region
      %s76 = ssub.s32 1024, 1024
      %77 = vsyncadd [#allocation11], %s76
      %s78 = sshll.u32 [#allocation10], 4
      %s79 = int_to_ptr.vmem [resolvable:$true] %s78
      %84 = dma.hbm_to_vmem [thread:$0]  %s11, 1024, %s79, [#allocation11], 64, 64, 4
    $region49: #{bilstm_stress_forward.1} parent=1 // pred_fallthru
      _
    // Predicated region
    $region50: #{bilstm_stress_forward.1} parent=1 // pred_check
      _
    $region51: #{bilstm_stress_forward.1} parent=1 // pred_check_branch
      %86 = sbr.rel (0) target = $region53
    $region52: #{bilstm_stress_forward.1} parent=1 // pred_region
      _
    $region53: #{bilstm_stress_forward.1} parent=1 // pred_fallthru
      _
    // Predicated region
    $region54: #{bilstm_stress_forward.1} parent=1 // pred_check
      _
    $region55: #{bilstm_stress_forward.1} parent=1 // pred_check_branch
      %88 = sbr.rel (0) target = $region57
    $region56: #{bilstm_stress_forward.1} parent=1 // pred_region
      %89 = dma.done [#allocation6], 4096
    $region57: #{bilstm_stress_forward.1} parent=1 // pred_fallthru
      _
    // Predicated region
    $region58: #{bilstm_stress_forward.1} parent=1 // pred_check
      _
    $region59: #{bilstm_stress_forward.1} parent=1 // pred_check_branch
      %91 = sbr.rel (0) target = $region61
    $region60: #{bilstm_stress_forward.1} parent=1 // pred_region
      %92 = dma.done [#allocation8], 8192
    $region61: #{bilstm_stress_forward.1} parent=1 // pred_fallthru
      _
    // Predicated region
    $region62: #{bilstm_stress_forward.1} parent=1 // pred_check
      _
    $region63: #{bilstm_stress_forward.1} parent=1 // pred_check_branch
      %94 = sbr.rel (0) target = $region65
    $region64: #{bilstm_stress_forward.1} parent=1 // pred_region
      %95 = dma.done [#allocation8], 4096
    $region65: #{bilstm_stress_forward.1} parent=1 // pred_fallthru
      _
    // Predicated region
    $region66: #{bilstm_stress_forward.1} parent=1 // pred_check
      _
    $region67: #{bilstm_stress_forward.1} parent=1 // pred_check_branch
      %97 = sbr.rel (0) target = $region69
    $region68: #{bilstm_stress_forward.1} parent=1 // pred_region
      %98 = dma.done [#allocation11], 1024
    $region69: #{bilstm_stress_forward.1} parent=1 // pred_fallthru
      _
    %v100 = vld [vmem:[%s0] sm:$0xf]
    %v101 = vld [vmem:[%s0 + $0x4] sm:$0xf]
    %v102 = vld [vmem:[%s0 + $0x8] sm:$0xf]
    %v103 = vld [vmem:[%s0 + $0xc] sm:$0xf]
    %v104 = vld [vmem:[%s0 + $0x10] sm:$0xf]
    %v105 = vld [vmem:[%s0 + $0x14] sm:$0xf]
    %v106 = vld [vmem:[%s0 + $0x18] sm:$0xf]
    %v107 = vld [vmem:[%s0 + $0x1c] sm:$0xf]
    %v108 = vld [vmem:[%s1] sm:$0xff]
    %v109 = vld [vmem:[%s1 + $0x8] sm:$0xff]
    %v110 = vld [vmem:[%s2] sm:$0xf]
    %v112 = vlaneseq
    %v113 = vshrl.u32 %v112, 7
    %v114 = vsub.s32 0, %v113
    %v115 = vrot.slane %v110, %v114
    %v116 = vlaneseq
    %v117 = vshrl.u32 %v116, 7
    %v118 = vsub.s32 1, %v117
    %v119 = vrot.slane %v110, %v118
    %v120 = vlaneseq
    %v121 = vshrl.u32 %v120, 7
    %v122 = vsub.s32 2, %v121
    %v123 = vrot.slane %v110, %v122
    %v124 = vlaneseq
    %v125 = vshrl.u32 %v124, 7
    %v126 = vsub.s32 3, %v125
    %v127 = vrot.slane %v110, %v126
    %v140 = vunpack.c.l.b16 %v100
    %v141 = vunpack.c.l.b16 %v101
    %v142 = vunpack.c.l.b16 %v102
    %v143 = vunpack.c.l.b16 %v103
    %v144 = vunpack.c.l.b16 %v104
    %v145 = vunpack.c.l.b16 %v105
    %v146 = vunpack.c.l.b16 %v106
    %v147 = vunpack.c.l.b16 %v107
    %v148 = vpack.c.b16 %v141, %v140
    %v149 = vpack.c.b16 %v143, %v142
    %v150 = vpack.c.b16 %v145, %v144
    %v151 = vpack.c.b16 %v147, %v146
    %v154 = vunpack.c.l.b16 %v108
    %v155 = vunpack.c.h.b16 %v108
    %v156 = vunpack.c.l.b16 %v109
    %v157 = vunpack.c.h.b16 %v109
    %v158 = vpack.c.b16 %v154, %v154
    %v159 = vpack.c.b16 %v155, %v155
    %v160 = vpack.c.b16 %v156, %v156
    %v161 = vpack.c.b16 %v157, %v157
    %vm162 = vcmask 64512
    %v164 = vsel %vm162, %v148, 0
    %v167 = vsel %vm162, %v149, 0
    %v170 = vsel %vm162, %v150, 0
    %v173 = vsel %vm162, %v151, 0
    %vm175 = vcmask 1043456
    %v177 = vsel %vm175, %v158, 0
    %v180 = vsel %vm175, %v159, 0
    %v183 = vsel %vm175, %v160, 0
    %v186 = vsel %vm175, %v161, 0
    %188 = vmatprep.subr.bf16.mxu0 0
    %189 = vmatpush1.bf16.msra.mxu0 0
    %190 = vmatprep.subr.bf16.mxu0 0
    %191 = vmatpush1.bf16.msra.mxu0 0
    %192 = vmatprep.subr.bf16.mxu0 0
    %193 = vmatpush1.bf16.msra.mxu0 0
    %194 = vmatprep.subr.bf16.mxu0 0
    %195 = vmatpush1.bf16.msra.mxu0 0
    %196 = vmatprep.subr.bf16.mxu0 0
    %197 = vmatpush1.bf16.msra.mxu0 0
    %198 = vmatprep.subr.bf16.mxu0 0
    %199 = vmatpush1.bf16.msra.mxu0 0
    %200 = vmatprep.subr.bf16.mxu0 0
    %201 = vmatpush1.bf16.msra.mxu0 0
    %202 = vmatprep.subr.bf16.mxu0 %v180
    %203 = vmatpush1.bf16.msra.mxu0 %v177
    %204 = vmatprep.subr.bf16.mxu0 0
    %205 = vmatpush2.bf16.msra.mxu0 0
    %206 = vmatprep.subr.bf16.mxu0 0
    %207 = vmatpush2.bf16.msra.mxu0 0
    %208 = vmatprep.subr.bf16.mxu0 0
    %209 = vmatpush2.bf16.msra.mxu0 0
    %210 = vmatprep.subr.bf16.mxu0 0
    %211 = vmatpush2.bf16.msra.mxu0 0
    %212 = vmatprep.subr.bf16.mxu0 0
    %213 = vmatpush2.bf16.msra.mxu0 0
    %214 = vmatprep.subr.bf16.mxu0 0
    %215 = vmatpush2.bf16.msra.mxu0 0
    %216 = vmatprep.subr.bf16.mxu0 0
    %217 = vmatpush2.bf16.msra.mxu0 0
    %218 = vmatprep.subr.bf16.mxu0 0
    %219 = vmatpush2.bf16.msra.mxu0 0
    %220 = vmatprep.mubr.bf16.mxu0 0
    %221 = vmatmul.mubr.bf16.gmra.mxu0 %v164
    %v222 = vpop.f32.mrf.mxu0
    %v223 = vadd.f32 %v115, %v222
    %v224 = vpop.f32.mrf.mxu0
    %v225 = vadd.f32 %v119, %v224
    %v226 = vpop.f32.mrf.mxu0
    %v227 = vadd.f32 %v115, %v226
    %v228 = vpop.f32.mrf.mxu0
    %v229 = vadd.f32 %v119, %v228
    %230 = vmatprep.mubr.bf16.mxu0 0
    %231 = vmatmul.mubr.bf16.gmra.mxu0 %v167
    %v232 = vpop.f32.mrf.mxu0
    %v233 = vadd.f32 %v115, %v232
    %v234 = vpop.f32.mrf.mxu0
    %v235 = vadd.f32 %v119, %v234
    %v236 = vpop.f32.mrf.mxu0
    %v237 = vadd.f32 %v115, %v236
    %v238 = vpop.f32.mrf.mxu0
    %v239 = vadd.f32 %v119, %v238
    %240 = vmatprep.mubr.bf16.mxu0 0
    %241 = vmatmul.mubr.bf16.gmra.mxu0 %v170
    %v242 = vpop.f32.mrf.mxu0
    %v243 = vadd.f32 %v115, %v242
    %v244 = vpop.f32.mrf.mxu0
    %v245 = vadd.f32 %v119, %v244
    %v246 = vpop.f32.mrf.mxu0
    %v247 = vadd.f32 %v115, %v246
    %v248 = vpop.f32.mrf.mxu0
    %v249 = vadd.f32 %v119, %v248
    %250 = vmatprep.mubr.bf16.mxu0 0
    %251 = vmatmul.mubr.bf16.gmra.mxu0 %v173
    %v252 = vpop.f32.mrf.mxu0
    %v253 = vadd.f32 %v115, %v252
    %v254 = vpop.f32.mrf.mxu0
    %v255 = vadd.f32 %v119, %v254
    %v256 = vpop.f32.mrf.mxu0
    %v257 = vadd.f32 %v115, %v256
    %v258 = vpop.f32.mrf.mxu0
    %v259 = vadd.f32 %v119, %v258
    %260 = vdwg.mxu0
    %261 = vmatprep.subr.bf16.mxu0 0
    %262 = vmatpush1.bf16.msra.mxu0 0
    %263 = vmatprep.subr.bf16.mxu0 0
    %264 = vmatpush1.bf16.msra.mxu0 0
    %265 = vmatprep.subr.bf16.mxu0 0
    %266 = vmatpush1.bf16.msra.mxu0 0
    %267 = vmatprep.subr.bf16.mxu0 0
    %268 = vmatpush1.bf16.msra.mxu0 0
    %269 = vmatprep.subr.bf16.mxu0 0
    %270 = vmatpush1.bf16.msra.mxu0 0
    %271 = vmatprep.subr.bf16.mxu0 0
    %272 = vmatpush1.bf16.msra.mxu0 0
    %273 = vmatprep.subr.bf16.mxu0 0
    %274 = vmatpush1.bf16.msra.mxu0 0
    %275 = vmatprep.subr.bf16.mxu0 %v186
    %276 = vmatpush1.bf16.msra.mxu0 %v183
    %277 = vmatprep.subr.bf16.mxu0 0
    %278 = vmatpush2.bf16.msra.mxu0 0
    %279 = vmatprep.subr.bf16.mxu0 0
    %280 = vmatpush2.bf16.msra.mxu0 0
    %281 = vmatprep.subr.bf16.mxu0 0
    %282 = vmatpush2.bf16.msra.mxu0 0
    %283 = vmatprep.subr.bf16.mxu0 0
    %284 = vmatpush2.bf16.msra.mxu0 0
    %285 = vmatprep.subr.bf16.mxu0 0
    %286 = vmatpush2.bf16.msra.mxu0 0
    %287 = vmatprep.subr.bf16.mxu0 0
    %288 = vmatpush2.bf16.msra.mxu0 0
    %289 = vmatprep.subr.bf16.mxu0 0
    %290 = vmatpush2.bf16.msra.mxu0 0
    %291 = vmatprep.subr.bf16.mxu0 0
    %292 = vmatpush2.bf16.msra.mxu0 0
    %293 = vmatprep.mubr.bf16.mxu0 0
    %294 = vmatmul.mubr.bf16.gmra.mxu0 %v164
    %v295 = vpop.f32.mrf.mxu0
    %v296 = vadd.f32 %v123, %v295
    %v297 = vpop.f32.mrf.mxu0
    %v298 = vadd.f32 %v127, %v297
    %v299 = vpop.f32.mrf.mxu0
    %v300 = vadd.f32 %v123, %v299
    %v301 = vpop.f32.mrf.mxu0
    %v302 = vadd.f32 %v127, %v301
    %303 = vmatprep.mubr.bf16.mxu0 0
    %304 = vmatmul.mubr.bf16.gmra.mxu0 %v167
    %v305 = vpop.f32.mrf.mxu0
    %v306 = vadd.f32 %v123, %v305
    %v307 = vpop.f32.mrf.mxu0
    %v308 = vadd.f32 %v127, %v307
    %v309 = vpop.f32.mrf.mxu0
    %v310 = vadd.f32 %v123, %v309
    %v311 = vpop.f32.mrf.mxu0
    %v312 = vadd.f32 %v127, %v311
    %313 = vmatprep.mubr.bf16.mxu0 0
    %314 = vmatmul.mubr.bf16.gmra.mxu0 %v170
    %v315 = vpop.f32.mrf.mxu0
    %v316 = vadd.f32 %v123, %v315
    %v317 = vpop.f32.mrf.mxu0
    %v318 = vadd.f32 %v127, %v317
    %v319 = vpop.f32.mrf.mxu0
    %v320 = vadd.f32 %v123, %v319
    %v321 = vpop.f32.mrf.mxu0
    %v322 = vadd.f32 %v127, %v321
    %323 = vmatprep.mubr.bf16.mxu0 0
    %324 = vmatmul.mubr.bf16.gmra.mxu0 %v173
    %v325 = vpop.f32.mrf.mxu0
    %v326 = vadd.f32 %v123, %v325
    %v327 = vpop.f32.mrf.mxu0
    %v328 = vadd.f32 %v127, %v327
    %v329 = vpop.f32.mrf.mxu0
    %v330 = vadd.f32 %v123, %v329
    %v331 = vpop.f32.mrf.mxu0
    %v332 = vadd.f32 %v127, %v331
    %333 = vdwg.mxu0
    %334 = vst [vmem:[#allocation2] sm:$0xff] %v223
    %335 = vst [vmem:[#allocation2 + $0x8] sm:$0xff] %v225
    %336 = vst [vmem:[#allocation2 + $0x10] sm:$0xff] %v296
    %337 = vst [vmem:[#allocation2 + $0x18] sm:$0xff] %v298
    %338 = vst [vmem:[#allocation2 + $0x20] sm:$0xff] %v227
    %339 = vst [vmem:[#allocation2 + $0x28] sm:$0xff] %v229
    %340 = vst [vmem:[#allocation2 + $0x30] sm:$0xff] %v300
    %341 = vst [vmem:[#allocation2 + $0x38] sm:$0xff] %v302
    %342 = vst [vmem:[#allocation2 + $0x40] sm:$0xff] %v233
    %343 = vst [vmem:[#allocation2 + $0x48] sm:$0xff] %v235
    %344 = vst [vmem:[#allocation2 + $0x50] sm:$0xff] %v306
    %345 = vst [vmem:[#allocation2 + $0x58] sm:$0xff] %v308
    %346 = vst [vmem:[#allocation2 + $0x60] sm:$0xff] %v237
    %347 = vst [vmem:[#allocation2 + $0x68] sm:$0xff] %v239
    %348 = vst [vmem:[#allocation2 + $0x70] sm:$0xff] %v310
    %349 = vst [vmem:[#allocation2 + $0x78] sm:$0xff] %v312
    %350 = vst [vmem:[#allocation2 + $0x80] sm:$0xff] %v243
    %351 = vst [vmem:[#allocation2 + $0x88] sm:$0xff] %v245
    %352 = vst [vmem:[#allocation2 + $0x90] sm:$0xff] %v316
    %353 = vst [vmem:[#allocation2 + $0x98] sm:$0xff] %v318
    %354 = vst [vmem:[#allocation2 + $0xa0] sm:$0xff] %v247
    %355 = vst [vmem:[#allocation2 + $0xa8] sm:$0xff] %v249
    %356 = vst [vmem:[#allocation2 + $0xb0] sm:$0xff] %v320
    %357 = vst [vmem:[#allocation2 + $0xb8] sm:$0xff] %v322
    %358 = vst [vmem:[#allocation2 + $0xc0] sm:$0xff] %v253
    %359 = vst [vmem:[#allocation2 + $0xc8] sm:$0xff] %v255
    %360 = vst [vmem:[#allocation2 + $0xd0] sm:$0xff] %v326
    %361 = vst [vmem:[#allocation2 + $0xd8] sm:$0xff] %v328
    %362 = vst [vmem:[#allocation2 + $0xe0] sm:$0xff] %v257
    %363 = vst [vmem:[#allocation2 + $0xe8] sm:$0xff] %v259
    %364 = vst [vmem:[#allocation2 + $0xf0] sm:$0xff] %v330
    %365 = vst [vmem:[#allocation2 + $0xf8] sm:$0xff] %v332
    %s366 = smul.u32 0, 4
    %s367 = smul.addr %s366, 8
    %s368 = scalar_lea.vmem [#allocation2], %s367
    %v369 = vld [vmem:[%s368] sm:$0xff]
    %v370 = vld [vmem:[%s368 + $0x8] sm:$0xff]
    %v371 = vld [vmem:[%s368 + $0x10] sm:$0xff]
    %v372 = vld [vmem:[%s368 + $0x18] sm:$0xff]
    %v373 = vld [vmem:[#allocation5] sm:$0xff]
    %v374 = vld [vmem:[#allocation5 + $0x8] sm:$0xff]
    %v375 = vld [vmem:[#allocation5 + $0x10] sm:$0xff]
    %v376 = vld [vmem:[#allocation5 + $0x18] sm:$0xff]
    %v377 = vld [vmem:[#allocation5 + $0x20] sm:$0xff]
    %v378 = vld [vmem:[#allocation5 + $0x28] sm:$0xff]
    %v379 = vld [vmem:[#allocation5 + $0x30] sm:$0xff]
    %v380 = vld [vmem:[#allocation5 + $0x38] sm:$0xff]
    %v381 = vld [vmem:[#allocation5 + $0x40] sm:$0xff]
    %v382 = vld [vmem:[#allocation5 + $0x48] sm:$0xff]
    %v383 = vld [vmem:[#allocation5 + $0x50] sm:$0xff]
    %v384 = vld [vmem:[#allocation5 + $0x58] sm:$0xff]
    %v385 = vld [vmem:[#allocation5 + $0x60] sm:$0xff]
    %v386 = vld [vmem:[#allocation5 + $0x68] sm:$0xff]
    %v387 = vld [vmem:[#allocation5 + $0x70] sm:$0xff]
    %v388 = vld [vmem:[#allocation5 + $0x78] sm:$0xff]
    %v389 = vld [vmem:[#allocation5 + $0x80] sm:$0xff]
    %v390 = vld [vmem:[#allocation5 + $0x88] sm:$0xff]
    %v391 = vld [vmem:[#allocation5 + $0x90] sm:$0xff]
    %v392 = vld [vmem:[#allocation5 + $0x98] sm:$0xff]
    %v393 = vld [vmem:[#allocation5 + $0xa0] sm:$0xff]
    %v394 = vld [vmem:[#allocation5 + $0xa8] sm:$0xff]
    %v395 = vld [vmem:[#allocation5 + $0xb0] sm:$0xff]
    %v396 = vld [vmem:[#allocation5 + $0xb8] sm:$0xff]
    %v397 = vld [vmem:[#allocation5 + $0xc0] sm:$0xff]
    %v398 = vld [vmem:[#allocation5 + $0xc8] sm:$0xff]
    %v399 = vld [vmem:[#allocation5 + $0xd0] sm:$0xff]
    %v400 = vld [vmem:[#allocation5 + $0xd8] sm:$0xff]
    %v401 = vld [vmem:[#allocation5 + $0xe0] sm:$0xff]
    %v402 = vld [vmem:[#allocation5 + $0xe8] sm:$0xff]
    %v403 = vld [vmem:[#allocation5 + $0xf0] sm:$0xff]
    %v404 = vld [vmem:[#allocation5 + $0xf8] sm:$0xff]
    %v437 = vunpack.c.l.b16 %v373
    %v438 = vunpack.c.h.b16 %v373
    %v439 = vunpack.c.l.b16 %v374
    %v440 = vunpack.c.h.b16 %v374
    %v441 = vunpack.c.l.b16 %v375
    %v442 = vunpack.c.h.b16 %v375
    %v443 = vunpack.c.l.b16 %v376
    %v444 = vunpack.c.h.b16 %v376
    %v445 = vunpack.c.l.b16 %v377
    %v446 = vunpack.c.h.b16 %v377
    %v447 = vunpack.c.l.b16 %v378
    %v448 = vunpack.c.h.b16 %v378
    %v449 = vunpack.c.l.b16 %v379
    %v450 = vunpack.c.h.b16 %v379
    %v451 = vunpack.c.l.b16 %v380
    %v452 = vunpack.c.h.b16 %v380
    %v453 = vunpack.c.l.b16 %v381
    %v454 = vunpack.c.h.b16 %v381
    %v455 = vunpack.c.l.b16 %v382
    %v456 = vunpack.c.h.b16 %v382
    %v457 = vunpack.c.l.b16 %v383
    %v458 = vunpack.c.h.b16 %v383
    %v459 = vunpack.c.l.b16 %v384
    %v460 = vunpack.c.h.b16 %v384
    %v461 = vunpack.c.l.b16 %v385
    %v462 = vunpack.c.h.b16 %v385
    %v463 = vunpack.c.l.b16 %v386
    %v464 = vunpack.c.h.b16 %v386
    %v465 = vunpack.c.l.b16 %v387
    %v466 = vunpack.c.h.b16 %v387
    %v467 = vunpack.c.l.b16 %v388
    %v468 = vunpack.c.h.b16 %v388
    %v469 = vunpack.c.l.b16 %v389
    %v470 = vunpack.c.h.b16 %v389
    %v471 = vunpack.c.l.b16 %v390
    %v472 = vunpack.c.h.b16 %v390
    %v473 = vunpack.c.l.b16 %v391
    %v474 = vunpack.c.h.b16 %v391
    %v475 = vunpack.c.l.b16 %v392
    %v476 = vunpack.c.h.b16 %v392
    %v477 = vunpack.c.l.b16 %v393
    %v478 = vunpack.c.h.b16 %v393
    %v479 = vunpack.c.l.b16 %v394
    %v480 = vunpack.c.h.b16 %v394
    %v481 = vunpack.c.l.b16 %v395
    %v482 = vunpack.c.h.b16 %v395
    %v483 = vunpack.c.l.b16 %v396
    %v484 = vunpack.c.h.b16 %v396
    %v485 = vunpack.c.l.b16 %v397
    %v486 = vunpack.c.h.b16 %v397
    %v487 = vunpack.c.l.b16 %v398
    %v488 = vunpack.c.h.b16 %v398
    %v489 = vunpack.c.l.b16 %v399
    %v490 = vunpack.c.h.b16 %v399
    %v491 = vunpack.c.l.b16 %v400
    %v492 = vunpack.c.h.b16 %v400
    %v493 = vunpack.c.l.b16 %v401
    %v494 = vunpack.c.h.b16 %v401
    %v495 = vunpack.c.l.b16 %v402
    %v496 = vunpack.c.h.b16 %v402
    %v497 = vunpack.c.l.b16 %v403
    %v498 = vunpack.c.h.b16 %v403
    %v499 = vunpack.c.l.b16 %v404
    %v500 = vunpack.c.h.b16 %v404
    %v501 = vpack.c.b16 %v441, %v437
    %v502 = vpack.c.b16 %v442, %v438
    %v503 = vpack.c.b16 %v443, %v439
    %v504 = vpack.c.b16 %v444, %v440
    %v505 = vpack.c.b16 %v449, %v445
    %v506 = vpack.c.b16 %v450, %v446
    %v507 = vpack.c.b16 %v451, %v447
    %v508 = vpack.c.b16 %v452, %v448
    %v509 = vpack.c.b16 %v457, %v453
    %v510 = vpack.c.b16 %v458, %v454
    %v511 = vpack.c.b16 %v459, %v455
    %v512 = vpack.c.b16 %v460, %v456
    %v513 = vpack.c.b16 %v465, %v461
    %v514 = vpack.c.b16 %v466, %v462
    %v515 = vpack.c.b16 %v467, %v463
    %v516 = vpack.c.b16 %v468, %v464
    %v517 = vpack.c.b16 %v473, %v469
    %v518 = vpack.c.b16 %v474, %v470
    %v519 = vpack.c.b16 %v475, %v471
    %v520 = vpack.c.b16 %v476, %v472
    %v521 = vpack.c.b16 %v481, %v477
    %v522 = vpack.c.b16 %v482, %v478
    %v523 = vpack.c.b16 %v483, %v479
    %v524 = vpack.c.b16 %v484, %v480
    %v525 = vpack.c.b16 %v489, %v485
    %v526 = vpack.c.b16 %v490, %v486
    %v527 = vpack.c.b16 %v491, %v487
    %v528 = vpack.c.b16 %v492, %v488
    %v529 = vpack.c.b16 %v497, %v493
    %v530 = vpack.c.b16 %v498, %v494
    %v531 = vpack.c.b16 %v499, %v495
    %v532 = vpack.c.b16 %v500, %v496
    %565 = vmatprep.subr.bf16.mxu0 %v530
    %566 = vmatpush1.bf16.msra.mxu0 %v529
    %567 = vmatprep.subr.bf16.mxu0 %v526
    %568 = vmatpush1.bf16.msra.mxu0 %v525
    %569 = vmatprep.subr.bf16.mxu0 %v522
    %570 = vmatpush1.bf16.msra.mxu0 %v521
    %571 = vmatprep.subr.bf16.mxu0 %v518
    %572 = vmatpush1.bf16.msra.mxu0 %v517
    %573 = vmatprep.subr.bf16.mxu0 %v514
    %574 = vmatpush1.bf16.msra.mxu0 %v513
    %575 = vmatprep.subr.bf16.mxu0 %v510
    %576 = vmatpush1.bf16.msra.mxu0 %v509
    %577 = vmatprep.subr.bf16.mxu0 %v506
    %578 = vmatpush1.bf16.msra.mxu0 %v505
    %579 = vmatprep.subr.bf16.mxu0 %v502
    %580 = vmatpush1.bf16.msra.mxu0 %v501
    %581 = vmatprep.subr.bf16.mxu0 0
    %582 = vmatpush2.bf16.msra.mxu0 0
    %583 = vmatprep.subr.bf16.mxu0 0
    %584 = vmatpush2.bf16.msra.mxu0 0
    %585 = vmatprep.subr.bf16.mxu0 0
    %586 = vmatpush2.bf16.msra.mxu0 0
    %587 = vmatprep.subr.bf16.mxu0 0
    %588 = vmatpush2.bf16.msra.mxu0 0
    %589 = vmatprep.subr.bf16.mxu0 0
    %590 = vmatpush2.bf16.msra.mxu0 0
    %591 = vmatprep.subr.bf16.mxu0 0
    %592 = vmatpush2.bf16.msra.mxu0 0
    %593 = vmatprep.subr.bf16.mxu0 0
    %594 = vmatpush2.bf16.msra.mxu0 0
    %595 = vmatprep.subr.bf16.mxu0 0
    %596 = vmatpush2.bf16.msra.mxu0 0
    %597 = vmatprep.mubr.bf16.mxu0 0
    %598 = vmatmul.mubr.bf16.gmra.mxu0 0
    %v599 = vpop.f32.mrf.mxu0
    %v600 = vadd.f32 0.0, %v599
    %v601 = vpop.f32.mrf.mxu0
    %v602 = vadd.f32 0.0, %v601
    %v603 = vpop.f32.mrf.mxu0
    %v604 = vpop.f32.mrf.mxu0
    %605 = vdwg.mxu0
    %606 = vmatprep.subr.bf16.mxu0 %v532
    %607 = vmatpush1.bf16.msra.mxu0 %v531
    %608 = vmatprep.subr.bf16.mxu0 %v528
    %609 = vmatpush1.bf16.msra.mxu0 %v527
    %610 = vmatprep.subr.bf16.mxu0 %v524
    %611 = vmatpush1.bf16.msra.mxu0 %v523
    %612 = vmatprep.subr.bf16.mxu0 %v520
    %613 = vmatpush1.bf16.msra.mxu0 %v519
    %614 = vmatprep.subr.bf16.mxu0 %v516
    %615 = vmatpush1.bf16.msra.mxu0 %v515
    %616 = vmatprep.subr.bf16.mxu0 %v512
    %617 = vmatpush1.bf16.msra.mxu0 %v511
    %618 = vmatprep.subr.bf16.mxu0 %v508
    %619 = vmatpush1.bf16.msra.mxu0 %v507
    %620 = vmatprep.subr.bf16.mxu0 %v504
    %621 = vmatpush1.bf16.msra.mxu0 %v503
    %622 = vmatprep.subr.bf16.mxu0 0
    %623 = vmatpush2.bf16.msra.mxu0 0
    %624 = vmatprep.subr.bf16.mxu0 0
    %625 = vmatpush2.bf16.msra.mxu0 0
    %626 = vmatprep.subr.bf16.mxu0 0
    %627 = vmatpush2.bf16.msra.mxu0 0
    %628 = vmatprep.subr.bf16.mxu0 0
    %629 = vmatpush2.bf16.msra.mxu0 0
    %630 = vmatprep.subr.bf16.mxu0 0
    %631 = vmatpush2.bf16.msra.mxu0 0
    %632 = vmatprep.subr.bf16.mxu0 0
    %633 = vmatpush2.bf16.msra.mxu0 0
    %634 = vmatprep.subr.bf16.mxu0 0
    %635 = vmatpush2.bf16.msra.mxu0 0
    %636 = vmatprep.subr.bf16.mxu0 0
    %637 = vmatpush2.bf16.msra.mxu0 0
    %638 = vmatprep.mubr.bf16.mxu0 0
    %639 = vmatmul.mubr.bf16.gmra.mxu0 0
    %v640 = vpop.f32.mrf.mxu0
    %v641 = vadd.f32 0.0, %v640
    %v642 = vpop.f32.mrf.mxu0
    %v643 = vadd.f32 0.0, %v642
    %v644 = vpop.f32.mrf.mxu0
    %v645 = vpop.f32.mrf.mxu0
    %646 = vdwg.mxu0
    %v647 = vadd.f32 %v369, %v600
    %v648 = vadd.f32 %v370, %v602
    %v649 = vadd.f32 %v371, %v641
    %v650 = vadd.f32 %v372, %v643
    %v651 = vxor.u32 %v647, 2147483648
    %v652 = vxor.u32 %v648, 2147483648
    %v653 = vxor.u32 %v649, 2147483648
    %v654 = vmul.f32 %v651, 1.442695
    %v655 = vpow.pop %v654
    %v656 = vmul.f32 %v652, 1.442695
    %v657 = vpow.pop %v656
    %v658 = vmul.f32 %v653, 1.442695
    %v659 = vpow.pop %v658
    %v660 = vadd.f32 %v655, 1.0
    %v661 = vadd.f32 %v657, 1.0
    %v662 = vadd.f32 %v659, 1.0
    %v663 = vrcp.pop %v660
    %v664 = vmul.f32 1.0, %v663
    %v665 = vrcp.pop %v661
    %v666 = vmul.f32 1.0, %v665
    %v667 = vrcp.pop %v662
    %v668 = vmul.f32 1.0, %v667
    %v669 = vtanh.pop %v650
    %v670 = vmul.f32 %v666, 0.0
    %v671 = vmul.f32 %v664, %v669
    %v672 = vadd.f32 %v670, %v671
    %v673 = vtanh.pop %v672
    %v674 = vmul.f32 %v668, %v673
    %s675 = smul.u32 0, 2
    %s676 = smul.addr %s675, 8
    %s677 = scalar_lea.vmem [#allocation3], %s676
    %678 = vst [vmem:[%s677] sm:$0xff] %v674
    %s679 = smul.u32 7, 2
    %s680 = smul.addr %s679, 8
    %s681 = scalar_lea.vmem [#allocation3], %s680
    %682 = vst [vmem:[%s681 + $0x8] sm:$0xff] %v674
    %s683 = smul.u32 1, 4
    %s684 = smul.addr %s683, 8
    %s685 = scalar_lea.vmem [#allocation2], %s684
    %v686 = vld [vmem:[%s685] sm:$0xff]
    %v687 = vld [vmem:[%s685 + $0x8] sm:$0xff]
    %v688 = vld [vmem:[%s685 + $0x10] sm:$0xff]
    %v689 = vld [vmem:[%s685 + $0x18] sm:$0xff]
    %v690 = vpack.c.bf16 %v674, %v674
    %v691 = vld [vmem:[#allocation5] sm:$0xff]
    %v692 = vld [vmem:[#allocation5 + $0x8] sm:$0xff]
    %v693 = vld [vmem:[#allocation5 + $0x10] sm:$0xff]
    %v694 = vld [vmem:[#allocation5 + $0x18] sm:$0xff]
    %v695 = vld [vmem:[#allocation5 + $0x20] sm:$0xff]
    %v696 = vld [vmem:[#allocation5 + $0x28] sm:$0xff]
    %v697 = vld [vmem:[#allocation5 + $0x30] sm:$0xff]
    %v698 = vld [vmem:[#allocation5 + $0x38] sm:$0xff]
    %v699 = vld [vmem:[#allocation5 + $0x40] sm:$0xff]
    %v700 = vld [vmem:[#allocation5 + $0x48] sm:$0xff]
    %v701 = vld [vmem:[#allocation5 + $0x50] sm:$0xff]
    %v702 = vld [vmem:[#allocation5 + $0x58] sm:$0xff]
    %v703 = vld [vmem:[#allocation5 + $0x60] sm:$0xff]
    %v704 = vld [vmem:[#allocation5 + $0x68] sm:$0xff]
    %v705 = vld [vmem:[#allocation5 + $0x70] sm:$0xff]
    %v706 = vld [vmem:[#allocation5 + $0x78] sm:$0xff]
    %v707 = vld [vmem:[#allocation5 + $0x80] sm:$0xff]
    %v708 = vld [vmem:[#allocation5 + $0x88] sm:$0xff]
    %v709 = vld [vmem:[#allocation5 + $0x90] sm:$0xff]
    %v710 = vld [vmem:[#allocation5 + $0x98] sm:$0xff]
    %v711 = vld [vmem:[#allocation5 + $0xa0] sm:$0xff]
    %v712 = vld [vmem:[#allocation5 + $0xa8] sm:$0xff]
    %v713 = vld [vmem:[#allocation5 + $0xb0] sm:$0xff]
    %v714 = vld [vmem:[#allocation5 + $0xb8] sm:$0xff]
    %v715 = vld [vmem:[#allocation5 + $0xc0] sm:$0xff]
    %v716 = vld [vmem:[#allocation5 + $0xc8] sm:$0xff]
    %v717 = vld [vmem:[#allocation5 + $0xd0] sm:$0xff]
    %v718 = vld [vmem:[#allocation5 + $0xd8] sm:$0xff]
    %v719 = vld [vmem:[#allocation5 + $0xe0] sm:$0xff]
    %v720 = vld [vmem:[#allocation5 + $0xe8] sm:$0xff]
    %v721 = vld [vmem:[#allocation5 + $0xf0] sm:$0xff]
    %v722 = vld [vmem:[#allocation5 + $0xf8] sm:$0xff]
    %v755 = vunpack.c.l.b16 %v691
    %v756 = vunpack.c.h.b16 %v691
    %v757 = vunpack.c.l.b16 %v692
    %v758 = vunpack.c.h.b16 %v692
    %v759 = vunpack.c.l.b16 %v693
    %v760 = vunpack.c.h.b16 %v693
    %v761 = vunpack.c.l.b16 %v694
    %v762 = vunpack.c.h.b16 %v694
    %v763 = vunpack.c.l.b16 %v695
    %v764 = vunpack.c.h.b16 %v695
    %v765 = vunpack.c.l.b16 %v696
    %v766 = vunpack.c.h.b16 %v696
    %v767 = vunpack.c.l.b16 %v697
    %v768 = vunpack.c.h.b16 %v697
    %v769 = vunpack.c.l.b16 %v698
    %v770 = vunpack.c.h.b16 %v698
    %v771 = vunpack.c.l.b16 %v699
    %v772 = vunpack.c.h.b16 %v699
    %v773 = vunpack.c.l.b16 %v700
    %v774 = vunpack.c.h.b16 %v700
    %v775 = vunpack.c.l.b16 %v701
    %v776 = vunpack.c.h.b16 %v701
    %v777 = vunpack.c.l.b16 %v702
    %v778 = vunpack.c.h.b16 %v702
    %v779 = vunpack.c.l.b16 %v703
    %v780 = vunpack.c.h.b16 %v703
    %v781 = vunpack.c.l.b16 %v704
    %v782 = vunpack.c.h.b16 %v704
    %v783 = vunpack.c.l.b16 %v705
    %v784 = vunpack.c.h.b16 %v705
    %v785 = vunpack.c.l.b16 %v706
    %v786 = vunpack.c.h.b16 %v706
    %v787 = vunpack.c.l.b16 %v707
    %v788 = vunpack.c.h.b16 %v707
    %v789 = vunpack.c.l.b16 %v708
    %v790 = vunpack.c.h.b16 %v708
    %v791 = vunpack.c.l.b16 %v709
    %v792 = vunpack.c.h.b16 %v709
    %v793 = vunpack.c.l.b16 %v710
    %v794 = vunpack.c.h.b16 %v710
    %v795 = vunpack.c.l.b16 %v711
    %v796 = vunpack.c.h.b16 %v711
    %v797 = vunpack.c.l.b16 %v712
    %v798 = vunpack.c.h.b16 %v712
    %v799 = vunpack.c.l.b16 %v713
    %v800 = vunpack.c.h.b16 %v713
    %v801 = vunpack.c.l.b16 %v714
    %v802 = vunpack.c.h.b16 %v714
    %v803 = vunpack.c.l.b16 %v715
    %v804 = vunpack.c.h.b16 %v715
    %v805 = vunpack.c.l.b16 %v716
    %v806 = vunpack.c.h.b16 %v716
    %v807 = vunpack.c.l.b16 %v717
    %v808 = vunpack.c.h.b16 %v717
    %v809 = vunpack.c.l.b16 %v718
    %v810 = vunpack.c.h.b16 %v718
    %v811 = vunpack.c.l.b16 %v719
    %v812 = vunpack.c.h.b16 %v719
    %v813 = vunpack.c.l.b16 %v720
    %v814 = vunpack.c.h.b16 %v720
    %v815 = vunpack.c.l.b16 %v721
    %v816 = vunpack.c.h.b16 %v721
    %v817 = vunpack.c.l.b16 %v722
    %v818 = vunpack.c.h.b16 %v722
    %v819 = vpack.c.b16 %v759, %v755
    %v820 = vpack.c.b16 %v760, %v756
    %v821 = vpack.c.b16 %v761, %v757
    %v822 = vpack.c.b16 %v762, %v758
    %v823 = vpack.c.b16 %v767, %v763
    %v824 = vpack.c.b16 %v768, %v764
    %v825 = vpack.c.b16 %v769, %v765
    %v826 = vpack.c.b16 %v770, %v766
    %v827 = vpack.c.b16 %v775, %v771
    %v828 = vpack.c.b16 %v776, %v772
    %v829 = vpack.c.b16 %v777, %v773
    %v830 = vpack.c.b16 %v778, %v774
    %v831 = vpack.c.b16 %v783, %v779
    %v832 = vpack.c.b16 %v784, %v780
    %v833 = vpack.c.b16 %v785, %v781
    %v834 = vpack.c.b16 %v786, %v782
    %v835 = vpack.c.b16 %v791, %v787
    %v836 = vpack.c.b16 %v792, %v788
    %v837 = vpack.c.b16 %v793, %v789
    %v838 = vpack.c.b16 %v794, %v790
    %v839 = vpack.c.b16 %v799, %v795
    %v840 = vpack.c.b16 %v800, %v796
    %v841 = vpack.c.b16 %v801, %v797
    %v842 = vpack.c.b16 %v802, %v798
    %v843 = vpack.c.b16 %v807, %v803
    %v844 = vpack.c.b16 %v808, %v804
    %v845 = vpack.c.b16 %v809, %v805
    %v846 = vpack.c.b16 %v810, %v806
    %v847 = vpack.c.b16 %v815, %v811
    %v848 = vpack.c.b16 %v816, %v812
    %v849 = vpack.c.b16 %v817, %v813
    %v850 = vpack.c.b16 %v818, %v814
    %883 = vmatprep.subr.bf16.mxu0 %v848
    %884 = vmatpush1.bf16.msra.mxu0 %v847
    %885 = vmatprep.subr.bf16.mxu0 %v844
    %886 = vmatpush1.bf16.msra.mxu0 %v843
    %887 = vmatprep.subr.bf16.mxu0 %v840
    %888 = vmatpush1.bf16.msra.mxu0 %v839
    %889 = vmatprep.subr.bf16.mxu0 %v836
    %890 = vmatpush1.bf16.msra.mxu0 %v835
    %891 = vmatprep.subr.bf16.mxu0 %v832
    %892 = vmatpush1.bf16.msra.mxu0 %v831
    %893 = vmatprep.subr.bf16.mxu0 %v828
    %894 = vmatpush1.bf16.msra.mxu0 %v827
    %895 = vmatprep.subr.bf16.mxu0 %v824
    %896 = vmatpush1.bf16.msra.mxu0 %v823
    %897 = vmatprep.subr.bf16.mxu0 %v820
    %898 = vmatpush1.bf16.msra.mxu0 %v819
    %899 = vmatprep.subr.bf16.mxu0 0
    %900 = vmatpush2.bf16.msra.mxu0 0
    %901 = vmatprep.subr.bf16.mxu0 0
    %902 = vmatpush2.bf16.msra.mxu0 0
    %903 = vmatprep.subr.bf16.mxu0 0
    %904 = vmatpush2.bf16.msra.mxu0 0
    %905 = vmatprep.subr.bf16.mxu0 0
    %906 = vmatpush2.bf16.msra.mxu0 0
    %907 = vmatprep.subr.bf16.mxu0 0
    %908 = vmatpush2.bf16.msra.mxu0 0
    %909 = vmatprep.subr.bf16.mxu0 0
    %910 = vmatpush2.bf16.msra.mxu0 0
    %911 = vmatprep.subr.bf16.mxu0 0
    %912 = vmatpush2.bf16.msra.mxu0 0
    %913 = vmatprep.subr.bf16.mxu0 0
    %914 = vmatpush2.bf16.msra.mxu0 0
    %915 = vmatprep.mubr.bf16.mxu0 0
    %916 = vmatmul.mubr.bf16.gmra.mxu0 %v690
    %v917 = vpop.f32.mrf.mxu0
    %v918 = vadd.f32 0.0, %v917
    %v919 = vpop.f32.mrf.mxu0
    %v920 = vadd.f32 0.0, %v919
    %v921 = vpop.f32.mrf.mxu0
    %v922 = vpop.f32.mrf.mxu0
    %923 = vdwg.mxu0
    %924 = vmatprep.subr.bf16.mxu0 %v850
    %925 = vmatpush1.bf16.msra.mxu0 %v849
    %926 = vmatprep.subr.bf16.mxu0 %v846
    %927 = vmatpush1.bf16.msra.mxu0 %v845
    %928 = vmatprep.subr.bf16.mxu0 %v842
    %929 = vmatpush1.bf16.msra.mxu0 %v841
    %930 = vmatprep.subr.bf16.mxu0 %v838
    %931 = vmatpush1.bf16.msra.mxu0 %v837
    %932 = vmatprep.subr.bf16.mxu0 %v834
    %933 = vmatpush1.bf16.msra.mxu0 %v833
    %934 = vmatprep.subr.bf16.mxu0 %v830
    %935 = vmatpush1.bf16.msra.mxu0 %v829
    %936 = vmatprep.subr.bf16.mxu0 %v826
    %937 = vmatpush1.bf16.msra.mxu0 %v825
    %938 = vmatprep.subr.bf16.mxu0 %v822
    %939 = vmatpush1.bf16.msra.mxu0 %v821
    %940 = vmatprep.subr.bf16.mxu0 0
    %941 = vmatpush2.bf16.msra.mxu0 0
    %942 = vmatprep.subr.bf16.mxu0 0
    %943 = vmatpush2.bf16.msra.mxu0 0
    %944 = vmatprep.subr.bf16.mxu0 0
    %945 = vmatpush2.bf16.msra.mxu0 0
    %946 = vmatprep.subr.bf16.mxu0 0
    %947 = vmatpush2.bf16.msra.mxu0 0
    %948 = vmatprep.subr.bf16.mxu0 0
    %949 = vmatpush2.bf16.msra.mxu0 0
    %950 = vmatprep.subr.bf16.mxu0 0
    %951 = vmatpush2.bf16.msra.mxu0 0
    %952 = vmatprep.subr.bf16.mxu0 0
    %953 = vmatpush2.bf16.msra.mxu0 0
    %954 = vmatprep.subr.bf16.mxu0 0
    %955 = vmatpush2.bf16.msra.mxu0 0
    %956 = vmatprep.mubr.bf16.mxu0 0
    %957 = vmatmul.mubr.bf16.gmra.mxu0 %v690
    %v958 = vpop.f32.mrf.mxu0
    %v959 = vadd.f32 0.0, %v958
    %v960 = vpop.f32.mrf.mxu0
    %v961 = vadd.f32 0.0, %v960
    %v962 = vpop.f32.mrf.mxu0
    %v963 = vpop.f32.mrf.mxu0
    %964 = vdwg.mxu0
    %v965 = vadd.f32 %v686, %v918
    %v966 = vadd.f32 %v687, %v920
    %v967 = vadd.f32 %v688, %v959
    %v968 = vadd.f32 %v689, %v961
    %v969 = vxor.u32 %v965, 2147483648
    %v970 = vxor.u32 %v966, 2147483648
    %v971 = vxor.u32 %v967, 2147483648
    %v972 = vmul.f32 %v969, 1.442695
    %v973 = vpow.pop %v972
    %v974 = vmul.f32 %v970, 1.442695
    %v975 = vpow.pop %v974
    %v976 = vmul.f32 %v971, 1.442695
    %v977 = vpow.pop %v976
    %v978 = vadd.f32 %v973, 1.0
    %v979 = vadd.f32 %v975, 1.0
    %v980 = vadd.f32 %v977, 1.0
    %v981 = vrcp.pop %v978
    %v982 = vmul.f32 1.0, %v981
    %v983 = vrcp.pop %v979
    %v984 = vmul.f32 1.0, %v983
    %v985 = vrcp.pop %v980
    %v986 = vmul.f32 1.0, %v985
    %v987 = vtanh.pop %v968
    %v988 = vmul.f32 %v984, %v672
    %v989 = vmul.f32 %v982, %v987
    %v990 = vadd.f32 %v988, %v989
    %v991 = vtanh.pop %v990
    %v992 = vmul.f32 %v986, %v991
    %s993 = smul.u32 1, 2
    %s994 = smul.addr %s993, 8
    %s995 = scalar_lea.vmem [#allocation3], %s994
    %996 = vst [vmem:[%s995] sm:$0xff] %v992
    %s997 = smul.u32 6, 2
    %s998 = smul.addr %s997, 8
    %s999 = scalar_lea.vmem [#allocation3], %s998
    %1000 = vst [vmem:[%s999 + $0x8] sm:$0xff] %v992
    %s1001 = smul.u32 2, 4
    %s1002 = smul.addr %s1001, 8
    %s1003 = scalar_lea.vmem [#allocation2], %s1002
    %v1004 = vld [vmem:[%s1003] sm:$0xff]
    %v1005 = vld [vmem:[%s1003 + $0x8] sm:$0xff]
    %v1006 = vld [vmem:[%s1003 + $0x10] sm:$0xff]
    %v1007 = vld [vmem:[%s1003 + $0x18] sm:$0xff]
    %v1008 = vpack.c.bf16 %v992, %v992
    %v1009 = vld [vmem:[#allocation5] sm:$0xff]
    %v1010 = vld [vmem:[#allocation5 + $0x8] sm:$0xff]
    %v1011 = vld [vmem:[#allocation5 + $0x10] sm:$0xff]
    %v1012 = vld [vmem:[#allocation5 + $0x18] sm:$0xff]
    %v1013 = vld [vmem:[#allocation5 + $0x20] sm:$0xff]
    %v1014 = vld [vmem:[#allocation5 + $0x28] sm:$0xff]
    %v1015 = vld [vmem:[#allocation5 + $0x30] sm:$0xff]
    %v1016 = vld [vmem:[#allocation5 + $0x38] sm:$0xff]
    %v1017 = vld [vmem:[#allocation5 + $0x40] sm:$0xff]
    %v1018 = vld [vmem:[#allocation5 + $0x48] sm:$0xff]
    %v1019 = vld [vmem:[#allocation5 + $0x50] sm:$0xff]
    %v1020 = vld [vmem:[#allocation5 + $0x58] sm:$0xff]
    %v1021 = vld [vmem:[#allocation5 + $0x60] sm:$0xff]
    %v1022 = vld [vmem:[#allocation5 + $0x68] sm:$0xff]
    %v1023 = vld [vmem:[#allocation5 + $0x70] sm:$0xff]
    %v1024 = vld [vmem:[#allocation5 + $0x78] sm:$0xff]
    %v1025 = vld [vmem:[#allocation5 + $0x80] sm:$0xff]
    %v1026 = vld [vmem:[#allocation5 + $0x88] sm:$0xff]
    %v1027 = vld [vmem:[#allocation5 + $0x90] sm:$0xff]
    %v1028 = vld [vmem:[#allocation5 + $0x98] sm:$0xff]
    %v1029 = vld [vmem:[#allocation5 + $0xa0] sm:$0xff]
    %v1030 = vld [vmem:[#allocation5 + $0xa8] sm:$0xff]
    %v1031 = vld [vmem:[#allocation5 + $0xb0] sm:$0xff]
    %v1032 = vld [vmem:[#allocation5 + $0xb8] sm:$0xff]
    %v1033 = vld [vmem:[#allocation5 + $0xc0] sm:$0xff]
    %v1034 = vld [vmem:[#allocation5 + $0xc8] sm:$0xff]
    %v1035 = vld [vmem:[#allocation5 + $0xd0] sm:$0xff]
    %v1036 = vld [vmem:[#allocation5 + $0xd8] sm:$0xff]
    %v1037 = vld [vmem:[#allocation5 + $0xe0] sm:$0xff]
    %v1038 = vld [vmem:[#allocation5 + $0xe8] sm:$0xff]
    %v1039 = vld [vmem:[#allocation5 + $0xf0] sm:$0xff]
    %v1040 = vld [vmem:[#allocation5 + $0xf8] sm:$0xff]
    %v1073 = vunpack.c.l.b16 %v1009
    %v1074 = vunpack.c.h.b16 %v1009
    %v1075 = vunpack.c.l.b16 %v1010
    %v1076 = vunpack.c.h.b16 %v1010
    %v1077 = vunpack.c.l.b16 %v1011
    %v1078 = vunpack.c.h.b16 %v1011
    %v1079 = vunpack.c.l.b16 %v1012
    %v1080 = vunpack.c.h.b16 %v1012
    %v1081 = vunpack.c.l.b16 %v1013
    %v1082 = vunpack.c.h.b16 %v1013
    %v1083 = vunpack.c.l.b16 %v1014
    %v1084 = vunpack.c.h.b16 %v1014
    %v1085 = vunpack.c.l.b16 %v1015
    %v1086 = vunpack.c.h.b16 %v1015
    %v1087 = vunpack.c.l.b16 %v1016
    %v1088 = vunpack.c.h.b16 %v1016
    %v1089 = vunpack.c.l.b16 %v1017
    %v1090 = vunpack.c.h.b16 %v1017
    %v1091 = vunpack.c.l.b16 %v1018
    %v1092 = vunpack.c.h.b16 %v1018
    %v1093 = vunpack.c.l.b16 %v1019
    %v1094 = vunpack.c.h.b16 %v1019
    %v1095 = vunpack.c.l.b16 %v1020
    %v1096 = vunpack.c.h.b16 %v1020
    %v1097 = vunpack.c.l.b16 %v1021
    %v1098 = vunpack.c.h.b16 %v1021
    %v1099 = vunpack.c.l.b16 %v1022
    %v1100 = vunpack.c.h.b16 %v1022
    %v1101 = vunpack.c.l.b16 %v1023
    %v1102 = vunpack.c.h.b16 %v1023
    %v1103 = vunpack.c.l.b16 %v1024
    %v1104 = vunpack.c.h.b16 %v1024
    %v1105 = vunpack.c.l.b16 %v1025
    %v1106 = vunpack.c.h.b16 %v1025
    %v1107 = vunpack.c.l.b16 %v1026
    %v1108 = vunpack.c.h.b16 %v1026
    %v1109 = vunpack.c.l.b16 %v1027
    %v1110 = vunpack.c.h.b16 %v1027
    %v1111 = vunpack.c.l.b16 %v1028
    %v1112 = vunpack.c.h.b16 %v1028
    %v1113 = vunpack.c.l.b16 %v1029
    %v1114 = vunpack.c.h.b16 %v1029
    %v1115 = vunpack.c.l.b16 %v1030
    %v1116 = vunpack.c.h.b16 %v1030
    %v1117 = vunpack.c.l.b16 %v1031
    %v1118 = vunpack.c.h.b16 %v1031
    %v1119 = vunpack.c.l.b16 %v1032
    %v1120 = vunpack.c.h.b16 %v1032
    %v1121 = vunpack.c.l.b16 %v1033
    %v1122 = vunpack.c.h.b16 %v1033
    %v1123 = vunpack.c.l.b16 %v1034
    %v1124 = vunpack.c.h.b16 %v1034
    %v1125 = vunpack.c.l.b16 %v1035
    %v1126 = vunpack.c.h.b16 %v1035
    %v1127 = vunpack.c.l.b16 %v1036
    %v1128 = vunpack.c.h.b16 %v1036
    %v1129 = vunpack.c.l.b16 %v1037
    %v1130 = vunpack.c.h.b16 %v1037
    %v1131 = vunpack.c.l.b16 %v1038
    %v1132 = vunpack.c.h.b16 %v1038
    %v1133 = vunpack.c.l.b16 %v1039
    %v1134 = vunpack.c.h.b16 %v1039
    %v1135 = vunpack.c.l.b16 %v1040
    %v1136 = vunpack.c.h.b16 %v1040
    %v1137 = vpack.c.b16 %v1077, %v1073
    %v1138 = vpack.c.b16 %v1078, %v1074
    %v1139 = vpack.c.b16 %v1079, %v1075
    %v1140 = vpack.c.b16 %v1080, %v1076
    %v1141 = vpack.c.b16 %v1085, %v1081
    %v1142 = vpack.c.b16 %v1086, %v1082
    %v1143 = vpack.c.b16 %v1087, %v1083
    %v1144 = vpack.c.b16 %v1088, %v1084
    %v1145 = vpack.c.b16 %v1093, %v1089
    %v1146 = vpack.c.b16 %v1094, %v1090
    %v1147 = vpack.c.b16 %v1095, %v1091
    %v1148 = vpack.c.b16 %v1096, %v1092
    %v1149 = vpack.c.b16 %v1101, %v1097
    %v1150 = vpack.c.b16 %v1102, %v1098
    %v1151 = vpack.c.b16 %v1103, %v1099
    %v1152 = vpack.c.b16 %v1104, %v1100
    %v1153 = vpack.c.b16 %v1109, %v1105
    %v1154 = vpack.c.b16 %v1110, %v1106
    %v1155 = vpack.c.b16 %v1111, %v1107
    %v1156 = vpack.c.b16 %v1112, %v1108
    %v1157 = vpack.c.b16 %v1117, %v1113
    %v1158 = vpack.c.b16 %v1118, %v1114
    %v1159 = vpack.c.b16 %v1119, %v1115
    %v1160 = vpack.c.b16 %v1120, %v1116
    %v1161 = vpack.c.b16 %v1125, %v1121
    %v1162 = vpack.c.b16 %v1126, %v1122
    %v1163 = vpack.c.b16 %v1127, %v1123
    %v1164 = vpack.c.b16 %v1128, %v1124
    %v1165 = vpack.c.b16 %v1133, %v1129
    %v1166 = vpack.c.b16 %v1134, %v1130
    %v1167 = vpack.c.b16 %v1135, %v1131
    %v1168 = vpack.c.b16 %v1136, %v1132
    %1201 = vmatprep.subr.bf16.mxu0 %v1166
    %1202 = vmatpush1.bf16.msra.mxu0 %v1165
    %1203 = vmatprep.subr.bf16.mxu0 %v1162
    %1204 = vmatpush1.bf16.msra.mxu0 %v1161
    %1205 = vmatprep.subr.bf16.mxu0 %v1158
    %1206 = vmatpush1.bf16.msra.mxu0 %v1157
    %1207 = vmatprep.subr.bf16.mxu0 %v1154
    %1208 = vmatpush1.bf16.msra.mxu0 %v1153
    %1209 = vmatprep.subr.bf16.mxu0 %v1150
    %1210 = vmatpush1.bf16.msra.mxu0 %v1149
    %1211 = vmatprep.subr.bf16.mxu0 %v1146
    %1212 = vmatpush1.bf16.msra.mxu0 %v1145
    %1213 = vmatprep.subr.bf16.mxu0 %v1142
    %1214 = vmatpush1.bf16.msra.mxu0 %v1141
    %1215 = vmatprep.subr.bf16.mxu0 %v1138
    %1216 = vmatpush1.bf16.msra.mxu0 %v1137
    %1217 = vmatprep.subr.bf16.mxu0 0
    %1218 = vmatpush2.bf16.msra.mxu0 0
    %1219 = vmatprep.subr.bf16.mxu0 0
    %1220 = vmatpush2.bf16.msra.mxu0 0
    %1221 = vmatprep.subr.bf16.mxu0 0
    %1222 = vmatpush2.bf16.msra.mxu0 0
    %1223 = vmatprep.subr.bf16.mxu0 0
    %1224 = vmatpush2.bf16.msra.mxu0 0
    %1225 = vmatprep.subr.bf16.mxu0 0
    %1226 = vmatpush2.bf16.msra.mxu0 0
    %1227 = vmatprep.subr.bf16.mxu0 0
    %1228 = vmatpush2.bf16.msra.mxu0 0
    %1229 = vmatprep.subr.bf16.mxu0 0
    %1230 = vmatpush2.bf16.msra.mxu0 0
    %1231 = vmatprep.subr.bf16.mxu0 0
    %1232 = vmatpush2.bf16.msra.mxu0 0
    %1233 = vmatprep.mubr.bf16.mxu0 0
    %1234 = vmatmul.mubr.bf16.gmra.mxu0 %v1008
    %v1235 = vpop.f32.mrf.mxu0
    %v1236 = vadd.f32 0.0, %v1235
    %v1237 = vpop.f32.mrf.mxu0
    %v1238 = vadd.f32 0.0, %v1237
    %v1239 = vpop.f32.mrf.mxu0
    %v1240 = vpop.f32.mrf.mxu0
    %1241 = vdwg.mxu0
    %1242 = vmatprep.subr.bf16.mxu0 %v1168
    %1243 = vmatpush1.bf16.msra.mxu0 %v1167
    %1244 = vmatprep.subr.bf16.mxu0 %v1164
    %1245 = vmatpush1.bf16.msra.mxu0 %v1163
    %1246 = vmatprep.subr.bf16.mxu0 %v1160
    %1247 = vmatpush1.bf16.msra.mxu0 %v1159
    %1248 = vmatprep.subr.bf16.mxu0 %v1156
    %1249 = vmatpush1.bf16.msra.mxu0 %v1155
    %1250 = vmatprep.subr.bf16.mxu0 %v1152
    %1251 = vmatpush1.bf16.msra.mxu0 %v1151
    %1252 = vmatprep.subr.bf16.mxu0 %v1148
    %1253 = vmatpush1.bf16.msra.mxu0 %v1147
    %1254 = vmatprep.subr.bf16.mxu0 %v1144
    %1255 = vmatpush1.bf16.msra.mxu0 %v1143
    %1256 = vmatprep.subr.bf16.mxu0 %v1140
    %1257 = vmatpush1.bf16.msra.mxu0 %v1139
    %1258 = vmatprep.subr.bf16.mxu0 0
    %1259 = vmatpush2.bf16.msra.mxu0 0
    %1260 = vmatprep.subr.bf16.mxu0 0
    %1261 = vmatpush2.bf16.msra.mxu0 0
    %1262 = vmatprep.subr.bf16.mxu0 0
    %1263 = vmatpush2.bf16.msra.mxu0 0
    %1264 = vmatprep.subr.bf16.mxu0 0
    %1265 = vmatpush2.bf16.msra.mxu0 0
    %1266 = vmatprep.subr.bf16.mxu0 0
    %1267 = vmatpush2.bf16.msra.mxu0 0
    %1268 = vmatprep.subr.bf16.mxu0 0
    %1269 = vmatpush2.bf16.msra.mxu0 0
    %1270 = vmatprep.subr.bf16.mxu0 0
    %1271 = vmatpush2.bf16.msra.mxu0 0
    %1272 = vmatprep.subr.bf16.mxu0 0
    %1273 = vmatpush2.bf16.msra.mxu0 0
    %1274 = vmatprep.mubr.bf16.mxu0 0
    %1275 = vmatmul.mubr.bf16.gmra.mxu0 %v1008
    %v1276 = vpop.f32.mrf.mxu0
    %v1277 = vadd.f32 0.0, %v1276
    %v1278 = vpop.f32.mrf.mxu0
    %v1279 = vadd.f32 0.0, %v1278
    %v1280 = vpop.f32.mrf.mxu0
    %v1281 = vpop.f32.mrf.mxu0
    %1282 = vdwg.mxu0
    %v1283 = vadd.f32 %v1004, %v1236
    %v1284 = vadd.f32 %v1005, %v1238
    %v1285 = vadd.f32 %v1006, %v1277
    %v1286 = vadd.f32 %v1007, %v1279
    %v1287 = vxor.u32 %v1283, 2147483648
    %v1288 = vxor.u32 %v1284, 2147483648
    %v1289 = vxor.u32 %v1285, 2147483648
    %v1290 = vmul.f32 %v1287, 1.442695
    %v1291 = vpow.pop %v1290
    %v1292 = vmul.f32 %v1288, 1.442695
    %v1293 = vpow.pop %v1292
    %v1294 = vmul.f32 %v1289, 1.442695
    %v1295 = vpow.pop %v1294
    %v1296 = vadd.f32 %v1291, 1.0
    %v1297 = vadd.f32 %v1293, 1.0
    %v1298 = vadd.f32 %v1295, 1.0
    %v1299 = vrcp.pop %v1296
    %v1300 = vmul.f32 1.0, %v1299
    %v1301 = vrcp.pop %v1297
    %v1302 = vmul.f32 1.0, %v1301
    %v1303 = vrcp.pop %v1298
    %v1304 = vmul.f32 1.0, %v1303
    %v1305 = vtanh.pop %v1286
    %v1306 = vmul.f32 %v1302, %v990
    %v1307 = vmul.f32 %v1300, %v1305
    %v1308 = vadd.f32 %v1306, %v1307
    %v1309 = vtanh.pop %v1308
    %v1310 = vmul.f32 %v1304, %v1309
    %s1311 = smul.u32 2, 2
    %s1312 = smul.addr %s1311, 8
    %s1313 = scalar_lea.vmem [#allocation3], %s1312
    %1314 = vst [vmem:[%s1313] sm:$0xff] %v1310
    %s1315 = smul.u32 5, 2
    %s1316 = smul.addr %s1315, 8
    %s1317 = scalar_lea.vmem [#allocation3], %s1316
    %1318 = vst [vmem:[%s1317 + $0x8] sm:$0xff] %v1310
    %s1319 = smul.u32 3, 4
    %s1320 = smul.addr %s1319, 8
    %s1321 = scalar_lea.vmem [#allocation2], %s1320
    %v1322 = vld [vmem:[%s1321] sm:$0xff]
    %v1323 = vld [vmem:[%s1321 + $0x8] sm:$0xff]
    %v1324 = vld [vmem:[%s1321 + $0x10] sm:$0xff]
    %v1325 = vld [vmem:[%s1321 + $0x18] sm:$0xff]
    %v1326 = vpack.c.bf16 %v1310, %v1310
    %v1327 = vld [vmem:[#allocation5] sm:$0xff]
    %v1328 = vld [vmem:[#allocation5 + $0x8] sm:$0xff]
    %v1329 = vld [vmem:[#allocation5 + $0x10] sm:$0xff]
    %v1330 = vld [vmem:[#allocation5 + $0x18] sm:$0xff]
    %v1331 = vld [vmem:[#allocation5 + $0x20] sm:$0xff]
    %v1332 = vld [vmem:[#allocation5 + $0x28] sm:$0xff]
    %v1333 = vld [vmem:[#allocation5 + $0x30] sm:$0xff]
    %v1334 = vld [vmem:[#allocation5 + $0x38] sm:$0xff]
    %v1335 = vld [vmem:[#allocation5 + $0x40] sm:$0xff]
    %v1336 = vld [vmem:[#allocation5 + $0x48] sm:$0xff]
    %v1337 = vld [vmem:[#allocation5 + $0x50] sm:$0xff]
    %v1338 = vld [vmem:[#allocation5 + $0x58] sm:$0xff]
    %v1339 = vld [vmem:[#allocation5 + $0x60] sm:$0xff]
    %v1340 = vld [vmem:[#allocation5 + $0x68] sm:$0xff]
    %v1341 = vld [vmem:[#allocation5 + $0x70] sm:$0xff]
    %v1342 = vld [vmem:[#allocation5 + $0x78] sm:$0xff]
    %v1343 = vld [vmem:[#allocation5 + $0x80] sm:$0xff]
    %v1344 = vld [vmem:[#allocation5 + $0x88] sm:$0xff]
    %v1345 = vld [vmem:[#allocation5 + $0x90] sm:$0xff]
    %v1346 = vld [vmem:[#allocation5 + $0x98] sm:$0xff]
    %v1347 = vld [vmem:[#allocation5 + $0xa0] sm:$0xff]
    %v1348 = vld [vmem:[#allocation5 + $0xa8] sm:$0xff]
    %v1349 = vld [vmem:[#allocation5 + $0xb0] sm:$0xff]
    %v1350 = vld [vmem:[#allocation5 + $0xb8] sm:$0xff]
    %v1351 = vld [vmem:[#allocation5 + $0xc0] sm:$0xff]
    %v1352 = vld [vmem:[#allocation5 + $0xc8] sm:$0xff]
    %v1353 = vld [vmem:[#allocation5 + $0xd0] sm:$0xff]
    %v1354 = vld [vmem:[#allocation5 + $0xd8] sm:$0xff]
    %v1355 = vld [vmem:[#allocation5 + $0xe0] sm:$0xff]
    %v1356 = vld [vmem:[#allocation5 + $0xe8] sm:$0xff]
    %v1357 = vld [vmem:[#allocation5 + $0xf0] sm:$0xff]
    %v1358 = vld [vmem:[#allocation5 + $0xf8] sm:$0xff]
    %v1391 = vunpack.c.l.b16 %v1327
    %v1392 = vunpack.c.h.b16 %v1327
    %v1393 = vunpack.c.l.b16 %v1328
    %v1394 = vunpack.c.h.b16 %v1328
    %v1395 = vunpack.c.l.b16 %v1329
    %v1396 = vunpack.c.h.b16 %v1329
    %v1397 = vunpack.c.l.b16 %v1330
    %v1398 = vunpack.c.h.b16 %v1330
    %v1399 = vunpack.c.l.b16 %v1331
    %v1400 = vunpack.c.h.b16 %v1331
    %v1401 = vunpack.c.l.b16 %v1332
    %v1402 = vunpack.c.h.b16 %v1332
    %v1403 = vunpack.c.l.b16 %v1333
    %v1404 = vunpack.c.h.b16 %v1333
    %v1405 = vunpack.c.l.b16 %v1334
    %v1406 = vunpack.c.h.b16 %v1334
    %v1407 = vunpack.c.l.b16 %v1335
    %v1408 = vunpack.c.h.b16 %v1335
    %v1409 = vunpack.c.l.b16 %v1336
    %v1410 = vunpack.c.h.b16 %v1336
    %v1411 = vunpack.c.l.b16 %v1337
    %v1412 = vunpack.c.h.b16 %v1337
    %v1413 = vunpack.c.l.b16 %v1338
    %v1414 = vunpack.c.h.b16 %v1338
    %v1415 = vunpack.c.l.b16 %v1339
    %v1416 = vunpack.c.h.b16 %v1339
    %v1417 = vunpack.c.l.b16 %v1340
    %v1418 = vunpack.c.h.b16 %v1340
    %v1419 = vunpack.c.l.b16 %v1341
    %v1420 = vunpack.c.h.b16 %v1341
    %v1421 = vunpack.c.l.b16 %v1342
    %v1422 = vunpack.c.h.b16 %v1342
    %v1423 = vunpack.c.l.b16 %v1343
    %v1424 = vunpack.c.h.b16 %v1343
    %v1425 = vunpack.c.l.b16 %v1344
    %v1426 = vunpack.c.h.b16 %v1344
    %v1427 = vunpack.c.l.b16 %v1345
    %v1428 = vunpack.c.h.b16 %v1345
    %v1429 = vunpack.c.l.b16 %v1346
    %v1430 = vunpack.c.h.b16 %v1346
    %v1431 = vunpack.c.l.b16 %v1347
    %v1432 = vunpack.c.h.b16 %v1347
    %v1433 = vunpack.c.l.b16 %v1348
    %v1434 = vunpack.c.h.b16 %v1348
    %v1435 = vunpack.c.l.b16 %v1349
    %v1436 = vunpack.c.h.b16 %v1349
    %v1437 = vunpack.c.l.b16 %v1350
    %v1438 = vunpack.c.h.b16 %v1350
    %v1439 = vunpack.c.l.b16 %v1351
    %v1440 = vunpack.c.h.b16 %v1351
    %v1441 = vunpack.c.l.b16 %v1352
    %v1442 = vunpack.c.h.b16 %v1352
    %v1443 = vunpack.c.l.b16 %v1353
    %v1444 = vunpack.c.h.b16 %v1353
    %v1445 = vunpack.c.l.b16 %v1354
    %v1446 = vunpack.c.h.b16 %v1354
    %v1447 = vunpack.c.l.b16 %v1355
    %v1448 = vunpack.c.h.b16 %v1355
    %v1449 = vunpack.c.l.b16 %v1356
    %v1450 = vunpack.c.h.b16 %v1356
    %v1451 = vunpack.c.l.b16 %v1357
    %v1452 = vunpack.c.h.b16 %v1357
    %v1453 = vunpack.c.l.b16 %v1358
    %v1454 = vunpack.c.h.b16 %v1358
    %v1455 = vpack.c.b16 %v1395, %v1391
    %v1456 = vpack.c.b16 %v1396, %v1392
    %v1457 = vpack.c.b16 %v1397, %v1393
    %v1458 = vpack.c.b16 %v1398, %v1394
    %v1459 = vpack.c.b16 %v1403, %v1399
    %v1460 = vpack.c.b16 %v1404, %v1400
    %v1461 = vpack.c.b16 %v1405, %v1401
    %v1462 = vpack.c.b16 %v1406, %v1402
    %v1463 = vpack.c.b16 %v1411, %v1407
    %v1464 = vpack.c.b16 %v1412, %v1408
    %v1465 = vpack.c.b16 %v1413, %v1409
    %v1466 = vpack.c.b16 %v1414, %v1410
    %v1467 = vpack.c.b16 %v1419, %v1415
    %v1468 = vpack.c.b16 %v1420, %v1416
    %v1469 = vpack.c.b16 %v1421, %v1417
    %v1470 = vpack.c.b16 %v1422, %v1418
    %v1471 = vpack.c.b16 %v1427, %v1423
    %v1472 = vpack.c.b16 %v1428, %v1424
    %v1473 = vpack.c.b16 %v1429, %v1425
    %v1474 = vpack.c.b16 %v1430, %v1426
    %v1475 = vpack.c.b16 %v1435, %v1431
    %v1476 = vpack.c.b16 %v1436, %v1432
    %v1477 = vpack.c.b16 %v1437, %v1433
    %v1478 = vpack.c.b16 %v1438, %v1434
    %v1479 = vpack.c.b16 %v1443, %v1439
    %v1480 = vpack.c.b16 %v1444, %v1440
    %v1481 = vpack.c.b16 %v1445, %v1441
    %v1482 = vpack.c.b16 %v1446, %v1442
    %v1483 = vpack.c.b16 %v1451, %v1447
    %v1484 = vpack.c.b16 %v1452, %v1448
    %v1485 = vpack.c.b16 %v1453, %v1449
    %v1486 = vpack.c.b16 %v1454, %v1450
    %1519 = vmatprep.subr.bf16.mxu0 %v1484
    %1520 = vmatpush1.bf16.msra.mxu0 %v1483
    %1521 = vmatprep.subr.bf16.mxu0 %v1480
    %1522 = vmatpush1.bf16.msra.mxu0 %v1479
    %1523 = vmatprep.subr.bf16.mxu0 %v1476
    %1524 = vmatpush1.bf16.msra.mxu0 %v1475
    %1525 = vmatprep.subr.bf16.mxu0 %v1472
    %1526 = vmatpush1.bf16.msra.mxu0 %v1471
    %1527 = vmatprep.subr.bf16.mxu0 %v1468
    %1528 = vmatpush1.bf16.msra.mxu0 %v1467
    %1529 = vmatprep.subr.bf16.mxu0 %v1464
    %1530 = vmatpush1.bf16.msra.mxu0 %v1463
    %1531 = vmatprep.subr.bf16.mxu0 %v1460
    %1532 = vmatpush1.bf16.msra.mxu0 %v1459
    %1533 = vmatprep.subr.bf16.mxu0 %v1456
    %1534 = vmatpush1.bf16.msra.mxu0 %v1455
    %1535 = vmatprep.subr.bf16.mxu0 0
    %1536 = vmatpush2.bf16.msra.mxu0 0
    %1537 = vmatprep.subr.bf16.mxu0 0
    %1538 = vmatpush2.bf16.msra.mxu0 0
    %1539 = vmatprep.subr.bf16.mxu0 0
    %1540 = vmatpush2.bf16.msra.mxu0 0
    %1541 = vmatprep.subr.bf16.mxu0 0
    %1542 = vmatpush2.bf16.msra.mxu0 0
    %1543 = vmatprep.subr.bf16.mxu0 0
    %1544 = vmatpush2.bf16.msra.mxu0 0
    %1545 = vmatprep.subr.bf16.mxu0 0
    %1546 = vmatpush2.bf16.msra.mxu0 0
    %1547 = vmatprep.subr.bf16.mxu0 0
    %1548 = vmatpush2.bf16.msra.mxu0 0
    %1549 = vmatprep.subr.bf16.mxu0 0
    %1550 = vmatpush2.bf16.msra.mxu0 0
    %1551 = vmatprep.mubr.bf16.mxu0 0
    %1552 = vmatmul.mubr.bf16.gmra.mxu0 %v1326
    %v1553 = vpop.f32.mrf.mxu0
    %v1554 = vadd.f32 0.0, %v1553
    %v1555 = vpop.f32.mrf.mxu0
    %v1556 = vadd.f32 0.0, %v1555
    %v1557 = vpop.f32.mrf.mxu0
    %v1558 = vpop.f32.mrf.mxu0
    %1559 = vdwg.mxu0
    %1560 = vmatprep.subr.bf16.mxu0 %v1486
    %1561 = vmatpush1.bf16.msra.mxu0 %v1485
    %1562 = vmatprep.subr.bf16.mxu0 %v1482
    %1563 = vmatpush1.bf16.msra.mxu0 %v1481
    %1564 = vmatprep.subr.bf16.mxu0 %v1478
    %1565 = vmatpush1.bf16.msra.mxu0 %v1477
    %1566 = vmatprep.subr.bf16.mxu0 %v1474
    %1567 = vmatpush1.bf16.msra.mxu0 %v1473
    %1568 = vmatprep.subr.bf16.mxu0 %v1470
    %1569 = vmatpush1.bf16.msra.mxu0 %v1469
    %1570 = vmatprep.subr.bf16.mxu0 %v1466
    %1571 = vmatpush1.bf16.msra.mxu0 %v1465
    %1572 = vmatprep.subr.bf16.mxu0 %v1462
    %1573 = vmatpush1.bf16.msra.mxu0 %v1461
    %1574 = vmatprep.subr.bf16.mxu0 %v1458
    %1575 = vmatpush1.bf16.msra.mxu0 %v1457
    %1576 = vmatprep.subr.bf16.mxu0 0
    %1577 = vmatpush2.bf16.msra.mxu0 0
    %1578 = vmatprep.subr.bf16.mxu0 0
    %1579 = vmatpush2.bf16.msra.mxu0 0
    %1580 = vmatprep.subr.bf16.mxu0 0
    %1581 = vmatpush2.bf16.msra.mxu0 0
    %1582 = vmatprep.subr.bf16.mxu0 0
    %1583 = vmatpush2.bf16.msra.mxu0 0
    %1584 = vmatprep.subr.bf16.mxu0 0
    %1585 = vmatpush2.bf16.msra.mxu0 0
    %1586 = vmatprep.subr.bf16.mxu0 0
    %1587 = vmatpush2.bf16.msra.mxu0 0
    %1588 = vmatprep.subr.bf16.mxu0 0
    %1589 = vmatpush2.bf16.msra.mxu0 0
    %1590 = vmatprep.subr.bf16.mxu0 0
    %1591 = vmatpush2.bf16.msra.mxu0 0
    %1592 = vmatprep.mubr.bf16.mxu0 0
    %1593 = vmatmul.mubr.bf16.gmra.mxu0 %v1326
    %v1594 = vpop.f32.mrf.mxu0
    %v1595 = vadd.f32 0.0, %v1594
    %v1596 = vpop.f32.mrf.mxu0
    %v1597 = vadd.f32 0.0, %v1596
    %v1598 = vpop.f32.mrf.mxu0
    %v1599 = vpop.f32.mrf.mxu0
    %1600 = vdwg.mxu0
    %v1601 = vadd.f32 %v1322, %v1554
    %v1602 = vadd.f32 %v1323, %v1556
    %v1603 = vadd.f32 %v1324, %v1595
    %v1604 = vadd.f32 %v1325, %v1597
    %v1605 = vxor.u32 %v1601, 2147483648
    %v1606 = vxor.u32 %v1602, 2147483648
    %v1607 = vxor.u32 %v1603, 2147483648
    %v1608 = vmul.f32 %v1605, 1.442695
    %v1609 = vpow.pop %v1608
    %v1610 = vmul.f32 %v1606, 1.442695
    %v1611 = vpow.pop %v1610
    %v1612 = vmul.f32 %v1607, 1.442695
    %v1613 = vpow.pop %v1612
    %v1614 = vadd.f32 %v1609, 1.0
    %v1615 = vadd.f32 %v1611, 1.0
    %v1616 = vadd.f32 %v1613, 1.0
    %v1617 = vrcp.pop %v1614
    %v1618 = vmul.f32 1.0, %v1617
    %v1619 = vrcp.pop %v1615
    %v1620 = vmul.f32 1.0, %v1619
    %v1621 = vrcp.pop %v1616
    %v1622 = vmul.f32 1.0, %v1621
    %v1623 = vtanh.pop %v1604
    %v1624 = vmul.f32 %v1620, %v1308
    %v1625 = vmul.f32 %v1618, %v1623
    %v1626 = vadd.f32 %v1624, %v1625
    %v1627 = vtanh.pop %v1626
    %v1628 = vmul.f32 %v1622, %v1627
    %s1629 = smul.u32 3, 2
    %s1630 = smul.addr %s1629, 8
    %s1631 = scalar_lea.vmem [#allocation3], %s1630
    %1632 = vst [vmem:[%s1631] sm:$0xff] %v1628
    %s1633 = smul.u32 4, 2
    %s1634 = smul.addr %s1633, 8
    %s1635 = scalar_lea.vmem [#allocation3], %s1634
    %1636 = vst [vmem:[%s1635 + $0x8] sm:$0xff] %v1628
    %s1637 = smul.u32 4, 4
    %s1638 = smul.addr %s1637, 8
    %s1639 = scalar_lea.vmem [#allocation2], %s1638
    %v1640 = vld [vmem:[%s1639] sm:$0xff]
    %v1641 = vld [vmem:[%s1639 + $0x8] sm:$0xff]
    %v1642 = vld [vmem:[%s1639 + $0x10] sm:$0xff]
    %v1643 = vld [vmem:[%s1639 + $0x18] sm:$0xff]
    %v1644 = vpack.c.bf16 %v1628, %v1628
    %v1645 = vld [vmem:[#allocation5] sm:$0xff]
    %v1646 = vld [vmem:[#allocation5 + $0x8] sm:$0xff]
    %v1647 = vld [vmem:[#allocation5 + $0x10] sm:$0xff]
    %v1648 = vld [vmem:[#allocation5 + $0x18] sm:$0xff]
    %v1649 = vld [vmem:[#allocation5 + $0x20] sm:$0xff]
    %v1650 = vld [vmem:[#allocation5 + $0x28] sm:$0xff]
    %v1651 = vld [vmem:[#allocation5 + $0x30] sm:$0xff]
    %v1652 = vld [vmem:[#allocation5 + $0x38] sm:$0xff]
    %v1653 = vld [vmem:[#allocation5 + $0x40] sm:$0xff]
    %v1654 = vld [vmem:[#allocation5 + $0x48] sm:$0xff]
    %v1655 = vld [vmem:[#allocation5 + $0x50] sm:$0xff]
    %v1656 = vld [vmem:[#allocation5 + $0x58] sm:$0xff]
    %v1657 = vld [vmem:[#allocation5 + $0x60] sm:$0xff]
    %v1658 = vld [vmem:[#allocation5 + $0x68] sm:$0xff]
    %v1659 = vld [vmem:[#allocation5 + $0x70] sm:$0xff]
    %v1660 = vld [vmem:[#allocation5 + $0x78] sm:$0xff]
    %v1661 = vld [vmem:[#allocation5 + $0x80] sm:$0xff]
    %v1662 = vld [vmem:[#allocation5 + $0x88] sm:$0xff]
    %v1663 = vld [vmem:[#allocation5 + $0x90] sm:$0xff]
    %v1664 = vld [vmem:[#allocation5 + $0x98] sm:$0xff]
    %v1665 = vld [vmem:[#allocation5 + $0xa0] sm:$0xff]
    %v1666 = vld [vmem:[#allocation5 + $0xa8] sm:$0xff]
    %v1667 = vld [vmem:[#allocation5 + $0xb0] sm:$0xff]
    %v1668 = vld [vmem:[#allocation5 + $0xb8] sm:$0xff]
    %v1669 = vld [vmem:[#allocation5 + $0xc0] sm:$0xff]
    %v1670 = vld [vmem:[#allocation5 + $0xc8] sm:$0xff]
    %v1671 = vld [vmem:[#allocation5 + $0xd0] sm:$0xff]
    %v1672 = vld [vmem:[#allocation5 + $0xd8] sm:$0xff]
    %v1673 = vld [vmem:[#allocation5 + $0xe0] sm:$0xff]
    %v1674 = vld [vmem:[#allocation5 + $0xe8] sm:$0xff]
    %v1675 = vld [vmem:[#allocation5 + $0xf0] sm:$0xff]
    %v1676 = vld [vmem:[#allocation5 + $0xf8] sm:$0xff]
    %v1709 = vunpack.c.l.b16 %v1645
    %v1710 = vunpack.c.h.b16 %v1645
    %v1711 = vunpack.c.l.b16 %v1646
    %v1712 = vunpack.c.h.b16 %v1646
    %v1713 = vunpack.c.l.b16 %v1647
    %v1714 = vunpack.c.h.b16 %v1647
    %v1715 = vunpack.c.l.b16 %v1648
    %v1716 = vunpack.c.h.b16 %v1648
    %v1717 = vunpack.c.l.b16 %v1649
    %v1718 = vunpack.c.h.b16 %v1649
    %v1719 = vunpack.c.l.b16 %v1650
    %v1720 = vunpack.c.h.b16 %v1650
    %v1721 = vunpack.c.l.b16 %v1651
    %v1722 = vunpack.c.h.b16 %v1651
    %v1723 = vunpack.c.l.b16 %v1652
    %v1724 = vunpack.c.h.b16 %v1652
    %v1725 = vunpack.c.l.b16 %v1653
    %v1726 = vunpack.c.h.b16 %v1653
    %v1727 = vunpack.c.l.b16 %v1654
    %v1728 = vunpack.c.h.b16 %v1654
    %v1729 = vunpack.c.l.b16 %v1655
    %v1730 = vunpack.c.h.b16 %v1655
    %v1731 = vunpack.c.l.b16 %v1656
    %v1732 = vunpack.c.h.b16 %v1656
    %v1733 = vunpack.c.l.b16 %v1657
    %v1734 = vunpack.c.h.b16 %v1657
    %v1735 = vunpack.c.l.b16 %v1658
    %v1736 = vunpack.c.h.b16 %v1658
    %v1737 = vunpack.c.l.b16 %v1659
    %v1738 = vunpack.c.h.b16 %v1659
    %v1739 = vunpack.c.l.b16 %v1660
    %v1740 = vunpack.c.h.b16 %v1660
    %v1741 = vunpack.c.l.b16 %v1661
    %v1742 = vunpack.c.h.b16 %v1661
    %v1743 = vunpack.c.l.b16 %v1662
    %v1744 = vunpack.c.h.b16 %v1662
    %v1745 = vunpack.c.l.b16 %v1663
    %v1746 = vunpack.c.h.b16 %v1663
    %v1747 = vunpack.c.l.b16 %v1664
    %v1748 = vunpack.c.h.b16 %v1664
    %v1749 = vunpack.c.l.b16 %v1665
    %v1750 = vunpack.c.h.b16 %v1665
    %v1751 = vunpack.c.l.b16 %v1666
    %v1752 = vunpack.c.h.b16 %v1666
    %v1753 = vunpack.c.l.b16 %v1667
    %v1754 = vunpack.c.h.b16 %v1667
    %v1755 = vunpack.c.l.b16 %v1668
    %v1756 = vunpack.c.h.b16 %v1668
    %v1757 = vunpack.c.l.b16 %v1669
    %v1758 = vunpack.c.h.b16 %v1669
    %v1759 = vunpack.c.l.b16 %v1670
    %v1760 = vunpack.c.h.b16 %v1670
    %v1761 = vunpack.c.l.b16 %v1671
    %v1762 = vunpack.c.h.b16 %v1671
    %v1763 = vunpack.c.l.b16 %v1672
    %v1764 = vunpack.c.h.b16 %v1672
    %v1765 = vunpack.c.l.b16 %v1673
    %v1766 = vunpack.c.h.b16 %v1673
    %v1767 = vunpack.c.l.b16 %v1674
    %v1768 = vunpack.c.h.b16 %v1674
    %v1769 = vunpack.c.l.b16 %v1675
    %v1770 = vunpack.c.h.b16 %v1675
    %v1771 = vunpack.c.l.b16 %v1676
    %v1772 = vunpack.c.h.b16 %v1676
    %v1773 = vpack.c.b16 %v1713, %v1709
    %v1774 = vpack.c.b16 %v1714, %v1710
    %v1775 = vpack.c.b16 %v1715, %v1711
    %v1776 = vpack.c.b16 %v1716, %v1712
    %v1777 = vpack.c.b16 %v1721, %v1717
    %v1778 = vpack.c.b16 %v1722, %v1718
    %v1779 = vpack.c.b16 %v1723, %v1719
    %v1780 = vpack.c.b16 %v1724, %v1720
    %v1781 = vpack.c.b16 %v1729, %v1725
    %v1782 = vpack.c.b16 %v1730, %v1726
    %v1783 = vpack.c.b16 %v1731, %v1727
    %v1784 = vpack.c.b16 %v1732, %v1728
    %v1785 = vpack.c.b16 %v1737, %v1733
    %v1786 = vpack.c.b16 %v1738, %v1734
    %v1787 = vpack.c.b16 %v1739, %v1735
    %v1788 = vpack.c.b16 %v1740, %v1736
    %v1789 = vpack.c.b16 %v1745, %v1741
    %v1790 = vpack.c.b16 %v1746, %v1742
    %v1791 = vpack.c.b16 %v1747, %v1743
    %v1792 = vpack.c.b16 %v1748, %v1744
    %v1793 = vpack.c.b16 %v1753, %v1749
    %v1794 = vpack.c.b16 %v1754, %v1750
    %v1795 = vpack.c.b16 %v1755, %v1751
    %v1796 = vpack.c.b16 %v1756, %v1752
    %v1797 = vpack.c.b16 %v1761, %v1757
    %v1798 = vpack.c.b16 %v1762, %v1758
    %v1799 = vpack.c.b16 %v1763, %v1759
    %v1800 = vpack.c.b16 %v1764, %v1760
    %v1801 = vpack.c.b16 %v1769, %v1765
    %v1802 = vpack.c.b16 %v1770, %v1766
    %v1803 = vpack.c.b16 %v1771, %v1767
    %v1804 = vpack.c.b16 %v1772, %v1768
    %1837 = vmatprep.subr.bf16.mxu0 %v1802
    %1838 = vmatpush1.bf16.msra.mxu0 %v1801
    %1839 = vmatprep.subr.bf16.mxu0 %v1798
    %1840 = vmatpush1.bf16.msra.mxu0 %v1797
    %1841 = vmatprep.subr.bf16.mxu0 %v1794
    %1842 = vmatpush1.bf16.msra.mxu0 %v1793
    %1843 = vmatprep.subr.bf16.mxu0 %v1790
    %1844 = vmatpush1.bf16.msra.mxu0 %v1789
    %1845 = vmatprep.subr.bf16.mxu0 %v1786
    %1846 = vmatpush1.bf16.msra.mxu0 %v1785
    %1847 = vmatprep.subr.bf16.mxu0 %v1782
    %1848 = vmatpush1.bf16.msra.mxu0 %v1781
    %1849 = vmatprep.subr.bf16.mxu0 %v1778
    %1850 = vmatpush1.bf16.msra.mxu0 %v1777
    %1851 = vmatprep.subr.bf16.mxu0 %v1774
    %1852 = vmatpush1.bf16.msra.mxu0 %v1773
    %1853 = vmatprep.subr.bf16.mxu0 0
    %1854 = vmatpush2.bf16.msra.mxu0 0
    %1855 = vmatprep.subr.bf16.mxu0 0
    %1856 = vmatpush2.bf16.msra.mxu0 0
    %1857 = vmatprep.subr.bf16.mxu0 0
    %1858 = vmatpush2.bf16.msra.mxu0 0
    %1859 = vmatprep.subr.bf16.mxu0 0
    %1860 = vmatpush2.bf16.msra.mxu0 0
    %1861 = vmatprep.subr.bf16.mxu0 0
    %1862 = vmatpush2.bf16.msra.mxu0 0
    %1863 = vmatprep.subr.bf16.mxu0 0
    %1864 = vmatpush2.bf16.msra.mxu0 0
    %1865 = vmatprep.subr.bf16.mxu0 0
    %1866 = vmatpush2.bf16.msra.mxu0 0
    %1867 = vmatprep.subr.bf16.mxu0 0
    %1868 = vmatpush2.bf16.msra.mxu0 0
    %1869 = vmatprep.mubr.bf16.mxu0 0
    %1870 = vmatmul.mubr.bf16.gmra.mxu0 %v1644
    %v1871 = vpop.f32.mrf.mxu0
    %v1872 = vadd.f32 0.0, %v1871
    %v1873 = vpop.f32.mrf.mxu0
    %v1874 = vadd.f32 0.0, %v1873
    %v1875 = vpop.f32.mrf.mxu0
    %v1876 = vpop.f32.mrf.mxu0
    %1877 = vdwg.mxu0
    %1878 = vmatprep.subr.bf16.mxu0 %v1804
    %1879 = vmatpush1.bf16.msra.mxu0 %v1803
    %1880 = vmatprep.subr.bf16.mxu0 %v1800
    %1881 = vmatpush1.bf16.msra.mxu0 %v1799
    %1882 = vmatprep.subr.bf16.mxu0 %v1796
    %1883 = vmatpush1.bf16.msra.mxu0 %v1795
    %1884 = vmatprep.subr.bf16.mxu0 %v1792
    %1885 = vmatpush1.bf16.msra.mxu0 %v1791
    %1886 = vmatprep.subr.bf16.mxu0 %v1788
    %1887 = vmatpush1.bf16.msra.mxu0 %v1787
    %1888 = vmatprep.subr.bf16.mxu0 %v1784
    %1889 = vmatpush1.bf16.msra.mxu0 %v1783
    %1890 = vmatprep.subr.bf16.mxu0 %v1780
    %1891 = vmatpush1.bf16.msra.mxu0 %v1779
    %1892 = vmatprep.subr.bf16.mxu0 %v1776
    %1893 = vmatpush1.bf16.msra.mxu0 %v1775
    %1894 = vmatprep.subr.bf16.mxu0 0
    %1895 = vmatpush2.bf16.msra.mxu0 0
    %1896 = vmatprep.subr.bf16.mxu0 0
    %1897 = vmatpush2.bf16.msra.mxu0 0
    %1898 = vmatprep.subr.bf16.mxu0 0
    %1899 = vmatpush2.bf16.msra.mxu0 0
    %1900 = vmatprep.subr.bf16.mxu0 0
    %1901 = vmatpush2.bf16.msra.mxu0 0
    %1902 = vmatprep.subr.bf16.mxu0 0
    %1903 = vmatpush2.bf16.msra.mxu0 0
    %1904 = vmatprep.subr.bf16.mxu0 0
    %1905 = vmatpush2.bf16.msra.mxu0 0
    %1906 = vmatprep.subr.bf16.mxu0 0
    %1907 = vmatpush2.bf16.msra.mxu0 0
    %1908 = vmatprep.subr.bf16.mxu0 0
    %1909 = vmatpush2.bf16.msra.mxu0 0
    %1910 = vmatprep.mubr.bf16.mxu0 0
    %1911 = vmatmul.mubr.bf16.gmra.mxu0 %v1644
    %v1912 = vpop.f32.mrf.mxu0
    %v1913 = vadd.f32 0.0, %v1912
    %v1914 = vpop.f32.mrf.mxu0
    %v1915 = vadd.f32 0.0, %v1914
    %v1916 = vpop.f32.mrf.mxu0
    %v1917 = vpop.f32.mrf.mxu0
    %1918 = vdwg.mxu0
    %v1919 = vadd.f32 %v1640, %v1872
    %v1920 = vadd.f32 %v1641, %v1874
    %v1921 = vadd.f32 %v1642, %v1913
    %v1922 = vadd.f32 %v1643, %v1915
    %v1923 = vxor.u32 %v1919, 2147483648
    %v1924 = vxor.u32 %v1920, 2147483648
    %v1925 = vxor.u32 %v1921, 2147483648
    %v1926 = vmul.f32 %v1923, 1.442695
    %v1927 = vpow.pop %v1926
    %v1928 = vmul.f32 %v1924, 1.442695
    %v1929 = vpow.pop %v1928
    %v1930 = vmul.f32 %v1925, 1.442695
    %v1931 = vpow.pop %v1930
    %v1932 = vadd.f32 %v1927, 1.0
    %v1933 = vadd.f32 %v1929, 1.0
    %v1934 = vadd.f32 %v1931, 1.0
    %v1935 = vrcp.pop %v1932
    %v1936 = vmul.f32 1.0, %v1935
    %v1937 = vrcp.pop %v1933
    %v1938 = vmul.f32 1.0, %v1937
    %v1939 = vrcp.pop %v1934
    %v1940 = vmul.f32 1.0, %v1939
    %v1941 = vtanh.pop %v1922
    %v1942 = vmul.f32 %v1938, %v1626
    %v1943 = vmul.f32 %v1936, %v1941
    %v1944 = vadd.f32 %v1942, %v1943
    %v1945 = vtanh.pop %v1944
    %v1946 = vmul.f32 %v1940, %v1945
    %1947 = vst [vmem:[%s1635] sm:$0xff] %v1946
    %1948 = vst [vmem:[%s1631 + $0x8] sm:$0xff] %v1946
    %s1949 = smul.u32 5, 4
    %s1950 = smul.addr %s1949, 8
    %s1951 = scalar_lea.vmem [#allocation2], %s1950
    %v1952 = vld [vmem:[%s1951] sm:$0xff]
    %v1953 = vld [vmem:[%s1951 + $0x8] sm:$0xff]
    %v1954 = vld [vmem:[%s1951 + $0x10] sm:$0xff]
    %v1955 = vld [vmem:[%s1951 + $0x18] sm:$0xff]
    %v1956 = vpack.c.bf16 %v1946, %v1946
    %v1957 = vld [vmem:[#allocation5] sm:$0xff]
    %v1958 = vld [vmem:[#allocation5 + $0x8] sm:$0xff]
    %v1959 = vld [vmem:[#allocation5 + $0x10] sm:$0xff]
    %v1960 = vld [vmem:[#allocation5 + $0x18] sm:$0xff]
    %v1961 = vld [vmem:[#allocation5 + $0x20] sm:$0xff]
    %v1962 = vld [vmem:[#allocation5 + $0x28] sm:$0xff]
    %v1963 = vld [vmem:[#allocation5 + $0x30] sm:$0xff]
    %v1964 = vld [vmem:[#allocation5 + $0x38] sm:$0xff]
    %v1965 = vld [vmem:[#allocation5 + $0x40] sm:$0xff]
    %v1966 = vld [vmem:[#allocation5 + $0x48] sm:$0xff]
    %v1967 = vld [vmem:[#allocation5 + $0x50] sm:$0xff]
    %v1968 = vld [vmem:[#allocation5 + $0x58] sm:$0xff]
    %v1969 = vld [vmem:[#allocation5 + $0x60] sm:$0xff]
    %v1970 = vld [vmem:[#allocation5 + $0x68] sm:$0xff]
    %v1971 = vld [vmem:[#allocation5 + $0x70] sm:$0xff]
    %v1972 = vld [vmem:[#allocation5 + $0x78] sm:$0xff]
    %v1973 = vld [vmem:[#allocation5 + $0x80] sm:$0xff]
    %v1974 = vld [vmem:[#allocation5 + $0x88] sm:$0xff]
    %v1975 = vld [vmem:[#allocation5 + $0x90] sm:$0xff]
    %v1976 = vld [vmem:[#allocation5 + $0x98] sm:$0xff]
    %v1977 = vld [vmem:[#allocation5 + $0xa0] sm:$0xff]
    %v1978 = vld [vmem:[#allocation5 + $0xa8] sm:$0xff]
    %v1979 = vld [vmem:[#allocation5 + $0xb0] sm:$0xff]
    %v1980 = vld [vmem:[#allocation5 + $0xb8] sm:$0xff]
    %v1981 = vld [vmem:[#allocation5 + $0xc0] sm:$0xff]
    %v1982 = vld [vmem:[#allocation5 + $0xc8] sm:$0xff]
    %v1983 = vld [vmem:[#allocation5 + $0xd0] sm:$0xff]
    %v1984 = vld [vmem:[#allocation5 + $0xd8] sm:$0xff]
    %v1985 = vld [vmem:[#allocation5 + $0xe0] sm:$0xff]
    %v1986 = vld [vmem:[#allocation5 + $0xe8] sm:$0xff]
    %v1987 = vld [vmem:[#allocation5 + $0xf0] sm:$0xff]
    %v1988 = vld [vmem:[#allocation5 + $0xf8] sm:$0xff]
    %v2021 = vunpack.c.l.b16 %v1957
    %v2022 = vunpack.c.h.b16 %v1957
    %v2023 = vunpack.c.l.b16 %v1958
    %v2024 = vunpack.c.h.b16 %v1958
    %v2025 = vunpack.c.l.b16 %v1959
    %v2026 = vunpack.c.h.b16 %v1959
    %v2027 = vunpack.c.l.b16 %v1960
    %v2028 = vunpack.c.h.b16 %v1960
    %v2029 = vunpack.c.l.b16 %v1961
    %v2030 = vunpack.c.h.b16 %v1961
    %v2031 = vunpack.c.l.b16 %v1962
    %v2032 = vunpack.c.h.b16 %v1962
    %v2033 = vunpack.c.l.b16 %v1963
    %v2034 = vunpack.c.h.b16 %v1963
    %v2035 = vunpack.c.l.b16 %v1964
    %v2036 = vunpack.c.h.b16 %v1964
    %v2037 = vunpack.c.l.b16 %v1965
    %v2038 = vunpack.c.h.b16 %v1965
    %v2039 = vunpack.c.l.b16 %v1966
    %v2040 = vunpack.c.h.b16 %v1966
    %v2041 = vunpack.c.l.b16 %v1967
    %v2042 = vunpack.c.h.b16 %v1967
    %v2043 = vunpack.c.l.b16 %v1968
    %v2044 = vunpack.c.h.b16 %v1968
    %v2045 = vunpack.c.l.b16 %v1969
    %v2046 = vunpack.c.h.b16 %v1969
    %v2047 = vunpack.c.l.b16 %v1970
    %v2048 = vunpack.c.h.b16 %v1970
    %v2049 = vunpack.c.l.b16 %v1971
    %v2050 = vunpack.c.h.b16 %v1971
    %v2051 = vunpack.c.l.b16 %v1972
    %v2052 = vunpack.c.h.b16 %v1972
    %v2053 = vunpack.c.l.b16 %v1973
    %v2054 = vunpack.c.h.b16 %v1973
    %v2055 = vunpack.c.l.b16 %v1974
    %v2056 = vunpack.c.h.b16 %v1974
    %v2057 = vunpack.c.l.b16 %v1975
    %v2058 = vunpack.c.h.b16 %v1975
    %v2059 = vunpack.c.l.b16 %v1976
    %v2060 = vunpack.c.h.b16 %v1976
    %v2061 = vunpack.c.l.b16 %v1977
    %v2062 = vunpack.c.h.b16 %v1977
    %v2063 = vunpack.c.l.b16 %v1978
    %v2064 = vunpack.c.h.b16 %v1978
    %v2065 = vunpack.c.l.b16 %v1979
    %v2066 = vunpack.c.h.b16 %v1979
    %v2067 = vunpack.c.l.b16 %v1980
    %v2068 = vunpack.c.h.b16 %v1980
    %v2069 = vunpack.c.l.b16 %v1981
    %v2070 = vunpack.c.h.b16 %v1981
    %v2071 = vunpack.c.l.b16 %v1982
    %v2072 = vunpack.c.h.b16 %v1982
    %v2073 = vunpack.c.l.b16 %v1983
    %v2074 = vunpack.c.h.b16 %v1983
    %v2075 = vunpack.c.l.b16 %v1984
    %v2076 = vunpack.c.h.b16 %v1984
    %v2077 = vunpack.c.l.b16 %v1985
    %v2078 = vunpack.c.h.b16 %v1985
    %v2079 = vunpack.c.l.b16 %v1986
    %v2080 = vunpack.c.h.b16 %v1986
    %v2081 = vunpack.c.l.b16 %v1987
    %v2082 = vunpack.c.h.b16 %v1987
    %v2083 = vunpack.c.l.b16 %v1988
    %v2084 = vunpack.c.h.b16 %v1988
    %v2085 = vpack.c.b16 %v2025, %v2021
    %v2086 = vpack.c.b16 %v2026, %v2022
    %v2087 = vpack.c.b16 %v2027, %v2023
    %v2088 = vpack.c.b16 %v2028, %v2024
    %v2089 = vpack.c.b16 %v2033, %v2029
    %v2090 = vpack.c.b16 %v2034, %v2030
    %v2091 = vpack.c.b16 %v2035, %v2031
    %v2092 = vpack.c.b16 %v2036, %v2032
    %v2093 = vpack.c.b16 %v2041, %v2037
    %v2094 = vpack.c.b16 %v2042, %v2038
    %v2095 = vpack.c.b16 %v2043, %v2039
    %v2096 = vpack.c.b16 %v2044, %v2040
    %v2097 = vpack.c.b16 %v2049, %v2045
    %v2098 = vpack.c.b16 %v2050, %v2046
    %v2099 = vpack.c.b16 %v2051, %v2047
    %v2100 = vpack.c.b16 %v2052, %v2048
    %v2101 = vpack.c.b16 %v2057, %v2053
    %v2102 = vpack.c.b16 %v2058, %v2054
    %v2103 = vpack.c.b16 %v2059, %v2055
    %v2104 = vpack.c.b16 %v2060, %v2056
    %v2105 = vpack.c.b16 %v2065, %v2061
    %v2106 = vpack.c.b16 %v2066, %v2062
    %v2107 = vpack.c.b16 %v2067, %v2063
    %v2108 = vpack.c.b16 %v2068, %v2064
    %v2109 = vpack.c.b16 %v2073, %v2069
    %v2110 = vpack.c.b16 %v2074, %v2070
    %v2111 = vpack.c.b16 %v2075, %v2071
    %v2112 = vpack.c.b16 %v2076, %v2072
    %v2113 = vpack.c.b16 %v2081, %v2077
    %v2114 = vpack.c.b16 %v2082, %v2078
    %v2115 = vpack.c.b16 %v2083, %v2079
    %v2116 = vpack.c.b16 %v2084, %v2080
    %2149 = vmatprep.subr.bf16.mxu0 %v2114
    %2150 = vmatpush1.bf16.msra.mxu0 %v2113
    %2151 = vmatprep.subr.bf16.mxu0 %v2110
    %2152 = vmatpush1.bf16.msra.mxu0 %v2109
    %2153 = vmatprep.subr.bf16.mxu0 %v2106
    %2154 = vmatpush1.bf16.msra.mxu0 %v2105
    %2155 = vmatprep.subr.bf16.mxu0 %v2102
    %2156 = vmatpush1.bf16.msra.mxu0 %v2101
    %2157 = vmatprep.subr.bf16.mxu0 %v2098
    %2158 = vmatpush1.bf16.msra.mxu0 %v2097
    %2159 = vmatprep.subr.bf16.mxu0 %v2094
    %2160 = vmatpush1.bf16.msra.mxu0 %v2093
    %2161 = vmatprep.subr.bf16.mxu0 %v2090
    %2162 = vmatpush1.bf16.msra.mxu0 %v2089
    %2163 = vmatprep.subr.bf16.mxu0 %v2086
    %2164 = vmatpush1.bf16.msra.mxu0 %v2085
    %2165 = vmatprep.subr.bf16.mxu0 0
    %2166 = vmatpush2.bf16.msra.mxu0 0
    %2167 = vmatprep.subr.bf16.mxu0 0
    %2168 = vmatpush2.bf16.msra.mxu0 0
    %2169 = vmatprep.subr.bf16.mxu0 0
    %2170 = vmatpush2.bf16.msra.mxu0 0
    %2171 = vmatprep.subr.bf16.mxu0 0
    %2172 = vmatpush2.bf16.msra.mxu0 0
    %2173 = vmatprep.subr.bf16.mxu0 0
    %2174 = vmatpush2.bf16.msra.mxu0 0
    %2175 = vmatprep.subr.bf16.mxu0 0
    %2176 = vmatpush2.bf16.msra.mxu0 0
    %2177 = vmatprep.subr.bf16.mxu0 0
    %2178 = vmatpush2.bf16.msra.mxu0 0
    %2179 = vmatprep.subr.bf16.mxu0 0
    %2180 = vmatpush2.bf16.msra.mxu0 0
    %2181 = vmatprep.mubr.bf16.mxu0 0
    %2182 = vmatmul.mubr.bf16.gmra.mxu0 %v1956
    %v2183 = vpop.f32.mrf.mxu0
    %v2184 = vadd.f32 0.0, %v2183
    %v2185 = vpop.f32.mrf.mxu0
    %v2186 = vadd.f32 0.0, %v2185
    %v2187 = vpop.f32.mrf.mxu0
    %v2188 = vpop.f32.mrf.mxu0
    %2189 = vdwg.mxu0
    %2190 = vmatprep.subr.bf16.mxu0 %v2116
    %2191 = vmatpush1.bf16.msra.mxu0 %v2115
    %2192 = vmatprep.subr.bf16.mxu0 %v2112
    %2193 = vmatpush1.bf16.msra.mxu0 %v2111
    %2194 = vmatprep.subr.bf16.mxu0 %v2108
    %2195 = vmatpush1.bf16.msra.mxu0 %v2107
    %2196 = vmatprep.subr.bf16.mxu0 %v2104
    %2197 = vmatpush1.bf16.msra.mxu0 %v2103
    %2198 = vmatprep.subr.bf16.mxu0 %v2100
    %2199 = vmatpush1.bf16.msra.mxu0 %v2099
    %2200 = vmatprep.subr.bf16.mxu0 %v2096
    %2201 = vmatpush1.bf16.msra.mxu0 %v2095
    %2202 = vmatprep.subr.bf16.mxu0 %v2092
    %2203 = vmatpush1.bf16.msra.mxu0 %v2091
    %2204 = vmatprep.subr.bf16.mxu0 %v2088
    %2205 = vmatpush1.bf16.msra.mxu0 %v2087
    %2206 = vmatprep.subr.bf16.mxu0 0
    %2207 = vmatpush2.bf16.msra.mxu0 0
    %2208 = vmatprep.subr.bf16.mxu0 0
    %2209 = vmatpush2.bf16.msra.mxu0 0
    %2210 = vmatprep.subr.bf16.mxu0 0
    %2211 = vmatpush2.bf16.msra.mxu0 0
    %2212 = vmatprep.subr.bf16.mxu0 0
    %2213 = vmatpush2.bf16.msra.mxu0 0
    %2214 = vmatprep.subr.bf16.mxu0 0
    %2215 = vmatpush2.bf16.msra.mxu0 0
    %2216 = vmatprep.subr.bf16.mxu0 0
    %2217 = vmatpush2.bf16.msra.mxu0 0
    %2218 = vmatprep.subr.bf16.mxu0 0
    %2219 = vmatpush2.bf16.msra.mxu0 0
    %2220 = vmatprep.subr.bf16.mxu0 0
    %2221 = vmatpush2.bf16.msra.mxu0 0
    %2222 = vmatprep.mubr.bf16.mxu0 0
    %2223 = vmatmul.mubr.bf16.gmra.mxu0 %v1956
    %v2224 = vpop.f32.mrf.mxu0
    %v2225 = vadd.f32 0.0, %v2224
    %v2226 = vpop.f32.mrf.mxu0
    %v2227 = vadd.f32 0.0, %v2226
    %v2228 = vpop.f32.mrf.mxu0
    %v2229 = vpop.f32.mrf.mxu0
    %2230 = vdwg.mxu0
    %v2231 = vadd.f32 %v1952, %v2184
    %v2232 = vadd.f32 %v1953, %v2186
    %v2233 = vadd.f32 %v1954, %v2225
    %v2234 = vadd.f32 %v1955, %v2227
    %v2235 = vxor.u32 %v2231, 2147483648
    %v2236 = vxor.u32 %v2232, 2147483648
    %v2237 = vxor.u32 %v2233, 2147483648
    %v2238 = vmul.f32 %v2235, 1.442695
    %v2239 = vpow.pop %v2238
    %v2240 = vmul.f32 %v2236, 1.442695
    %v2241 = vpow.pop %v2240
    %v2242 = vmul.f32 %v2237, 1.442695
    %v2243 = vpow.pop %v2242
    %v2244 = vadd.f32 %v2239, 1.0
    %v2245 = vadd.f32 %v2241, 1.0
    %v2246 = vadd.f32 %v2243, 1.0
    %v2247 = vrcp.pop %v2244
    %v2248 = vmul.f32 1.0, %v2247
    %v2249 = vrcp.pop %v2245
    %v2250 = vmul.f32 1.0, %v2249
    %v2251 = vrcp.pop %v2246
    %v2252 = vmul.f32 1.0, %v2251
    %v2253 = vtanh.pop %v2234
    %v2254 = vmul.f32 %v2250, %v1944
    %v2255 = vmul.f32 %v2248, %v2253
    %v2256 = vadd.f32 %v2254, %v2255
    %v2257 = vtanh.pop %v2256
    %v2258 = vmul.f32 %v2252, %v2257
    %2259 = vst [vmem:[%s1317] sm:$0xff] %v2258
    %2260 = vst [vmem:[%s1313 + $0x8] sm:$0xff] %v2258
    %s2261 = smul.u32 6, 4
    %s2262 = smul.addr %s2261, 8
    %s2263 = scalar_lea.vmem [#allocation2], %s2262
    %v2264 = vld [vmem:[%s2263] sm:$0xff]
    %v2265 = vld [vmem:[%s2263 + $0x8] sm:$0xff]
    %v2266 = vld [vmem:[%s2263 + $0x10] sm:$0xff]
    %v2267 = vld [vmem:[%s2263 + $0x18] sm:$0xff]
    %v2268 = vpack.c.bf16 %v2258, %v2258
    %v2269 = vld [vmem:[#allocation5] sm:$0xff]
    %v2270 = vld [vmem:[#allocation5 + $0x8] sm:$0xff]
    %v2271 = vld [vmem:[#allocation5 + $0x10] sm:$0xff]
    %v2272 = vld [vmem:[#allocation5 + $0x18] sm:$0xff]
    %v2273 = vld [vmem:[#allocation5 + $0x20] sm:$0xff]
    %v2274 = vld [vmem:[#allocation5 + $0x28] sm:$0xff]
    %v2275 = vld [vmem:[#allocation5 + $0x30] sm:$0xff]
    %v2276 = vld [vmem:[#allocation5 + $0x38] sm:$0xff]
    %v2277 = vld [vmem:[#allocation5 + $0x40] sm:$0xff]
    %v2278 = vld [vmem:[#allocation5 + $0x48] sm:$0xff]
    %v2279 = vld [vmem:[#allocation5 + $0x50] sm:$0xff]
    %v2280 = vld [vmem:[#allocation5 + $0x58] sm:$0xff]
    %v2281 = vld [vmem:[#allocation5 + $0x60] sm:$0xff]
    %v2282 = vld [vmem:[#allocation5 + $0x68] sm:$0xff]
    %v2283 = vld [vmem:[#allocation5 + $0x70] sm:$0xff]
    %v2284 = vld [vmem:[#allocation5 + $0x78] sm:$0xff]
    %v2285 = vld [vmem:[#allocation5 + $0x80] sm:$0xff]
    %v2286 = vld [vmem:[#allocation5 + $0x88] sm:$0xff]
    %v2287 = vld [vmem:[#allocation5 + $0x90] sm:$0xff]
    %v2288 = vld [vmem:[#allocation5 + $0x98] sm:$0xff]
    %v2289 = vld [vmem:[#allocation5 + $0xa0] sm:$0xff]
    %v2290 = vld [vmem:[#allocation5 + $0xa8] sm:$0xff]
    %v2291 = vld [vmem:[#allocation5 + $0xb0] sm:$0xff]
    %v2292 = vld [vmem:[#allocation5 + $0xb8] sm:$0xff]
    %v2293 = vld [vmem:[#allocation5 + $0xc0] sm:$0xff]
    %v2294 = vld [vmem:[#allocation5 + $0xc8] sm:$0xff]
    %v2295 = vld [vmem:[#allocation5 + $0xd0] sm:$0xff]
    %v2296 = vld [vmem:[#allocation5 + $0xd8] sm:$0xff]
    %v2297 = vld [vmem:[#allocation5 + $0xe0] sm:$0xff]
    %v2298 = vld [vmem:[#allocation5 + $0xe8] sm:$0xff]
    %v2299 = vld [vmem:[#allocation5 + $0xf0] sm:$0xff]
    %v2300 = vld [vmem:[#allocation5 + $0xf8] sm:$0xff]
    %v2333 = vunpack.c.l.b16 %v2269
    %v2334 = vunpack.c.h.b16 %v2269
    %v2335 = vunpack.c.l.b16 %v2270
    %v2336 = vunpack.c.h.b16 %v2270
    %v2337 = vunpack.c.l.b16 %v2271
    %v2338 = vunpack.c.h.b16 %v2271
    %v2339 = vunpack.c.l.b16 %v2272
    %v2340 = vunpack.c.h.b16 %v2272
    %v2341 = vunpack.c.l.b16 %v2273
    %v2342 = vunpack.c.h.b16 %v2273
    %v2343 = vunpack.c.l.b16 %v2274
    %v2344 = vunpack.c.h.b16 %v2274
    %v2345 = vunpack.c.l.b16 %v2275
    %v2346 = vunpack.c.h.b16 %v2275
    %v2347 = vunpack.c.l.b16 %v2276
    %v2348 = vunpack.c.h.b16 %v2276
    %v2349 = vunpack.c.l.b16 %v2277
    %v2350 = vunpack.c.h.b16 %v2277
    %v2351 = vunpack.c.l.b16 %v2278
    %v2352 = vunpack.c.h.b16 %v2278
    %v2353 = vunpack.c.l.b16 %v2279
    %v2354 = vunpack.c.h.b16 %v2279
    %v2355 = vunpack.c.l.b16 %v2280
    %v2356 = vunpack.c.h.b16 %v2280
    %v2357 = vunpack.c.l.b16 %v2281
    %v2358 = vunpack.c.h.b16 %v2281
    %v2359 = vunpack.c.l.b16 %v2282
    %v2360 = vunpack.c.h.b16 %v2282
    %v2361 = vunpack.c.l.b16 %v2283
    %v2362 = vunpack.c.h.b16 %v2283
    %v2363 = vunpack.c.l.b16 %v2284
    %v2364 = vunpack.c.h.b16 %v2284
    %v2365 = vunpack.c.l.b16 %v2285
    %v2366 = vunpack.c.h.b16 %v2285
    %v2367 = vunpack.c.l.b16 %v2286
    %v2368 = vunpack.c.h.b16 %v2286
    %v2369 = vunpack.c.l.b16 %v2287
    %v2370 = vunpack.c.h.b16 %v2287
    %v2371 = vunpack.c.l.b16 %v2288
    %v2372 = vunpack.c.h.b16 %v2288
    %v2373 = vunpack.c.l.b16 %v2289
    %v2374 = vunpack.c.h.b16 %v2289
    %v2375 = vunpack.c.l.b16 %v2290
    %v2376 = vunpack.c.h.b16 %v2290
    %v2377 = vunpack.c.l.b16 %v2291
    %v2378 = vunpack.c.h.b16 %v2291
    %v2379 = vunpack.c.l.b16 %v2292
    %v2380 = vunpack.c.h.b16 %v2292
    %v2381 = vunpack.c.l.b16 %v2293
    %v2382 = vunpack.c.h.b16 %v2293
    %v2383 = vunpack.c.l.b16 %v2294
    %v2384 = vunpack.c.h.b16 %v2294
    %v2385 = vunpack.c.l.b16 %v2295
    %v2386 = vunpack.c.h.b16 %v2295
    %v2387 = vunpack.c.l.b16 %v2296
    %v2388 = vunpack.c.h.b16 %v2296
    %v2389 = vunpack.c.l.b16 %v2297
    %v2390 = vunpack.c.h.b16 %v2297
    %v2391 = vunpack.c.l.b16 %v2298
    %v2392 = vunpack.c.h.b16 %v2298
    %v2393 = vunpack.c.l.b16 %v2299
    %v2394 = vunpack.c.h.b16 %v2299
    %v2395 = vunpack.c.l.b16 %v2300
    %v2396 = vunpack.c.h.b16 %v2300
    %v2397 = vpack.c.b16 %v2337, %v2333
    %v2398 = vpack.c.b16 %v2338, %v2334
    %v2399 = vpack.c.b16 %v2339, %v2335
    %v2400 = vpack.c.b16 %v2340, %v2336
    %v2401 = vpack.c.b16 %v2345, %v2341
    %v2402 = vpack.c.b16 %v2346, %v2342
    %v2403 = vpack.c.b16 %v2347, %v2343
    %v2404 = vpack.c.b16 %v2348, %v2344
    %v2405 = vpack.c.b16 %v2353, %v2349
    %v2406 = vpack.c.b16 %v2354, %v2350
    %v2407 = vpack.c.b16 %v2355, %v2351
    %v2408 = vpack.c.b16 %v2356, %v2352
    %v2409 = vpack.c.b16 %v2361, %v2357
    %v2410 = vpack.c.b16 %v2362, %v2358
    %v2411 = vpack.c.b16 %v2363, %v2359
    %v2412 = vpack.c.b16 %v2364, %v2360
    %v2413 = vpack.c.b16 %v2369, %v2365
    %v2414 = vpack.c.b16 %v2370, %v2366
    %v2415 = vpack.c.b16 %v2371, %v2367
    %v2416 = vpack.c.b16 %v2372, %v2368
    %v2417 = vpack.c.b16 %v2377, %v2373
    %v2418 = vpack.c.b16 %v2378, %v2374
    %v2419 = vpack.c.b16 %v2379, %v2375
    %v2420 = vpack.c.b16 %v2380, %v2376
    %v2421 = vpack.c.b16 %v2385, %v2381
    %v2422 = vpack.c.b16 %v2386, %v2382
    %v2423 = vpack.c.b16 %v2387, %v2383
    %v2424 = vpack.c.b16 %v2388, %v2384
    %v2425 = vpack.c.b16 %v2393, %v2389
    %v2426 = vpack.c.b16 %v2394, %v2390
    %v2427 = vpack.c.b16 %v2395, %v2391
    %v2428 = vpack.c.b16 %v2396, %v2392
    %2461 = vmatprep.subr.bf16.mxu0 %v2426
    %2462 = vmatpush1.bf16.msra.mxu0 %v2425
    %2463 = vmatprep.subr.bf16.mxu0 %v2422
    %2464 = vmatpush1.bf16.msra.mxu0 %v2421
    %2465 = vmatprep.subr.bf16.mxu0 %v2418
    %2466 = vmatpush1.bf16.msra.mxu0 %v2417
    %2467 = vmatprep.subr.bf16.mxu0 %v2414
    %2468 = vmatpush1.bf16.msra.mxu0 %v2413
    %2469 = vmatprep.subr.bf16.mxu0 %v2410
    %2470 = vmatpush1.bf16.msra.mxu0 %v2409
    %2471 = vmatprep.subr.bf16.mxu0 %v2406
    %2472 = vmatpush1.bf16.msra.mxu0 %v2405
    %2473 = vmatprep.subr.bf16.mxu0 %v2402
    %2474 = vmatpush1.bf16.msra.mxu0 %v2401
    %2475 = vmatprep.subr.bf16.mxu0 %v2398
    %2476 = vmatpush1.bf16.msra.mxu0 %v2397
    %2477 = vmatprep.subr.bf16.mxu0 0
    %2478 = vmatpush2.bf16.msra.mxu0 0
    %2479 = vmatprep.subr.bf16.mxu0 0
    %2480 = vmatpush2.bf16.msra.mxu0 0
    %2481 = vmatprep.subr.bf16.mxu0 0
    %2482 = vmatpush2.bf16.msra.mxu0 0
    %2483 = vmatprep.subr.bf16.mxu0 0
    %2484 = vmatpush2.bf16.msra.mxu0 0
    %2485 = vmatprep.subr.bf16.mxu0 0
    %2486 = vmatpush2.bf16.msra.mxu0 0
    %2487 = vmatprep.subr.bf16.mxu0 0
    %2488 = vmatpush2.bf16.msra.mxu0 0
    %2489 = vmatprep.subr.bf16.mxu0 0
    %2490 = vmatpush2.bf16.msra.mxu0 0
    %2491 = vmatprep.subr.bf16.mxu0 0
    %2492 = vmatpush2.bf16.msra.mxu0 0
    %2493 = vmatprep.mubr.bf16.mxu0 0
    %2494 = vmatmul.mubr.bf16.gmra.mxu0 %v2268
    %v2495 = vpop.f32.mrf.mxu0
    %v2496 = vadd.f32 0.0, %v2495
    %v2497 = vpop.f32.mrf.mxu0
    %v2498 = vadd.f32 0.0, %v2497
    %v2499 = vpop.f32.mrf.mxu0
    %v2500 = vpop.f32.mrf.mxu0
    %2501 = vdwg.mxu0
    %2502 = vmatprep.subr.bf16.mxu0 %v2428
    %2503 = vmatpush1.bf16.msra.mxu0 %v2427
    %2504 = vmatprep.subr.bf16.mxu0 %v2424
    %2505 = vmatpush1.bf16.msra.mxu0 %v2423
    %2506 = vmatprep.subr.bf16.mxu0 %v2420
    %2507 = vmatpush1.bf16.msra.mxu0 %v2419
    %2508 = vmatprep.subr.bf16.mxu0 %v2416
    %2509 = vmatpush1.bf16.msra.mxu0 %v2415
    %2510 = vmatprep.subr.bf16.mxu0 %v2412
    %2511 = vmatpush1.bf16.msra.mxu0 %v2411
    %2512 = vmatprep.subr.bf16.mxu0 %v2408
    %2513 = vmatpush1.bf16.msra.mxu0 %v2407
    %2514 = vmatprep.subr.bf16.mxu0 %v2404
    %2515 = vmatpush1.bf16.msra.mxu0 %v2403
    %2516 = vmatprep.subr.bf16.mxu0 %v2400
    %2517 = vmatpush1.bf16.msra.mxu0 %v2399
    %2518 = vmatprep.subr.bf16.mxu0 0
    %2519 = vmatpush2.bf16.msra.mxu0 0
    %2520 = vmatprep.subr.bf16.mxu0 0
    %2521 = vmatpush2.bf16.msra.mxu0 0
    %2522 = vmatprep.subr.bf16.mxu0 0
    %2523 = vmatpush2.bf16.msra.mxu0 0
    %2524 = vmatprep.subr.bf16.mxu0 0
    %2525 = vmatpush2.bf16.msra.mxu0 0
    %2526 = vmatprep.subr.bf16.mxu0 0
    %2527 = vmatpush2.bf16.msra.mxu0 0
    %2528 = vmatprep.subr.bf16.mxu0 0
    %2529 = vmatpush2.bf16.msra.mxu0 0
    %2530 = vmatprep.subr.bf16.mxu0 0
    %2531 = vmatpush2.bf16.msra.mxu0 0
    %2532 = vmatprep.subr.bf16.mxu0 0
    %2533 = vmatpush2.bf16.msra.mxu0 0
    %2534 = vmatprep.mubr.bf16.mxu0 0
    %2535 = vmatmul.mubr.bf16.gmra.mxu0 %v2268
    %v2536 = vpop.f32.mrf.mxu0
    %v2537 = vadd.f32 0.0, %v2536
    %v2538 = vpop.f32.mrf.mxu0
    %v2539 = vadd.f32 0.0, %v2538
    %v2540 = vpop.f32.mrf.mxu0
    %v2541 = vpop.f32.mrf.mxu0
    %2542 = vdwg.mxu0
    %v2543 = vadd.f32 %v2264, %v2496
    %v2544 = vadd.f32 %v2265, %v2498
    %v2545 = vadd.f32 %v2266, %v2537
    %v2546 = vadd.f32 %v2267, %v2539
    %v2547 = vxor.u32 %v2543, 2147483648
    %v2548 = vxor.u32 %v2544, 2147483648
    %v2549 = vxor.u32 %v2545, 2147483648
    %v2550 = vmul.f32 %v2547, 1.442695
    %v2551 = vpow.pop %v2550
    %v2552 = vmul.f32 %v2548, 1.442695
    %v2553 = vpow.pop %v2552
    %v2554 = vmul.f32 %v2549, 1.442695
    %v2555 = vpow.pop %v2554
    %v2556 = vadd.f32 %v2551, 1.0
    %v2557 = vadd.f32 %v2553, 1.0
    %v2558 = vadd.f32 %v2555, 1.0
    %v2559 = vrcp.pop %v2556
    %v2560 = vmul.f32 1.0, %v2559
    %v2561 = vrcp.pop %v2557
    %v2562 = vmul.f32 1.0, %v2561
    %v2563 = vrcp.pop %v2558
    %v2564 = vmul.f32 1.0, %v2563
    %v2565 = vtanh.pop %v2546
    %v2566 = vmul.f32 %v2562, %v2256
    %v2567 = vmul.f32 %v2560, %v2565
    %v2568 = vadd.f32 %v2566, %v2567
    %v2569 = vtanh.pop %v2568
    %v2570 = vmul.f32 %v2564, %v2569
    %2571 = vst [vmem:[%s999] sm:$0xff] %v2570
    %2572 = vst [vmem:[%s995 + $0x8] sm:$0xff] %v2570
    %s2573 = smul.u32 7, 4
    %s2574 = smul.addr %s2573, 8
    %s2575 = scalar_lea.vmem [#allocation2], %s2574
    %v2576 = vld [vmem:[%s2575] sm:$0xff]
    %v2577 = vld [vmem:[%s2575 + $0x8] sm:$0xff]
    %v2578 = vld [vmem:[%s2575 + $0x10] sm:$0xff]
    %v2579 = vld [vmem:[%s2575 + $0x18] sm:$0xff]
    %v2580 = vpack.c.bf16 %v2570, %v2570
    %v2581 = vld [vmem:[#allocation5] sm:$0xff]
    %v2582 = vld [vmem:[#allocation5 + $0x8] sm:$0xff]
    %v2583 = vld [vmem:[#allocation5 + $0x10] sm:$0xff]
    %v2584 = vld [vmem:[#allocation5 + $0x18] sm:$0xff]
    %v2585 = vld [vmem:[#allocation5 + $0x20] sm:$0xff]
    %v2586 = vld [vmem:[#allocation5 + $0x28] sm:$0xff]
    %v2587 = vld [vmem:[#allocation5 + $0x30] sm:$0xff]
    %v2588 = vld [vmem:[#allocation5 + $0x38] sm:$0xff]
    %v2589 = vld [vmem:[#allocation5 + $0x40] sm:$0xff]
    %v2590 = vld [vmem:[#allocation5 + $0x48] sm:$0xff]
    %v2591 = vld [vmem:[#allocation5 + $0x50] sm:$0xff]
    %v2592 = vld [vmem:[#allocation5 + $0x58] sm:$0xff]
    %v2593 = vld [vmem:[#allocation5 + $0x60] sm:$0xff]
    %v2594 = vld [vmem:[#allocation5 + $0x68] sm:$0xff]
    %v2595 = vld [vmem:[#allocation5 + $0x70] sm:$0xff]
    %v2596 = vld [vmem:[#allocation5 + $0x78] sm:$0xff]
    %v2597 = vld [vmem:[#allocation5 + $0x80] sm:$0xff]
    %v2598 = vld [vmem:[#allocation5 + $0x88] sm:$0xff]
    %v2599 = vld [vmem:[#allocation5 + $0x90] sm:$0xff]
    %v2600 = vld [vmem:[#allocation5 + $0x98] sm:$0xff]
    %v2601 = vld [vmem:[#allocation5 + $0xa0] sm:$0xff]
    %v2602 = vld [vmem:[#allocation5 + $0xa8] sm:$0xff]
    %v2603 = vld [vmem:[#allocation5 + $0xb0] sm:$0xff]
    %v2604 = vld [vmem:[#allocation5 + $0xb8] sm:$0xff]
    %v2605 = vld [vmem:[#allocation5 + $0xc0] sm:$0xff]
    %v2606 = vld [vmem:[#allocation5 + $0xc8] sm:$0xff]
    %v2607 = vld [vmem:[#allocation5 + $0xd0] sm:$0xff]
    %v2608 = vld [vmem:[#allocation5 + $0xd8] sm:$0xff]
    %v2609 = vld [vmem:[#allocation5 + $0xe0] sm:$0xff]
    %v2610 = vld [vmem:[#allocation5 + $0xe8] sm:$0xff]
    %v2611 = vld [vmem:[#allocation5 + $0xf0] sm:$0xff]
    %v2612 = vld [vmem:[#allocation5 + $0xf8] sm:$0xff]
    %v2645 = vunpack.c.l.b16 %v2581
    %v2646 = vunpack.c.h.b16 %v2581
    %v2647 = vunpack.c.l.b16 %v2582
    %v2648 = vunpack.c.h.b16 %v2582
    %v2649 = vunpack.c.l.b16 %v2583
    %v2650 = vunpack.c.h.b16 %v2583
    %v2651 = vunpack.c.l.b16 %v2584
    %v2652 = vunpack.c.h.b16 %v2584
    %v2653 = vunpack.c.l.b16 %v2585
    %v2654 = vunpack.c.h.b16 %v2585
    %v2655 = vunpack.c.l.b16 %v2586
    %v2656 = vunpack.c.h.b16 %v2586
    %v2657 = vunpack.c.l.b16 %v2587
    %v2658 = vunpack.c.h.b16 %v2587
    %v2659 = vunpack.c.l.b16 %v2588
    %v2660 = vunpack.c.h.b16 %v2588
    %v2661 = vunpack.c.l.b16 %v2589
    %v2662 = vunpack.c.h.b16 %v2589
    %v2663 = vunpack.c.l.b16 %v2590
    %v2664 = vunpack.c.h.b16 %v2590
    %v2665 = vunpack.c.l.b16 %v2591
    %v2666 = vunpack.c.h.b16 %v2591
    %v2667 = vunpack.c.l.b16 %v2592
    %v2668 = vunpack.c.h.b16 %v2592
    %v2669 = vunpack.c.l.b16 %v2593
    %v2670 = vunpack.c.h.b16 %v2593
    %v2671 = vunpack.c.l.b16 %v2594
    %v2672 = vunpack.c.h.b16 %v2594
    %v2673 = vunpack.c.l.b16 %v2595
    %v2674 = vunpack.c.h.b16 %v2595
    %v2675 = vunpack.c.l.b16 %v2596
    %v2676 = vunpack.c.h.b16 %v2596
    %v2677 = vunpack.c.l.b16 %v2597
    %v2678 = vunpack.c.h.b16 %v2597
    %v2679 = vunpack.c.l.b16 %v2598
    %v2680 = vunpack.c.h.b16 %v2598
    %v2681 = vunpack.c.l.b16 %v2599
    %v2682 = vunpack.c.h.b16 %v2599
    %v2683 = vunpack.c.l.b16 %v2600
    %v2684 = vunpack.c.h.b16 %v2600
    %v2685 = vunpack.c.l.b16 %v2601
    %v2686 = vunpack.c.h.b16 %v2601
    %v2687 = vunpack.c.l.b16 %v2602
    %v2688 = vunpack.c.h.b16 %v2602
    %v2689 = vunpack.c.l.b16 %v2603
    %v2690 = vunpack.c.h.b16 %v2603
    %v2691 = vunpack.c.l.b16 %v2604
    %v2692 = vunpack.c.h.b16 %v2604
    %v2693 = vunpack.c.l.b16 %v2605
    %v2694 = vunpack.c.h.b16 %v2605
    %v2695 = vunpack.c.l.b16 %v2606
    %v2696 = vunpack.c.h.b16 %v2606
    %v2697 = vunpack.c.l.b16 %v2607
    %v2698 = vunpack.c.h.b16 %v2607
    %v2699 = vunpack.c.l.b16 %v2608
    %v2700 = vunpack.c.h.b16 %v2608
    %v2701 = vunpack.c.l.b16 %v2609
    %v2702 = vunpack.c.h.b16 %v2609
    %v2703 = vunpack.c.l.b16 %v2610
    %v2704 = vunpack.c.h.b16 %v2610
    %v2705 = vunpack.c.l.b16 %v2611
    %v2706 = vunpack.c.h.b16 %v2611
    %v2707 = vunpack.c.l.b16 %v2612
    %v2708 = vunpack.c.h.b16 %v2612
    %v2709 = vpack.c.b16 %v2649, %v2645
    %v2710 = vpack.c.b16 %v2650, %v2646
    %v2711 = vpack.c.b16 %v2651, %v2647
    %v2712 = vpack.c.b16 %v2652, %v2648
    %v2713 = vpack.c.b16 %v2657, %v2653
    %v2714 = vpack.c.b16 %v2658, %v2654
    %v2715 = vpack.c.b16 %v2659, %v2655
    %v2716 = vpack.c.b16 %v2660, %v2656
    %v2717 = vpack.c.b16 %v2665, %v2661
    %v2718 = vpack.c.b16 %v2666, %v2662
    %v2719 = vpack.c.b16 %v2667, %v2663
    %v2720 = vpack.c.b16 %v2668, %v2664
    %v2721 = vpack.c.b16 %v2673, %v2669
    %v2722 = vpack.c.b16 %v2674, %v2670
    %v2723 = vpack.c.b16 %v2675, %v2671
    %v2724 = vpack.c.b16 %v2676, %v2672
    %v2725 = vpack.c.b16 %v2681, %v2677
    %v2726 = vpack.c.b16 %v2682, %v2678
    %v2727 = vpack.c.b16 %v2683, %v2679
    %v2728 = vpack.c.b16 %v2684, %v2680
    %v2729 = vpack.c.b16 %v2689, %v2685
    %v2730 = vpack.c.b16 %v2690, %v2686
    %v2731 = vpack.c.b16 %v2691, %v2687
    %v2732 = vpack.c.b16 %v2692, %v2688
    %v2733 = vpack.c.b16 %v2697, %v2693
    %v2734 = vpack.c.b16 %v2698, %v2694
    %v2735 = vpack.c.b16 %v2699, %v2695
    %v2736 = vpack.c.b16 %v2700, %v2696
    %v2737 = vpack.c.b16 %v2705, %v2701
    %v2738 = vpack.c.b16 %v2706, %v2702
    %v2739 = vpack.c.b16 %v2707, %v2703
    %v2740 = vpack.c.b16 %v2708, %v2704
    %2773 = vmatprep.subr.bf16.mxu0 %v2738
    %2774 = vmatpush1.bf16.msra.mxu0 %v2737
    %2775 = vmatprep.subr.bf16.mxu0 %v2734
    %2776 = vmatpush1.bf16.msra.mxu0 %v2733
    %2777 = vmatprep.subr.bf16.mxu0 %v2730
    %2778 = vmatpush1.bf16.msra.mxu0 %v2729
    %2779 = vmatprep.subr.bf16.mxu0 %v2726
    %2780 = vmatpush1.bf16.msra.mxu0 %v2725
    %2781 = vmatprep.subr.bf16.mxu0 %v2722
    %2782 = vmatpush1.bf16.msra.mxu0 %v2721
    %2783 = vmatprep.subr.bf16.mxu0 %v2718
    %2784 = vmatpush1.bf16.msra.mxu0 %v2717
    %2785 = vmatprep.subr.bf16.mxu0 %v2714
    %2786 = vmatpush1.bf16.msra.mxu0 %v2713
    %2787 = vmatprep.subr.bf16.mxu0 %v2710
    %2788 = vmatpush1.bf16.msra.mxu0 %v2709
    %2789 = vmatprep.subr.bf16.mxu0 0
    %2790 = vmatpush2.bf16.msra.mxu0 0
    %2791 = vmatprep.subr.bf16.mxu0 0
    %2792 = vmatpush2.bf16.msra.mxu0 0
    %2793 = vmatprep.subr.bf16.mxu0 0
    %2794 = vmatpush2.bf16.msra.mxu0 0
    %2795 = vmatprep.subr.bf16.mxu0 0
    %2796 = vmatpush2.bf16.msra.mxu0 0
    %2797 = vmatprep.subr.bf16.mxu0 0
    %2798 = vmatpush2.bf16.msra.mxu0 0
    %2799 = vmatprep.subr.bf16.mxu0 0
    %2800 = vmatpush2.bf16.msra.mxu0 0
    %2801 = vmatprep.subr.bf16.mxu0 0
    %2802 = vmatpush2.bf16.msra.mxu0 0
    %2803 = vmatprep.subr.bf16.mxu0 0
    %2804 = vmatpush2.bf16.msra.mxu0 0
    %2805 = vmatprep.mubr.bf16.mxu0 0
    %2806 = vmatmul.mubr.bf16.gmra.mxu0 %v2580
    %v2807 = vpop.f32.mrf.mxu0
    %v2808 = vadd.f32 0.0, %v2807
    %v2809 = vpop.f32.mrf.mxu0
    %v2810 = vadd.f32 0.0, %v2809
    %v2811 = vpop.f32.mrf.mxu0
    %v2812 = vpop.f32.mrf.mxu0
    %2813 = vdwg.mxu0
    %2814 = vmatprep.subr.bf16.mxu0 %v2740
    %2815 = vmatpush1.bf16.msra.mxu0 %v2739
    %2816 = vmatprep.subr.bf16.mxu0 %v2736
    %2817 = vmatpush1.bf16.msra.mxu0 %v2735
    %2818 = vmatprep.subr.bf16.mxu0 %v2732
    %2819 = vmatpush1.bf16.msra.mxu0 %v2731
    %2820 = vmatprep.subr.bf16.mxu0 %v2728
    %2821 = vmatpush1.bf16.msra.mxu0 %v2727
    %2822 = vmatprep.subr.bf16.mxu0 %v2724
    %2823 = vmatpush1.bf16.msra.mxu0 %v2723
    %2824 = vmatprep.subr.bf16.mxu0 %v2720
    %2825 = vmatpush1.bf16.msra.mxu0 %v2719
    %2826 = vmatprep.subr.bf16.mxu0 %v2716
    %2827 = vmatpush1.bf16.msra.mxu0 %v2715
    %2828 = vmatprep.subr.bf16.mxu0 %v2712
    %2829 = vmatpush1.bf16.msra.mxu0 %v2711
    %2830 = vmatprep.subr.bf16.mxu0 0
    %2831 = vmatpush2.bf16.msra.mxu0 0
    %2832 = vmatprep.subr.bf16.mxu0 0
    %2833 = vmatpush2.bf16.msra.mxu0 0
    %2834 = vmatprep.subr.bf16.mxu0 0
    %2835 = vmatpush2.bf16.msra.mxu0 0
    %2836 = vmatprep.subr.bf16.mxu0 0
    %2837 = vmatpush2.bf16.msra.mxu0 0
    %2838 = vmatprep.subr.bf16.mxu0 0
    %2839 = vmatpush2.bf16.msra.mxu0 0
    %2840 = vmatprep.subr.bf16.mxu0 0
    %2841 = vmatpush2.bf16.msra.mxu0 0
    %2842 = vmatprep.subr.bf16.mxu0 0
    %2843 = vmatpush2.bf16.msra.mxu0 0
    %2844 = vmatprep.subr.bf16.mxu0 0
    %2845 = vmatpush2.bf16.msra.mxu0 0
    %2846 = vmatprep.mubr.bf16.mxu0 0
    %2847 = vmatmul.mubr.bf16.gmra.mxu0 %v2580
    %v2848 = vpop.f32.mrf.mxu0
    %v2849 = vadd.f32 0.0, %v2848
    %v2850 = vpop.f32.mrf.mxu0
    %v2851 = vadd.f32 0.0, %v2850
    %v2852 = vpop.f32.mrf.mxu0
    %v2853 = vpop.f32.mrf.mxu0
    %2854 = vdwg.mxu0
    %v2855 = vadd.f32 %v2576, %v2808
    %v2856 = vadd.f32 %v2577, %v2810
    %v2857 = vadd.f32 %v2578, %v2849
    %v2858 = vadd.f32 %v2579, %v2851
    %v2859 = vxor.u32 %v2855, 2147483648
    %v2860 = vxor.u32 %v2856, 2147483648
    %v2861 = vxor.u32 %v2857, 2147483648
    %v2862 = vmul.f32 %v2859, 1.442695
    %v2863 = vpow.pop %v2862
    %v2864 = vmul.f32 %v2860, 1.442695
    %v2865 = vpow.pop %v2864
    %v2866 = vmul.f32 %v2861, 1.442695
    %v2867 = vpow.pop %v2866
    %v2868 = vadd.f32 %v2863, 1.0
    %v2869 = vadd.f32 %v2865, 1.0
    %v2870 = vadd.f32 %v2867, 1.0
    %v2871 = vrcp.pop %v2868
    %v2872 = vmul.f32 1.0, %v2871
    %v2873 = vrcp.pop %v2869
    %v2874 = vmul.f32 1.0, %v2873
    %v2875 = vrcp.pop %v2870
    %v2876 = vmul.f32 1.0, %v2875
    %v2877 = vtanh.pop %v2858
    %v2878 = vmul.f32 %v2874, %v2568
    %v2879 = vmul.f32 %v2872, %v2877
    %v2880 = vadd.f32 %v2878, %v2879
    %v2881 = vtanh.pop %v2880
    %v2882 = vmul.f32 %v2876, %v2881
    %2883 = vst [vmem:[%s681] sm:$0xff] %v2882
    %2884 = vst [vmem:[%s677 + $0x8] sm:$0xff] %v2882
    %v2885 = vld [vmem:[#allocation3] sm:$0xff]
    %v2886 = vld [vmem:[#allocation3 + $0x8] sm:$0xff]
    %v2887 = vld [vmem:[#allocation3 + $0x10] sm:$0xff]
    %v2888 = vld [vmem:[#allocation3 + $0x18] sm:$0xff]
    %v2889 = vld [vmem:[#allocation3 + $0x20] sm:$0xff]
    %v2890 = vld [vmem:[#allocation3 + $0x28] sm:$0xff]
    %v2891 = vld [vmem:[#allocation3 + $0x30] sm:$0xff]
    %v2892 = vld [vmem:[#allocation3 + $0x38] sm:$0xff]
    %v2893 = vld [vmem:[#allocation3 + $0x40] sm:$0xff]
    %v2894 = vld [vmem:[#allocation3 + $0x48] sm:$0xff]
    %v2895 = vld [vmem:[#allocation3 + $0x50] sm:$0xff]
    %v2896 = vld [vmem:[#allocation3 + $0x58] sm:$0xff]
    %v2897 = vld [vmem:[#allocation3 + $0x60] sm:$0xff]
    %v2898 = vld [vmem:[#allocation3 + $0x68] sm:$0xff]
    %v2899 = vld [vmem:[#allocation3 + $0x70] sm:$0xff]
    %v2900 = vld [vmem:[#allocation3 + $0x78] sm:$0xff]
    %v2901 = vpack.c.bf16 %v2887, %v2885
    %v2902 = vpack.c.bf16 %v2888, %v2886
    %v2903 = vpack.c.bf16 %v2891, %v2889
    %v2904 = vpack.c.bf16 %v2892, %v2890
    %v2905 = vpack.c.bf16 %v2895, %v2893
    %v2906 = vpack.c.bf16 %v2896, %v2894
    %v2907 = vpack.c.bf16 %v2899, %v2897
    %v2908 = vpack.c.bf16 %v2900, %v2898
    %v2909 = vld [vmem:[#allocation7] sm:$0xff]
    %v2910 = vld [vmem:[#allocation7 + $0x8] sm:$0xff]
    %v2911 = vld [vmem:[#allocation7 + $0x10] sm:$0xff]
    %v2912 = vld [vmem:[#allocation7 + $0x18] sm:$0xff]
    %v2913 = vld [vmem:[#allocation7 + $0x20] sm:$0xff]
    %v2914 = vld [vmem:[#allocation7 + $0x28] sm:$0xff]
    %v2915 = vld [vmem:[#allocation7 + $0x30] sm:$0xff]
    %v2916 = vld [vmem:[#allocation7 + $0x38] sm:$0xff]
    %v2917 = vld [vmem:[#allocation7 + $0x40] sm:$0xff]
    %v2918 = vld [vmem:[#allocation7 + $0x48] sm:$0xff]
    %v2919 = vld [vmem:[#allocation7 + $0x50] sm:$0xff]
    %v2920 = vld [vmem:[#allocation7 + $0x58] sm:$0xff]
    %v2921 = vld [vmem:[#allocation7 + $0x60] sm:$0xff]
    %v2922 = vld [vmem:[#allocation7 + $0x68] sm:$0xff]
    %v2923 = vld [vmem:[#allocation7 + $0x70] sm:$0xff]
    %v2924 = vld [vmem:[#allocation7 + $0x78] sm:$0xff]
    %v2925 = vld [vmem:[#allocation7 + $0x80] sm:$0xff]
    %v2926 = vld [vmem:[#allocation7 + $0x88] sm:$0xff]
    %v2927 = vld [vmem:[#allocation7 + $0x90] sm:$0xff]
    %v2928 = vld [vmem:[#allocation7 + $0x98] sm:$0xff]
    %v2929 = vld [vmem:[#allocation7 + $0xa0] sm:$0xff]
    %v2930 = vld [vmem:[#allocation7 + $0xa8] sm:$0xff]
    %v2931 = vld [vmem:[#allocation7 + $0xb0] sm:$0xff]
    %v2932 = vld [vmem:[#allocation7 + $0xb8] sm:$0xff]
    %v2933 = vld [vmem:[#allocation7 + $0xc0] sm:$0xff]
    %v2934 = vld [vmem:[#allocation7 + $0xc8] sm:$0xff]
    %v2935 = vld [vmem:[#allocation7 + $0xd0] sm:$0xff]
    %v2936 = vld [vmem:[#allocation7 + $0xd8] sm:$0xff]
    %v2937 = vld [vmem:[#allocation7 + $0xe0] sm:$0xff]
    %v2938 = vld [vmem:[#allocation7 + $0xe8] sm:$0xff]
    %v2939 = vld [vmem:[#allocation7 + $0xf0] sm:$0xff]
    %v2940 = vld [vmem:[#allocation7 + $0xf8] sm:$0xff]
    %v2941 = vld [vmem:[#allocation7 + $0x100] sm:$0xff]
    %v2942 = vld [vmem:[#allocation7 + $0x108] sm:$0xff]
    %v2943 = vld [vmem:[#allocation7 + $0x110] sm:$0xff]
    %v2944 = vld [vmem:[#allocation7 + $0x118] sm:$0xff]
    %v2945 = vld [vmem:[#allocation7 + $0x120] sm:$0xff]
    %v2946 = vld [vmem:[#allocation7 + $0x128] sm:$0xff]
    %v2947 = vld [vmem:[#allocation7 + $0x130] sm:$0xff]
    %v2948 = vld [vmem:[#allocation7 + $0x138] sm:$0xff]
    %v2949 = vld [vmem:[#allocation7 + $0x140] sm:$0xff]
    %v2950 = vld [vmem:[#allocation7 + $0x148] sm:$0xff]
    %v2951 = vld [vmem:[#allocation7 + $0x150] sm:$0xff]
    %v2952 = vld [vmem:[#allocation7 + $0x158] sm:$0xff]
    %v2953 = vld [vmem:[#allocation7 + $0x160] sm:$0xff]
    %v2954 = vld [vmem:[#allocation7 + $0x168] sm:$0xff]
    %v2955 = vld [vmem:[#allocation7 + $0x170] sm:$0xff]
    %v2956 = vld [vmem:[#allocation7 + $0x178] sm:$0xff]
    %v2957 = vld [vmem:[#allocation7 + $0x180] sm:$0xff]
    %v2958 = vld [vmem:[#allocation7 + $0x188] sm:$0xff]
    %v2959 = vld [vmem:[#allocation7 + $0x190] sm:$0xff]
    %v2960 = vld [vmem:[#allocation7 + $0x198] sm:$0xff]
    %v2961 = vld [vmem:[#allocation7 + $0x1a0] sm:$0xff]
    %v2962 = vld [vmem:[#allocation7 + $0x1a8] sm:$0xff]
    %v2963 = vld [vmem:[#allocation7 + $0x1b0] sm:$0xff]
    %v2964 = vld [vmem:[#allocation7 + $0x1b8] sm:$0xff]
    %v2965 = vld [vmem:[#allocation7 + $0x1c0] sm:$0xff]
    %v2966 = vld [vmem:[#allocation7 + $0x1c8] sm:$0xff]
    %v2967 = vld [vmem:[#allocation7 + $0x1d0] sm:$0xff]
    %v2968 = vld [vmem:[#allocation7 + $0x1d8] sm:$0xff]
    %v2969 = vld [vmem:[#allocation7 + $0x1e0] sm:$0xff]
    %v2970 = vld [vmem:[#allocation7 + $0x1e8] sm:$0xff]
    %v2971 = vld [vmem:[#allocation7 + $0x1f0] sm:$0xff]
    %v2972 = vld [vmem:[#allocation7 + $0x1f8] sm:$0xff]
    %v2973 = vld [vmem:[%s5] sm:$0xf]
    %v2975 = vlaneseq
    %v2976 = vshrl.u32 %v2975, 7
    %v2977 = vsub.s32 0, %v2976
    %v2978 = vrot.slane %v2973, %v2977
    %v2979 = vlaneseq
    %v2980 = vshrl.u32 %v2979, 7
    %v2981 = vsub.s32 1, %v2980
    %v2982 = vrot.slane %v2973, %v2981
    %v2983 = vlaneseq
    %v2984 = vshrl.u32 %v2983, 7
    %v2985 = vsub.s32 2, %v2984
    %v2986 = vrot.slane %v2973, %v2985
    %v2987 = vlaneseq
    %v2988 = vshrl.u32 %v2987, 7
    %v2989 = vsub.s32 3, %v2988
    %v2990 = vrot.slane %v2973, %v2989
    %v3059 = vunpack.c.l.b16 %v2909
    %v3060 = vunpack.c.h.b16 %v2909
    %v3061 = vunpack.c.l.b16 %v2910
    %v3062 = vunpack.c.h.b16 %v2910
    %v3063 = vunpack.c.l.b16 %v2911
    %v3064 = vunpack.c.h.b16 %v2911
    %v3065 = vunpack.c.l.b16 %v2912
    %v3066 = vunpack.c.h.b16 %v2912
    %v3067 = vunpack.c.l.b16 %v2913
    %v3068 = vunpack.c.h.b16 %v2913
    %v3069 = vunpack.c.l.b16 %v2914
    %v3070 = vunpack.c.h.b16 %v2914
    %v3071 = vunpack.c.l.b16 %v2915
    %v3072 = vunpack.c.h.b16 %v2915
    %v3073 = vunpack.c.l.b16 %v2916
    %v3074 = vunpack.c.h.b16 %v2916
    %v3075 = vunpack.c.l.b16 %v2917
    %v3076 = vunpack.c.h.b16 %v2917
    %v3077 = vunpack.c.l.b16 %v2918
    %v3078 = vunpack.c.h.b16 %v2918
    %v3079 = vunpack.c.l.b16 %v2919
    %v3080 = vunpack.c.h.b16 %v2919
    %v3081 = vunpack.c.l.b16 %v2920
    %v3082 = vunpack.c.h.b16 %v2920
    %v3083 = vunpack.c.l.b16 %v2921
    %v3084 = vunpack.c.h.b16 %v2921
    %v3085 = vunpack.c.l.b16 %v2922
    %v3086 = vunpack.c.h.b16 %v2922
    %v3087 = vunpack.c.l.b16 %v2923
    %v3088 = vunpack.c.h.b16 %v2923
    %v3089 = vunpack.c.l.b16 %v2924
    %v3090 = vunpack.c.h.b16 %v2924
    %v3091 = vunpack.c.l.b16 %v2925
    %v3092 = vunpack.c.h.b16 %v2925
    %v3093 = vunpack.c.l.b16 %v2926
    %v3094 = vunpack.c.h.b16 %v2926
    %v3095 = vunpack.c.l.b16 %v2927
    %v3096 = vunpack.c.h.b16 %v2927
    %v3097 = vunpack.c.l.b16 %v2928
    %v3098 = vunpack.c.h.b16 %v2928
    %v3099 = vunpack.c.l.b16 %v2929
    %v3100 = vunpack.c.h.b16 %v2929
    %v3101 = vunpack.c.l.b16 %v2930
    %v3102 = vunpack.c.h.b16 %v2930
    %v3103 = vunpack.c.l.b16 %v2931
    %v3104 = vunpack.c.h.b16 %v2931
    %v3105 = vunpack.c.l.b16 %v2932
    %v3106 = vunpack.c.h.b16 %v2932
    %v3107 = vunpack.c.l.b16 %v2933
    %v3108 = vunpack.c.h.b16 %v2933
    %v3109 = vunpack.c.l.b16 %v2934
    %v3110 = vunpack.c.h.b16 %v2934
    %v3111 = vunpack.c.l.b16 %v2935
    %v3112 = vunpack.c.h.b16 %v2935
    %v3113 = vunpack.c.l.b16 %v2936
    %v3114 = vunpack.c.h.b16 %v2936
    %v3115 = vunpack.c.l.b16 %v2937
    %v3116 = vunpack.c.h.b16 %v2937
    %v3117 = vunpack.c.l.b16 %v2938
    %v3118 = vunpack.c.h.b16 %v2938
    %v3119 = vunpack.c.l.b16 %v2939
    %v3120 = vunpack.c.h.b16 %v2939
    %v3121 = vunpack.c.l.b16 %v2940
    %v3122 = vunpack.c.h.b16 %v2940
    %v3123 = vunpack.c.l.b16 %v2941
    %v3124 = vunpack.c.h.b16 %v2941
    %v3125 = vunpack.c.l.b16 %v2942
    %v3126 = vunpack.c.h.b16 %v2942
    %v3127 = vunpack.c.l.b16 %v2943
    %v3128 = vunpack.c.h.b16 %v2943
    %v3129 = vunpack.c.l.b16 %v2944
    %v3130 = vunpack.c.h.b16 %v2944
    %v3131 = vunpack.c.l.b16 %v2945
    %v3132 = vunpack.c.h.b16 %v2945
    %v3133 = vunpack.c.l.b16 %v2946
    %v3134 = vunpack.c.h.b16 %v2946
    %v3135 = vunpack.c.l.b16 %v2947
    %v3136 = vunpack.c.h.b16 %v2947
    %v3137 = vunpack.c.l.b16 %v2948
    %v3138 = vunpack.c.h.b16 %v2948
    %v3139 = vunpack.c.l.b16 %v2949
    %v3140 = vunpack.c.h.b16 %v2949
    %v3141 = vunpack.c.l.b16 %v2950
    %v3142 = vunpack.c.h.b16 %v2950
    %v3143 = vunpack.c.l.b16 %v2951
    %v3144 = vunpack.c.h.b16 %v2951
    %v3145 = vunpack.c.l.b16 %v2952
    %v3146 = vunpack.c.h.b16 %v2952
    %v3147 = vunpack.c.l.b16 %v2953
    %v3148 = vunpack.c.h.b16 %v2953
    %v3149 = vunpack.c.l.b16 %v2954
    %v3150 = vunpack.c.h.b16 %v2954
    %v3151 = vunpack.c.l.b16 %v2955
    %v3152 = vunpack.c.h.b16 %v2955
    %v3153 = vunpack.c.l.b16 %v2956
    %v3154 = vunpack.c.h.b16 %v2956
    %v3155 = vunpack.c.l.b16 %v2957
    %v3156 = vunpack.c.h.b16 %v2957
    %v3157 = vunpack.c.l.b16 %v2958
    %v3158 = vunpack.c.h.b16 %v2958
    %v3159 = vunpack.c.l.b16 %v2959
    %v3160 = vunpack.c.h.b16 %v2959
    %v3161 = vunpack.c.l.b16 %v2960
    %v3162 = vunpack.c.h.b16 %v2960
    %v3163 = vunpack.c.l.b16 %v2961
    %v3164 = vunpack.c.h.b16 %v2961
    %v3165 = vunpack.c.l.b16 %v2962
    %v3166 = vunpack.c.h.b16 %v2962
    %v3167 = vunpack.c.l.b16 %v2963
    %v3168 = vunpack.c.h.b16 %v2963
    %v3169 = vunpack.c.l.b16 %v2964
    %v3170 = vunpack.c.h.b16 %v2964
    %v3171 = vunpack.c.l.b16 %v2965
    %v3172 = vunpack.c.h.b16 %v2965
    %v3173 = vunpack.c.l.b16 %v2966
    %v3174 = vunpack.c.h.b16 %v2966
    %v3175 = vunpack.c.l.b16 %v2967
    %v3176 = vunpack.c.h.b16 %v2967
    %v3177 = vunpack.c.l.b16 %v2968
    %v3178 = vunpack.c.h.b16 %v2968
    %v3179 = vunpack.c.l.b16 %v2969
    %v3180 = vunpack.c.h.b16 %v2969
    %v3181 = vunpack.c.l.b16 %v2970
    %v3182 = vunpack.c.h.b16 %v2970
    %v3183 = vunpack.c.l.b16 %v2971
    %v3184 = vunpack.c.h.b16 %v2971
    %v3185 = vunpack.c.l.b16 %v2972
    %v3186 = vunpack.c.h.b16 %v2972
    %v3187 = vpack.c.b16 %v3063, %v3059
    %v3188 = vpack.c.b16 %v3064, %v3060
    %v3189 = vpack.c.b16 %v3065, %v3061
    %v3190 = vpack.c.b16 %v3066, %v3062
    %v3191 = vpack.c.b16 %v3071, %v3067
    %v3192 = vpack.c.b16 %v3072, %v3068
    %v3193 = vpack.c.b16 %v3073, %v3069
    %v3194 = vpack.c.b16 %v3074, %v3070
    %v3195 = vpack.c.b16 %v3079, %v3075
    %v3196 = vpack.c.b16 %v3080, %v3076
    %v3197 = vpack.c.b16 %v3081, %v3077
    %v3198 = vpack.c.b16 %v3082, %v3078
    %v3199 = vpack.c.b16 %v3087, %v3083
    %v3200 = vpack.c.b16 %v3088, %v3084
    %v3201 = vpack.c.b16 %v3089, %v3085
    %v3202 = vpack.c.b16 %v3090, %v3086
    %v3203 = vpack.c.b16 %v3095, %v3091
    %v3204 = vpack.c.b16 %v3096, %v3092
    %v3205 = vpack.c.b16 %v3097, %v3093
    %v3206 = vpack.c.b16 %v3098, %v3094
    %v3207 = vpack.c.b16 %v3103, %v3099
    %v3208 = vpack.c.b16 %v3104, %v3100
    %v3209 = vpack.c.b16 %v3105, %v3101
    %v3210 = vpack.c.b16 %v3106, %v3102
    %v3211 = vpack.c.b16 %v3111, %v3107
    %v3212 = vpack.c.b16 %v3112, %v3108
    %v3213 = vpack.c.b16 %v3113, %v3109
    %v3214 = vpack.c.b16 %v3114, %v3110
    %v3215 = vpack.c.b16 %v3119, %v3115
    %v3216 = vpack.c.b16 %v3120, %v3116
    %v3217 = vpack.c.b16 %v3121, %v3117
    %v3218 = vpack.c.b16 %v3122, %v3118
    %v3219 = vpack.c.b16 %v3127, %v3123
    %v3220 = vpack.c.b16 %v3128, %v3124
    %v3221 = vpack.c.b16 %v3129, %v3125
    %v3222 = vpack.c.b16 %v3130, %v3126
    %v3223 = vpack.c.b16 %v3135, %v3131
    %v3224 = vpack.c.b16 %v3136, %v3132
    %v3225 = vpack.c.b16 %v3137, %v3133
    %v3226 = vpack.c.b16 %v3138, %v3134
    %v3227 = vpack.c.b16 %v3143, %v3139
    %v3228 = vpack.c.b16 %v3144, %v3140
    %v3229 = vpack.c.b16 %v3145, %v3141
    %v3230 = vpack.c.b16 %v3146, %v3142
    %v3231 = vpack.c.b16 %v3151, %v3147
    %v3232 = vpack.c.b16 %v3152, %v3148
    %v3233 = vpack.c.b16 %v3153, %v3149
    %v3234 = vpack.c.b16 %v3154, %v3150
    %v3235 = vpack.c.b16 %v3159, %v3155
    %v3236 = vpack.c.b16 %v3160, %v3156
    %v3237 = vpack.c.b16 %v3161, %v3157
    %v3238 = vpack.c.b16 %v3162, %v3158
    %v3239 = vpack.c.b16 %v3167, %v3163
    %v3240 = vpack.c.b16 %v3168, %v3164
    %v3241 = vpack.c.b16 %v3169, %v3165
    %v3242 = vpack.c.b16 %v3170, %v3166
    %v3243 = vpack.c.b16 %v3175, %v3171
    %v3244 = vpack.c.b16 %v3176, %v3172
    %v3245 = vpack.c.b16 %v3177, %v3173
    %v3246 = vpack.c.b16 %v3178, %v3174
    %v3247 = vpack.c.b16 %v3183, %v3179
    %v3248 = vpack.c.b16 %v3184, %v3180
    %v3249 = vpack.c.b16 %v3185, %v3181
    %v3250 = vpack.c.b16 %v3186, %v3182
    %3315 = vmatprep.subr.bf16.mxu0 %v3216
    %3316 = vmatpush1.bf16.msra.mxu0 %v3215
    %3317 = vmatprep.subr.bf16.mxu0 %v3212
    %3318 = vmatpush1.bf16.msra.mxu0 %v3211
    %3319 = vmatprep.subr.bf16.mxu0 %v3208
    %3320 = vmatpush1.bf16.msra.mxu0 %v3207
    %3321 = vmatprep.subr.bf16.mxu0 %v3204
    %3322 = vmatpush1.bf16.msra.mxu0 %v3203
    %3323 = vmatprep.subr.bf16.mxu0 %v3200
    %3324 = vmatpush1.bf16.msra.mxu0 %v3199
    %3325 = vmatprep.subr.bf16.mxu0 %v3196
    %3326 = vmatpush1.bf16.msra.mxu0 %v3195
    %3327 = vmatprep.subr.bf16.mxu0 %v3192
    %3328 = vmatpush1.bf16.msra.mxu0 %v3191
    %3329 = vmatprep.subr.bf16.mxu0 %v3188
    %3330 = vmatpush1.bf16.msra.mxu0 %v3187
    %3331 = vmatprep.subr.bf16.mxu0 %v3248
    %3332 = vmatpush2.bf16.msra.mxu0 %v3247
    %3333 = vmatprep.subr.bf16.mxu0 %v3244
    %3334 = vmatpush2.bf16.msra.mxu0 %v3243
    %3335 = vmatprep.subr.bf16.mxu0 %v3240
    %3336 = vmatpush2.bf16.msra.mxu0 %v3239
    %3337 = vmatprep.subr.bf16.mxu0 %v3236
    %3338 = vmatpush2.bf16.msra.mxu0 %v3235
    %3339 = vmatprep.subr.bf16.mxu0 %v3232
    %3340 = vmatpush2.bf16.msra.mxu0 %v3231
    %3341 = vmatprep.subr.bf16.mxu0 %v3228
    %3342 = vmatpush2.bf16.msra.mxu0 %v3227
    %3343 = vmatprep.subr.bf16.mxu0 %v3224
    %3344 = vmatpush2.bf16.msra.mxu0 %v3223
    %3345 = vmatprep.subr.bf16.mxu0 %v3220
    %3346 = vmatpush2.bf16.msra.mxu0 %v3219
    %3347 = vmatprep.mubr.bf16.mxu0 %v2902
    %3348 = vmatmul.mubr.bf16.gmra.mxu0 %v2901
    %v3349 = vpop.f32.mrf.mxu0
    %v3350 = vadd.f32 %v2978, %v3349
    %v3351 = vpop.f32.mrf.mxu0
    %v3352 = vadd.f32 %v2982, %v3351
    %v3353 = vpop.f32.mrf.mxu0
    %v3354 = vadd.f32 %v2978, %v3353
    %v3355 = vpop.f32.mrf.mxu0
    %v3356 = vadd.f32 %v2982, %v3355
    %3357 = vmatprep.mubr.bf16.mxu0 %v2904
    %3358 = vmatmul.mubr.bf16.gmra.mxu0 %v2903
    %v3359 = vpop.f32.mrf.mxu0
    %v3360 = vadd.f32 %v2978, %v3359
    %v3361 = vpop.f32.mrf.mxu0
    %v3362 = vadd.f32 %v2982, %v3361
    %v3363 = vpop.f32.mrf.mxu0
    %v3364 = vadd.f32 %v2978, %v3363
    %v3365 = vpop.f32.mrf.mxu0
    %v3366 = vadd.f32 %v2982, %v3365
    %3367 = vmatprep.mubr.bf16.mxu0 %v2906
    %3368 = vmatmul.mubr.bf16.gmra.mxu0 %v2905
    %v3369 = vpop.f32.mrf.mxu0
    %v3370 = vadd.f32 %v2978, %v3369
    %v3371 = vpop.f32.mrf.mxu0
    %v3372 = vadd.f32 %v2982, %v3371
    %v3373 = vpop.f32.mrf.mxu0
    %v3374 = vadd.f32 %v2978, %v3373
    %v3375 = vpop.f32.mrf.mxu0
    %v3376 = vadd.f32 %v2982, %v3375
    %3377 = vmatprep.mubr.bf16.mxu0 %v2908
    %3378 = vmatmul.mubr.bf16.gmra.mxu0 %v2907
    %v3379 = vpop.f32.mrf.mxu0
    %v3380 = vadd.f32 %v2978, %v3379
    %v3381 = vpop.f32.mrf.mxu0
    %v3382 = vadd.f32 %v2982, %v3381
    %v3383 = vpop.f32.mrf.mxu0
    %v3384 = vadd.f32 %v2978, %v3383
    %v3385 = vpop.f32.mrf.mxu0
    %v3386 = vadd.f32 %v2982, %v3385
    %3387 = vdwg.mxu0
    %3388 = vmatprep.subr.bf16.mxu0 %v3218
    %3389 = vmatpush1.bf16.msra.mxu0 %v3217
    %3390 = vmatprep.subr.bf16.mxu0 %v3214
    %3391 = vmatpush1.bf16.msra.mxu0 %v3213
    %3392 = vmatprep.subr.bf16.mxu0 %v3210
    %3393 = vmatpush1.bf16.msra.mxu0 %v3209
    %3394 = vmatprep.subr.bf16.mxu0 %v3206
    %3395 = vmatpush1.bf16.msra.mxu0 %v3205
    %3396 = vmatprep.subr.bf16.mxu0 %v3202
    %3397 = vmatpush1.bf16.msra.mxu0 %v3201
    %3398 = vmatprep.subr.bf16.mxu0 %v3198
    %3399 = vmatpush1.bf16.msra.mxu0 %v3197
    %3400 = vmatprep.subr.bf16.mxu0 %v3194
    %3401 = vmatpush1.bf16.msra.mxu0 %v3193
    %3402 = vmatprep.subr.bf16.mxu0 %v3190
    %3403 = vmatpush1.bf16.msra.mxu0 %v3189
    %3404 = vmatprep.subr.bf16.mxu0 %v3250
    %3405 = vmatpush2.bf16.msra.mxu0 %v3249
    %3406 = vmatprep.subr.bf16.mxu0 %v3246
    %3407 = vmatpush2.bf16.msra.mxu0 %v3245
    %3408 = vmatprep.subr.bf16.mxu0 %v3242
    %3409 = vmatpush2.bf16.msra.mxu0 %v3241
    %3410 = vmatprep.subr.bf16.mxu0 %v3238
    %3411 = vmatpush2.bf16.msra.mxu0 %v3237
    %3412 = vmatprep.subr.bf16.mxu0 %v3234
    %3413 = vmatpush2.bf16.msra.mxu0 %v3233
    %3414 = vmatprep.subr.bf16.mxu0 %v3230
    %3415 = vmatpush2.bf16.msra.mxu0 %v3229
    %3416 = vmatprep.subr.bf16.mxu0 %v3226
    %3417 = vmatpush2.bf16.msra.mxu0 %v3225
    %3418 = vmatprep.subr.bf16.mxu0 %v3222
    %3419 = vmatpush2.bf16.msra.mxu0 %v3221
    %3420 = vmatprep.mubr.bf16.mxu0 %v2902
    %3421 = vmatmul.mubr.bf16.gmra.mxu0 %v2901
    %v3422 = vpop.f32.mrf.mxu0
    %v3423 = vadd.f32 %v2986, %v3422
    %v3424 = vpop.f32.mrf.mxu0
    %v3425 = vadd.f32 %v2990, %v3424
    %v3426 = vpop.f32.mrf.mxu0
    %v3427 = vadd.f32 %v2986, %v3426
    %v3428 = vpop.f32.mrf.mxu0
    %v3429 = vadd.f32 %v2990, %v3428
    %3430 = vmatprep.mubr.bf16.mxu0 %v2904
    %3431 = vmatmul.mubr.bf16.gmra.mxu0 %v2903
    %v3432 = vpop.f32.mrf.mxu0
    %v3433 = vadd.f32 %v2986, %v3432
    %v3434 = vpop.f32.mrf.mxu0
    %v3435 = vadd.f32 %v2990, %v3434
    %v3436 = vpop.f32.mrf.mxu0
    %v3437 = vadd.f32 %v2986, %v3436
    %v3438 = vpop.f32.mrf.mxu0
    %v3439 = vadd.f32 %v2990, %v3438
    %3440 = vmatprep.mubr.bf16.mxu0 %v2906
    %3441 = vmatmul.mubr.bf16.gmra.mxu0 %v2905
    %v3442 = vpop.f32.mrf.mxu0
    %v3443 = vadd.f32 %v2986, %v3442
    %v3444 = vpop.f32.mrf.mxu0
    %v3445 = vadd.f32 %v2990, %v3444
    %v3446 = vpop.f32.mrf.mxu0
    %v3447 = vadd.f32 %v2986, %v3446
    %v3448 = vpop.f32.mrf.mxu0
    %v3449 = vadd.f32 %v2990, %v3448
    %3450 = vmatprep.mubr.bf16.mxu0 %v2908
    %3451 = vmatmul.mubr.bf16.gmra.mxu0 %v2907
    %v3452 = vpop.f32.mrf.mxu0
    %v3453 = vadd.f32 %v2986, %v3452
    %v3454 = vpop.f32.mrf.mxu0
    %v3455 = vadd.f32 %v2990, %v3454
    %v3456 = vpop.f32.mrf.mxu0
    %v3457 = vadd.f32 %v2986, %v3456
    %v3458 = vpop.f32.mrf.mxu0
    %v3459 = vadd.f32 %v2990, %v3458
    %3460 = vdwg.mxu0
    %3461 = vst [vmem:[#allocation2] sm:$0xff] %v3350
    %3462 = vst [vmem:[#allocation2 + $0x8] sm:$0xff] %v3352
    %3463 = vst [vmem:[#allocation2 + $0x10] sm:$0xff] %v3423
    %3464 = vst [vmem:[#allocation2 + $0x18] sm:$0xff] %v3425
    %3465 = vst [vmem:[#allocation2 + $0x20] sm:$0xff] %v3354
    %3466 = vst [vmem:[#allocation2 + $0x28] sm:$0xff] %v3356
    %3467 = vst [vmem:[#allocation2 + $0x30] sm:$0xff] %v3427
    %3468 = vst [vmem:[#allocation2 + $0x38] sm:$0xff] %v3429
    %3469 = vst [vmem:[#allocation2 + $0x40] sm:$0xff] %v3360
    %3470 = vst [vmem:[#allocation2 + $0x48] sm:$0xff] %v3362
    %3471 = vst [vmem:[#allocation2 + $0x50] sm:$0xff] %v3433
    %3472 = vst [vmem:[#allocation2 + $0x58] sm:$0xff] %v3435
    %3473 = vst [vmem:[#allocation2 + $0x60] sm:$0xff] %v3364
    %3474 = vst [vmem:[#allocation2 + $0x68] sm:$0xff] %v3366
    %3475 = vst [vmem:[#allocation2 + $0x70] sm:$0xff] %v3437
    %3476 = vst [vmem:[#allocation2 + $0x78] sm:$0xff] %v3439
    %3477 = vst [vmem:[#allocation2 + $0x80] sm:$0xff] %v3370
    %3478 = vst [vmem:[#allocation2 + $0x88] sm:$0xff] %v3372
    %3479 = vst [vmem:[#allocation2 + $0x90] sm:$0xff] %v3443
    %3480 = vst [vmem:[#allocation2 + $0x98] sm:$0xff] %v3445
    %3481 = vst [vmem:[#allocation2 + $0xa0] sm:$0xff] %v3374
    %3482 = vst [vmem:[#allocation2 + $0xa8] sm:$0xff] %v3376
    %3483 = vst [vmem:[#allocation2 + $0xb0] sm:$0xff] %v3447
    %3484 = vst [vmem:[#allocation2 + $0xb8] sm:$0xff] %v3449
    %3485 = vst [vmem:[#allocation2 + $0xc0] sm:$0xff] %v3380
    %3486 = vst [vmem:[#allocation2 + $0xc8] sm:$0xff] %v3382
    %3487 = vst [vmem:[#allocation2 + $0xd0] sm:$0xff] %v3453
    %3488 = vst [vmem:[#allocation2 + $0xd8] sm:$0xff] %v3455
    %3489 = vst [vmem:[#allocation2 + $0xe0] sm:$0xff] %v3384
    %3490 = vst [vmem:[#allocation2 + $0xe8] sm:$0xff] %v3386
    %3491 = vst [vmem:[#allocation2 + $0xf0] sm:$0xff] %v3457
    %3492 = vst [vmem:[#allocation2 + $0xf8] sm:$0xff] %v3459
    %v3493 = vld [vmem:[%s368] sm:$0xff]
    %v3494 = vld [vmem:[%s368 + $0x8] sm:$0xff]
    %v3495 = vld [vmem:[%s368 + $0x10] sm:$0xff]
    %v3496 = vld [vmem:[%s368 + $0x18] sm:$0xff]
    %v3497 = vld [vmem:[#allocation9] sm:$0xff]
    %v3498 = vld [vmem:[#allocation9 + $0x8] sm:$0xff]
    %v3499 = vld [vmem:[#allocation9 + $0x10] sm:$0xff]
    %v3500 = vld [vmem:[#allocation9 + $0x18] sm:$0xff]
    %v3501 = vld [vmem:[#allocation9 + $0x20] sm:$0xff]
    %v3502 = vld [vmem:[#allocation9 + $0x28] sm:$0xff]
    %v3503 = vld [vmem:[#allocation9 + $0x30] sm:$0xff]
    %v3504 = vld [vmem:[#allocation9 + $0x38] sm:$0xff]
    %v3505 = vld [vmem:[#allocation9 + $0x40] sm:$0xff]
    %v3506 = vld [vmem:[#allocation9 + $0x48] sm:$0xff]
    %v3507 = vld [vmem:[#allocation9 + $0x50] sm:$0xff]
    %v3508 = vld [vmem:[#allocation9 + $0x58] sm:$0xff]
    %v3509 = vld [vmem:[#allocation9 + $0x60] sm:$0xff]
    %v3510 = vld [vmem:[#allocation9 + $0x68] sm:$0xff]
    %v3511 = vld [vmem:[#allocation9 + $0x70] sm:$0xff]
    %v3512 = vld [vmem:[#allocation9 + $0x78] sm:$0xff]
    %v3513 = vld [vmem:[#allocation9 + $0x80] sm:$0xff]
    %v3514 = vld [vmem:[#allocation9 + $0x88] sm:$0xff]
    %v3515 = vld [vmem:[#allocation9 + $0x90] sm:$0xff]
    %v3516 = vld [vmem:[#allocation9 + $0x98] sm:$0xff]
    %v3517 = vld [vmem:[#allocation9 + $0xa0] sm:$0xff]
    %v3518 = vld [vmem:[#allocation9 + $0xa8] sm:$0xff]
    %v3519 = vld [vmem:[#allocation9 + $0xb0] sm:$0xff]
    %v3520 = vld [vmem:[#allocation9 + $0xb8] sm:$0xff]
    %v3521 = vld [vmem:[#allocation9 + $0xc0] sm:$0xff]
    %v3522 = vld [vmem:[#allocation9 + $0xc8] sm:$0xff]
    %v3523 = vld [vmem:[#allocation9 + $0xd0] sm:$0xff]
    %v3524 = vld [vmem:[#allocation9 + $0xd8] sm:$0xff]
    %v3525 = vld [vmem:[#allocation9 + $0xe0] sm:$0xff]
    %v3526 = vld [vmem:[#allocation9 + $0xe8] sm:$0xff]
    %v3527 = vld [vmem:[#allocation9 + $0xf0] sm:$0xff]
    %v3528 = vld [vmem:[#allocation9 + $0xf8] sm:$0xff]
    %v3561 = vunpack.c.l.b16 %v3497
    %v3562 = vunpack.c.h.b16 %v3497
    %v3563 = vunpack.c.l.b16 %v3498
    %v3564 = vunpack.c.h.b16 %v3498
    %v3565 = vunpack.c.l.b16 %v3499
    %v3566 = vunpack.c.h.b16 %v3499
    %v3567 = vunpack.c.l.b16 %v3500
    %v3568 = vunpack.c.h.b16 %v3500
    %v3569 = vunpack.c.l.b16 %v3501
    %v3570 = vunpack.c.h.b16 %v3501
    %v3571 = vunpack.c.l.b16 %v3502
    %v3572 = vunpack.c.h.b16 %v3502
    %v3573 = vunpack.c.l.b16 %v3503
    %v3574 = vunpack.c.h.b16 %v3503
    %v3575 = vunpack.c.l.b16 %v3504
    %v3576 = vunpack.c.h.b16 %v3504
    %v3577 = vunpack.c.l.b16 %v3505
    %v3578 = vunpack.c.h.b16 %v3505
    %v3579 = vunpack.c.l.b16 %v3506
    %v3580 = vunpack.c.h.b16 %v3506
    %v3581 = vunpack.c.l.b16 %v3507
    %v3582 = vunpack.c.h.b16 %v3507
    %v3583 = vunpack.c.l.b16 %v3508
    %v3584 = vunpack.c.h.b16 %v3508
    %v3585 = vunpack.c.l.b16 %v3509
    %v3586 = vunpack.c.h.b16 %v3509
    %v3587 = vunpack.c.l.b16 %v3510
    %v3588 = vunpack.c.h.b16 %v3510
    %v3589 = vunpack.c.l.b16 %v3511
    %v3590 = vunpack.c.h.b16 %v3511
    %v3591 = vunpack.c.l.b16 %v3512
    %v3592 = vunpack.c.h.b16 %v3512
    %v3593 = vunpack.c.l.b16 %v3513
    %v3594 = vunpack.c.h.b16 %v3513
    %v3595 = vunpack.c.l.b16 %v3514
    %v3596 = vunpack.c.h.b16 %v3514
    %v3597 = vunpack.c.l.b16 %v3515
    %v3598 = vunpack.c.h.b16 %v3515
    %v3599 = vunpack.c.l.b16 %v3516
    %v3600 = vunpack.c.h.b16 %v3516
    %v3601 = vunpack.c.l.b16 %v3517
    %v3602 = vunpack.c.h.b16 %v3517
    %v3603 = vunpack.c.l.b16 %v3518
    %v3604 = vunpack.c.h.b16 %v3518
    %v3605 = vunpack.c.l.b16 %v3519
    %v3606 = vunpack.c.h.b16 %v3519
    %v3607 = vunpack.c.l.b16 %v3520
    %v3608 = vunpack.c.h.b16 %v3520
    %v3609 = vunpack.c.l.b16 %v3521
    %v3610 = vunpack.c.h.b16 %v3521
    %v3611 = vunpack.c.l.b16 %v3522
    %v3612 = vunpack.c.h.b16 %v3522
    %v3613 = vunpack.c.l.b16 %v3523
    %v3614 = vunpack.c.h.b16 %v3523
    %v3615 = vunpack.c.l.b16 %v3524
    %v3616 = vunpack.c.h.b16 %v3524
    %v3617 = vunpack.c.l.b16 %v3525
    %v3618 = vunpack.c.h.b16 %v3525
    %v3619 = vunpack.c.l.b16 %v3526
    %v3620 = vunpack.c.h.b16 %v3526
    %v3621 = vunpack.c.l.b16 %v3527
    %v3622 = vunpack.c.h.b16 %v3527
    %v3623 = vunpack.c.l.b16 %v3528
    %v3624 = vunpack.c.h.b16 %v3528
    %v3625 = vpack.c.b16 %v3565, %v3561
    %v3626 = vpack.c.b16 %v3566, %v3562
    %v3627 = vpack.c.b16 %v3567, %v3563
    %v3628 = vpack.c.b16 %v3568, %v3564
    %v3629 = vpack.c.b16 %v3573, %v3569
    %v3630 = vpack.c.b16 %v3574, %v3570
    %v3631 = vpack.c.b16 %v3575, %v3571
    %v3632 = vpack.c.b16 %v3576, %v3572
    %v3633 = vpack.c.b16 %v3581, %v3577
    %v3634 = vpack.c.b16 %v3582, %v3578
    %v3635 = vpack.c.b16 %v3583, %v3579
    %v3636 = vpack.c.b16 %v3584, %v3580
    %v3637 = vpack.c.b16 %v3589, %v3585
    %v3638 = vpack.c.b16 %v3590, %v3586
    %v3639 = vpack.c.b16 %v3591, %v3587
    %v3640 = vpack.c.b16 %v3592, %v3588
    %v3641 = vpack.c.b16 %v3597, %v3593
    %v3642 = vpack.c.b16 %v3598, %v3594
    %v3643 = vpack.c.b16 %v3599, %v3595
    %v3644 = vpack.c.b16 %v3600, %v3596
    %v3645 = vpack.c.b16 %v3605, %v3601
    %v3646 = vpack.c.b16 %v3606, %v3602
    %v3647 = vpack.c.b16 %v3607, %v3603
    %v3648 = vpack.c.b16 %v3608, %v3604
    %v3649 = vpack.c.b16 %v3613, %v3609
    %v3650 = vpack.c.b16 %v3614, %v3610
    %v3651 = vpack.c.b16 %v3615, %v3611
    %v3652 = vpack.c.b16 %v3616, %v3612
    %v3653 = vpack.c.b16 %v3621, %v3617
    %v3654 = vpack.c.b16 %v3622, %v3618
    %v3655 = vpack.c.b16 %v3623, %v3619
    %v3656 = vpack.c.b16 %v3624, %v3620
    %3689 = vmatprep.subr.bf16.mxu0 %v3654
    %3690 = vmatpush1.bf16.msra.mxu0 %v3653
    %3691 = vmatprep.subr.bf16.mxu0 %v3650
    %3692 = vmatpush1.bf16.msra.mxu0 %v3649
    %3693 = vmatprep.subr.bf16.mxu0 %v3646
    %3694 = vmatpush1.bf16.msra.mxu0 %v3645
    %3695 = vmatprep.subr.bf16.mxu0 %v3642
    %3696 = vmatpush1.bf16.msra.mxu0 %v3641
    %3697 = vmatprep.subr.bf16.mxu0 %v3638
    %3698 = vmatpush1.bf16.msra.mxu0 %v3637
    %3699 = vmatprep.subr.bf16.mxu0 %v3634
    %3700 = vmatpush1.bf16.msra.mxu0 %v3633
    %3701 = vmatprep.subr.bf16.mxu0 %v3630
    %3702 = vmatpush1.bf16.msra.mxu0 %v3629
    %3703 = vmatprep.subr.bf16.mxu0 %v3626
    %3704 = vmatpush1.bf16.msra.mxu0 %v3625
    %3705 = vmatprep.subr.bf16.mxu0 0
    %3706 = vmatpush2.bf16.msra.mxu0 0
    %3707 = vmatprep.subr.bf16.mxu0 0
    %3708 = vmatpush2.bf16.msra.mxu0 0
    %3709 = vmatprep.subr.bf16.mxu0 0
    %3710 = vmatpush2.bf16.msra.mxu0 0
    %3711 = vmatprep.subr.bf16.mxu0 0
    %3712 = vmatpush2.bf16.msra.mxu0 0
    %3713 = vmatprep.subr.bf16.mxu0 0
    %3714 = vmatpush2.bf16.msra.mxu0 0
    %3715 = vmatprep.subr.bf16.mxu0 0
    %3716 = vmatpush2.bf16.msra.mxu0 0
    %3717 = vmatprep.subr.bf16.mxu0 0
    %3718 = vmatpush2.bf16.msra.mxu0 0
    %3719 = vmatprep.subr.bf16.mxu0 0
    %3720 = vmatpush2.bf16.msra.mxu0 0
    %3721 = vmatprep.mubr.bf16.mxu0 0
    %3722 = vmatmul.mubr.bf16.gmra.mxu0 0
    %v3723 = vpop.f32.mrf.mxu0
    %v3724 = vadd.f32 0.0, %v3723
    %v3725 = vpop.f32.mrf.mxu0
    %v3726 = vadd.f32 0.0, %v3725
    %v3727 = vpop.f32.mrf.mxu0
    %v3728 = vpop.f32.mrf.mxu0
    %3729 = vdwg.mxu0
    %3730 = vmatprep.subr.bf16.mxu0 %v3656
    %3731 = vmatpush1.bf16.msra.mxu0 %v3655
    %3732 = vmatprep.subr.bf16.mxu0 %v3652
    %3733 = vmatpush1.bf16.msra.mxu0 %v3651
    %3734 = vmatprep.subr.bf16.mxu0 %v3648
    %3735 = vmatpush1.bf16.msra.mxu0 %v3647
    %3736 = vmatprep.subr.bf16.mxu0 %v3644
    %3737 = vmatpush1.bf16.msra.mxu0 %v3643
    %3738 = vmatprep.subr.bf16.mxu0 %v3640
    %3739 = vmatpush1.bf16.msra.mxu0 %v3639
    %3740 = vmatprep.subr.bf16.mxu0 %v3636
    %3741 = vmatpush1.bf16.msra.mxu0 %v3635
    %3742 = vmatprep.subr.bf16.mxu0 %v3632
    %3743 = vmatpush1.bf16.msra.mxu0 %v3631
    %3744 = vmatprep.subr.bf16.mxu0 %v3628
    %3745 = vmatpush1.bf16.msra.mxu0 %v3627
    %3746 = vmatprep.subr.bf16.mxu0 0
    %3747 = vmatpush2.bf16.msra.mxu0 0
    %3748 = vmatprep.subr.bf16.mxu0 0
    %3749 = vmatpush2.bf16.msra.mxu0 0
    %3750 = vmatprep.subr.bf16.mxu0 0
    %3751 = vmatpush2.bf16.msra.mxu0 0
    %3752 = vmatprep.subr.bf16.mxu0 0
    %3753 = vmatpush2.bf16.msra.mxu0 0
    %3754 = vmatprep.subr.bf16.mxu0 0
    %3755 = vmatpush2.bf16.msra.mxu0 0
    %3756 = vmatprep.subr.bf16.mxu0 0
    %3757 = vmatpush2.bf16.msra.mxu0 0
    %3758 = vmatprep.subr.bf16.mxu0 0
    %3759 = vmatpush2.bf16.msra.mxu0 0
    %3760 = vmatprep.subr.bf16.mxu0 0
    %3761 = vmatpush2.bf16.msra.mxu0 0
    %3762 = vmatprep.mubr.bf16.mxu0 0
    %3763 = vmatmul.mubr.bf16.gmra.mxu0 0
    %v3764 = vpop.f32.mrf.mxu0
    %v3765 = vadd.f32 0.0, %v3764
    %v3766 = vpop.f32.mrf.mxu0
    %v3767 = vadd.f32 0.0, %v3766
    %v3768 = vpop.f32.mrf.mxu0
    %v3769 = vpop.f32.mrf.mxu0
    %3770 = vdwg.mxu0
    %v3771 = vadd.f32 %v3493, %v3724
    %v3772 = vadd.f32 %v3494, %v3726
    %v3773 = vadd.f32 %v3495, %v3765
    %v3774 = vadd.f32 %v3496, %v3767
    %v3775 = vxor.u32 %v3771, 2147483648
    %v3776 = vxor.u32 %v3772, 2147483648
    %v3777 = vxor.u32 %v3773, 2147483648
    %v3778 = vmul.f32 %v3775, 1.442695
    %v3779 = vpow.pop %v3778
    %v3780 = vmul.f32 %v3776, 1.442695
    %v3781 = vpow.pop %v3780
    %v3782 = vmul.f32 %v3777, 1.442695
    %v3783 = vpow.pop %v3782
    %v3784 = vadd.f32 %v3779, 1.0
    %v3785 = vadd.f32 %v3781, 1.0
    %v3786 = vadd.f32 %v3783, 1.0
    %v3787 = vrcp.pop %v3784
    %v3788 = vmul.f32 1.0, %v3787
    %v3789 = vrcp.pop %v3785
    %v3790 = vmul.f32 1.0, %v3789
    %v3791 = vrcp.pop %v3786
    %v3792 = vmul.f32 1.0, %v3791
    %v3793 = vtanh.pop %v3774
    %v3794 = vmul.f32 %v3790, 0.0
    %v3795 = vmul.f32 %v3788, %v3793
    %v3796 = vadd.f32 %v3794, %v3795
    %v3797 = vtanh.pop %v3796
    %v3798 = vmul.f32 %v3792, %v3797
    %s3799 = smul.addr %s675, 8
    %s3800 = scalar_lea.vmem [#allocation4], %s3799
    %3801 = vst [vmem:[%s3800] sm:$0xff] %v3798
    %s3802 = smul.addr %s679, 8
    %s3803 = scalar_lea.vmem [#allocation4], %s3802
    %3804 = vst [vmem:[%s3803 + $0x8] sm:$0xff] %v3798
    %v3805 = vld [vmem:[%s685] sm:$0xff]
    %v3806 = vld [vmem:[%s685 + $0x8] sm:$0xff]
    %v3807 = vld [vmem:[%s685 + $0x10] sm:$0xff]
    %v3808 = vld [vmem:[%s685 + $0x18] sm:$0xff]
    %v3809 = vpack.c.bf16 %v3798, %v3798
    %v3810 = vld [vmem:[#allocation9] sm:$0xff]
    %v3811 = vld [vmem:[#allocation9 + $0x8] sm:$0xff]
    %v3812 = vld [vmem:[#allocation9 + $0x10] sm:$0xff]
    %v3813 = vld [vmem:[#allocation9 + $0x18] sm:$0xff]
    %v3814 = vld [vmem:[#allocation9 + $0x20] sm:$0xff]
    %v3815 = vld [vmem:[#allocation9 + $0x28] sm:$0xff]
    %v3816 = vld [vmem:[#allocation9 + $0x30] sm:$0xff]
    %v3817 = vld [vmem:[#allocation9 + $0x38] sm:$0xff]
    %v3818 = vld [vmem:[#allocation9 + $0x40] sm:$0xff]
    %v3819 = vld [vmem:[#allocation9 + $0x48] sm:$0xff]
    %v3820 = vld [vmem:[#allocation9 + $0x50] sm:$0xff]
    %v3821 = vld [vmem:[#allocation9 + $0x58] sm:$0xff]
    %v3822 = vld [vmem:[#allocation9 + $0x60] sm:$0xff]
    %v3823 = vld [vmem:[#allocation9 + $0x68] sm:$0xff]
    %v3824 = vld [vmem:[#allocation9 + $0x70] sm:$0xff]
    %v3825 = vld [vmem:[#allocation9 + $0x78] sm:$0xff]
    %v3826 = vld [vmem:[#allocation9 + $0x80] sm:$0xff]
    %v3827 = vld [vmem:[#allocation9 + $0x88] sm:$0xff]
    %v3828 = vld [vmem:[#allocation9 + $0x90] sm:$0xff]
    %v3829 = vld [vmem:[#allocation9 + $0x98] sm:$0xff]
    %v3830 = vld [vmem:[#allocation9 + $0xa0] sm:$0xff]
    %v3831 = vld [vmem:[#allocation9 + $0xa8] sm:$0xff]
    %v3832 = vld [vmem:[#allocation9 + $0xb0] sm:$0xff]
    %v3833 = vld [vmem:[#allocation9 + $0xb8] sm:$0xff]
    %v3834 = vld [vmem:[#allocation9 + $0xc0] sm:$0xff]
    %v3835 = vld [vmem:[#allocation9 + $0xc8] sm:$0xff]
    %v3836 = vld [vmem:[#allocation9 + $0xd0] sm:$0xff]
    %v3837 = vld [vmem:[#allocation9 + $0xd8] sm:$0xff]
    %v3838 = vld [vmem:[#allocation9 + $0xe0] sm:$0xff]
    %v3839 = vld [vmem:[#allocation9 + $0xe8] sm:$0xff]
    %v3840 = vld [vmem:[#allocation9 + $0xf0] sm:$0xff]
    %v3841 = vld [vmem:[#allocation9 + $0xf8] sm:$0xff]
    %v3874 = vunpack.c.l.b16 %v3810
    %v3875 = vunpack.c.h.b16 %v3810
    %v3876 = vunpack.c.l.b16 %v3811
    %v3877 = vunpack.c.h.b16 %v3811
    %v3878 = vunpack.c.l.b16 %v3812
    %v3879 = vunpack.c.h.b16 %v3812
    %v3880 = vunpack.c.l.b16 %v3813
    %v3881 = vunpack.c.h.b16 %v3813
    %v3882 = vunpack.c.l.b16 %v3814
    %v3883 = vunpack.c.h.b16 %v3814
    %v3884 = vunpack.c.l.b16 %v3815
    %v3885 = vunpack.c.h.b16 %v3815
    %v3886 = vunpack.c.l.b16 %v3816
    %v3887 = vunpack.c.h.b16 %v3816
    %v3888 = vunpack.c.l.b16 %v3817
    %v3889 = vunpack.c.h.b16 %v3817
    %v3890 = vunpack.c.l.b16 %v3818
    %v3891 = vunpack.c.h.b16 %v3818
    %v3892 = vunpack.c.l.b16 %v3819
    %v3893 = vunpack.c.h.b16 %v3819
    %v3894 = vunpack.c.l.b16 %v3820
    %v3895 = vunpack.c.h.b16 %v3820
    %v3896 = vunpack.c.l.b16 %v3821
    %v3897 = vunpack.c.h.b16 %v3821
    %v3898 = vunpack.c.l.b16 %v3822
    %v3899 = vunpack.c.h.b16 %v3822
    %v3900 = vunpack.c.l.b16 %v3823
    %v3901 = vunpack.c.h.b16 %v3823
    %v3902 = vunpack.c.l.b16 %v3824
    %v3903 = vunpack.c.h.b16 %v3824
    %v3904 = vunpack.c.l.b16 %v3825
    %v3905 = vunpack.c.h.b16 %v3825
    %v3906 = vunpack.c.l.b16 %v3826
    %v3907 = vunpack.c.h.b16 %v3826
    %v3908 = vunpack.c.l.b16 %v3827
    %v3909 = vunpack.c.h.b16 %v3827
    %v3910 = vunpack.c.l.b16 %v3828
    %v3911 = vunpack.c.h.b16 %v3828
    %v3912 = vunpack.c.l.b16 %v3829
    %v3913 = vunpack.c.h.b16 %v3829
    %v3914 = vunpack.c.l.b16 %v3830
    %v3915 = vunpack.c.h.b16 %v3830
    %v3916 = vunpack.c.l.b16 %v3831
    %v3917 = vunpack.c.h.b16 %v3831
    %v3918 = vunpack.c.l.b16 %v3832
    %v3919 = vunpack.c.h.b16 %v3832
    %v3920 = vunpack.c.l.b16 %v3833
    %v3921 = vunpack.c.h.b16 %v3833
    %v3922 = vunpack.c.l.b16 %v3834
    %v3923 = vunpack.c.h.b16 %v3834
    %v3924 = vunpack.c.l.b16 %v3835
    %v3925 = vunpack.c.h.b16 %v3835
    %v3926 = vunpack.c.l.b16 %v3836
    %v3927 = vunpack.c.h.b16 %v3836
    %v3928 = vunpack.c.l.b16 %v3837
    %v3929 = vunpack.c.h.b16 %v3837
    %v3930 = vunpack.c.l.b16 %v3838
    %v3931 = vunpack.c.h.b16 %v3838
    %v3932 = vunpack.c.l.b16 %v3839
    %v3933 = vunpack.c.h.b16 %v3839
    %v3934 = vunpack.c.l.b16 %v3840
    %v3935 = vunpack.c.h.b16 %v3840
    %v3936 = vunpack.c.l.b16 %v3841
    %v3937 = vunpack.c.h.b16 %v3841
    %v3938 = vpack.c.b16 %v3878, %v3874
    %v3939 = vpack.c.b16 %v3879, %v3875
    %v3940 = vpack.c.b16 %v3880, %v3876
    %v3941 = vpack.c.b16 %v3881, %v3877
    %v3942 = vpack.c.b16 %v3886, %v3882
    %v3943 = vpack.c.b16 %v3887, %v3883
    %v3944 = vpack.c.b16 %v3888, %v3884
    %v3945 = vpack.c.b16 %v3889, %v3885
    %v3946 = vpack.c.b16 %v3894, %v3890
    %v3947 = vpack.c.b16 %v3895, %v3891
    %v3948 = vpack.c.b16 %v3896, %v3892
    %v3949 = vpack.c.b16 %v3897, %v3893
    %v3950 = vpack.c.b16 %v3902, %v3898
    %v3951 = vpack.c.b16 %v3903, %v3899
    %v3952 = vpack.c.b16 %v3904, %v3900
    %v3953 = vpack.c.b16 %v3905, %v3901
    %v3954 = vpack.c.b16 %v3910, %v3906
    %v3955 = vpack.c.b16 %v3911, %v3907
    %v3956 = vpack.c.b16 %v3912, %v3908
    %v3957 = vpack.c.b16 %v3913, %v3909
    %v3958 = vpack.c.b16 %v3918, %v3914
    %v3959 = vpack.c.b16 %v3919, %v3915
    %v3960 = vpack.c.b16 %v3920, %v3916
    %v3961 = vpack.c.b16 %v3921, %v3917
    %v3962 = vpack.c.b16 %v3926, %v3922
    %v3963 = vpack.c.b16 %v3927, %v3923
    %v3964 = vpack.c.b16 %v3928, %v3924
    %v3965 = vpack.c.b16 %v3929, %v3925
    %v3966 = vpack.c.b16 %v3934, %v3930
    %v3967 = vpack.c.b16 %v3935, %v3931
    %v3968 = vpack.c.b16 %v3936, %v3932
    %v3969 = vpack.c.b16 %v3937, %v3933
    %4002 = vmatprep.subr.bf16.mxu0 %v3967
    %4003 = vmatpush1.bf16.msra.mxu0 %v3966
    %4004 = vmatprep.subr.bf16.mxu0 %v3963
    %4005 = vmatpush1.bf16.msra.mxu0 %v3962
    %4006 = vmatprep.subr.bf16.mxu0 %v3959
    %4007 = vmatpush1.bf16.msra.mxu0 %v3958
    %4008 = vmatprep.subr.bf16.mxu0 %v3955
    %4009 = vmatpush1.bf16.msra.mxu0 %v3954
    %4010 = vmatprep.subr.bf16.mxu0 %v3951
    %4011 = vmatpush1.bf16.msra.mxu0 %v3950
    %4012 = vmatprep.subr.bf16.mxu0 %v3947
    %4013 = vmatpush1.bf16.msra.mxu0 %v3946
    %4014 = vmatprep.subr.bf16.mxu0 %v3943
    %4015 = vmatpush1.bf16.msra.mxu0 %v3942
    %4016 = vmatprep.subr.bf16.mxu0 %v3939
    %4017 = vmatpush1.bf16.msra.mxu0 %v3938
    %4018 = vmatprep.subr.bf16.mxu0 0
    %4019 = vmatpush2.bf16.msra.mxu0 0
    %4020 = vmatprep.subr.bf16.mxu0 0
    %4021 = vmatpush2.bf16.msra.mxu0 0
    %4022 = vmatprep.subr.bf16.mxu0 0
    %4023 = vmatpush2.bf16.msra.mxu0 0
    %4024 = vmatprep.subr.bf16.mxu0 0
    %4025 = vmatpush2.bf16.msra.mxu0 0
    %4026 = vmatprep.subr.bf16.mxu0 0
    %4027 = vmatpush2.bf16.msra.mxu0 0
    %4028 = vmatprep.subr.bf16.mxu0 0
    %4029 = vmatpush2.bf16.msra.mxu0 0
    %4030 = vmatprep.subr.bf16.mxu0 0
    %4031 = vmatpush2.bf16.msra.mxu0 0
    %4032 = vmatprep.subr.bf16.mxu0 0
    %4033 = vmatpush2.bf16.msra.mxu0 0
    %4034 = vmatprep.mubr.bf16.mxu0 0
    %4035 = vmatmul.mubr.bf16.gmra.mxu0 %v3809
    %v4036 = vpop.f32.mrf.mxu0
    %v4037 = vadd.f32 0.0, %v4036
    %v4038 = vpop.f32.mrf.mxu0
    %v4039 = vadd.f32 0.0, %v4038
    %v4040 = vpop.f32.mrf.mxu0
    %v4041 = vpop.f32.mrf.mxu0
    %4042 = vdwg.mxu0
    %4043 = vmatprep.subr.bf16.mxu0 %v3969
    %4044 = vmatpush1.bf16.msra.mxu0 %v3968
    %4045 = vmatprep.subr.bf16.mxu0 %v3965
    %4046 = vmatpush1.bf16.msra.mxu0 %v3964
    %4047 = vmatprep.subr.bf16.mxu0 %v3961
    %4048 = vmatpush1.bf16.msra.mxu0 %v3960
    %4049 = vmatprep.subr.bf16.mxu0 %v3957
    %4050 = vmatpush1.bf16.msra.mxu0 %v3956
    %4051 = vmatprep.subr.bf16.mxu0 %v3953
    %4052 = vmatpush1.bf16.msra.mxu0 %v3952
    %4053 = vmatprep.subr.bf16.mxu0 %v3949
    %4054 = vmatpush1.bf16.msra.mxu0 %v3948
    %4055 = vmatprep.subr.bf16.mxu0 %v3945
    %4056 = vmatpush1.bf16.msra.mxu0 %v3944
    %4057 = vmatprep.subr.bf16.mxu0 %v3941
    %4058 = vmatpush1.bf16.msra.mxu0 %v3940
    %4059 = vmatprep.subr.bf16.mxu0 0
    %4060 = vmatpush2.bf16.msra.mxu0 0
    %4061 = vmatprep.subr.bf16.mxu0 0
    %4062 = vmatpush2.bf16.msra.mxu0 0
    %4063 = vmatprep.subr.bf16.mxu0 0
    %4064 = vmatpush2.bf16.msra.mxu0 0
    %4065 = vmatprep.subr.bf16.mxu0 0
    %4066 = vmatpush2.bf16.msra.mxu0 0
    %4067 = vmatprep.subr.bf16.mxu0 0
    %4068 = vmatpush2.bf16.msra.mxu0 0
    %4069 = vmatprep.subr.bf16.mxu0 0
    %4070 = vmatpush2.bf16.msra.mxu0 0
    %4071 = vmatprep.subr.bf16.mxu0 0
    %4072 = vmatpush2.bf16.msra.mxu0 0
    %4073 = vmatprep.subr.bf16.mxu0 0
    %4074 = vmatpush2.bf16.msra.mxu0 0
    %4075 = vmatprep.mubr.bf16.mxu0 0
    %4076 = vmatmul.mubr.bf16.gmra.mxu0 %v3809
    %v4077 = vpop.f32.mrf.mxu0
    %v4078 = vadd.f32 0.0, %v4077
    %v4079 = vpop.f32.mrf.mxu0
    %v4080 = vadd.f32 0.0, %v4079
    %v4081 = vpop.f32.mrf.mxu0
    %v4082 = vpop.f32.mrf.mxu0
    %4083 = vdwg.mxu0
    %v4084 = vadd.f32 %v3805, %v4037
    %v4085 = vadd.f32 %v3806, %v4039
    %v4086 = vadd.f32 %v3807, %v4078
    %v4087 = vadd.f32 %v3808, %v4080
    %v4088 = vxor.u32 %v4084, 2147483648
    %v4089 = vxor.u32 %v4085, 2147483648
    %v4090 = vxor.u32 %v4086, 2147483648
    %v4091 = vmul.f32 %v4088, 1.442695
    %v4092 = vpow.pop %v4091
    %v4093 = vmul.f32 %v4089, 1.442695
    %v4094 = vpow.pop %v4093
    %v4095 = vmul.f32 %v4090, 1.442695
    %v4096 = vpow.pop %v4095
    %v4097 = vadd.f32 %v4092, 1.0
    %v4098 = vadd.f32 %v4094, 1.0
    %v4099 = vadd.f32 %v4096, 1.0
    %v4100 = vrcp.pop %v4097
    %v4101 = vmul.f32 1.0, %v4100
    %v4102 = vrcp.pop %v4098
    %v4103 = vmul.f32 1.0, %v4102
    %v4104 = vrcp.pop %v4099
    %v4105 = vmul.f32 1.0, %v4104
    %v4106 = vtanh.pop %v4087
    %v4107 = vmul.f32 %v4103, %v3796
    %v4108 = vmul.f32 %v4101, %v4106
    %v4109 = vadd.f32 %v4107, %v4108
    %v4110 = vtanh.pop %v4109
    %v4111 = vmul.f32 %v4105, %v4110
    %s4112 = smul.addr %s993, 8
    %s4113 = scalar_lea.vmem [#allocation4], %s4112
    %4114 = vst [vmem:[%s4113] sm:$0xff] %v4111
    %s4115 = smul.addr %s997, 8
    %s4116 = scalar_lea.vmem [#allocation4], %s4115
    %4117 = vst [vmem:[%s4116 + $0x8] sm:$0xff] %v4111
    %v4118 = vld [vmem:[%s1003] sm:$0xff]
    %v4119 = vld [vmem:[%s1003 + $0x8] sm:$0xff]
    %v4120 = vld [vmem:[%s1003 + $0x10] sm:$0xff]
    %v4121 = vld [vmem:[%s1003 + $0x18] sm:$0xff]
    %v4122 = vpack.c.bf16 %v4111, %v4111
    %v4123 = vld [vmem:[#allocation9] sm:$0xff]
    %v4124 = vld [vmem:[#allocation9 + $0x8] sm:$0xff]
    %v4125 = vld [vmem:[#allocation9 + $0x10] sm:$0xff]
    %v4126 = vld [vmem:[#allocation9 + $0x18] sm:$0xff]
    %v4127 = vld [vmem:[#allocation9 + $0x20] sm:$0xff]
    %v4128 = vld [vmem:[#allocation9 + $0x28] sm:$0xff]
    %v4129 = vld [vmem:[#allocation9 + $0x30] sm:$0xff]
    %v4130 = vld [vmem:[#allocation9 + $0x38] sm:$0xff]
    %v4131 = vld [vmem:[#allocation9 + $0x40] sm:$0xff]
    %v4132 = vld [vmem:[#allocation9 + $0x48] sm:$0xff]
    %v4133 = vld [vmem:[#allocation9 + $0x50] sm:$0xff]
    %v4134 = vld [vmem:[#allocation9 + $0x58] sm:$0xff]
    %v4135 = vld [vmem:[#allocation9 + $0x60] sm:$0xff]
    %v4136 = vld [vmem:[#allocation9 + $0x68] sm:$0xff]
    %v4137 = vld [vmem:[#allocation9 + $0x70] sm:$0xff]
    %v4138 = vld [vmem:[#allocation9 + $0x78] sm:$0xff]
    %v4139 = vld [vmem:[#allocation9 + $0x80] sm:$0xff]
    %v4140 = vld [vmem:[#allocation9 + $0x88] sm:$0xff]
    %v4141 = vld [vmem:[#allocation9 + $0x90] sm:$0xff]
    %v4142 = vld [vmem:[#allocation9 + $0x98] sm:$0xff]
    %v4143 = vld [vmem:[#allocation9 + $0xa0] sm:$0xff]
    %v4144 = vld [vmem:[#allocation9 + $0xa8] sm:$0xff]
    %v4145 = vld [vmem:[#allocation9 + $0xb0] sm:$0xff]
    %v4146 = vld [vmem:[#allocation9 + $0xb8] sm:$0xff]
    %v4147 = vld [vmem:[#allocation9 + $0xc0] sm:$0xff]
    %v4148 = vld [vmem:[#allocation9 + $0xc8] sm:$0xff]
    %v4149 = vld [vmem:[#allocation9 + $0xd0] sm:$0xff]
    %v4150 = vld [vmem:[#allocation9 + $0xd8] sm:$0xff]
    %v4151 = vld [vmem:[#allocation9 + $0xe0] sm:$0xff]
    %v4152 = vld [vmem:[#allocation9 + $0xe8] sm:$0xff]
    %v4153 = vld [vmem:[#allocation9 + $0xf0] sm:$0xff]
    %v4154 = vld [vmem:[#allocation9 + $0xf8] sm:$0xff]
    %v4187 = vunpack.c.l.b16 %v4123
    %v4188 = vunpack.c.h.b16 %v4123
    %v4189 = vunpack.c.l.b16 %v4124
    %v4190 = vunpack.c.h.b16 %v4124
    %v4191 = vunpack.c.l.b16 %v4125
    %v4192 = vunpack.c.h.b16 %v4125
    %v4193 = vunpack.c.l.b16 %v4126
    %v4194 = vunpack.c.h.b16 %v4126
    %v4195 = vunpack.c.l.b16 %v4127
    %v4196 = vunpack.c.h.b16 %v4127
    %v4197 = vunpack.c.l.b16 %v4128
    %v4198 = vunpack.c.h.b16 %v4128
    %v4199 = vunpack.c.l.b16 %v4129
    %v4200 = vunpack.c.h.b16 %v4129
    %v4201 = vunpack.c.l.b16 %v4130
    %v4202 = vunpack.c.h.b16 %v4130
    %v4203 = vunpack.c.l.b16 %v4131
    %v4204 = vunpack.c.h.b16 %v4131
    %v4205 = vunpack.c.l.b16 %v4132
    %v4206 = vunpack.c.h.b16 %v4132
    %v4207 = vunpack.c.l.b16 %v4133
    %v4208 = vunpack.c.h.b16 %v4133
    %v4209 = vunpack.c.l.b16 %v4134
    %v4210 = vunpack.c.h.b16 %v4134
    %v4211 = vunpack.c.l.b16 %v4135
    %v4212 = vunpack.c.h.b16 %v4135
    %v4213 = vunpack.c.l.b16 %v4136
    %v4214 = vunpack.c.h.b16 %v4136
    %v4215 = vunpack.c.l.b16 %v4137
    %v4216 = vunpack.c.h.b16 %v4137
    %v4217 = vunpack.c.l.b16 %v4138
    %v4218 = vunpack.c.h.b16 %v4138
    %v4219 = vunpack.c.l.b16 %v4139
    %v4220 = vunpack.c.h.b16 %v4139
    %v4221 = vunpack.c.l.b16 %v4140
    %v4222 = vunpack.c.h.b16 %v4140
    %v4223 = vunpack.c.l.b16 %v4141
    %v4224 = vunpack.c.h.b16 %v4141
    %v4225 = vunpack.c.l.b16 %v4142
    %v4226 = vunpack.c.h.b16 %v4142
    %v4227 = vunpack.c.l.b16 %v4143
    %v4228 = vunpack.c.h.b16 %v4143
    %v4229 = vunpack.c.l.b16 %v4144
    %v4230 = vunpack.c.h.b16 %v4144
    %v4231 = vunpack.c.l.b16 %v4145
    %v4232 = vunpack.c.h.b16 %v4145
    %v4233 = vunpack.c.l.b16 %v4146
    %v4234 = vunpack.c.h.b16 %v4146
    %v4235 = vunpack.c.l.b16 %v4147
    %v4236 = vunpack.c.h.b16 %v4147
    %v4237 = vunpack.c.l.b16 %v4148
    %v4238 = vunpack.c.h.b16 %v4148
    %v4239 = vunpack.c.l.b16 %v4149
    %v4240 = vunpack.c.h.b16 %v4149
    %v4241 = vunpack.c.l.b16 %v4150
    %v4242 = vunpack.c.h.b16 %v4150
    %v4243 = vunpack.c.l.b16 %v4151
    %v4244 = vunpack.c.h.b16 %v4151
    %v4245 = vunpack.c.l.b16 %v4152
    %v4246 = vunpack.c.h.b16 %v4152
    %v4247 = vunpack.c.l.b16 %v4153
    %v4248 = vunpack.c.h.b16 %v4153
    %v4249 = vunpack.c.l.b16 %v4154
    %v4250 = vunpack.c.h.b16 %v4154
    %v4251 = vpack.c.b16 %v4191, %v4187
    %v4252 = vpack.c.b16 %v4192, %v4188
    %v4253 = vpack.c.b16 %v4193, %v4189
    %v4254 = vpack.c.b16 %v4194, %v4190
    %v4255 = vpack.c.b16 %v4199, %v4195
    %v4256 = vpack.c.b16 %v4200, %v4196
    %v4257 = vpack.c.b16 %v4201, %v4197
    %v4258 = vpack.c.b16 %v4202, %v4198
    %v4259 = vpack.c.b16 %v4207, %v4203
    %v4260 = vpack.c.b16 %v4208, %v4204
    %v4261 = vpack.c.b16 %v4209, %v4205
    %v4262 = vpack.c.b16 %v4210, %v4206
    %v4263 = vpack.c.b16 %v4215, %v4211
    %v4264 = vpack.c.b16 %v4216, %v4212
    %v4265 = vpack.c.b16 %v4217, %v4213
    %v4266 = vpack.c.b16 %v4218, %v4214
    %v4267 = vpack.c.b16 %v4223, %v4219
    %v4268 = vpack.c.b16 %v4224, %v4220
    %v4269 = vpack.c.b16 %v4225, %v4221
    %v4270 = vpack.c.b16 %v4226, %v4222
    %v4271 = vpack.c.b16 %v4231, %v4227
    %v4272 = vpack.c.b16 %v4232, %v4228
    %v4273 = vpack.c.b16 %v4233, %v4229
    %v4274 = vpack.c.b16 %v4234, %v4230
    %v4275 = vpack.c.b16 %v4239, %v4235
    %v4276 = vpack.c.b16 %v4240, %v4236
    %v4277 = vpack.c.b16 %v4241, %v4237
    %v4278 = vpack.c.b16 %v4242, %v4238
    %v4279 = vpack.c.b16 %v4247, %v4243
    %v4280 = vpack.c.b16 %v4248, %v4244
    %v4281 = vpack.c.b16 %v4249, %v4245
    %v4282 = vpack.c.b16 %v4250, %v4246
    %4315 = vmatprep.subr.bf16.mxu0 %v4280
    %4316 = vmatpush1.bf16.msra.mxu0 %v4279
    %4317 = vmatprep.subr.bf16.mxu0 %v4276
    %4318 = vmatpush1.bf16.msra.mxu0 %v4275
    %4319 = vmatprep.subr.bf16.mxu0 %v4272
    %4320 = vmatpush1.bf16.msra.mxu0 %v4271
    %4321 = vmatprep.subr.bf16.mxu0 %v4268
    %4322 = vmatpush1.bf16.msra.mxu0 %v4267
    %4323 = vmatprep.subr.bf16.mxu0 %v4264
    %4324 = vmatpush1.bf16.msra.mxu0 %v4263
    %4325 = vmatprep.subr.bf16.mxu0 %v4260
    %4326 = vmatpush1.bf16.msra.mxu0 %v4259
    %4327 = vmatprep.subr.bf16.mxu0 %v4256
    %4328 = vmatpush1.bf16.msra.mxu0 %v4255
    %4329 = vmatprep.subr.bf16.mxu0 %v4252
    %4330 = vmatpush1.bf16.msra.mxu0 %v4251
    %4331 = vmatprep.subr.bf16.mxu0 0
    %4332 = vmatpush2.bf16.msra.mxu0 0
    %4333 = vmatprep.subr.bf16.mxu0 0
    %4334 = vmatpush2.bf16.msra.mxu0 0
    %4335 = vmatprep.subr.bf16.mxu0 0
    %4336 = vmatpush2.bf16.msra.mxu0 0
    %4337 = vmatprep.subr.bf16.mxu0 0
    %4338 = vmatpush2.bf16.msra.mxu0 0
    %4339 = vmatprep.subr.bf16.mxu0 0
    %4340 = vmatpush2.bf16.msra.mxu0 0
    %4341 = vmatprep.subr.bf16.mxu0 0
    %4342 = vmatpush2.bf16.msra.mxu0 0
    %4343 = vmatprep.subr.bf16.mxu0 0
    %4344 = vmatpush2.bf16.msra.mxu0 0
    %4345 = vmatprep.subr.bf16.mxu0 0
    %4346 = vmatpush2.bf16.msra.mxu0 0
    %4347 = vmatprep.mubr.bf16.mxu0 0
    %4348 = vmatmul.mubr.bf16.gmra.mxu0 %v4122
    %v4349 = vpop.f32.mrf.mxu0
    %v4350 = vadd.f32 0.0, %v4349
    %v4351 = vpop.f32.mrf.mxu0
    %v4352 = vadd.f32 0.0, %v4351
    %v4353 = vpop.f32.mrf.mxu0
    %v4354 = vpop.f32.mrf.mxu0
    %4355 = vdwg.mxu0
    %4356 = vmatprep.subr.bf16.mxu0 %v4282
    %4357 = vmatpush1.bf16.msra.mxu0 %v4281
    %4358 = vmatprep.subr.bf16.mxu0 %v4278
    %4359 = vmatpush1.bf16.msra.mxu0 %v4277
    %4360 = vmatprep.subr.bf16.mxu0 %v4274
    %4361 = vmatpush1.bf16.msra.mxu0 %v4273
    %4362 = vmatprep.subr.bf16.mxu0 %v4270
    %4363 = vmatpush1.bf16.msra.mxu0 %v4269
    %4364 = vmatprep.subr.bf16.mxu0 %v4266
    %4365 = vmatpush1.bf16.msra.mxu0 %v4265
    %4366 = vmatprep.subr.bf16.mxu0 %v4262
    %4367 = vmatpush1.bf16.msra.mxu0 %v4261
    %4368 = vmatprep.subr.bf16.mxu0 %v4258
    %4369 = vmatpush1.bf16.msra.mxu0 %v4257
    %4370 = vmatprep.subr.bf16.mxu0 %v4254
    %4371 = vmatpush1.bf16.msra.mxu0 %v4253
    %4372 = vmatprep.subr.bf16.mxu0 0
    %4373 = vmatpush2.bf16.msra.mxu0 0
    %4374 = vmatprep.subr.bf16.mxu0 0
    %4375 = vmatpush2.bf16.msra.mxu0 0
    %4376 = vmatprep.subr.bf16.mxu0 0
    %4377 = vmatpush2.bf16.msra.mxu0 0
    %4378 = vmatprep.subr.bf16.mxu0 0
    %4379 = vmatpush2.bf16.msra.mxu0 0
    %4380 = vmatprep.subr.bf16.mxu0 0
    %4381 = vmatpush2.bf16.msra.mxu0 0
    %4382 = vmatprep.subr.bf16.mxu0 0
    %4383 = vmatpush2.bf16.msra.mxu0 0
    %4384 = vmatprep.subr.bf16.mxu0 0
    %4385 = vmatpush2.bf16.msra.mxu0 0
    %4386 = vmatprep.subr.bf16.mxu0 0
    %4387 = vmatpush2.bf16.msra.mxu0 0
    %4388 = vmatprep.mubr.bf16.mxu0 0
    %4389 = vmatmul.mubr.bf16.gmra.mxu0 %v4122
    %v4390 = vpop.f32.mrf.mxu0
    %v4391 = vadd.f32 0.0, %v4390
    %v4392 = vpop.f32.mrf.mxu0
    %v4393 = vadd.f32 0.0, %v4392
    %v4394 = vpop.f32.mrf.mxu0
    %v4395 = vpop.f32.mrf.mxu0
    %4396 = vdwg.mxu0
    %v4397 = vadd.f32 %v4118, %v4350
    %v4398 = vadd.f32 %v4119, %v4352
    %v4399 = vadd.f32 %v4120, %v4391
    %v4400 = vadd.f32 %v4121, %v4393
    %v4401 = vxor.u32 %v4397, 2147483648
    %v4402 = vxor.u32 %v4398, 2147483648
    %v4403 = vxor.u32 %v4399, 2147483648
    %v4404 = vmul.f32 %v4401, 1.442695
    %v4405 = vpow.pop %v4404
    %v4406 = vmul.f32 %v4402, 1.442695
    %v4407 = vpow.pop %v4406
    %v4408 = vmul.f32 %v4403, 1.442695
    %v4409 = vpow.pop %v4408
    %v4410 = vadd.f32 %v4405, 1.0
    %v4411 = vadd.f32 %v4407, 1.0
    %v4412 = vadd.f32 %v4409, 1.0
    %v4413 = vrcp.pop %v4410
    %v4414 = vmul.f32 1.0, %v4413
    %v4415 = vrcp.pop %v4411
    %v4416 = vmul.f32 1.0, %v4415
    %v4417 = vrcp.pop %v4412
    %v4418 = vmul.f32 1.0, %v4417
    %v4419 = vtanh.pop %v4400
    %v4420 = vmul.f32 %v4416, %v4109
    %v4421 = vmul.f32 %v4414, %v4419
    %v4422 = vadd.f32 %v4420, %v4421
    %v4423 = vtanh.pop %v4422
    %v4424 = vmul.f32 %v4418, %v4423
    %s4425 = smul.addr %s1311, 8
    %s4426 = scalar_lea.vmem [#allocation4], %s4425
    %4427 = vst [vmem:[%s4426] sm:$0xff] %v4424
    %s4428 = smul.addr %s1315, 8
    %s4429 = scalar_lea.vmem [#allocation4], %s4428
    %4430 = vst [vmem:[%s4429 + $0x8] sm:$0xff] %v4424
    %v4431 = vld [vmem:[%s1321] sm:$0xff]
    %v4432 = vld [vmem:[%s1321 + $0x8] sm:$0xff]
    %v4433 = vld [vmem:[%s1321 + $0x10] sm:$0xff]
    %v4434 = vld [vmem:[%s1321 + $0x18] sm:$0xff]
    %v4435 = vpack.c.bf16 %v4424, %v4424
    %v4436 = vld [vmem:[#allocation9] sm:$0xff]
    %v4437 = vld [vmem:[#allocation9 + $0x8] sm:$0xff]
    %v4438 = vld [vmem:[#allocation9 + $0x10] sm:$0xff]
    %v4439 = vld [vmem:[#allocation9 + $0x18] sm:$0xff]
    %v4440 = vld [vmem:[#allocation9 + $0x20] sm:$0xff]
    %v4441 = vld [vmem:[#allocation9 + $0x28] sm:$0xff]
    %v4442 = vld [vmem:[#allocation9 + $0x30] sm:$0xff]
    %v4443 = vld [vmem:[#allocation9 + $0x38] sm:$0xff]
    %v4444 = vld [vmem:[#allocation9 + $0x40] sm:$0xff]
    %v4445 = vld [vmem:[#allocation9 + $0x48] sm:$0xff]
    %v4446 = vld [vmem:[#allocation9 + $0x50] sm:$0xff]
    %v4447 = vld [vmem:[#allocation9 + $0x58] sm:$0xff]
    %v4448 = vld [vmem:[#allocation9 + $0x60] sm:$0xff]
    %v4449 = vld [vmem:[#allocation9 + $0x68] sm:$0xff]
    %v4450 = vld [vmem:[#allocation9 + $0x70] sm:$0xff]
    %v4451 = vld [vmem:[#allocation9 + $0x78] sm:$0xff]
    %v4452 = vld [vmem:[#allocation9 + $0x80] sm:$0xff]
    %v4453 = vld [vmem:[#allocation9 + $0x88] sm:$0xff]
    %v4454 = vld [vmem:[#allocation9 + $0x90] sm:$0xff]
    %v4455 = vld [vmem:[#allocation9 + $0x98] sm:$0xff]
    %v4456 = vld [vmem:[#allocation9 + $0xa0] sm:$0xff]
    %v4457 = vld [vmem:[#allocation9 + $0xa8] sm:$0xff]
    %v4458 = vld [vmem:[#allocation9 + $0xb0] sm:$0xff]
    %v4459 = vld [vmem:[#allocation9 + $0xb8] sm:$0xff]
    %v4460 = vld [vmem:[#allocation9 + $0xc0] sm:$0xff]
    %v4461 = vld [vmem:[#allocation9 + $0xc8] sm:$0xff]
    %v4462 = vld [vmem:[#allocation9 + $0xd0] sm:$0xff]
    %v4463 = vld [vmem:[#allocation9 + $0xd8] sm:$0xff]
    %v4464 = vld [vmem:[#allocation9 + $0xe0] sm:$0xff]
    %v4465 = vld [vmem:[#allocation9 + $0xe8] sm:$0xff]
    %v4466 = vld [vmem:[#allocation9 + $0xf0] sm:$0xff]
    %v4467 = vld [vmem:[#allocation9 + $0xf8] sm:$0xff]
    %v4500 = vunpack.c.l.b16 %v4436
    %v4501 = vunpack.c.h.b16 %v4436
    %v4502 = vunpack.c.l.b16 %v4437
    %v4503 = vunpack.c.h.b16 %v4437
    %v4504 = vunpack.c.l.b16 %v4438
    %v4505 = vunpack.c.h.b16 %v4438
    %v4506 = vunpack.c.l.b16 %v4439
    %v4507 = vunpack.c.h.b16 %v4439
    %v4508 = vunpack.c.l.b16 %v4440
    %v4509 = vunpack.c.h.b16 %v4440
    %v4510 = vunpack.c.l.b16 %v4441
    %v4511 = vunpack.c.h.b16 %v4441
    %v4512 = vunpack.c.l.b16 %v4442
    %v4513 = vunpack.c.h.b16 %v4442
    %v4514 = vunpack.c.l.b16 %v4443
    %v4515 = vunpack.c.h.b16 %v4443
    %v4516 = vunpack.c.l.b16 %v4444
    %v4517 = vunpack.c.h.b16 %v4444
    %v4518 = vunpack.c.l.b16 %v4445
    %v4519 = vunpack.c.h.b16 %v4445
    %v4520 = vunpack.c.l.b16 %v4446
    %v4521 = vunpack.c.h.b16 %v4446
    %v4522 = vunpack.c.l.b16 %v4447
    %v4523 = vunpack.c.h.b16 %v4447
    %v4524 = vunpack.c.l.b16 %v4448
    %v4525 = vunpack.c.h.b16 %v4448
    %v4526 = vunpack.c.l.b16 %v4449
    %v4527 = vunpack.c.h.b16 %v4449
    %v4528 = vunpack.c.l.b16 %v4450
    %v4529 = vunpack.c.h.b16 %v4450
    %v4530 = vunpack.c.l.b16 %v4451
    %v4531 = vunpack.c.h.b16 %v4451
    %v4532 = vunpack.c.l.b16 %v4452
    %v4533 = vunpack.c.h.b16 %v4452
    %v4534 = vunpack.c.l.b16 %v4453
    %v4535 = vunpack.c.h.b16 %v4453
    %v4536 = vunpack.c.l.b16 %v4454
    %v4537 = vunpack.c.h.b16 %v4454
    %v4538 = vunpack.c.l.b16 %v4455
    %v4539 = vunpack.c.h.b16 %v4455
    %v4540 = vunpack.c.l.b16 %v4456
    %v4541 = vunpack.c.h.b16 %v4456
    %v4542 = vunpack.c.l.b16 %v4457
    %v4543 = vunpack.c.h.b16 %v4457
    %v4544 = vunpack.c.l.b16 %v4458
    %v4545 = vunpack.c.h.b16 %v4458
    %v4546 = vunpack.c.l.b16 %v4459
    %v4547 = vunpack.c.h.b16 %v4459
    %v4548 = vunpack.c.l.b16 %v4460
    %v4549 = vunpack.c.h.b16 %v4460
    %v4550 = vunpack.c.l.b16 %v4461
    %v4551 = vunpack.c.h.b16 %v4461
    %v4552 = vunpack.c.l.b16 %v4462
    %v4553 = vunpack.c.h.b16 %v4462
    %v4554 = vunpack.c.l.b16 %v4463
    %v4555 = vunpack.c.h.b16 %v4463
    %v4556 = vunpack.c.l.b16 %v4464
    %v4557 = vunpack.c.h.b16 %v4464
    %v4558 = vunpack.c.l.b16 %v4465
    %v4559 = vunpack.c.h.b16 %v4465
    %v4560 = vunpack.c.l.b16 %v4466
    %v4561 = vunpack.c.h.b16 %v4466
    %v4562 = vunpack.c.l.b16 %v4467
    %v4563 = vunpack.c.h.b16 %v4467
    %v4564 = vpack.c.b16 %v4504, %v4500
    %v4565 = vpack.c.b16 %v4505, %v4501
    %v4566 = vpack.c.b16 %v4506, %v4502
    %v4567 = vpack.c.b16 %v4507, %v4503
    %v4568 = vpack.c.b16 %v4512, %v4508
    %v4569 = vpack.c.b16 %v4513, %v4509
    %v4570 = vpack.c.b16 %v4514, %v4510
    %v4571 = vpack.c.b16 %v4515, %v4511
    %v4572 = vpack.c.b16 %v4520, %v4516
    %v4573 = vpack.c.b16 %v4521, %v4517
    %v4574 = vpack.c.b16 %v4522, %v4518
    %v4575 = vpack.c.b16 %v4523, %v4519
    %v4576 = vpack.c.b16 %v4528, %v4524
    %v4577 = vpack.c.b16 %v4529, %v4525
    %v4578 = vpack.c.b16 %v4530, %v4526
    %v4579 = vpack.c.b16 %v4531, %v4527
    %v4580 = vpack.c.b16 %v4536, %v4532
    %v4581 = vpack.c.b16 %v4537, %v4533
    %v4582 = vpack.c.b16 %v4538, %v4534
    %v4583 = vpack.c.b16 %v4539, %v4535
    %v4584 = vpack.c.b16 %v4544, %v4540
    %v4585 = vpack.c.b16 %v4545, %v4541
    %v4586 = vpack.c.b16 %v4546, %v4542
    %v4587 = vpack.c.b16 %v4547, %v4543
    %v4588 = vpack.c.b16 %v4552, %v4548
    %v4589 = vpack.c.b16 %v4553, %v4549
    %v4590 = vpack.c.b16 %v4554, %v4550
    %v4591 = vpack.c.b16 %v4555, %v4551
    %v4592 = vpack.c.b16 %v4560, %v4556
    %v4593 = vpack.c.b16 %v4561, %v4557
    %v4594 = vpack.c.b16 %v4562, %v4558
    %v4595 = vpack.c.b16 %v4563, %v4559
    %4628 = vmatprep.subr.bf16.mxu0 %v4593
    %4629 = vmatpush1.bf16.msra.mxu0 %v4592
    %4630 = vmatprep.subr.bf16.mxu0 %v4589
    %4631 = vmatpush1.bf16.msra.mxu0 %v4588
    %4632 = vmatprep.subr.bf16.mxu0 %v4585
    %4633 = vmatpush1.bf16.msra.mxu0 %v4584
    %4634 = vmatprep.subr.bf16.mxu0 %v4581
    %4635 = vmatpush1.bf16.msra.mxu0 %v4580
    %4636 = vmatprep.subr.bf16.mxu0 %v4577
    %4637 = vmatpush1.bf16.msra.mxu0 %v4576
    %4638 = vmatprep.subr.bf16.mxu0 %v4573
    %4639 = vmatpush1.bf16.msra.mxu0 %v4572
    %4640 = vmatprep.subr.bf16.mxu0 %v4569
    %4641 = vmatpush1.bf16.msra.mxu0 %v4568
    %4642 = vmatprep.subr.bf16.mxu0 %v4565
    %4643 = vmatpush1.bf16.msra.mxu0 %v4564
    %4644 = vmatprep.subr.bf16.mxu0 0
    %4645 = vmatpush2.bf16.msra.mxu0 0
    %4646 = vmatprep.subr.bf16.mxu0 0
    %4647 = vmatpush2.bf16.msra.mxu0 0
    %4648 = vmatprep.subr.bf16.mxu0 0
    %4649 = vmatpush2.bf16.msra.mxu0 0
    %4650 = vmatprep.subr.bf16.mxu0 0
    %4651 = vmatpush2.bf16.msra.mxu0 0
    %4652 = vmatprep.subr.bf16.mxu0 0
    %4653 = vmatpush2.bf16.msra.mxu0 0
    %4654 = vmatprep.subr.bf16.mxu0 0
    %4655 = vmatpush2.bf16.msra.mxu0 0
    %4656 = vmatprep.subr.bf16.mxu0 0
    %4657 = vmatpush2.bf16.msra.mxu0 0
    %4658 = vmatprep.subr.bf16.mxu0 0
    %4659 = vmatpush2.bf16.msra.mxu0 0
    %4660 = vmatprep.mubr.bf16.mxu0 0
    %4661 = vmatmul.mubr.bf16.gmra.mxu0 %v4435
    %v4662 = vpop.f32.mrf.mxu0
    %v4663 = vadd.f32 0.0, %v4662
    %v4664 = vpop.f32.mrf.mxu0
    %v4665 = vadd.f32 0.0, %v4664
    %v4666 = vpop.f32.mrf.mxu0
    %v4667 = vpop.f32.mrf.mxu0
    %4668 = vdwg.mxu0
    %4669 = vmatprep.subr.bf16.mxu0 %v4595
    %4670 = vmatpush1.bf16.msra.mxu0 %v4594
    %4671 = vmatprep.subr.bf16.mxu0 %v4591
    %4672 = vmatpush1.bf16.msra.mxu0 %v4590
    %4673 = vmatprep.subr.bf16.mxu0 %v4587
    %4674 = vmatpush1.bf16.msra.mxu0 %v4586
    %4675 = vmatprep.subr.bf16.mxu0 %v4583
    %4676 = vmatpush1.bf16.msra.mxu0 %v4582
    %4677 = vmatprep.subr.bf16.mxu0 %v4579
    %4678 = vmatpush1.bf16.msra.mxu0 %v4578
    %4679 = vmatprep.subr.bf16.mxu0 %v4575
    %4680 = vmatpush1.bf16.msra.mxu0 %v4574
    %4681 = vmatprep.subr.bf16.mxu0 %v4571
    %4682 = vmatpush1.bf16.msra.mxu0 %v4570
    %4683 = vmatprep.subr.bf16.mxu0 %v4567
    %4684 = vmatpush1.bf16.msra.mxu0 %v4566
    %4685 = vmatprep.subr.bf16.mxu0 0
    %4686 = vmatpush2.bf16.msra.mxu0 0
    %4687 = vmatprep.subr.bf16.mxu0 0
    %4688 = vmatpush2.bf16.msra.mxu0 0
    %4689 = vmatprep.subr.bf16.mxu0 0
    %4690 = vmatpush2.bf16.msra.mxu0 0
    %4691 = vmatprep.subr.bf16.mxu0 0
    %4692 = vmatpush2.bf16.msra.mxu0 0
    %4693 = vmatprep.subr.bf16.mxu0 0
    %4694 = vmatpush2.bf16.msra.mxu0 0
    %4695 = vmatprep.subr.bf16.mxu0 0
    %4696 = vmatpush2.bf16.msra.mxu0 0
    %4697 = vmatprep.subr.bf16.mxu0 0
    %4698 = vmatpush2.bf16.msra.mxu0 0
    %4699 = vmatprep.subr.bf16.mxu0 0
    %4700 = vmatpush2.bf16.msra.mxu0 0
    %4701 = vmatprep.mubr.bf16.mxu0 0
    %4702 = vmatmul.mubr.bf16.gmra.mxu0 %v4435
    %v4703 = vpop.f32.mrf.mxu0
    %v4704 = vadd.f32 0.0, %v4703
    %v4705 = vpop.f32.mrf.mxu0
    %v4706 = vadd.f32 0.0, %v4705
    %v4707 = vpop.f32.mrf.mxu0
    %v4708 = vpop.f32.mrf.mxu0
    %4709 = vdwg.mxu0
    %v4710 = vadd.f32 %v4431, %v4663
    %v4711 = vadd.f32 %v4432, %v4665
    %v4712 = vadd.f32 %v4433, %v4704
    %v4713 = vadd.f32 %v4434, %v4706
    %v4714 = vxor.u32 %v4710, 2147483648
    %v4715 = vxor.u32 %v4711, 2147483648
    %v4716 = vxor.u32 %v4712, 2147483648
    %v4717 = vmul.f32 %v4714, 1.442695
    %v4718 = vpow.pop %v4717
    %v4719 = vmul.f32 %v4715, 1.442695
    %v4720 = vpow.pop %v4719
    %v4721 = vmul.f32 %v4716, 1.442695
    %v4722 = vpow.pop %v4721
    %v4723 = vadd.f32 %v4718, 1.0
    %v4724 = vadd.f32 %v4720, 1.0
    %v4725 = vadd.f32 %v4722, 1.0
    %v4726 = vrcp.pop %v4723
    %v4727 = vmul.f32 1.0, %v4726
    %v4728 = vrcp.pop %v4724
    %v4729 = vmul.f32 1.0, %v4728
    %v4730 = vrcp.pop %v4725
    %v4731 = vmul.f32 1.0, %v4730
    %v4732 = vtanh.pop %v4713
    %v4733 = vmul.f32 %v4729, %v4422
    %v4734 = vmul.f32 %v4727, %v4732
    %v4735 = vadd.f32 %v4733, %v4734
    %v4736 = vtanh.pop %v4735
    %v4737 = vmul.f32 %v4731, %v4736
    %s4738 = smul.addr %s1629, 8
    %s4739 = scalar_lea.vmem [#allocation4], %s4738
    %4740 = vst [vmem:[%s4739] sm:$0xff] %v4737
    %s4741 = smul.addr %s1633, 8
    %s4742 = scalar_lea.vmem [#allocation4], %s4741
    %4743 = vst [vmem:[%s4742 + $0x8] sm:$0xff] %v4737
    %v4744 = vld [vmem:[%s1639] sm:$0xff]
    %v4745 = vld [vmem:[%s1639 + $0x8] sm:$0xff]
    %v4746 = vld [vmem:[%s1639 + $0x10] sm:$0xff]
    %v4747 = vld [vmem:[%s1639 + $0x18] sm:$0xff]
    %v4748 = vpack.c.bf16 %v4737, %v4737
    %v4749 = vld [vmem:[#allocation9] sm:$0xff]
    %v4750 = vld [vmem:[#allocation9 + $0x8] sm:$0xff]
    %v4751 = vld [vmem:[#allocation9 + $0x10] sm:$0xff]
    %v4752 = vld [vmem:[#allocation9 + $0x18] sm:$0xff]
    %v4753 = vld [vmem:[#allocation9 + $0x20] sm:$0xff]
    %v4754 = vld [vmem:[#allocation9 + $0x28] sm:$0xff]
    %v4755 = vld [vmem:[#allocation9 + $0x30] sm:$0xff]
    %v4756 = vld [vmem:[#allocation9 + $0x38] sm:$0xff]
    %v4757 = vld [vmem:[#allocation9 + $0x40] sm:$0xff]
    %v4758 = vld [vmem:[#allocation9 + $0x48] sm:$0xff]
    %v4759 = vld [vmem:[#allocation9 + $0x50] sm:$0xff]
    %v4760 = vld [vmem:[#allocation9 + $0x58] sm:$0xff]
    %v4761 = vld [vmem:[#allocation9 + $0x60] sm:$0xff]
    %v4762 = vld [vmem:[#allocation9 + $0x68] sm:$0xff]
    %v4763 = vld [vmem:[#allocation9 + $0x70] sm:$0xff]
    %v4764 = vld [vmem:[#allocation9 + $0x78] sm:$0xff]
    %v4765 = vld [vmem:[#allocation9 + $0x80] sm:$0xff]
    %v4766 = vld [vmem:[#allocation9 + $0x88] sm:$0xff]
    %v4767 = vld [vmem:[#allocation9 + $0x90] sm:$0xff]
    %v4768 = vld [vmem:[#allocation9 + $0x98] sm:$0xff]
    %v4769 = vld [vmem:[#allocation9 + $0xa0] sm:$0xff]
    %v4770 = vld [vmem:[#allocation9 + $0xa8] sm:$0xff]
    %v4771 = vld [vmem:[#allocation9 + $0xb0] sm:$0xff]
    %v4772 = vld [vmem:[#allocation9 + $0xb8] sm:$0xff]
    %v4773 = vld [vmem:[#allocation9 + $0xc0] sm:$0xff]
    %v4774 = vld [vmem:[#allocation9 + $0xc8] sm:$0xff]
    %v4775 = vld [vmem:[#allocation9 + $0xd0] sm:$0xff]
    %v4776 = vld [vmem:[#allocation9 + $0xd8] sm:$0xff]
    %v4777 = vld [vmem:[#allocation9 + $0xe0] sm:$0xff]
    %v4778 = vld [vmem:[#allocation9 + $0xe8] sm:$0xff]
    %v4779 = vld [vmem:[#allocation9 + $0xf0] sm:$0xff]
    %v4780 = vld [vmem:[#allocation9 + $0xf8] sm:$0xff]
    %v4813 = vunpack.c.l.b16 %v4749
    %v4814 = vunpack.c.h.b16 %v4749
    %v4815 = vunpack.c.l.b16 %v4750
    %v4816 = vunpack.c.h.b16 %v4750
    %v4817 = vunpack.c.l.b16 %v4751
    %v4818 = vunpack.c.h.b16 %v4751
    %v4819 = vunpack.c.l.b16 %v4752
    %v4820 = vunpack.c.h.b16 %v4752
    %v4821 = vunpack.c.l.b16 %v4753
    %v4822 = vunpack.c.h.b16 %v4753
    %v4823 = vunpack.c.l.b16 %v4754
    %v4824 = vunpack.c.h.b16 %v4754
    %v4825 = vunpack.c.l.b16 %v4755
    %v4826 = vunpack.c.h.b16 %v4755
    %v4827 = vunpack.c.l.b16 %v4756
    %v4828 = vunpack.c.h.b16 %v4756
    %v4829 = vunpack.c.l.b16 %v4757
    %v4830 = vunpack.c.h.b16 %v4757
    %v4831 = vunpack.c.l.b16 %v4758
    %v4832 = vunpack.c.h.b16 %v4758
    %v4833 = vunpack.c.l.b16 %v4759
    %v4834 = vunpack.c.h.b16 %v4759
    %v4835 = vunpack.c.l.b16 %v4760
    %v4836 = vunpack.c.h.b16 %v4760
    %v4837 = vunpack.c.l.b16 %v4761
    %v4838 = vunpack.c.h.b16 %v4761
    %v4839 = vunpack.c.l.b16 %v4762
    %v4840 = vunpack.c.h.b16 %v4762
    %v4841 = vunpack.c.l.b16 %v4763
    %v4842 = vunpack.c.h.b16 %v4763
    %v4843 = vunpack.c.l.b16 %v4764
    %v4844 = vunpack.c.h.b16 %v4764
    %v4845 = vunpack.c.l.b16 %v4765
    %v4846 = vunpack.c.h.b16 %v4765
    %v4847 = vunpack.c.l.b16 %v4766
    %v4848 = vunpack.c.h.b16 %v4766
    %v4849 = vunpack.c.l.b16 %v4767
    %v4850 = vunpack.c.h.b16 %v4767
    %v4851 = vunpack.c.l.b16 %v4768
    %v4852 = vunpack.c.h.b16 %v4768
    %v4853 = vunpack.c.l.b16 %v4769
    %v4854 = vunpack.c.h.b16 %v4769
    %v4855 = vunpack.c.l.b16 %v4770
    %v4856 = vunpack.c.h.b16 %v4770
    %v4857 = vunpack.c.l.b16 %v4771
    %v4858 = vunpack.c.h.b16 %v4771
    %v4859 = vunpack.c.l.b16 %v4772
    %v4860 = vunpack.c.h.b16 %v4772
    %v4861 = vunpack.c.l.b16 %v4773
    %v4862 = vunpack.c.h.b16 %v4773
    %v4863 = vunpack.c.l.b16 %v4774
    %v4864 = vunpack.c.h.b16 %v4774
    %v4865 = vunpack.c.l.b16 %v4775
    %v4866 = vunpack.c.h.b16 %v4775
    %v4867 = vunpack.c.l.b16 %v4776
    %v4868 = vunpack.c.h.b16 %v4776
    %v4869 = vunpack.c.l.b16 %v4777
    %v4870 = vunpack.c.h.b16 %v4777
    %v4871 = vunpack.c.l.b16 %v4778
    %v4872 = vunpack.c.h.b16 %v4778
    %v4873 = vunpack.c.l.b16 %v4779
    %v4874 = vunpack.c.h.b16 %v4779
    %v4875 = vunpack.c.l.b16 %v4780
    %v4876 = vunpack.c.h.b16 %v4780
    %v4877 = vpack.c.b16 %v4817, %v4813
    %v4878 = vpack.c.b16 %v4818, %v4814
    %v4879 = vpack.c.b16 %v4819, %v4815
    %v4880 = vpack.c.b16 %v4820, %v4816
    %v4881 = vpack.c.b16 %v4825, %v4821
    %v4882 = vpack.c.b16 %v4826, %v4822
    %v4883 = vpack.c.b16 %v4827, %v4823
    %v4884 = vpack.c.b16 %v4828, %v4824
    %v4885 = vpack.c.b16 %v4833, %v4829
    %v4886 = vpack.c.b16 %v4834, %v4830
    %v4887 = vpack.c.b16 %v4835, %v4831
    %v4888 = vpack.c.b16 %v4836, %v4832
    %v4889 = vpack.c.b16 %v4841, %v4837
    %v4890 = vpack.c.b16 %v4842, %v4838
    %v4891 = vpack.c.b16 %v4843, %v4839
    %v4892 = vpack.c.b16 %v4844, %v4840
    %v4893 = vpack.c.b16 %v4849, %v4845
    %v4894 = vpack.c.b16 %v4850, %v4846
    %v4895 = vpack.c.b16 %v4851, %v4847
    %v4896 = vpack.c.b16 %v4852, %v4848
    %v4897 = vpack.c.b16 %v4857, %v4853
    %v4898 = vpack.c.b16 %v4858, %v4854
    %v4899 = vpack.c.b16 %v4859, %v4855
    %v4900 = vpack.c.b16 %v4860, %v4856
    %v4901 = vpack.c.b16 %v4865, %v4861
    %v4902 = vpack.c.b16 %v4866, %v4862
    %v4903 = vpack.c.b16 %v4867, %v4863
    %v4904 = vpack.c.b16 %v4868, %v4864
    %v4905 = vpack.c.b16 %v4873, %v4869
    %v4906 = vpack.c.b16 %v4874, %v4870
    %v4907 = vpack.c.b16 %v4875, %v4871
    %v4908 = vpack.c.b16 %v4876, %v4872
    %4941 = vmatprep.subr.bf16.mxu0 %v4906
    %4942 = vmatpush1.bf16.msra.mxu0 %v4905
    %4943 = vmatprep.subr.bf16.mxu0 %v4902
    %4944 = vmatpush1.bf16.msra.mxu0 %v4901
    %4945 = vmatprep.subr.bf16.mxu0 %v4898
    %4946 = vmatpush1.bf16.msra.mxu0 %v4897
    %4947 = vmatprep.subr.bf16.mxu0 %v4894
    %4948 = vmatpush1.bf16.msra.mxu0 %v4893
    %4949 = vmatprep.subr.bf16.mxu0 %v4890
    %4950 = vmatpush1.bf16.msra.mxu0 %v4889
    %4951 = vmatprep.subr.bf16.mxu0 %v4886
    %4952 = vmatpush1.bf16.msra.mxu0 %v4885
    %4953 = vmatprep.subr.bf16.mxu0 %v4882
    %4954 = vmatpush1.bf16.msra.mxu0 %v4881
    %4955 = vmatprep.subr.bf16.mxu0 %v4878
    %4956 = vmatpush1.bf16.msra.mxu0 %v4877
    %4957 = vmatprep.subr.bf16.mxu0 0
    %4958 = vmatpush2.bf16.msra.mxu0 0
    %4959 = vmatprep.subr.bf16.mxu0 0
    %4960 = vmatpush2.bf16.msra.mxu0 0
    %4961 = vmatprep.subr.bf16.mxu0 0
    %4962 = vmatpush2.bf16.msra.mxu0 0
    %4963 = vmatprep.subr.bf16.mxu0 0
    %4964 = vmatpush2.bf16.msra.mxu0 0
    %4965 = vmatprep.subr.bf16.mxu0 0
    %4966 = vmatpush2.bf16.msra.mxu0 0
    %4967 = vmatprep.subr.bf16.mxu0 0
    %4968 = vmatpush2.bf16.msra.mxu0 0
    %4969 = vmatprep.subr.bf16.mxu0 0
    %4970 = vmatpush2.bf16.msra.mxu0 0
    %4971 = vmatprep.subr.bf16.mxu0 0
    %4972 = vmatpush2.bf16.msra.mxu0 0
    %4973 = vmatprep.mubr.bf16.mxu0 0
    %4974 = vmatmul.mubr.bf16.gmra.mxu0 %v4748
    %v4975 = vpop.f32.mrf.mxu0
    %v4976 = vadd.f32 0.0, %v4975
    %v4977 = vpop.f32.mrf.mxu0
    %v4978 = vadd.f32 0.0, %v4977
    %v4979 = vpop.f32.mrf.mxu0
    %v4980 = vpop.f32.mrf.mxu0
    %4981 = vdwg.mxu0
    %4982 = vmatprep.subr.bf16.mxu0 %v4908
    %4983 = vmatpush1.bf16.msra.mxu0 %v4907
    %4984 = vmatprep.subr.bf16.mxu0 %v4904
    %4985 = vmatpush1.bf16.msra.mxu0 %v4903
    %4986 = vmatprep.subr.bf16.mxu0 %v4900
    %4987 = vmatpush1.bf16.msra.mxu0 %v4899
    %4988 = vmatprep.subr.bf16.mxu0 %v4896
    %4989 = vmatpush1.bf16.msra.mxu0 %v4895
    %4990 = vmatprep.subr.bf16.mxu0 %v4892
    %4991 = vmatpush1.bf16.msra.mxu0 %v4891
    %4992 = vmatprep.subr.bf16.mxu0 %v4888
    %4993 = vmatpush1.bf16.msra.mxu0 %v4887
    %4994 = vmatprep.subr.bf16.mxu0 %v4884
    %4995 = vmatpush1.bf16.msra.mxu0 %v4883
    %4996 = vmatprep.subr.bf16.mxu0 %v4880
    %4997 = vmatpush1.bf16.msra.mxu0 %v4879
    %4998 = vmatprep.subr.bf16.mxu0 0
    %4999 = vmatpush2.bf16.msra.mxu0 0
    %5000 = vmatprep.subr.bf16.mxu0 0
    %5001 = vmatpush2.bf16.msra.mxu0 0
    %5002 = vmatprep.subr.bf16.mxu0 0
    %5003 = vmatpush2.bf16.msra.mxu0 0
    %5004 = vmatprep.subr.bf16.mxu0 0
    %5005 = vmatpush2.bf16.msra.mxu0 0
    %5006 = vmatprep.subr.bf16.mxu0 0
    %5007 = vmatpush2.bf16.msra.mxu0 0
    %5008 = vmatprep.subr.bf16.mxu0 0
    %5009 = vmatpush2.bf16.msra.mxu0 0
    %5010 = vmatprep.subr.bf16.mxu0 0
    %5011 = vmatpush2.bf16.msra.mxu0 0
    %5012 = vmatprep.subr.bf16.mxu0 0
    %5013 = vmatpush2.bf16.msra.mxu0 0
    %5014 = vmatprep.mubr.bf16.mxu0 0
    %5015 = vmatmul.mubr.bf16.gmra.mxu0 %v4748
    %v5016 = vpop.f32.mrf.mxu0
    %v5017 = vadd.f32 0.0, %v5016
    %v5018 = vpop.f32.mrf.mxu0
    %v5019 = vadd.f32 0.0, %v5018
    %v5020 = vpop.f32.mrf.mxu0
    %v5021 = vpop.f32.mrf.mxu0
    %5022 = vdwg.mxu0
    %v5023 = vadd.f32 %v4744, %v4976
    %v5024 = vadd.f32 %v4745, %v4978
    %v5025 = vadd.f32 %v4746, %v5017
    %v5026 = vadd.f32 %v4747, %v5019
    %v5027 = vxor.u32 %v5023, 2147483648
    %v5028 = vxor.u32 %v5024, 2147483648
    %v5029 = vxor.u32 %v5025, 2147483648
    %v5030 = vmul.f32 %v5027, 1.442695
    %v5031 = vpow.pop %v5030
    %v5032 = vmul.f32 %v5028, 1.442695
    %v5033 = vpow.pop %v5032
    %v5034 = vmul.f32 %v5029, 1.442695
    %v5035 = vpow.pop %v5034
    %v5036 = vadd.f32 %v5031, 1.0
    %v5037 = vadd.f32 %v5033, 1.0
    %v5038 = vadd.f32 %v5035, 1.0
    %v5039 = vrcp.pop %v5036
    %v5040 = vmul.f32 1.0, %v5039
    %v5041 = vrcp.pop %v5037
    %v5042 = vmul.f32 1.0, %v5041
    %v5043 = vrcp.pop %v5038
    %v5044 = vmul.f32 1.0, %v5043
    %v5045 = vtanh.pop %v5026
    %v5046 = vmul.f32 %v5042, %v4735
    %v5047 = vmul.f32 %v5040, %v5045
    %v5048 = vadd.f32 %v5046, %v5047
    %v5049 = vtanh.pop %v5048
    %v5050 = vmul.f32 %v5044, %v5049
    %5051 = vst [vmem:[%s4742] sm:$0xff] %v5050
    %5052 = vst [vmem:[%s4739 + $0x8] sm:$0xff] %v5050
    %v5053 = vld [vmem:[%s1951] sm:$0xff]
    %v5054 = vld [vmem:[%s1951 + $0x8] sm:$0xff]
    %v5055 = vld [vmem:[%s1951 + $0x10] sm:$0xff]
    %v5056 = vld [vmem:[%s1951 + $0x18] sm:$0xff]
    %v5057 = vpack.c.bf16 %v5050, %v5050
    %v5058 = vld [vmem:[#allocation9] sm:$0xff]
    %v5059 = vld [vmem:[#allocation9 + $0x8] sm:$0xff]
    %v5060 = vld [vmem:[#allocation9 + $0x10] sm:$0xff]
    %v5061 = vld [vmem:[#allocation9 + $0x18] sm:$0xff]
    %v5062 = vld [vmem:[#allocation9 + $0x20] sm:$0xff]
    %v5063 = vld [vmem:[#allocation9 + $0x28] sm:$0xff]
    %v5064 = vld [vmem:[#allocation9 + $0x30] sm:$0xff]
    %v5065 = vld [vmem:[#allocation9 + $0x38] sm:$0xff]
    %v5066 = vld [vmem:[#allocation9 + $0x40] sm:$0xff]
    %v5067 = vld [vmem:[#allocation9 + $0x48] sm:$0xff]
    %v5068 = vld [vmem:[#allocation9 + $0x50] sm:$0xff]
    %v5069 = vld [vmem:[#allocation9 + $0x58] sm:$0xff]
    %v5070 = vld [vmem:[#allocation9 + $0x60] sm:$0xff]
    %v5071 = vld [vmem:[#allocation9 + $0x68] sm:$0xff]
    %v5072 = vld [vmem:[#allocation9 + $0x70] sm:$0xff]
    %v5073 = vld [vmem:[#allocation9 + $0x78] sm:$0xff]
    %v5074 = vld [vmem:[#allocation9 + $0x80] sm:$0xff]
    %v5075 = vld [vmem:[#allocation9 + $0x88] sm:$0xff]
    %v5076 = vld [vmem:[#allocation9 + $0x90] sm:$0xff]
    %v5077 = vld [vmem:[#allocation9 + $0x98] sm:$0xff]
    %v5078 = vld [vmem:[#allocation9 + $0xa0] sm:$0xff]
    %v5079 = vld [vmem:[#allocation9 + $0xa8] sm:$0xff]
    %v5080 = vld [vmem:[#allocation9 + $0xb0] sm:$0xff]
    %v5081 = vld [vmem:[#allocation9 + $0xb8] sm:$0xff]
    %v5082 = vld [vmem:[#allocation9 + $0xc0] sm:$0xff]
    %v5083 = vld [vmem:[#allocation9 + $0xc8] sm:$0xff]
    %v5084 = vld [vmem:[#allocation9 + $0xd0] sm:$0xff]
    %v5085 = vld [vmem:[#allocation9 + $0xd8] sm:$0xff]
    %v5086 = vld [vmem:[#allocation9 + $0xe0] sm:$0xff]
    %v5087 = vld [vmem:[#allocation9 + $0xe8] sm:$0xff]
    %v5088 = vld [vmem:[#allocation9 + $0xf0] sm:$0xff]
    %v5089 = vld [vmem:[#allocation9 + $0xf8] sm:$0xff]
    %v5122 = vunpack.c.l.b16 %v5058
    %v5123 = vunpack.c.h.b16 %v5058
    %v5124 = vunpack.c.l.b16 %v5059
    %v5125 = vunpack.c.h.b16 %v5059
    %v5126 = vunpack.c.l.b16 %v5060
    %v5127 = vunpack.c.h.b16 %v5060
    %v5128 = vunpack.c.l.b16 %v5061
    %v5129 = vunpack.c.h.b16 %v5061
    %v5130 = vunpack.c.l.b16 %v5062
    %v5131 = vunpack.c.h.b16 %v5062
    %v5132 = vunpack.c.l.b16 %v5063
    %v5133 = vunpack.c.h.b16 %v5063
    %v5134 = vunpack.c.l.b16 %v5064
    %v5135 = vunpack.c.h.b16 %v5064
    %v5136 = vunpack.c.l.b16 %v5065
    %v5137 = vunpack.c.h.b16 %v5065
    %v5138 = vunpack.c.l.b16 %v5066
    %v5139 = vunpack.c.h.b16 %v5066
    %v5140 = vunpack.c.l.b16 %v5067
    %v5141 = vunpack.c.h.b16 %v5067
    %v5142 = vunpack.c.l.b16 %v5068
    %v5143 = vunpack.c.h.b16 %v5068
    %v5144 = vunpack.c.l.b16 %v5069
    %v5145 = vunpack.c.h.b16 %v5069
    %v5146 = vunpack.c.l.b16 %v5070
    %v5147 = vunpack.c.h.b16 %v5070
    %v5148 = vunpack.c.l.b16 %v5071
    %v5149 = vunpack.c.h.b16 %v5071
    %v5150 = vunpack.c.l.b16 %v5072
    %v5151 = vunpack.c.h.b16 %v5072
    %v5152 = vunpack.c.l.b16 %v5073
    %v5153 = vunpack.c.h.b16 %v5073
    %v5154 = vunpack.c.l.b16 %v5074
    %v5155 = vunpack.c.h.b16 %v5074
    %v5156 = vunpack.c.l.b16 %v5075
    %v5157 = vunpack.c.h.b16 %v5075
    %v5158 = vunpack.c.l.b16 %v5076
    %v5159 = vunpack.c.h.b16 %v5076
    %v5160 = vunpack.c.l.b16 %v5077
    %v5161 = vunpack.c.h.b16 %v5077
    %v5162 = vunpack.c.l.b16 %v5078
    %v5163 = vunpack.c.h.b16 %v5078
    %v5164 = vunpack.c.l.b16 %v5079
    %v5165 = vunpack.c.h.b16 %v5079
    %v5166 = vunpack.c.l.b16 %v5080
    %v5167 = vunpack.c.h.b16 %v5080
    %v5168 = vunpack.c.l.b16 %v5081
    %v5169 = vunpack.c.h.b16 %v5081
    %v5170 = vunpack.c.l.b16 %v5082
    %v5171 = vunpack.c.h.b16 %v5082
    %v5172 = vunpack.c.l.b16 %v5083
    %v5173 = vunpack.c.h.b16 %v5083
    %v5174 = vunpack.c.l.b16 %v5084
    %v5175 = vunpack.c.h.b16 %v5084
    %v5176 = vunpack.c.l.b16 %v5085
    %v5177 = vunpack.c.h.b16 %v5085
    %v5178 = vunpack.c.l.b16 %v5086
    %v5179 = vunpack.c.h.b16 %v5086
    %v5180 = vunpack.c.l.b16 %v5087
    %v5181 = vunpack.c.h.b16 %v5087
    %v5182 = vunpack.c.l.b16 %v5088
    %v5183 = vunpack.c.h.b16 %v5088
    %v5184 = vunpack.c.l.b16 %v5089
    %v5185 = vunpack.c.h.b16 %v5089
    %v5186 = vpack.c.b16 %v5126, %v5122
    %v5187 = vpack.c.b16 %v5127, %v5123
    %v5188 = vpack.c.b16 %v5128, %v5124
    %v5189 = vpack.c.b16 %v5129, %v5125
    %v5190 = vpack.c.b16 %v5134, %v5130
    %v5191 = vpack.c.b16 %v5135, %v5131
    %v5192 = vpack.c.b16 %v5136, %v5132
    %v5193 = vpack.c.b16 %v5137, %v5133
    %v5194 = vpack.c.b16 %v5142, %v5138
    %v5195 = vpack.c.b16 %v5143, %v5139
    %v5196 = vpack.c.b16 %v5144, %v5140
    %v5197 = vpack.c.b16 %v5145, %v5141
    %v5198 = vpack.c.b16 %v5150, %v5146
    %v5199 = vpack.c.b16 %v5151, %v5147
    %v5200 = vpack.c.b16 %v5152, %v5148
    %v5201 = vpack.c.b16 %v5153, %v5149
    %v5202 = vpack.c.b16 %v5158, %v5154
    %v5203 = vpack.c.b16 %v5159, %v5155
    %v5204 = vpack.c.b16 %v5160, %v5156
    %v5205 = vpack.c.b16 %v5161, %v5157
    %v5206 = vpack.c.b16 %v5166, %v5162
    %v5207 = vpack.c.b16 %v5167, %v5163
    %v5208 = vpack.c.b16 %v5168, %v5164
    %v5209 = vpack.c.b16 %v5169, %v5165
    %v5210 = vpack.c.b16 %v5174, %v5170
    %v5211 = vpack.c.b16 %v5175, %v5171
    %v5212 = vpack.c.b16 %v5176, %v5172
    %v5213 = vpack.c.b16 %v5177, %v5173
    %v5214 = vpack.c.b16 %v5182, %v5178
    %v5215 = vpack.c.b16 %v5183, %v5179
    %v5216 = vpack.c.b16 %v5184, %v5180
    %v5217 = vpack.c.b16 %v5185, %v5181
    %5250 = vmatprep.subr.bf16.mxu0 %v5215
    %5251 = vmatpush1.bf16.msra.mxu0 %v5214
    %5252 = vmatprep.subr.bf16.mxu0 %v5211
    %5253 = vmatpush1.bf16.msra.mxu0 %v5210
    %5254 = vmatprep.subr.bf16.mxu0 %v5207
    %5255 = vmatpush1.bf16.msra.mxu0 %v5206
    %5256 = vmatprep.subr.bf16.mxu0 %v5203
    %5257 = vmatpush1.bf16.msra.mxu0 %v5202
    %5258 = vmatprep.subr.bf16.mxu0 %v5199
    %5259 = vmatpush1.bf16.msra.mxu0 %v5198
    %5260 = vmatprep.subr.bf16.mxu0 %v5195
    %5261 = vmatpush1.bf16.msra.mxu0 %v5194
    %5262 = vmatprep.subr.bf16.mxu0 %v5191
    %5263 = vmatpush1.bf16.msra.mxu0 %v5190
    %5264 = vmatprep.subr.bf16.mxu0 %v5187
    %5265 = vmatpush1.bf16.msra.mxu0 %v5186
    %5266 = vmatprep.subr.bf16.mxu0 0
    %5267 = vmatpush2.bf16.msra.mxu0 0
    %5268 = vmatprep.subr.bf16.mxu0 0
    %5269 = vmatpush2.bf16.msra.mxu0 0
    %5270 = vmatprep.subr.bf16.mxu0 0
    %5271 = vmatpush2.bf16.msra.mxu0 0
    %5272 = vmatprep.subr.bf16.mxu0 0
    %5273 = vmatpush2.bf16.msra.mxu0 0
    %5274 = vmatprep.subr.bf16.mxu0 0
    %5275 = vmatpush2.bf16.msra.mxu0 0
    %5276 = vmatprep.subr.bf16.mxu0 0
    %5277 = vmatpush2.bf16.msra.mxu0 0
    %5278 = vmatprep.subr.bf16.mxu0 0
    %5279 = vmatpush2.bf16.msra.mxu0 0
    %5280 = vmatprep.subr.bf16.mxu0 0
    %5281 = vmatpush2.bf16.msra.mxu0 0
    %5282 = vmatprep.mubr.bf16.mxu0 0
    %5283 = vmatmul.mubr.bf16.gmra.mxu0 %v5057
    %v5284 = vpop.f32.mrf.mxu0
    %v5285 = vadd.f32 0.0, %v5284
    %v5286 = vpop.f32.mrf.mxu0
    %v5287 = vadd.f32 0.0, %v5286
    %v5288 = vpop.f32.mrf.mxu0
    %v5289 = vpop.f32.mrf.mxu0
    %5290 = vdwg.mxu0
    %5291 = vmatprep.subr.bf16.mxu0 %v5217
    %5292 = vmatpush1.bf16.msra.mxu0 %v5216
    %5293 = vmatprep.subr.bf16.mxu0 %v5213
    %5294 = vmatpush1.bf16.msra.mxu0 %v5212
    %5295 = vmatprep.subr.bf16.mxu0 %v5209
    %5296 = vmatpush1.bf16.msra.mxu0 %v5208
    %5297 = vmatprep.subr.bf16.mxu0 %v5205
    %5298 = vmatpush1.bf16.msra.mxu0 %v5204
    %5299 = vmatprep.subr.bf16.mxu0 %v5201
    %5300 = vmatpush1.bf16.msra.mxu0 %v5200
    %5301 = vmatprep.subr.bf16.mxu0 %v5197
    %5302 = vmatpush1.bf16.msra.mxu0 %v5196
    %5303 = vmatprep.subr.bf16.mxu0 %v5193
    %5304 = vmatpush1.bf16.msra.mxu0 %v5192
    %5305 = vmatprep.subr.bf16.mxu0 %v5189
    %5306 = vmatpush1.bf16.msra.mxu0 %v5188
    %5307 = vmatprep.subr.bf16.mxu0 0
    %5308 = vmatpush2.bf16.msra.mxu0 0
    %5309 = vmatprep.subr.bf16.mxu0 0
    %5310 = vmatpush2.bf16.msra.mxu0 0
    %5311 = vmatprep.subr.bf16.mxu0 0
    %5312 = vmatpush2.bf16.msra.mxu0 0
    %5313 = vmatprep.subr.bf16.mxu0 0
    %5314 = vmatpush2.bf16.msra.mxu0 0
    %5315 = vmatprep.subr.bf16.mxu0 0
    %5316 = vmatpush2.bf16.msra.mxu0 0
    %5317 = vmatprep.subr.bf16.mxu0 0
    %5318 = vmatpush2.bf16.msra.mxu0 0
    %5319 = vmatprep.subr.bf16.mxu0 0
    %5320 = vmatpush2.bf16.msra.mxu0 0
    %5321 = vmatprep.subr.bf16.mxu0 0
    %5322 = vmatpush2.bf16.msra.mxu0 0
    %5323 = vmatprep.mubr.bf16.mxu0 0
    %5324 = vmatmul.mubr.bf16.gmra.mxu0 %v5057
    %v5325 = vpop.f32.mrf.mxu0
    %v5326 = vadd.f32 0.0, %v5325
    %v5327 = vpop.f32.mrf.mxu0
    %v5328 = vadd.f32 0.0, %v5327
    %v5329 = vpop.f32.mrf.mxu0
    %v5330 = vpop.f32.mrf.mxu0
    %5331 = vdwg.mxu0
    %v5332 = vadd.f32 %v5053, %v5285
    %v5333 = vadd.f32 %v5054, %v5287
    %v5334 = vadd.f32 %v5055, %v5326
    %v5335 = vadd.f32 %v5056, %v5328
    %v5336 = vxor.u32 %v5332, 2147483648
    %v5337 = vxor.u32 %v5333, 2147483648
    %v5338 = vxor.u32 %v5334, 2147483648
    %v5339 = vmul.f32 %v5336, 1.442695
    %v5340 = vpow.pop %v5339
    %v5341 = vmul.f32 %v5337, 1.442695
    %v5342 = vpow.pop %v5341
    %v5343 = vmul.f32 %v5338, 1.442695
    %v5344 = vpow.pop %v5343
    %v5345 = vadd.f32 %v5340, 1.0
    %v5346 = vadd.f32 %v5342, 1.0
    %v5347 = vadd.f32 %v5344, 1.0
    %v5348 = vrcp.pop %v5345
    %v5349 = vmul.f32 1.0, %v5348
    %v5350 = vrcp.pop %v5346
    %v5351 = vmul.f32 1.0, %v5350
    %v5352 = vrcp.pop %v5347
    %v5353 = vmul.f32 1.0, %v5352
    %v5354 = vtanh.pop %v5335
    %v5355 = vmul.f32 %v5351, %v5048
    %v5356 = vmul.f32 %v5349, %v5354
    %v5357 = vadd.f32 %v5355, %v5356
    %v5358 = vtanh.pop %v5357
    %v5359 = vmul.f32 %v5353, %v5358
    %5360 = vst [vmem:[%s4429] sm:$0xff] %v5359
    %5361 = vst [vmem:[%s4426 + $0x8] sm:$0xff] %v5359
    %v5362 = vld [vmem:[%s2263] sm:$0xff]
    %v5363 = vld [vmem:[%s2263 + $0x8] sm:$0xff]
    %v5364 = vld [vmem:[%s2263 + $0x10] sm:$0xff]
    %v5365 = vld [vmem:[%s2263 + $0x18] sm:$0xff]
    %v5366 = vpack.c.bf16 %v5359, %v5359
    %v5367 = vld [vmem:[#allocation9] sm:$0xff]
    %v5368 = vld [vmem:[#allocation9 + $0x8] sm:$0xff]
    %v5369 = vld [vmem:[#allocation9 + $0x10] sm:$0xff]
    %v5370 = vld [vmem:[#allocation9 + $0x18] sm:$0xff]
    %v5371 = vld [vmem:[#allocation9 + $0x20] sm:$0xff]
    %v5372 = vld [vmem:[#allocation9 + $0x28] sm:$0xff]
    %v5373 = vld [vmem:[#allocation9 + $0x30] sm:$0xff]
    %v5374 = vld [vmem:[#allocation9 + $0x38] sm:$0xff]
    %v5375 = vld [vmem:[#allocation9 + $0x40] sm:$0xff]
    %v5376 = vld [vmem:[#allocation9 + $0x48] sm:$0xff]
    %v5377 = vld [vmem:[#allocation9 + $0x50] sm:$0xff]
    %v5378 = vld [vmem:[#allocation9 + $0x58] sm:$0xff]
    %v5379 = vld [vmem:[#allocation9 + $0x60] sm:$0xff]
    %v5380 = vld [vmem:[#allocation9 + $0x68] sm:$0xff]
    %v5381 = vld [vmem:[#allocation9 + $0x70] sm:$0xff]
    %v5382 = vld [vmem:[#allocation9 + $0x78] sm:$0xff]
    %v5383 = vld [vmem:[#allocation9 + $0x80] sm:$0xff]
    %v5384 = vld [vmem:[#allocation9 + $0x88] sm:$0xff]
    %v5385 = vld [vmem:[#allocation9 + $0x90] sm:$0xff]
    %v5386 = vld [vmem:[#allocation9 + $0x98] sm:$0xff]
    %v5387 = vld [vmem:[#allocation9 + $0xa0] sm:$0xff]
    %v5388 = vld [vmem:[#allocation9 + $0xa8] sm:$0xff]
    %v5389 = vld [vmem:[#allocation9 + $0xb0] sm:$0xff]
    %v5390 = vld [vmem:[#allocation9 + $0xb8] sm:$0xff]
    %v5391 = vld [vmem:[#allocation9 + $0xc0] sm:$0xff]
    %v5392 = vld [vmem:[#allocation9 + $0xc8] sm:$0xff]
    %v5393 = vld [vmem:[#allocation9 + $0xd0] sm:$0xff]
    %v5394 = vld [vmem:[#allocation9 + $0xd8] sm:$0xff]
    %v5395 = vld [vmem:[#allocation9 + $0xe0] sm:$0xff]
    %v5396 = vld [vmem:[#allocation9 + $0xe8] sm:$0xff]
    %v5397 = vld [vmem:[#allocation9 + $0xf0] sm:$0xff]
    %v5398 = vld [vmem:[#allocation9 + $0xf8] sm:$0xff]
    %v5431 = vunpack.c.l.b16 %v5367
    %v5432 = vunpack.c.h.b16 %v5367
    %v5433 = vunpack.c.l.b16 %v5368
    %v5434 = vunpack.c.h.b16 %v5368
    %v5435 = vunpack.c.l.b16 %v5369
    %v5436 = vunpack.c.h.b16 %v5369
    %v5437 = vunpack.c.l.b16 %v5370
    %v5438 = vunpack.c.h.b16 %v5370
    %v5439 = vunpack.c.l.b16 %v5371
    %v5440 = vunpack.c.h.b16 %v5371
    %v5441 = vunpack.c.l.b16 %v5372
    %v5442 = vunpack.c.h.b16 %v5372
    %v5443 = vunpack.c.l.b16 %v5373
    %v5444 = vunpack.c.h.b16 %v5373
    %v5445 = vunpack.c.l.b16 %v5374
    %v5446 = vunpack.c.h.b16 %v5374
    %v5447 = vunpack.c.l.b16 %v5375
    %v5448 = vunpack.c.h.b16 %v5375
    %v5449 = vunpack.c.l.b16 %v5376
    %v5450 = vunpack.c.h.b16 %v5376
    %v5451 = vunpack.c.l.b16 %v5377
    %v5452 = vunpack.c.h.b16 %v5377
    %v5453 = vunpack.c.l.b16 %v5378
    %v5454 = vunpack.c.h.b16 %v5378
    %v5455 = vunpack.c.l.b16 %v5379
    %v5456 = vunpack.c.h.b16 %v5379
    %v5457 = vunpack.c.l.b16 %v5380
    %v5458 = vunpack.c.h.b16 %v5380
    %v5459 = vunpack.c.l.b16 %v5381
    %v5460 = vunpack.c.h.b16 %v5381
    %v5461 = vunpack.c.l.b16 %v5382
    %v5462 = vunpack.c.h.b16 %v5382
    %v5463 = vunpack.c.l.b16 %v5383
    %v5464 = vunpack.c.h.b16 %v5383
    %v5465 = vunpack.c.l.b16 %v5384
    %v5466 = vunpack.c.h.b16 %v5384
    %v5467 = vunpack.c.l.b16 %v5385
    %v5468 = vunpack.c.h.b16 %v5385
    %v5469 = vunpack.c.l.b16 %v5386
    %v5470 = vunpack.c.h.b16 %v5386
    %v5471 = vunpack.c.l.b16 %v5387
    %v5472 = vunpack.c.h.b16 %v5387
    %v5473 = vunpack.c.l.b16 %v5388
    %v5474 = vunpack.c.h.b16 %v5388
    %v5475 = vunpack.c.l.b16 %v5389
    %v5476 = vunpack.c.h.b16 %v5389
    %v5477 = vunpack.c.l.b16 %v5390
    %v5478 = vunpack.c.h.b16 %v5390
    %v5479 = vunpack.c.l.b16 %v5391
    %v5480 = vunpack.c.h.b16 %v5391
    %v5481 = vunpack.c.l.b16 %v5392
    %v5482 = vunpack.c.h.b16 %v5392
    %v5483 = vunpack.c.l.b16 %v5393
    %v5484 = vunpack.c.h.b16 %v5393
    %v5485 = vunpack.c.l.b16 %v5394
    %v5486 = vunpack.c.h.b16 %v5394
    %v5487 = vunpack.c.l.b16 %v5395
    %v5488 = vunpack.c.h.b16 %v5395
    %v5489 = vunpack.c.l.b16 %v5396
    %v5490 = vunpack.c.h.b16 %v5396
    %v5491 = vunpack.c.l.b16 %v5397
    %v5492 = vunpack.c.h.b16 %v5397
    %v5493 = vunpack.c.l.b16 %v5398
    %v5494 = vunpack.c.h.b16 %v5398
    %v5495 = vpack.c.b16 %v5435, %v5431
    %v5496 = vpack.c.b16 %v5436, %v5432
    %v5497 = vpack.c.b16 %v5437, %v5433
    %v5498 = vpack.c.b16 %v5438, %v5434
    %v5499 = vpack.c.b16 %v5443, %v5439
    %v5500 = vpack.c.b16 %v5444, %v5440
    %v5501 = vpack.c.b16 %v5445, %v5441
    %v5502 = vpack.c.b16 %v5446, %v5442
    %v5503 = vpack.c.b16 %v5451, %v5447
    %v5504 = vpack.c.b16 %v5452, %v5448
    %v5505 = vpack.c.b16 %v5453, %v5449
    %v5506 = vpack.c.b16 %v5454, %v5450
    %v5507 = vpack.c.b16 %v5459, %v5455
    %v5508 = vpack.c.b16 %v5460, %v5456
    %v5509 = vpack.c.b16 %v5461, %v5457
    %v5510 = vpack.c.b16 %v5462, %v5458
    %v5511 = vpack.c.b16 %v5467, %v5463
    %v5512 = vpack.c.b16 %v5468, %v5464
    %v5513 = vpack.c.b16 %v5469, %v5465
    %v5514 = vpack.c.b16 %v5470, %v5466
    %v5515 = vpack.c.b16 %v5475, %v5471
    %v5516 = vpack.c.b16 %v5476, %v5472
    %v5517 = vpack.c.b16 %v5477, %v5473
    %v5518 = vpack.c.b16 %v5478, %v5474
    %v5519 = vpack.c.b16 %v5483, %v5479
    %v5520 = vpack.c.b16 %v5484, %v5480
    %v5521 = vpack.c.b16 %v5485, %v5481
    %v5522 = vpack.c.b16 %v5486, %v5482
    %v5523 = vpack.c.b16 %v5491, %v5487
    %v5524 = vpack.c.b16 %v5492, %v5488
    %v5525 = vpack.c.b16 %v5493, %v5489
    %v5526 = vpack.c.b16 %v5494, %v5490
    %5559 = vmatprep.subr.bf16.mxu0 %v5524
    %5560 = vmatpush1.bf16.msra.mxu0 %v5523
    %5561 = vmatprep.subr.bf16.mxu0 %v5520
    %5562 = vmatpush1.bf16.msra.mxu0 %v5519
    %5563 = vmatprep.subr.bf16.mxu0 %v5516
    %5564 = vmatpush1.bf16.msra.mxu0 %v5515
    %5565 = vmatprep.subr.bf16.mxu0 %v5512
    %5566 = vmatpush1.bf16.msra.mxu0 %v5511
    %5567 = vmatprep.subr.bf16.mxu0 %v5508
    %5568 = vmatpush1.bf16.msra.mxu0 %v5507
    %5569 = vmatprep.subr.bf16.mxu0 %v5504
    %5570 = vmatpush1.bf16.msra.mxu0 %v5503
    %5571 = vmatprep.subr.bf16.mxu0 %v5500
    %5572 = vmatpush1.bf16.msra.mxu0 %v5499
    %5573 = vmatprep.subr.bf16.mxu0 %v5496
    %5574 = vmatpush1.bf16.msra.mxu0 %v5495
    %5575 = vmatprep.subr.bf16.mxu0 0
    %5576 = vmatpush2.bf16.msra.mxu0 0
    %5577 = vmatprep.subr.bf16.mxu0 0
    %5578 = vmatpush2.bf16.msra.mxu0 0
    %5579 = vmatprep.subr.bf16.mxu0 0
    %5580 = vmatpush2.bf16.msra.mxu0 0
    %5581 = vmatprep.subr.bf16.mxu0 0
    %5582 = vmatpush2.bf16.msra.mxu0 0
    %5583 = vmatprep.subr.bf16.mxu0 0
    %5584 = vmatpush2.bf16.msra.mxu0 0
    %5585 = vmatprep.subr.bf16.mxu0 0
    %5586 = vmatpush2.bf16.msra.mxu0 0
    %5587 = vmatprep.subr.bf16.mxu0 0
    %5588 = vmatpush2.bf16.msra.mxu0 0
    %5589 = vmatprep.subr.bf16.mxu0 0
    %5590 = vmatpush2.bf16.msra.mxu0 0
    %5591 = vmatprep.mubr.bf16.mxu0 0
    %5592 = vmatmul.mubr.bf16.gmra.mxu0 %v5366
    %v5593 = vpop.f32.mrf.mxu0
    %v5594 = vadd.f32 0.0, %v5593
    %v5595 = vpop.f32.mrf.mxu0
    %v5596 = vadd.f32 0.0, %v5595
    %v5597 = vpop.f32.mrf.mxu0
    %v5598 = vpop.f32.mrf.mxu0
    %5599 = vdwg.mxu0
    %5600 = vmatprep.subr.bf16.mxu0 %v5526
    %5601 = vmatpush1.bf16.msra.mxu0 %v5525
    %5602 = vmatprep.subr.bf16.mxu0 %v5522
    %5603 = vmatpush1.bf16.msra.mxu0 %v5521
    %5604 = vmatprep.subr.bf16.mxu0 %v5518
    %5605 = vmatpush1.bf16.msra.mxu0 %v5517
    %5606 = vmatprep.subr.bf16.mxu0 %v5514
    %5607 = vmatpush1.bf16.msra.mxu0 %v5513
    %5608 = vmatprep.subr.bf16.mxu0 %v5510
    %5609 = vmatpush1.bf16.msra.mxu0 %v5509
    %5610 = vmatprep.subr.bf16.mxu0 %v5506
    %5611 = vmatpush1.bf16.msra.mxu0 %v5505
    %5612 = vmatprep.subr.bf16.mxu0 %v5502
    %5613 = vmatpush1.bf16.msra.mxu0 %v5501
    %5614 = vmatprep.subr.bf16.mxu0 %v5498
    %5615 = vmatpush1.bf16.msra.mxu0 %v5497
    %5616 = vmatprep.subr.bf16.mxu0 0
    %5617 = vmatpush2.bf16.msra.mxu0 0
    %5618 = vmatprep.subr.bf16.mxu0 0
    %5619 = vmatpush2.bf16.msra.mxu0 0
    %5620 = vmatprep.subr.bf16.mxu0 0
    %5621 = vmatpush2.bf16.msra.mxu0 0
    %5622 = vmatprep.subr.bf16.mxu0 0
    %5623 = vmatpush2.bf16.msra.mxu0 0
    %5624 = vmatprep.subr.bf16.mxu0 0
    %5625 = vmatpush2.bf16.msra.mxu0 0
    %5626 = vmatprep.subr.bf16.mxu0 0
    %5627 = vmatpush2.bf16.msra.mxu0 0
    %5628 = vmatprep.subr.bf16.mxu0 0
    %5629 = vmatpush2.bf16.msra.mxu0 0
    %5630 = vmatprep.subr.bf16.mxu0 0
    %5631 = vmatpush2.bf16.msra.mxu0 0
    %5632 = vmatprep.mubr.bf16.mxu0 0
    %5633 = vmatmul.mubr.bf16.gmra.mxu0 %v5366
    %v5634 = vpop.f32.mrf.mxu0
    %v5635 = vadd.f32 0.0, %v5634
    %v5636 = vpop.f32.mrf.mxu0
    %v5637 = vadd.f32 0.0, %v5636
    %v5638 = vpop.f32.mrf.mxu0
    %v5639 = vpop.f32.mrf.mxu0
    %5640 = vdwg.mxu0
    %v5641 = vadd.f32 %v5362, %v5594
    %v5642 = vadd.f32 %v5363, %v5596
    %v5643 = vadd.f32 %v5364, %v5635
    %v5644 = vadd.f32 %v5365, %v5637
    %v5645 = vxor.u32 %v5641, 2147483648
    %v5646 = vxor.u32 %v5642, 2147483648
    %v5647 = vxor.u32 %v5643, 2147483648
    %v5648 = vmul.f32 %v5645, 1.442695
    %v5649 = vpow.pop %v5648
    %v5650 = vmul.f32 %v5646, 1.442695
    %v5651 = vpow.pop %v5650
    %v5652 = vmul.f32 %v5647, 1.442695
    %v5653 = vpow.pop %v5652
    %v5654 = vadd.f32 %v5649, 1.0
    %v5655 = vadd.f32 %v5651, 1.0
    %v5656 = vadd.f32 %v5653, 1.0
    %v5657 = vrcp.pop %v5654
    %v5658 = vmul.f32 1.0, %v5657
    %v5659 = vrcp.pop %v5655
    %v5660 = vmul.f32 1.0, %v5659
    %v5661 = vrcp.pop %v5656
    %v5662 = vmul.f32 1.0, %v5661
    %v5663 = vtanh.pop %v5644
    %v5664 = vmul.f32 %v5660, %v5357
    %v5665 = vmul.f32 %v5658, %v5663
    %v5666 = vadd.f32 %v5664, %v5665
    %v5667 = vtanh.pop %v5666
    %v5668 = vmul.f32 %v5662, %v5667
    %5669 = vst [vmem:[%s4116] sm:$0xff] %v5668
    %5670 = vst [vmem:[%s4113 + $0x8] sm:$0xff] %v5668
    %v5671 = vld [vmem:[%s2575] sm:$0xff]
    %v5672 = vld [vmem:[%s2575 + $0x8] sm:$0xff]
    %v5673 = vld [vmem:[%s2575 + $0x10] sm:$0xff]
    %v5674 = vld [vmem:[%s2575 + $0x18] sm:$0xff]
    %v5675 = vpack.c.bf16 %v5668, %v5668
    %v5676 = vld [vmem:[#allocation9] sm:$0xff]
    %v5677 = vld [vmem:[#allocation9 + $0x8] sm:$0xff]
    %v5678 = vld [vmem:[#allocation9 + $0x10] sm:$0xff]
    %v5679 = vld [vmem:[#allocation9 + $0x18] sm:$0xff]
    %v5680 = vld [vmem:[#allocation9 + $0x20] sm:$0xff]
    %v5681 = vld [vmem:[#allocation9 + $0x28] sm:$0xff]
    %v5682 = vld [vmem:[#allocation9 + $0x30] sm:$0xff]
    %v5683 = vld [vmem:[#allocation9 + $0x38] sm:$0xff]
    %v5684 = vld [vmem:[#allocation9 + $0x40] sm:$0xff]
    %v5685 = vld [vmem:[#allocation9 + $0x48] sm:$0xff]
    %v5686 = vld [vmem:[#allocation9 + $0x50] sm:$0xff]
    %v5687 = vld [vmem:[#allocation9 + $0x58] sm:$0xff]
    %v5688 = vld [vmem:[#allocation9 + $0x60] sm:$0xff]
    %v5689 = vld [vmem:[#allocation9 + $0x68] sm:$0xff]
    %v5690 = vld [vmem:[#allocation9 + $0x70] sm:$0xff]
    %v5691 = vld [vmem:[#allocation9 + $0x78] sm:$0xff]
    %v5692 = vld [vmem:[#allocation9 + $0x80] sm:$0xff]
    %v5693 = vld [vmem:[#allocation9 + $0x88] sm:$0xff]
    %v5694 = vld [vmem:[#allocation9 + $0x90] sm:$0xff]
    %v5695 = vld [vmem:[#allocation9 + $0x98] sm:$0xff]
    %v5696 = vld [vmem:[#allocation9 + $0xa0] sm:$0xff]
    %v5697 = vld [vmem:[#allocation9 + $0xa8] sm:$0xff]
    %v5698 = vld [vmem:[#allocation9 + $0xb0] sm:$0xff]
    %v5699 = vld [vmem:[#allocation9 + $0xb8] sm:$0xff]
    %v5700 = vld [vmem:[#allocation9 + $0xc0] sm:$0xff]
    %v5701 = vld [vmem:[#allocation9 + $0xc8] sm:$0xff]
    %v5702 = vld [vmem:[#allocation9 + $0xd0] sm:$0xff]
    %v5703 = vld [vmem:[#allocation9 + $0xd8] sm:$0xff]
    %v5704 = vld [vmem:[#allocation9 + $0xe0] sm:$0xff]
    %v5705 = vld [vmem:[#allocation9 + $0xe8] sm:$0xff]
    %v5706 = vld [vmem:[#allocation9 + $0xf0] sm:$0xff]
    %v5707 = vld [vmem:[#allocation9 + $0xf8] sm:$0xff]
    %v5740 = vunpack.c.l.b16 %v5676
    %v5741 = vunpack.c.h.b16 %v5676
    %v5742 = vunpack.c.l.b16 %v5677
    %v5743 = vunpack.c.h.b16 %v5677
    %v5744 = vunpack.c.l.b16 %v5678
    %v5745 = vunpack.c.h.b16 %v5678
    %v5746 = vunpack.c.l.b16 %v5679
    %v5747 = vunpack.c.h.b16 %v5679
    %v5748 = vunpack.c.l.b16 %v5680
    %v5749 = vunpack.c.h.b16 %v5680
    %v5750 = vunpack.c.l.b16 %v5681
    %v5751 = vunpack.c.h.b16 %v5681
    %v5752 = vunpack.c.l.b16 %v5682
    %v5753 = vunpack.c.h.b16 %v5682
    %v5754 = vunpack.c.l.b16 %v5683
    %v5755 = vunpack.c.h.b16 %v5683
    %v5756 = vunpack.c.l.b16 %v5684
    %v5757 = vunpack.c.h.b16 %v5684
    %v5758 = vunpack.c.l.b16 %v5685
    %v5759 = vunpack.c.h.b16 %v5685
    %v5760 = vunpack.c.l.b16 %v5686
    %v5761 = vunpack.c.h.b16 %v5686
    %v5762 = vunpack.c.l.b16 %v5687
    %v5763 = vunpack.c.h.b16 %v5687
    %v5764 = vunpack.c.l.b16 %v5688
    %v5765 = vunpack.c.h.b16 %v5688
    %v5766 = vunpack.c.l.b16 %v5689
    %v5767 = vunpack.c.h.b16 %v5689
    %v5768 = vunpack.c.l.b16 %v5690
    %v5769 = vunpack.c.h.b16 %v5690
    %v5770 = vunpack.c.l.b16 %v5691
    %v5771 = vunpack.c.h.b16 %v5691
    %v5772 = vunpack.c.l.b16 %v5692
    %v5773 = vunpack.c.h.b16 %v5692
    %v5774 = vunpack.c.l.b16 %v5693
    %v5775 = vunpack.c.h.b16 %v5693
    %v5776 = vunpack.c.l.b16 %v5694
    %v5777 = vunpack.c.h.b16 %v5694
    %v5778 = vunpack.c.l.b16 %v5695
    %v5779 = vunpack.c.h.b16 %v5695
    %v5780 = vunpack.c.l.b16 %v5696
    %v5781 = vunpack.c.h.b16 %v5696
    %v5782 = vunpack.c.l.b16 %v5697
    %v5783 = vunpack.c.h.b16 %v5697
    %v5784 = vunpack.c.l.b16 %v5698
    %v5785 = vunpack.c.h.b16 %v5698
    %v5786 = vunpack.c.l.b16 %v5699
    %v5787 = vunpack.c.h.b16 %v5699
    %v5788 = vunpack.c.l.b16 %v5700
    %v5789 = vunpack.c.h.b16 %v5700
    %v5790 = vunpack.c.l.b16 %v5701
    %v5791 = vunpack.c.h.b16 %v5701
    %v5792 = vunpack.c.l.b16 %v5702
    %v5793 = vunpack.c.h.b16 %v5702
    %v5794 = vunpack.c.l.b16 %v5703
    %v5795 = vunpack.c.h.b16 %v5703
    %v5796 = vunpack.c.l.b16 %v5704
    %v5797 = vunpack.c.h.b16 %v5704
    %v5798 = vunpack.c.l.b16 %v5705
    %v5799 = vunpack.c.h.b16 %v5705
    %v5800 = vunpack.c.l.b16 %v5706
    %v5801 = vunpack.c.h.b16 %v5706
    %v5802 = vunpack.c.l.b16 %v5707
    %v5803 = vunpack.c.h.b16 %v5707
    %v5804 = vpack.c.b16 %v5744, %v5740
    %v5805 = vpack.c.b16 %v5745, %v5741
    %v5806 = vpack.c.b16 %v5746, %v5742
    %v5807 = vpack.c.b16 %v5747, %v5743
    %v5808 = vpack.c.b16 %v5752, %v5748
    %v5809 = vpack.c.b16 %v5753, %v5749
    %v5810 = vpack.c.b16 %v5754, %v5750
    %v5811 = vpack.c.b16 %v5755, %v5751
    %v5812 = vpack.c.b16 %v5760, %v5756
    %v5813 = vpack.c.b16 %v5761, %v5757
    %v5814 = vpack.c.b16 %v5762, %v5758
    %v5815 = vpack.c.b16 %v5763, %v5759
    %v5816 = vpack.c.b16 %v5768, %v5764
    %v5817 = vpack.c.b16 %v5769, %v5765
    %v5818 = vpack.c.b16 %v5770, %v5766
    %v5819 = vpack.c.b16 %v5771, %v5767
    %v5820 = vpack.c.b16 %v5776, %v5772
    %v5821 = vpack.c.b16 %v5777, %v5773
    %v5822 = vpack.c.b16 %v5778, %v5774
    %v5823 = vpack.c.b16 %v5779, %v5775
    %v5824 = vpack.c.b16 %v5784, %v5780
    %v5825 = vpack.c.b16 %v5785, %v5781
    %v5826 = vpack.c.b16 %v5786, %v5782
    %v5827 = vpack.c.b16 %v5787, %v5783
    %v5828 = vpack.c.b16 %v5792, %v5788
    %v5829 = vpack.c.b16 %v5793, %v5789
    %v5830 = vpack.c.b16 %v5794, %v5790
    %v5831 = vpack.c.b16 %v5795, %v5791
    %v5832 = vpack.c.b16 %v5800, %v5796
    %v5833 = vpack.c.b16 %v5801, %v5797
    %v5834 = vpack.c.b16 %v5802, %v5798
    %v5835 = vpack.c.b16 %v5803, %v5799
    %5868 = vmatprep.subr.bf16.mxu0 %v5833
    %5869 = vmatpush1.bf16.msra.mxu0 %v5832
    %5870 = vmatprep.subr.bf16.mxu0 %v5829
    %5871 = vmatpush1.bf16.msra.mxu0 %v5828
    %5872 = vmatprep.subr.bf16.mxu0 %v5825
    %5873 = vmatpush1.bf16.msra.mxu0 %v5824
    %5874 = vmatprep.subr.bf16.mxu0 %v5821
    %5875 = vmatpush1.bf16.msra.mxu0 %v5820
    %5876 = vmatprep.subr.bf16.mxu0 %v5817
    %5877 = vmatpush1.bf16.msra.mxu0 %v5816
    %5878 = vmatprep.subr.bf16.mxu0 %v5813
    %5879 = vmatpush1.bf16.msra.mxu0 %v5812
    %5880 = vmatprep.subr.bf16.mxu0 %v5809
    %5881 = vmatpush1.bf16.msra.mxu0 %v5808
    %5882 = vmatprep.subr.bf16.mxu0 %v5805
    %5883 = vmatpush1.bf16.msra.mxu0 %v5804
    %5884 = vmatprep.subr.bf16.mxu0 0
    %5885 = vmatpush2.bf16.msra.mxu0 0
    %5886 = vmatprep.subr.bf16.mxu0 0
    %5887 = vmatpush2.bf16.msra.mxu0 0
    %5888 = vmatprep.subr.bf16.mxu0 0
    %5889 = vmatpush2.bf16.msra.mxu0 0
    %5890 = vmatprep.subr.bf16.mxu0 0
    %5891 = vmatpush2.bf16.msra.mxu0 0
    %5892 = vmatprep.subr.bf16.mxu0 0
    %5893 = vmatpush2.bf16.msra.mxu0 0
    %5894 = vmatprep.subr.bf16.mxu0 0
    %5895 = vmatpush2.bf16.msra.mxu0 0
    %5896 = vmatprep.subr.bf16.mxu0 0
    %5897 = vmatpush2.bf16.msra.mxu0 0
    %5898 = vmatprep.subr.bf16.mxu0 0
    %5899 = vmatpush2.bf16.msra.mxu0 0
    %5900 = vmatprep.mubr.bf16.mxu0 0
    %5901 = vmatmul.mubr.bf16.gmra.mxu0 %v5675
    %v5902 = vpop.f32.mrf.mxu0
    %v5903 = vadd.f32 0.0, %v5902
    %v5904 = vpop.f32.mrf.mxu0
    %v5905 = vadd.f32 0.0, %v5904
    %v5906 = vpop.f32.mrf.mxu0
    %v5907 = vpop.f32.mrf.mxu0
    %5908 = vdwg.mxu0
    %5909 = vmatprep.subr.bf16.mxu0 %v5835
    %5910 = vmatpush1.bf16.msra.mxu0 %v5834
    %5911 = vmatprep.subr.bf16.mxu0 %v5831
    %5912 = vmatpush1.bf16.msra.mxu0 %v5830
    %5913 = vmatprep.subr.bf16.mxu0 %v5827
    %5914 = vmatpush1.bf16.msra.mxu0 %v5826
    %5915 = vmatprep.subr.bf16.mxu0 %v5823
    %5916 = vmatpush1.bf16.msra.mxu0 %v5822
    %5917 = vmatprep.subr.bf16.mxu0 %v5819
    %5918 = vmatpush1.bf16.msra.mxu0 %v5818
    %5919 = vmatprep.subr.bf16.mxu0 %v5815
    %5920 = vmatpush1.bf16.msra.mxu0 %v5814
    %5921 = vmatprep.subr.bf16.mxu0 %v5811
    %5922 = vmatpush1.bf16.msra.mxu0 %v5810
    %5923 = vmatprep.subr.bf16.mxu0 %v5807
    %5924 = vmatpush1.bf16.msra.mxu0 %v5806
    %5925 = vmatprep.subr.bf16.mxu0 0
    %5926 = vmatpush2.bf16.msra.mxu0 0
    %5927 = vmatprep.subr.bf16.mxu0 0
    %5928 = vmatpush2.bf16.msra.mxu0 0
    %5929 = vmatprep.subr.bf16.mxu0 0
    %5930 = vmatpush2.bf16.msra.mxu0 0
    %5931 = vmatprep.subr.bf16.mxu0 0
    %5932 = vmatpush2.bf16.msra.mxu0 0
    %5933 = vmatprep.subr.bf16.mxu0 0
    %5934 = vmatpush2.bf16.msra.mxu0 0
    %5935 = vmatprep.subr.bf16.mxu0 0
    %5936 = vmatpush2.bf16.msra.mxu0 0
    %5937 = vmatprep.subr.bf16.mxu0 0
    %5938 = vmatpush2.bf16.msra.mxu0 0
    %5939 = vmatprep.subr.bf16.mxu0 0
    %5940 = vmatpush2.bf16.msra.mxu0 0
    %5941 = vmatprep.mubr.bf16.mxu0 0
    %5942 = vmatmul.mubr.bf16.gmra.mxu0 %v5675
    %v5943 = vpop.f32.mrf.mxu0
    %v5944 = vadd.f32 0.0, %v5943
    %v5945 = vpop.f32.mrf.mxu0
    %v5946 = vadd.f32 0.0, %v5945
    %v5947 = vpop.f32.mrf.mxu0
    %v5948 = vpop.f32.mrf.mxu0
    %5949 = vdwg.mxu0
    %v5950 = vadd.f32 %v5671, %v5903
    %v5951 = vadd.f32 %v5672, %v5905
    %v5952 = vadd.f32 %v5673, %v5944
    %v5953 = vadd.f32 %v5674, %v5946
    %v5954 = vxor.u32 %v5950, 2147483648
    %v5955 = vxor.u32 %v5951, 2147483648
    %v5956 = vxor.u32 %v5952, 2147483648
    %v5957 = vmul.f32 %v5954, 1.442695
    %v5958 = vpow.pop %v5957
    %v5959 = vmul.f32 %v5955, 1.442695
    %v5960 = vpow.pop %v5959
    %v5961 = vmul.f32 %v5956, 1.442695
    %v5962 = vpow.pop %v5961
    %v5963 = vadd.f32 %v5958, 1.0
    %v5964 = vadd.f32 %v5960, 1.0
    %v5965 = vadd.f32 %v5962, 1.0
    %v5966 = vrcp.pop %v5963
    %v5967 = vmul.f32 1.0, %v5966
    %v5968 = vrcp.pop %v5964
    %v5969 = vmul.f32 1.0, %v5968
    %v5970 = vrcp.pop %v5965
    %v5971 = vmul.f32 1.0, %v5970
    %v5972 = vtanh.pop %v5953
    %v5973 = vmul.f32 %v5969, %v5666
    %v5974 = vmul.f32 %v5967, %v5972
    %v5975 = vadd.f32 %v5973, %v5974
    %v5976 = vtanh.pop %v5975
    %v5977 = vmul.f32 %v5971, %v5976
    %5978 = vst [vmem:[%s3803] sm:$0xff] %v5977
    %5979 = vst [vmem:[%s3800 + $0x8] sm:$0xff] %v5977
    %v5980 = vld [vmem:[#allocation4 + $0x70] sm:$0xff]
    %v5981 = vld [vmem:[#allocation4 + $0x78] sm:$0xff]
    %v5982 = vpack.c.bf16 %v5980, %v5980
    %v5983 = vpack.c.bf16 %v5981, %v5981
    %v5984 = vld [vmem:[%s7] sm:$0xf]
    %v5985 = vld [vmem:[%s7 + $0x4] sm:$0xf]
    %v5986 = vld [vmem:[%s7 + $0x8] sm:$0xf]
    %v5987 = vld [vmem:[%s7 + $0xc] sm:$0xf]
    %v5988 = vld [vmem:[%s7 + $0x10] sm:$0xf]
    %v5989 = vld [vmem:[%s7 + $0x14] sm:$0xf]
    %v5990 = vld [vmem:[%s7 + $0x18] sm:$0xf]
    %v5991 = vld [vmem:[%s7 + $0x1c] sm:$0xf]
    %v5992 = vld [vmem:[%s7 + $0x20] sm:$0xf]
    %v5993 = vld [vmem:[%s7 + $0x24] sm:$0xf]
    %v5994 = vld [vmem:[%s7 + $0x28] sm:$0xf]
    %v5995 = vld [vmem:[%s7 + $0x2c] sm:$0xf]
    %v5996 = vld [vmem:[%s7 + $0x30] sm:$0xf]
    %v5997 = vld [vmem:[%s7 + $0x34] sm:$0xf]
    %v5998 = vld [vmem:[%s7 + $0x38] sm:$0xf]
    %v5999 = vld [vmem:[%s7 + $0x3c] sm:$0xf]
    %v6000 = vld [vmem:[%s7 + $0x40] sm:$0xf]
    %v6001 = vld [vmem:[%s7 + $0x44] sm:$0xf]
    %v6002 = vld [vmem:[%s7 + $0x48] sm:$0xf]
    %v6003 = vld [vmem:[%s7 + $0x4c] sm:$0xf]
    %v6004 = vld [vmem:[%s7 + $0x50] sm:$0xf]
    %v6005 = vld [vmem:[%s7 + $0x54] sm:$0xf]
    %v6006 = vld [vmem:[%s7 + $0x58] sm:$0xf]
    %v6007 = vld [vmem:[%s7 + $0x5c] sm:$0xf]
    %v6008 = vld [vmem:[%s7 + $0x60] sm:$0xf]
    %v6009 = vld [vmem:[%s7 + $0x64] sm:$0xf]
    %v6010 = vld [vmem:[%s7 + $0x68] sm:$0xf]
    %v6011 = vld [vmem:[%s7 + $0x6c] sm:$0xf]
    %v6012 = vld [vmem:[%s7 + $0x70] sm:$0xf]
    %v6013 = vld [vmem:[%s7 + $0x74] sm:$0xf]
    %v6014 = vld [vmem:[%s7 + $0x78] sm:$0xf]
    %v6015 = vld [vmem:[%s7 + $0x7c] sm:$0xf]
    %v6016 = vld [vmem:[%s8] sm:$0x1]
    %v6018 = vlaneseq
    %v6019 = vshrl.u32 %v6018, 7
    %v6020 = vsub.s32 0, %v6019
    %v6021 = vrot.slane %v6016, %v6020
    %v6055 = vunpack.c.l.b16 %v5984
    %v6056 = vunpack.c.l.b16 %v5985
    %v6057 = vunpack.c.l.b16 %v5986
    %v6058 = vunpack.c.l.b16 %v5987
    %v6059 = vunpack.c.l.b16 %v5988
    %v6060 = vunpack.c.l.b16 %v5989
    %v6061 = vunpack.c.l.b16 %v5990
    %v6062 = vunpack.c.l.b16 %v5991
    %v6063 = vunpack.c.l.b16 %v5992
    %v6064 = vunpack.c.l.b16 %v5993
    %v6065 = vunpack.c.l.b16 %v5994
    %v6066 = vunpack.c.l.b16 %v5995
    %v6067 = vunpack.c.l.b16 %v5996
    %v6068 = vunpack.c.l.b16 %v5997
    %v6069 = vunpack.c.l.b16 %v5998
    %v6070 = vunpack.c.l.b16 %v5999
    %v6071 = vunpack.c.l.b16 %v6000
    %v6072 = vunpack.c.l.b16 %v6001
    %v6073 = vunpack.c.l.b16 %v6002
    %v6074 = vunpack.c.l.b16 %v6003
    %v6075 = vunpack.c.l.b16 %v6004
    %v6076 = vunpack.c.l.b16 %v6005
    %v6077 = vunpack.c.l.b16 %v6006
    %v6078 = vunpack.c.l.b16 %v6007
    %v6079 = vunpack.c.l.b16 %v6008
    %v6080 = vunpack.c.l.b16 %v6009
    %v6081 = vunpack.c.l.b16 %v6010
    %v6082 = vunpack.c.l.b16 %v6011
    %v6083 = vunpack.c.l.b16 %v6012
    %v6084 = vunpack.c.l.b16 %v6013
    %v6085 = vunpack.c.l.b16 %v6014
    %v6086 = vunpack.c.l.b16 %v6015
    %v6087 = vpack.c.b16 %v6056, %v6055
    %v6088 = vpack.c.b16 %v6058, %v6057
    %v6089 = vpack.c.b16 %v6060, %v6059
    %v6090 = vpack.c.b16 %v6062, %v6061
    %v6091 = vpack.c.b16 %v6064, %v6063
    %v6092 = vpack.c.b16 %v6066, %v6065
    %v6093 = vpack.c.b16 %v6068, %v6067
    %v6094 = vpack.c.b16 %v6070, %v6069
    %v6095 = vpack.c.b16 %v6072, %v6071
    %v6096 = vpack.c.b16 %v6074, %v6073
    %v6097 = vpack.c.b16 %v6076, %v6075
    %v6098 = vpack.c.b16 %v6078, %v6077
    %v6099 = vpack.c.b16 %v6080, %v6079
    %v6100 = vpack.c.b16 %v6082, %v6081
    %v6101 = vpack.c.b16 %v6084, %v6083
    %v6102 = vpack.c.b16 %v6086, %v6085
    %6119 = vmatprep.subr.bf16.mxu0 0
    %6120 = vmatpush1.bf16.msra.mxu0 %v6094
    %6121 = vmatprep.subr.bf16.mxu0 0
    %6122 = vmatpush1.bf16.msra.mxu0 %v6093
    %6123 = vmatprep.subr.bf16.mxu0 0
    %6124 = vmatpush1.bf16.msra.mxu0 %v6092
    %6125 = vmatprep.subr.bf16.mxu0 0
    %6126 = vmatpush1.bf16.msra.mxu0 %v6091
    %6127 = vmatprep.subr.bf16.mxu0 0
    %6128 = vmatpush1.bf16.msra.mxu0 %v6090
    %6129 = vmatprep.subr.bf16.mxu0 0
    %6130 = vmatpush1.bf16.msra.mxu0 %v6089
    %6131 = vmatprep.subr.bf16.mxu0 0
    %6132 = vmatpush1.bf16.msra.mxu0 %v6088
    %6133 = vmatprep.subr.bf16.mxu0 0
    %6134 = vmatpush1.bf16.msra.mxu0 %v6087
    %6135 = vmatprep.subr.bf16.mxu0 0
    %6136 = vmatpush2.bf16.msra.mxu0 %v6102
    %6137 = vmatprep.subr.bf16.mxu0 0
    %6138 = vmatpush2.bf16.msra.mxu0 %v6101
    %6139 = vmatprep.subr.bf16.mxu0 0
    %6140 = vmatpush2.bf16.msra.mxu0 %v6100
    %6141 = vmatprep.subr.bf16.mxu0 0
    %6142 = vmatpush2.bf16.msra.mxu0 %v6099
    %6143 = vmatprep.subr.bf16.mxu0 0
    %6144 = vmatpush2.bf16.msra.mxu0 %v6098
    %6145 = vmatprep.subr.bf16.mxu0 0
    %6146 = vmatpush2.bf16.msra.mxu0 %v6097
    %6147 = vmatprep.subr.bf16.mxu0 0
    %6148 = vmatpush2.bf16.msra.mxu0 %v6096
    %6149 = vmatprep.subr.bf16.mxu0 0
    %6150 = vmatpush2.bf16.msra.mxu0 %v6095
    %6151 = vmatprep.mubr.bf16.mxu0 %v5983
    %6152 = vmatmul.mubr.bf16.gmra.mxu0 %v5982
    %v6153 = vpop.f32.mrf.mxu0
    %v6154 = vadd.f32 %v6021, %v6153
    %v6155 = vpop.f32.mrf.mxu0
    %v6156 = vpop.f32.mrf.mxu0
    %v6157 = vpop.f32.mrf.mxu0
    %6158 = vdwg.mxu0
    %v6159 = vmax.f32 %v6154, 0.0
    %v6160 = vpack.c.bf16 %v6159, %v6159
    %v6161 = vld [vmem:[%s9] sm:$0xf]
    %v6162 = vld [vmem:[%s9 + $0x4] sm:$0xf]
    %v6163 = vld [vmem:[%s9 + $0x8] sm:$0xf]
    %v6164 = vld [vmem:[%s9 + $0xc] sm:$0xf]
    %v6165 = vld [vmem:[%s9 + $0x10] sm:$0xf]
    %v6166 = vld [vmem:[%s9 + $0x14] sm:$0xf]
    %v6167 = vld [vmem:[%s9 + $0x18] sm:$0xf]
    %v6168 = vld [vmem:[%s9 + $0x1c] sm:$0xf]
    %v6169 = vld [vmem:[%s9 + $0x20] sm:$0xf]
    %v6170 = vld [vmem:[%s9 + $0x24] sm:$0xf]
    %v6171 = vld [vmem:[%s9 + $0x28] sm:$0xf]
    %v6172 = vld [vmem:[%s9 + $0x2c] sm:$0xf]
    %v6173 = vld [vmem:[%s9 + $0x30] sm:$0xf]
    %v6174 = vld [vmem:[%s9 + $0x34] sm:$0xf]
    %v6175 = vld [vmem:[%s9 + $0x38] sm:$0xf]
    %v6176 = vld [vmem:[%s9 + $0x3c] sm:$0xf]
    %v6177 = vld [vmem:[%s10] sm:$0x1]
    %v6179 = vlaneseq
    %v6180 = vshrl.u32 %v6179, 7
    %v6181 = vsub.s32 0, %v6180
    %v6182 = vrot.slane %v6177, %v6181
    %v6200 = vunpack.c.l.b16 %v6161
    %v6201 = vunpack.c.l.b16 %v6162
    %v6202 = vunpack.c.l.b16 %v6163
    %v6203 = vunpack.c.l.b16 %v6164
    %v6204 = vunpack.c.l.b16 %v6165
    %v6205 = vunpack.c.l.b16 %v6166
    %v6206 = vunpack.c.l.b16 %v6167
    %v6207 = vunpack.c.l.b16 %v6168
    %v6208 = vunpack.c.l.b16 %v6169
    %v6209 = vunpack.c.l.b16 %v6170
    %v6210 = vunpack.c.l.b16 %v6171
    %v6211 = vunpack.c.l.b16 %v6172
    %v6212 = vunpack.c.l.b16 %v6173
    %v6213 = vunpack.c.l.b16 %v6174
    %v6214 = vunpack.c.l.b16 %v6175
    %v6215 = vunpack.c.l.b16 %v6176
    %v6216 = vpack.c.b16 %v6201, %v6200
    %v6217 = vpack.c.b16 %v6203, %v6202
    %v6218 = vpack.c.b16 %v6205, %v6204
    %v6219 = vpack.c.b16 %v6207, %v6206
    %v6220 = vpack.c.b16 %v6209, %v6208
    %v6221 = vpack.c.b16 %v6211, %v6210
    %v6222 = vpack.c.b16 %v6213, %v6212
    %v6223 = vpack.c.b16 %v6215, %v6214
    %6232 = vmatprep.subr.bf16.mxu0 0
    %6233 = vmatpush1.bf16.msra.mxu0 %v6223
    %6234 = vmatprep.subr.bf16.mxu0 0
    %6235 = vmatpush1.bf16.msra.mxu0 %v6222
    %6236 = vmatprep.subr.bf16.mxu0 0
    %6237 = vmatpush1.bf16.msra.mxu0 %v6221
    %6238 = vmatprep.subr.bf16.mxu0 0
    %6239 = vmatpush1.bf16.msra.mxu0 %v6220
    %6240 = vmatprep.subr.bf16.mxu0 0
    %6241 = vmatpush1.bf16.msra.mxu0 %v6219
    %6242 = vmatprep.subr.bf16.mxu0 0
    %6243 = vmatpush1.bf16.msra.mxu0 %v6218
    %6244 = vmatprep.subr.bf16.mxu0 0
    %6245 = vmatpush1.bf16.msra.mxu0 %v6217
    %6246 = vmatprep.subr.bf16.mxu0 0
    %6247 = vmatpush1.bf16.msra.mxu0 %v6216
    %6248 = vmatprep.subr.bf16.mxu0 0
    %6249 = vmatpush2.bf16.msra.mxu0 0
    %6250 = vmatprep.subr.bf16.mxu0 0
    %6251 = vmatpush2.bf16.msra.mxu0 0
    %6252 = vmatprep.subr.bf16.mxu0 0
    %6253 = vmatpush2.bf16.msra.mxu0 0
    %6254 = vmatprep.subr.bf16.mxu0 0
    %6255 = vmatpush2.bf16.msra.mxu0 0
    %6256 = vmatprep.subr.bf16.mxu0 0
    %6257 = vmatpush2.bf16.msra.mxu0 0
    %6258 = vmatprep.subr.bf16.mxu0 0
    %6259 = vmatpush2.bf16.msra.mxu0 0
    %6260 = vmatprep.subr.bf16.mxu0 0
    %6261 = vmatpush2.bf16.msra.mxu0 0
    %6262 = vmatprep.subr.bf16.mxu0 0
    %6263 = vmatpush2.bf16.msra.mxu0 0
    %6264 = vmatprep.mubr.bf16.mxu0 0
    %6265 = vmatmul.mubr.bf16.gmra.mxu0 %v6160
    %v6266 = vpop.f32.mrf.mxu0
    %v6267 = vadd.f32 %v6182, %v6266
    %v6268 = vpop.f32.mrf.mxu0
    %v6269 = vpop.f32.mrf.mxu0
    %v6270 = vpop.f32.mrf.mxu0
    %6271 = vdwg.mxu0
    %v6272 = vmax.f32 %v6267, 0.0
    %v6273 = vpack.c.bf16 %v6272, %v6272
    %v6274 = vld [vmem:[#allocation10] sm:$0xf]
    %v6275 = vld [vmem:[#allocation10 + $0x4] sm:$0xf]
    %v6276 = vld [vmem:[#allocation10 + $0x8] sm:$0xf]
    %v6277 = vld [vmem:[#allocation10 + $0xc] sm:$0xf]
    %v6278 = vld [vmem:[#allocation10 + $0x10] sm:$0xf]
    %v6279 = vld [vmem:[#allocation10 + $0x14] sm:$0xf]
    %v6280 = vld [vmem:[#allocation10 + $0x18] sm:$0xf]
    %v6281 = vld [vmem:[#allocation10 + $0x1c] sm:$0xf]
    %v6282 = vld [vmem:[#allocation10 + $0x20] sm:$0xf]
    %v6283 = vld [vmem:[#allocation10 + $0x24] sm:$0xf]
    %v6284 = vld [vmem:[#allocation10 + $0x28] sm:$0xf]
    %v6285 = vld [vmem:[#allocation10 + $0x2c] sm:$0xf]
    %v6286 = vld [vmem:[#allocation10 + $0x30] sm:$0xf]
    %v6287 = vld [vmem:[#allocation10 + $0x34] sm:$0xf]
    %v6288 = vld [vmem:[#allocation10 + $0x38] sm:$0xf]
    %v6289 = vld [vmem:[#allocation10 + $0x3c] sm:$0xf]
    %v6290 = vld [vmem:[%s12] sm:$0x1]
    %v6292 = vlaneseq
    %v6293 = vshrl.u32 %v6292, 7
    %v6294 = vsub.s32 0, %v6293
    %v6295 = vrot.slane %v6290, %v6294
    %v6313 = vunpack.c.l.b16 %v6274
    %v6314 = vunpack.c.l.b16 %v6275
    %v6315 = vunpack.c.l.b16 %v6276
    %v6316 = vunpack.c.l.b16 %v6277
    %v6317 = vunpack.c.l.b16 %v6278
    %v6318 = vunpack.c.l.b16 %v6279
    %v6319 = vunpack.c.l.b16 %v6280
    %v6320 = vunpack.c.l.b16 %v6281
    %v6321 = vunpack.c.l.b16 %v6282
    %v6322 = vunpack.c.l.b16 %v6283
    %v6323 = vunpack.c.l.b16 %v6284
    %v6324 = vunpack.c.l.b16 %v6285
    %v6325 = vunpack.c.l.b16 %v6286
    %v6326 = vunpack.c.l.b16 %v6287
    %v6327 = vunpack.c.l.b16 %v6288
    %v6328 = vunpack.c.l.b16 %v6289
    %v6329 = vpack.c.b16 %v6314, %v6313
    %v6330 = vpack.c.b16 %v6316, %v6315
    %v6331 = vpack.c.b16 %v6318, %v6317
    %v6332 = vpack.c.b16 %v6320, %v6319
    %v6333 = vpack.c.b16 %v6322, %v6321
    %v6334 = vpack.c.b16 %v6324, %v6323
    %v6335 = vpack.c.b16 %v6326, %v6325
    %v6336 = vpack.c.b16 %v6328, %v6327
    %6345 = vmatprep.subr.bf16.mxu0 0
    %6346 = vmatpush1.bf16.msra.mxu0 %v6336
    %6347 = vmatprep.subr.bf16.mxu0 0
    %6348 = vmatpush1.bf16.msra.mxu0 %v6335
    %6349 = vmatprep.subr.bf16.mxu0 0
    %6350 = vmatpush1.bf16.msra.mxu0 %v6334
    %6351 = vmatprep.subr.bf16.mxu0 0
    %6352 = vmatpush1.bf16.msra.mxu0 %v6333
    %6353 = vmatprep.subr.bf16.mxu0 0
    %6354 = vmatpush1.bf16.msra.mxu0 %v6332
    %6355 = vmatprep.subr.bf16.mxu0 0
    %6356 = vmatpush1.bf16.msra.mxu0 %v6331
    %6357 = vmatprep.subr.bf16.mxu0 0
    %6358 = vmatpush1.bf16.msra.mxu0 %v6330
    %6359 = vmatprep.subr.bf16.mxu0 0
    %6360 = vmatpush1.bf16.msra.mxu0 %v6329
    %6361 = vmatprep.subr.bf16.mxu0 0
    %6362 = vmatpush2.bf16.msra.mxu0 0
    %6363 = vmatprep.subr.bf16.mxu0 0
    %6364 = vmatpush2.bf16.msra.mxu0 0
    %6365 = vmatprep.subr.bf16.mxu0 0
    %6366 = vmatpush2.bf16.msra.mxu0 0
    %6367 = vmatprep.subr.bf16.mxu0 0
    %6368 = vmatpush2.bf16.msra.mxu0 0
    %6369 = vmatprep.subr.bf16.mxu0 0
    %6370 = vmatpush2.bf16.msra.mxu0 0
    %6371 = vmatprep.subr.bf16.mxu0 0
    %6372 = vmatpush2.bf16.msra.mxu0 0
    %6373 = vmatprep.subr.bf16.mxu0 0
    %6374 = vmatpush2.bf16.msra.mxu0 0
    %6375 = vmatprep.subr.bf16.mxu0 0
    %6376 = vmatpush2.bf16.msra.mxu0 0
    %6377 = vmatprep.mubr.bf16.mxu0 0
    %6378 = vmatmul.mubr.bf16.gmra.mxu0 %v6273
    %v6379 = vpop.f32.mrf.mxu0
    %v6380 = vadd.f32 %v6295, %v6379
    %v6381 = vpop.f32.mrf.mxu0
    %v6382 = vpop.f32.mrf.mxu0
    %v6383 = vpop.f32.mrf.mxu0
    %6384 = vdwg.mxu0
    %6385 = vst [vmem:[%s13] sm:$0xff] %v6380
    // Predicated region
    $region70: #{bilstm_stress_forward.1} parent=1 // pred_check
      _
    $region71: #{bilstm_stress_forward.1} parent=1 // pred_check_branch
      %6387 = sbr.rel (0) target = $region73
    $region72: #{bilstm_stress_forward.1} parent=1 // pred_region
      _
    $region73: #{bilstm_stress_forward.1} parent=1 // pred_fallthru
      _
    // Predicated region
    $region74: #{bilstm_stress_forward.1} parent=1 // pred_check
      _
    $region75: #{bilstm_stress_forward.1} parent=1 // pred_check_branch
      %6389 = sbr.rel (0) target = $region77
    $region76: #{bilstm_stress_forward.1} parent=1 // pred_region
      _
    $region77: #{bilstm_stress_forward.1} parent=1 // pred_fallthru
      _
    %6390 = vsyncpa [#allocation6], 1
    %6391 = vsyncpa [#allocation8], 1
    %6392 = vsyncpa [#allocation11], 1

</llo_original>
